<compile_context>
chip_gen: v7x
topology: tpu7x:2x2x1
jax: 0.10.0
libtpu: 0.0.40
codegen_flags: <defaults>
</compile_context>

<pallas_src>
import functools

import jax
import jax.numpy as jnp
from jax.experimental import pallas as pl
from jax.experimental.pallas import tpu as pltpu


_LANE = 128
_SUBLANE = 8
_VMEM_LIMIT = 32 * 1024 * 1024   # scoped VMEM budget (safe on v5e/v6e/v7x)


def _round_up(x, m):
    return (x + m - 1) // m * m


def _apply_act(out, act, slope):
    if act == "relu":
        return jnp.maximum(out, 0.0)
    if act == "leaky":
        return jnp.where(out >= 0.0, out, out * slope)
    return out


# ----------------------------- Pallas kernels ------------------------------

def _mm_kernel(x_ref, w_ref, b_ref, o_ref, acc_ref, *, act, slope):
    # x: (tm, tk) bf16, w: (tk, tn) bf16, b: (1, tn) f32, acc: (tm, tn) f32
    k = pl.program_id(2)

    @pl.when(k == 0)
    def _():
        acc_ref[...] = jnp.zeros_like(acc_ref)

    acc_ref[...] += jnp.dot(x_ref[...], w_ref[...],
                            preferred_element_type=jnp.float32)

    @pl.when(k == pl.num_programs(2) - 1)
    def _():
        o_ref[...] = _apply_act(acc_ref[...] + b_ref[...], act, slope)


def _mm_res_kernel(x_ref, w_ref, b_ref, res_ref, o_ref, acc_ref, *, act, slope):
    # act(x @ w + b) + residual   (conv_2 + identity in UNetConvBlock)
    k = pl.program_id(2)

    @pl.when(k == 0)
    def _():
        acc_ref[...] = jnp.zeros_like(acc_ref)

    acc_ref[...] += jnp.dot(x_ref[...], w_ref[...],
                            preferred_element_type=jnp.float32)

    @pl.when(k == pl.num_programs(2) - 1)
    def _():
        out = _apply_act(acc_ref[...] + b_ref[...], act, slope)
        o_ref[...] = out + res_ref[...]


def _dw_kernel(x_ref, w_ref, b_ref, o_ref, *, H, W, act, slope):
    # Depthwise 3x3 conv, one batch element per grid step.
    # x: (1, H+2, W+2, C) zero-padded; taps formed by in-kernel shifted slices
    # (VPU MACs, shifts on otherwise-idle slots) -- no HBM patch stack.
    x = x_ref[0]                                   # (H+2, W+2, C)
    acc = jnp.zeros((H, W, x.shape[-1]), jnp.float32)
    for dh in range(3):
        for dw in range(3):
            tap = x[dh:dh + H, dw:dw + W, :]       # static slices
            acc = acc + tap * w_ref[3 * dh + dw]   # (H,W,C) * (1,C)
    o_ref[0] = _apply_act(acc + b_ref[...], act, slope)


def _hin_kernel(x_ref, g_ref, b_ref, o_ref, *, c_half, slope, eps):
    # Half-instance-norm + LeakyReLU, one batch element per grid step.
    # Stats (mean/var/rsqrt) only over the first c_half channels; the rest
    # pass straight through to the LeakyReLU (no wasted reduce / no iota mask).
    x = x_ref[0]                                   # (HW, C)
    x1 = x[:, :c_half]
    x2 = x[:, c_half:]
    mean = jnp.mean(x1, axis=0, keepdims=True)     # (1, c_half)
    var = jnp.mean((x1 - mean) ** 2, axis=0, keepdims=True)   # biased var
    n1 = (x1 - mean) * jax.lax.rsqrt(var + eps)
    n1 = n1 * g_ref[...] + b_ref[...]
    y1 = jnp.where(n1 >= 0.0, n1, n1 * slope)
    y2 = jnp.where(x2 >= 0.0, x2, x2 * slope)
    o_ref[0] = jnp.concatenate([y1, y2], axis=-1)


# --------------------------- pallas_call wrappers ---------------------------

def matmul_bias(x, w, b, act=None, slope=0.2, residual=None, out_padded=False):
    """act(x @ w + b) [+ residual] with a tiled, pipelined Pallas matmul.

    x: (M, K) f32, w: (K, N) f32, b: (N,) f32.
    residual (optional): (M, N) f32 or an already lane-padded (M_pad, N_pad).
    Returns (M, N) f32, or the lane-padded (M_pad, N_pad) if out_padded=True.
    """
    M, K = x.shape
    N = w.shape[1]

    # --- tile selection --------------------------------------------------
    # M: 8-aligned row tiles, at least 2 tiles when possible (v7x megacore).
    M_r8 = _round_up(M, _SUBLANE)
    n_m = max(1, pl.cdiv(M_r8, 256))
    if n_m == 1 and M_r8 >= 2 * _SUBLANE:
        n_m = 2
    tm = _round_up(pl.cdiv(M_r8, n_m), _SUBLANE)
    M_pad = _round_up(M_r8, tm)
    # N: zero-pad to the 128-lane boundary -> unmasked, lane-dense stores.
    N_pad = _round_up(N, _LANE)
    tn = 256 if N_pad % 256 == 0 else _LANE
    # K: reduction axis, kept whole unless large (then tiled + accumulated).
    K_r = _round_up(K, _SUBLANE)
    tk = min(512, K_r)
    K_pad = _round_up(K_r, tk)

    # bf16 operands for the MXU (f32 accumulation); zero padding is exact.
    xp = jnp.pad(x.astype(jnp.bfloat16), ((0, M_pad - M), (0, K_pad - K)))
    wp = jnp.pad(w.astype(jnp.bfloat16), ((0, K_pad - K), (0, N_pad - N)))
    bp = jnp.pad(b.astype(jnp.float32).reshape(1, N), ((0, 0), (0, N_pad - N)))

    grid = (M_pad // tm, N_pad // tn, K_pad // tk)

    x_spec = pl.BlockSpec((tm, tk), lambda i, j, k: (i, k))
    w_spec = pl.BlockSpec((tk, tn), lambda i, j, k: (k, j))
    b_spec = pl.BlockSpec((1, tn), lambda i, j, k: (0, j))
    o_spec = pl.BlockSpec((tm, tn), lambda i, j, k: (i, j))

    cparams = pltpu.CompilerParams(
        dimension_semantics=("parallel", "parallel", "arbitrary"),
        vmem_limit_bytes=_VMEM_LIMIT)
    cost = pl.CostEstimate(
        flops=2 * M_pad * N_pad * K_pad,
        transcendentals=0,
        bytes_accessed=(M_pad * K_pad + K_pad * N_pad) * 2 + M_pad * N_pad * 4)

    if residual is None:
        kern = functools.partial(_mm_kernel, act=act, slope=slope)
        out = pl.pallas_call(
            kern,
            out_shape=jax.ShapeDtypeStruct((M_pad, N_pad), jnp.float32),
            grid_spec=pltpu.PrefetchScalarGridSpec(
                num_scalar_prefetch=0, grid=grid,
                in_specs=[x_spec, w_spec, b_spec],
                out_specs=o_spec,
                scratch_shapes=[pltpu.VMEM((tm, tn), jnp.float32)]),
            compiler_params=cparams,
            cost_estimate=cost,
        )(xp, wp, bp)
    else:
        if residual.shape == (M_pad, N_pad):
            rp = residual
        else:
            rM, rN = residual.shape
            rp = jnp.pad(residual.astype(jnp.float32),
                         ((0, M_pad - rM), (0, N_pad - rN)))
        kern = functools.partial(_mm_res_kernel, act=act, slope=slope)
        out = pl.pallas_call(
            kern,
            out_shape=jax.ShapeDtypeStruct((M_pad, N_pad), jnp.float32),
            grid_spec=pltpu.PrefetchScalarGridSpec(
                num_scalar_prefetch=0, grid=grid,
                in_specs=[x_spec, w_spec, b_spec, o_spec],
                out_specs=o_spec,
                scratch_shapes=[pltpu.VMEM((tm, tn), jnp.float32)]),
            compiler_params=cparams,
            cost_estimate=cost,
        )(xp, wp, bp, rp)

    if out_padded:
        return out
    return out[:M, :N]


def dw_conv3x3(x_bhwc, w33c, bias, act=None, slope=0.2):
    """Depthwise 3x3 'same' conv (+bias, +activation), channels-last."""
    B, H, W, C = x_bhwc.shape
    xp = jnp.pad(x_bhwc.astype(jnp.float32), ((0, 0), (1, 1), (1, 1), (0, 0)))
    w9 = w33c.reshape(9, 1, C).astype(jnp.float32)
    b2 = bias.reshape(1, C).astype(jnp.float32)
    kern = functools.partial(_dw_kernel, H=H, W=W, act=act, slope=slope)
    return pl.pallas_call(
        kern,
        out_shape=jax.ShapeDtypeStruct((B, H, W, C), jnp.float32),
        grid_spec=pltpu.PrefetchScalarGridSpec(
            num_scalar_prefetch=0, grid=(B,),
            in_specs=[
                pl.BlockSpec((1, H + 2, W + 2, C), lambda b: (b, 0, 0, 0)),
                pl.BlockSpec((9, 1, C), lambda b: (0, 0, 0)),
                pl.BlockSpec((1, C), lambda b: (0, 0)),
            ],
            out_specs=pl.BlockSpec((1, H, W, C), lambda b: (b, 0, 0, 0))),
        compiler_params=pltpu.CompilerParams(
            dimension_semantics=("parallel",),
            vmem_limit_bytes=_VMEM_LIMIT),
    )(xp, w9, b2)


def hin_lrelu(x_bhwc, gamma, beta, slope=0.2, eps=1e-5):
    """Half-instance-norm (affine, first C/2 channels) + LeakyReLU."""
    B, H, W, C = x_bhwc.shape
    ch = C // 2
    x3 = x_bhwc.reshape(B, H * W, C)
    g = gamma.reshape(1, ch).astype(jnp.float32)
    bt = beta.reshape(1, ch).astype(jnp.float32)
    # TODO(synk): for very large H*W, switch to a two-pass sum/sumsq reduction
    #             over spatial tiles to bound VMEM while preserving numerics.
    kern = functools.partial(_hin_kernel, c_half=ch, slope=slope, eps=eps)
    out = pl.pallas_call(
        kern,
        out_shape=jax.ShapeDtypeStruct((B, H * W, C), jnp.float32),
        grid_spec=pltpu.PrefetchScalarGridSpec(
            num_scalar_prefetch=0, grid=(B,),
            in_specs=[
                pl.BlockSpec((1, H * W, C), lambda b: (b, 0, 0)),
                pl.BlockSpec((1, ch), lambda b: (0, 0)),
                pl.BlockSpec((1, ch), lambda b: (0, 0)),
            ],
            out_specs=pl.BlockSpec((1, H * W, C), lambda b: (b, 0, 0))),
        compiler_params=pltpu.CompilerParams(
            dimension_semantics=("parallel",),
            vmem_limit_bytes=_VMEM_LIMIT),
    )(x3, g, bt)
    return out.reshape(B, H, W, C)


# ------------------------------- JAX glue -----------------------------------

def im2col3x3(x_nhwc):
    """3x3 'same' patches -> (B*H*W, 9*C), ordered (dh, dw, ci)."""
    # TODO(synk): this still materializes a 9x activation copy through HBM;
    #             the manual-DMA halo-tile variant (pl.ANY + make_async_copy)
    #             would form the taps in-kernel and remove it.
    B, H, W, C = x_nhwc.shape
    xp = jnp.pad(x_nhwc, ((0, 0), (1, 1), (1, 1), (0, 0)))
    cols = [xp[:, dh:dh + H, dw:dw + W, :] for dh in range(3) for dw in range(3)]
    return jnp.concatenate(cols, axis=-1).reshape(B * H * W, 9 * C)


def unet_conv_block(x_bhwc, p, slope=0.2):
    """UNetConvBlock(in=2C, out=C, use_HIN=True), channels-last."""
    B, H, W, Cin = x_bhwc.shape
    Cout = p["conv1_w"].shape[-1]
    # conv_1 (3x3, Cin->Cout)
    out = matmul_bias(im2col3x3(x_bhwc),
                      p["conv1_w"].reshape(9 * Cin, Cout), p["conv1_b"])
    out = out.reshape(B, H, W, Cout)
    # HIN (instance-norm first half channels) + LeakyReLU(slope)
    out = hin_lrelu(out, p["norm_g"], p["norm_b"], slope)
    # identity 1x1 conv on the original input; keep its output lane-padded so
    # it feeds the conv_2 kernel's fused residual add without a repad.
    ident = matmul_bias(x_bhwc.reshape(B * H * W, Cin), p["id_w"], p["id_b"],
                        out_padded=True)
    # conv_2 (3x3, Cout->Cout) + LeakyReLU + residual add (fused in kernel)
    out = matmul_bias(im2col3x3(out),
                      p["conv2_w"].reshape(9 * Cout, Cout), p["conv2_b"],
                      act="leaky", slope=slope, residual=ident)
    return out.reshape(B, H, W, Cout)


def res_fft_spatial(x_nchw, p):
    """ResBlock_do_fft_bench: depthwise-3x3 convs in the rFFT domain."""
    B, C, H, W = x_nchw.shape
    y = jnp.fft.rfft2(x_nchw, norm="backward")                 # (B, C, H, Wr)
    y_f = jnp.concatenate([y.real, y.imag], axis=1)            # (B, 2C, H, Wr)
    yf = jnp.transpose(y_f, (0, 2, 3, 1))                      # (B, H, Wr, 2C)
    h = dw_conv3x3(yf, p["fft1_w"], p["fft1_b"], act="relu")
    h = dw_conv3x3(h, p["fft2_w"], p["fft2_b"])
    h = jnp.transpose(h, (0, 3, 1, 2))                         # (B, 2C, H, Wr)
    yr, yi = jnp.split(h, 2, axis=1)
    y_sp = jnp.fft.irfft2(yr + 1j * yi, s=(H, W), norm="backward")
    cat = jnp.concatenate([x_nchw, y_sp], axis=1)              # (B, 2C, H, W)
    out = unet_conv_block(jnp.transpose(cat, (0, 2, 3, 1)), p["merge"])
    return jnp.transpose(out, (0, 3, 1, 2))


def res_fft_spectral(x_nchw, p):
    """ResBlock_do_fft_bench2: 1x1 convs in the rFFT domain."""
    B, C, H, W = x_nchw.shape
    y = jnp.fft.rfft2(x_nchw, norm="backward")
    y_f = jnp.concatenate([y.real, y.imag], axis=1)            # (B, 2C, H, Wr)
    Wr = y_f.shape[-1]
    yf = jnp.transpose(y_f, (0, 2, 3, 1)).reshape(B * H * Wr, 2 * C)
    h = matmul_bias(yf, p["fft1_w"], p["fft1_b"], act="relu")
    h = matmul_bias(h, p["fft2_w"], p["fft2_b"])
    h = jnp.transpose(h.reshape(B, H, Wr, 2 * C), (0, 3, 1, 2))
    yr, yi = jnp.split(h, 2, axis=1)
    y_sp = jnp.fft.irfft2(yr + 1j * yi, s=(H, W), norm="backward")
    cat = jnp.concatenate([x_nchw, y_sp], axis=1)
    out = unet_conv_block(jnp.transpose(cat, (0, 2, 3, 1)), p["merge"])
    return jnp.transpose(out, (0, 3, 1, 2))


def fgmm_forward(x_nchw, params):
    x = res_fft_spatial(x_nchw, params["spatial"])
    return res_fft_spectral(x, params["spectral"])


# --------------------------- parameter creation ------------------------------

def init_params(key, dim):
    C, C2 = dim, 2 * dim
    keys = iter(jax.random.split(key, 32))

    def w(shape, scale=0.1):
        return jax.random.normal(next(keys), shape, jnp.float32) * scale

    def merge_params():
        return dict(
            conv1_w=w((3, 3, C2, C)), conv1_b=w((C,), 0.01),
            conv2_w=w((3, 3, C, C)), conv2_b=w((C,), 0.01),
            id_w=w((C2, C)), id_b=w((C,), 0.01),
            norm_g=jnp.ones((C // 2,), jnp.float32),
            norm_b=jnp.zeros((C // 2,), jnp.float32),
        )

    spatial = dict(
        fft1_w=w((3, 3, C2)), fft1_b=w((C2,), 0.01),
        fft2_w=w((3, 3, C2)), fft2_b=w((C2,), 0.01),
        merge=merge_params(),
    )
    spectral = dict(
        fft1_w=w((C2, C2)), fft1_b=w((C2,), 0.01),
        fft2_w=w((C2, C2)), fft2_b=w((C2,), 0.01),
        merge=merge_params(),
    )
    return dict(spatial=spatial, spectral=spectral)


# ---------------------------------- main -------------------------------------

if __name__ == "__main__":
    dim = 4
    key = jax.random.PRNGKey(0)
    pkey, xkey = jax.random.split(key)
    params = init_params(pkey, dim)
    x = jax.random.normal(xkey, (2, dim, 16, 16), jnp.float32)   # NCHW

    out = jax.jit(fgmm_forward)(x, params)
    out = jax.block_until_ready(out)
    assert out.shape == (2, dim, 16, 16) and out.dtype == jnp.float32
    print("KERNEL_OK")
</pallas_src>

<mosaic_0001>
module attributes {stable_mosaic.version = 11 : i64} {
  func.func @_dw_kernel(%arg0: i32, %arg1: memref<1x18x11x8xf32, #tpu.memory_space<vmem>>, %arg2: memref<9x1x8xf32, #tpu.memory_space<vmem>>, %arg3: memref<1x8xf32, #tpu.memory_space<vmem>>, %arg4: memref<1x16x9x8xf32, #tpu.memory_space<vmem>>) attributes {dimension_semantics = [#tpu.dimension_semantics<parallel>], iteration_bounds = array<i64: 2>, scalar_prefetch = 0 : i64, scratch_operands = 0 : i64, tpu.core_type = #tpu.core_type<tc>, window_params = [{transform_indices = @transform_0, window_bounds = array<i64: 1, 18, 11, 8>}, {pipeline_mode = #tpu.pipeline_mode<synchronous>, transform_indices = @transform_1, window_bounds = array<i64: 9, 1, 8>}, {pipeline_mode = #tpu.pipeline_mode<synchronous>, transform_indices = @transform_2, window_bounds = array<i64: 1, 8>}, {transform_indices = @transform_3, window_bounds = array<i64: 1, 16, 9, 8>}]} {
    %c0 = arith.constant 0 : index
    %c0_0 = arith.constant 0 : index
    %c0_1 = arith.constant 0 : index
    %c0_2 = arith.constant 0 : index
    %0 = vector.load %arg1[%c0, %c0_0, %c0_1, %c0_2] : memref<1x18x11x8xf32, #tpu.memory_space<vmem>>, vector<1x18x11x8xf32>
    %1 = vector.shape_cast %0 : vector<1x18x11x8xf32> to vector<18x11x8xf32>
    %cst = arith.constant 0.000000e+00 : f32
    %2 = vector.broadcast %cst : f32 to vector<16x9x8xf32>
    %3 = vector.extract_strided_slice %1 {offsets = [0, 0, 0], sizes = [16, 9, 8], strides = [1, 1, 1]} : vector<18x11x8xf32> to vector<16x9x8xf32>
    %c0_3 = arith.constant 0 : index
    %c0_4 = arith.constant 0 : index
    %c0_5 = arith.constant 0 : index
    %4 = vector.load %arg2[%c0_3, %c0_4, %c0_5] : memref<9x1x8xf32, #tpu.memory_space<vmem>>, vector<1x1x8xf32>
    %5 = vector.shape_cast %4 : vector<1x1x8xf32> to vector<1x8xf32>
    %6 = vector.shape_cast %5 : vector<1x8xf32> to vector<1x1x8xf32>
    %7 = vector.broadcast %6 : vector<1x1x8xf32> to vector<16x9x8xf32>
    %8 = arith.mulf %3, %7 : vector<16x9x8xf32>
    %9 = arith.addf %2, %8 : vector<16x9x8xf32>
    %10 = vector.extract_strided_slice %1 {offsets = [0, 1, 0], sizes = [16, 9, 8], strides = [1, 1, 1]} : vector<18x11x8xf32> to vector<16x9x8xf32>
    %c1 = arith.constant 1 : index
    %c0_6 = arith.constant 0 : index
    %c0_7 = arith.constant 0 : index
    %11 = vector.load %arg2[%c1, %c0_6, %c0_7] : memref<9x1x8xf32, #tpu.memory_space<vmem>>, vector<1x1x8xf32>
    %12 = vector.shape_cast %11 : vector<1x1x8xf32> to vector<1x8xf32>
    %13 = vector.shape_cast %12 : vector<1x8xf32> to vector<1x1x8xf32>
    %14 = vector.broadcast %13 : vector<1x1x8xf32> to vector<16x9x8xf32>
    %15 = arith.mulf %10, %14 : vector<16x9x8xf32>
    %16 = arith.addf %9, %15 : vector<16x9x8xf32>
    %17 = vector.extract_strided_slice %1 {offsets = [0, 2, 0], sizes = [16, 9, 8], strides = [1, 1, 1]} : vector<18x11x8xf32> to vector<16x9x8xf32>
    %c2 = arith.constant 2 : index
    %c0_8 = arith.constant 0 : index
    %c0_9 = arith.constant 0 : index
    %18 = vector.load %arg2[%c2, %c0_8, %c0_9] : memref<9x1x8xf32, #tpu.memory_space<vmem>>, vector<1x1x8xf32>
    %19 = vector.shape_cast %18 : vector<1x1x8xf32> to vector<1x8xf32>
    %20 = vector.shape_cast %19 : vector<1x8xf32> to vector<1x1x8xf32>
    %21 = vector.broadcast %20 : vector<1x1x8xf32> to vector<16x9x8xf32>
    %22 = arith.mulf %17, %21 : vector<16x9x8xf32>
    %23 = arith.addf %16, %22 : vector<16x9x8xf32>
    %24 = vector.extract_strided_slice %1 {offsets = [1, 0, 0], sizes = [16, 9, 8], strides = [1, 1, 1]} : vector<18x11x8xf32> to vector<16x9x8xf32>
    %c3 = arith.constant 3 : index
    %c0_10 = arith.constant 0 : index
    %c0_11 = arith.constant 0 : index
    %25 = vector.load %arg2[%c3, %c0_10, %c0_11] : memref<9x1x8xf32, #tpu.memory_space<vmem>>, vector<1x1x8xf32>
    %26 = vector.shape_cast %25 : vector<1x1x8xf32> to vector<1x8xf32>
    %27 = vector.shape_cast %26 : vector<1x8xf32> to vector<1x1x8xf32>
    %28 = vector.broadcast %27 : vector<1x1x8xf32> to vector<16x9x8xf32>
    %29 = arith.mulf %24, %28 : vector<16x9x8xf32>
    %30 = arith.addf %23, %29 : vector<16x9x8xf32>
    %31 = vector.extract_strided_slice %1 {offsets = [1, 1, 0], sizes = [16, 9, 8], strides = [1, 1, 1]} : vector<18x11x8xf32> to vector<16x9x8xf32>
    %c4 = arith.constant 4 : index
    %c0_12 = arith.constant 0 : index
    %c0_13 = arith.constant 0 : index
    %32 = vector.load %arg2[%c4, %c0_12, %c0_13] : memref<9x1x8xf32, #tpu.memory_space<vmem>>, vector<1x1x8xf32>
    %33 = vector.shape_cast %32 : vector<1x1x8xf32> to vector<1x8xf32>
    %34 = vector.shape_cast %33 : vector<1x8xf32> to vector<1x1x8xf32>
    %35 = vector.broadcast %34 : vector<1x1x8xf32> to vector<16x9x8xf32>
    %36 = arith.mulf %31, %35 : vector<16x9x8xf32>
    %37 = arith.addf %30, %36 : vector<16x9x8xf32>
    %38 = vector.extract_strided_slice %1 {offsets = [1, 2, 0], sizes = [16, 9, 8], strides = [1, 1, 1]} : vector<18x11x8xf32> to vector<16x9x8xf32>
    %c5 = arith.constant 5 : index
    %c0_14 = arith.constant 0 : index
    %c0_15 = arith.constant 0 : index
    %39 = vector.load %arg2[%c5, %c0_14, %c0_15] : memref<9x1x8xf32, #tpu.memory_space<vmem>>, vector<1x1x8xf32>
    %40 = vector.shape_cast %39 : vector<1x1x8xf32> to vector<1x8xf32>
    %41 = vector.shape_cast %40 : vector<1x8xf32> to vector<1x1x8xf32>
    %42 = vector.broadcast %41 : vector<1x1x8xf32> to vector<16x9x8xf32>
    %43 = arith.mulf %38, %42 : vector<16x9x8xf32>
    %44 = arith.addf %37, %43 : vector<16x9x8xf32>
    %45 = vector.extract_strided_slice %1 {offsets = [2, 0, 0], sizes = [16, 9, 8], strides = [1, 1, 1]} : vector<18x11x8xf32> to vector<16x9x8xf32>
    %c6 = arith.constant 6 : index
    %c0_16 = arith.constant 0 : index
    %c0_17 = arith.constant 0 : index
    %46 = vector.load %arg2[%c6, %c0_16, %c0_17] : memref<9x1x8xf32, #tpu.memory_space<vmem>>, vector<1x1x8xf32>
    %47 = vector.shape_cast %46 : vector<1x1x8xf32> to vector<1x8xf32>
    %48 = vector.shape_cast %47 : vector<1x8xf32> to vector<1x1x8xf32>
    %49 = vector.broadcast %48 : vector<1x1x8xf32> to vector<16x9x8xf32>
    %50 = arith.mulf %45, %49 : vector<16x9x8xf32>
    %51 = arith.addf %44, %50 : vector<16x9x8xf32>
    %52 = vector.extract_strided_slice %1 {offsets = [2, 1, 0], sizes = [16, 9, 8], strides = [1, 1, 1]} : vector<18x11x8xf32> to vector<16x9x8xf32>
    %c7 = arith.constant 7 : index
    %c0_18 = arith.constant 0 : index
    %c0_19 = arith.constant 0 : index
    %53 = vector.load %arg2[%c7, %c0_18, %c0_19] : memref<9x1x8xf32, #tpu.memory_space<vmem>>, vector<1x1x8xf32>
    %54 = vector.shape_cast %53 : vector<1x1x8xf32> to vector<1x8xf32>
    %55 = vector.shape_cast %54 : vector<1x8xf32> to vector<1x1x8xf32>
    %56 = vector.broadcast %55 : vector<1x1x8xf32> to vector<16x9x8xf32>
    %57 = arith.mulf %52, %56 : vector<16x9x8xf32>
    %58 = arith.addf %51, %57 : vector<16x9x8xf32>
    %59 = vector.extract_strided_slice %1 {offsets = [2, 2, 0], sizes = [16, 9, 8], strides = [1, 1, 1]} : vector<18x11x8xf32> to vector<16x9x8xf32>
    %c8 = arith.constant 8 : index
    %c0_20 = arith.constant 0 : index
    %c0_21 = arith.constant 0 : index
    %60 = vector.load %arg2[%c8, %c0_20, %c0_21] : memref<9x1x8xf32, #tpu.memory_space<vmem>>, vector<1x1x8xf32>
    %61 = vector.shape_cast %60 : vector<1x1x8xf32> to vector<1x8xf32>
    %62 = vector.shape_cast %61 : vector<1x8xf32> to vector<1x1x8xf32>
    %63 = vector.broadcast %62 : vector<1x1x8xf32> to vector<16x9x8xf32>
    %64 = arith.mulf %59, %63 : vector<16x9x8xf32>
    %65 = arith.addf %58, %64 : vector<16x9x8xf32>
    %c0_22 = arith.constant 0 : index
    %c0_23 = arith.constant 0 : index
    %66 = vector.load %arg3[%c0_22, %c0_23] : memref<1x8xf32, #tpu.memory_space<vmem>>, vector<1x8xf32>
    %67 = vector.shape_cast %66 : vector<1x8xf32> to vector<1x1x8xf32>
    %68 = vector.broadcast %67 : vector<1x1x8xf32> to vector<16x9x8xf32>
    %69 = arith.addf %65, %68 : vector<16x9x8xf32>
    %cst_24 = arith.constant 0.000000e+00 : f32
    %70 = vector.broadcast %cst_24 : f32 to vector<16x9x8xf32>
    %71 = arith.maximumf %69, %70 : vector<16x9x8xf32>
    %c0_25 = arith.constant 0 : index
    %c0_26 = arith.constant 0 : index
    %c0_27 = arith.constant 0 : index
    %c0_28 = arith.constant 0 : index
    %72 = vector.load %arg4[%c0_25, %c0_26, %c0_27, %c0_28] : memref<1x16x9x8xf32, #tpu.memory_space<vmem>>, vector<1x16x9x8xf32>
    %73 = vector.shape_cast %72 : vector<1x16x9x8xf32> to vector<16x9x8xf32>
    %74 = vector.shape_cast %71 : vector<16x9x8xf32> to vector<1x16x9x8xf32>
    tpu.vector_store %arg4[%c0_25, %c0_26, %c0_27, %c0_28], %74 {strides = array<i32>} : memref<1x16x9x8xf32, #tpu.memory_space<vmem>>, vector<1x16x9x8xf32>,
    return
  }
  func.func @transform_0(%arg0: i32) -> (i32, i32, i32, i32) {
    %c0_i32 = arith.constant 0 : i32
    %c0_i32_0 = arith.constant 0 : i32
    %c0_i32_1 = arith.constant 0 : i32
    %c0_i32_2 = arith.constant 0 : i32
    return %arg0, %c0_i32, %c0_i32_0, %c0_i32_1 : i32, i32, i32, i32
  }
  func.func @transform_1(%arg0: i32) -> (i32, i32, i32) {
    %c0_i32 = arith.constant 0 : i32
    %c0_i32_0 = arith.constant 0 : i32
    %c0_i32_1 = arith.constant 0 : i32
    %c0_i32_2 = arith.constant 0 : i32
    return %c0_i32, %c0_i32_0, %c0_i32_1 : i32, i32, i32
  }
  func.func @transform_2(%arg0: i32) -> (i32, i32) {
    %c0_i32 = arith.constant 0 : i32
    %c0_i32_0 = arith.constant 0 : i32
    %c0_i32_1 = arith.constant 0 : i32
    return %c0_i32, %c0_i32_0 : i32, i32
  }
  func.func @transform_3(%arg0: i32) -> (i32, i32, i32, i32) {
    %c0_i32 = arith.constant 0 : i32
    %c0_i32_0 = arith.constant 0 : i32
    %c0_i32_1 = arith.constant 0 : i32
    %c0_i32_2 = arith.constant 0 : i32
    return %arg0, %c0_i32, %c0_i32_0, %c0_i32_1 : i32, i32, i32, i32
  }
}

module attributes {stable_mosaic.version = 11 : i64} {
  func.func @_dw_kernel(%arg0: i32, %arg1: memref<1x18x11x8xf32, #tpu.memory_space<vmem>>, %arg2: memref<9x1x8xf32, #tpu.memory_space<vmem>>, %arg3: memref<1x8xf32, #tpu.memory_space<vmem>>, %arg4: memref<1x16x9x8xf32, #tpu.memory_space<vmem>>) attributes {dimension_semantics = [#tpu.dimension_semantics<parallel>], iteration_bounds = array<i64: 2>, scalar_prefetch = 0 : i64, scratch_operands = 0 : i64, tpu.core_type = #tpu.core_type<tc>, window_params = [{transform_indices = @transform_0, window_bounds = array<i64: 1, 18, 11, 8>}, {pipeline_mode = #tpu.pipeline_mode<synchronous>, transform_indices = @transform_1, window_bounds = array<i64: 9, 1, 8>}, {pipeline_mode = #tpu.pipeline_mode<synchronous>, transform_indices = @transform_2, window_bounds = array<i64: 1, 8>}, {transform_indices = @transform_3, window_bounds = array<i64: 1, 16, 9, 8>}]} {
    %c0 = arith.constant 0 : index
    %c0_0 = arith.constant 0 : index
    %c0_1 = arith.constant 0 : index
    %c0_2 = arith.constant 0 : index
    %0 = vector.load %arg1[%c0, %c0_0, %c0_1, %c0_2] : memref<1x18x11x8xf32, #tpu.memory_space<vmem>>, vector<1x18x11x8xf32>
    %1 = vector.shape_cast %0 : vector<1x18x11x8xf32> to vector<18x11x8xf32>
    %cst = arith.constant 0.000000e+00 : f32
    %2 = vector.broadcast %cst : f32 to vector<16x9x8xf32>
    %3 = vector.extract_strided_slice %1 {offsets = [0, 0, 0], sizes = [16, 9, 8], strides = [1, 1, 1]} : vector<18x11x8xf32> to vector<16x9x8xf32>
    %c0_3 = arith.constant 0 : index
    %c0_4 = arith.constant 0 : index
    %c0_5 = arith.constant 0 : index
    %4 = vector.load %arg2[%c0_3, %c0_4, %c0_5] : memref<9x1x8xf32, #tpu.memory_space<vmem>>, vector<1x1x8xf32>
    %5 = vector.shape_cast %4 : vector<1x1x8xf32> to vector<1x8xf32>
    %6 = vector.shape_cast %5 : vector<1x8xf32> to vector<1x1x8xf32>
    %7 = vector.broadcast %6 : vector<1x1x8xf32> to vector<16x9x8xf32>
    %8 = arith.mulf %3, %7 : vector<16x9x8xf32>
    %9 = arith.addf %2, %8 : vector<16x9x8xf32>
    %10 = vector.extract_strided_slice %1 {offsets = [0, 1, 0], sizes = [16, 9, 8], strides = [1, 1, 1]} : vector<18x11x8xf32> to vector<16x9x8xf32>
    %c1 = arith.constant 1 : index
    %c0_6 = arith.constant 0 : index
    %c0_7 = arith.constant 0 : index
    %11 = vector.load %arg2[%c1, %c0_6, %c0_7] : memref<9x1x8xf32, #tpu.memory_space<vmem>>, vector<1x1x8xf32>
    %12 = vector.shape_cast %11 : vector<1x1x8xf32> to vector<1x8xf32>
    %13 = vector.shape_cast %12 : vector<1x8xf32> to vector<1x1x8xf32>
    %14 = vector.broadcast %13 : vector<1x1x8xf32> to vector<16x9x8xf32>
    %15 = arith.mulf %10, %14 : vector<16x9x8xf32>
    %16 = arith.addf %9, %15 : vector<16x9x8xf32>
    %17 = vector.extract_strided_slice %1 {offsets = [0, 2, 0], sizes = [16, 9, 8], strides = [1, 1, 1]} : vector<18x11x8xf32> to vector<16x9x8xf32>
    %c2 = arith.constant 2 : index
    %c0_8 = arith.constant 0 : index
    %c0_9 = arith.constant 0 : index
    %18 = vector.load %arg2[%c2, %c0_8, %c0_9] : memref<9x1x8xf32, #tpu.memory_space<vmem>>, vector<1x1x8xf32>
    %19 = vector.shape_cast %18 : vector<1x1x8xf32> to vector<1x8xf32>
    %20 = vector.shape_cast %19 : vector<1x8xf32> to vector<1x1x8xf32>
    %21 = vector.broadcast %20 : vector<1x1x8xf32> to vector<16x9x8xf32>
    %22 = arith.mulf %17, %21 : vector<16x9x8xf32>
    %23 = arith.addf %16, %22 : vector<16x9x8xf32>
    %24 = vector.extract_strided_slice %1 {offsets = [1, 0, 0], sizes = [16, 9, 8], strides = [1, 1, 1]} : vector<18x11x8xf32> to vector<16x9x8xf32>
    %c3 = arith.constant 3 : index
    %c0_10 = arith.constant 0 : index
    %c0_11 = arith.constant 0 : index
    %25 = vector.load %arg2[%c3, %c0_10, %c0_11] : memref<9x1x8xf32, #tpu.memory_space<vmem>>, vector<1x1x8xf32>
    %26 = vector.shape_cast %25 : vector<1x1x8xf32> to vector<1x8xf32>
    %27 = vector.shape_cast %26 : vector<1x8xf32> to vector<1x1x8xf32>
    %28 = vector.broadcast %27 : vector<1x1x8xf32> to vector<16x9x8xf32>
    %29 = arith.mulf %24, %28 : vector<16x9x8xf32>
    %30 = arith.addf %23, %29 : vector<16x9x8xf32>
    %31 = vector.extract_strided_slice %1 {offsets = [1, 1, 0], sizes = [16, 9, 8], strides = [1, 1, 1]} : vector<18x11x8xf32> to vector<16x9x8xf32>
    %c4 = arith.constant 4 : index
    %c0_12 = arith.constant 0 : index
    %c0_13 = arith.constant 0 : index
    %32 = vector.load %arg2[%c4, %c0_12, %c0_13] : memref<9x1x8xf32, #tpu.memory_space<vmem>>, vector<1x1x8xf32>
    %33 = vector.shape_cast %32 : vector<1x1x8xf32> to vector<1x8xf32>
    %34 = vector.shape_cast %33 : vector<1x8xf32> to vector<1x1x8xf32>
    %35 = vector.broadcast %34 : vector<1x1x8xf32> to vector<16x9x8xf32>
    %36 = arith.mulf %31, %35 : vector<16x9x8xf32>
    %37 = arith.addf %30, %36 : vector<16x9x8xf32>
    %38 = vector.extract_strided_slice %1 {offsets = [1, 2, 0], sizes = [16, 9, 8], strides = [1, 1, 1]} : vector<18x11x8xf32> to vector<16x9x8xf32>
    %c5 = arith.constant 5 : index
    %c0_14 = arith.constant 0 : index
    %c0_15 = arith.constant 0 : index
    %39 = vector.load %arg2[%c5, %c0_14, %c0_15] : memref<9x1x8xf32, #tpu.memory_space<vmem>>, vector<1x1x8xf32>
    %40 = vector.shape_cast %39 : vector<1x1x8xf32> to vector<1x8xf32>
    %41 = vector.shape_cast %40 : vector<1x8xf32> to vector<1x1x8xf32>
    %42 = vector.broadcast %41 : vector<1x1x8xf32> to vector<16x9x8xf32>
    %43 = arith.mulf %38, %42 : vector<16x9x8xf32>
    %44 = arith.addf %37, %43 : vector<16x9x8xf32>
    %45 = vector.extract_strided_slice %1 {offsets = [2, 0, 0], sizes = [16, 9, 8], strides = [1, 1, 1]} : vector<18x11x8xf32> to vector<16x9x8xf32>
    %c6 = arith.constant 6 : index
    %c0_16 = arith.constant 0 : index
    %c0_17 = arith.constant 0 : index
    %46 = vector.load %arg2[%c6, %c0_16, %c0_17] : memref<9x1x8xf32, #tpu.memory_space<vmem>>, vector<1x1x8xf32>
    %47 = vector.shape_cast %46 : vector<1x1x8xf32> to vector<1x8xf32>
    %48 = vector.shape_cast %47 : vector<1x8xf32> to vector<1x1x8xf32>
    %49 = vector.broadcast %48 : vector<1x1x8xf32> to vector<16x9x8xf32>
    %50 = arith.mulf %45, %49 : vector<16x9x8xf32>
    %51 = arith.addf %44, %50 : vector<16x9x8xf32>
    %52 = vector.extract_strided_slice %1 {offsets = [2, 1, 0], sizes = [16, 9, 8], strides = [1, 1, 1]} : vector<18x11x8xf32> to vector<16x9x8xf32>
    %c7 = arith.constant 7 : index
    %c0_18 = arith.constant 0 : index
    %c0_19 = arith.constant 0 : index
    %53 = vector.load %arg2[%c7, %c0_18, %c0_19] : memref<9x1x8xf32, #tpu.memory_space<vmem>>, vector<1x1x8xf32>
    %54 = vector.shape_cast %53 : vector<1x1x8xf32> to vector<1x8xf32>
    %55 = vector.shape_cast %54 : vector<1x8xf32> to vector<1x1x8xf32>
    %56 = vector.broadcast %55 : vector<1x1x8xf32> to vector<16x9x8xf32>
    %57 = arith.mulf %52, %56 : vector<16x9x8xf32>
    %58 = arith.addf %51, %57 : vector<16x9x8xf32>
    %59 = vector.extract_strided_slice %1 {offsets = [2, 2, 0], sizes = [16, 9, 8], strides = [1, 1, 1]} : vector<18x11x8xf32> to vector<16x9x8xf32>
    %c8 = arith.constant 8 : index
    %c0_20 = arith.constant 0 : index
    %c0_21 = arith.constant 0 : index
    %60 = vector.load %arg2[%c8, %c0_20, %c0_21] : memref<9x1x8xf32, #tpu.memory_space<vmem>>, vector<1x1x8xf32>
    %61 = vector.shape_cast %60 : vector<1x1x8xf32> to vector<1x8xf32>
    %62 = vector.shape_cast %61 : vector<1x8xf32> to vector<1x1x8xf32>
    %63 = vector.broadcast %62 : vector<1x1x8xf32> to vector<16x9x8xf32>
    %64 = arith.mulf %59, %63 : vector<16x9x8xf32>
    %65 = arith.addf %58, %64 : vector<16x9x8xf32>
    %c0_22 = arith.constant 0 : index
    %c0_23 = arith.constant 0 : index
    %66 = vector.load %arg3[%c0_22, %c0_23] : memref<1x8xf32, #tpu.memory_space<vmem>>, vector<1x8xf32>
    %67 = vector.shape_cast %66 : vector<1x8xf32> to vector<1x1x8xf32>
    %68 = vector.broadcast %67 : vector<1x1x8xf32> to vector<16x9x8xf32>
    %69 = arith.addf %65, %68 : vector<16x9x8xf32>
    %c0_24 = arith.constant 0 : index
    %c0_25 = arith.constant 0 : index
    %c0_26 = arith.constant 0 : index
    %c0_27 = arith.constant 0 : index
    %70 = vector.load %arg4[%c0_24, %c0_25, %c0_26, %c0_27] : memref<1x16x9x8xf32, #tpu.memory_space<vmem>>, vector<1x16x9x8xf32>
    %71 = vector.shape_cast %70 : vector<1x16x9x8xf32> to vector<16x9x8xf32>
    %72 = vector.shape_cast %69 : vector<16x9x8xf32> to vector<1x16x9x8xf32>
    tpu.vector_store %arg4[%c0_24, %c0_25, %c0_26, %c0_27], %72 {strides = array<i32>} : memref<1x16x9x8xf32, #tpu.memory_space<vmem>>, vector<1x16x9x8xf32>,
    return
  }
  func.func @transform_0(%arg0: i32) -> (i32, i32, i32, i32) {
    %c0_i32 = arith.constant 0 : i32
    %c0_i32_0 = arith.constant 0 : i32
    %c0_i32_1 = arith.constant 0 : i32
    %c0_i32_2 = arith.constant 0 : i32
    return %arg0, %c0_i32, %c0_i32_0, %c0_i32_1 : i32, i32, i32, i32
  }
  func.func @transform_1(%arg0: i32) -> (i32, i32, i32) {
    %c0_i32 = arith.constant 0 : i32
    %c0_i32_0 = arith.constant 0 : i32
    %c0_i32_1 = arith.constant 0 : i32
    %c0_i32_2 = arith.constant 0 : i32
    return %c0_i32, %c0_i32_0, %c0_i32_1 : i32, i32, i32
  }
  func.func @transform_2(%arg0: i32) -> (i32, i32) {
    %c0_i32 = arith.constant 0 : i32
    %c0_i32_0 = arith.constant 0 : i32
    %c0_i32_1 = arith.constant 0 : i32
    return %c0_i32, %c0_i32_0 : i32, i32
  }
  func.func @transform_3(%arg0: i32) -> (i32, i32, i32, i32) {
    %c0_i32 = arith.constant 0 : i32
    %c0_i32_0 = arith.constant 0 : i32
    %c0_i32_1 = arith.constant 0 : i32
    %c0_i32_2 = arith.constant 0 : i32
    return %arg0, %c0_i32, %c0_i32_0, %c0_i32_1 : i32, i32, i32, i32
  }
}

module attributes {stable_mosaic.version = 11 : i64} {
  func.func @_mm_kernel(%arg0: i32, %arg1: i32, %arg2: i32, %arg3: memref<256x72xbf16, #tpu.memory_space<vmem>>, %arg4: memref<72x128xbf16, #tpu.memory_space<vmem>>, %arg5: memref<1x128xf32, #tpu.memory_space<vmem>>, %arg6: memref<256x128xf32, #tpu.memory_space<vmem>>, %arg7: memref<256x128xf32, #tpu.memory_space<vmem>>) attributes {dimension_semantics = [#tpu.dimension_semantics<parallel>, #tpu.dimension_semantics<parallel>, #tpu.dimension_semantics<arbitrary>], iteration_bounds = array<i64: 2, 1, 1>, scalar_prefetch = 0 : i64, scratch_operands = 1 : i64, tpu.core_type = #tpu.core_type<tc>, window_params = [{transform_indices = @transform_0, window_bounds = array<i64: 256, 72>}, {transform_indices = @transform_1, window_bounds = array<i64: 72, 128>}, {transform_indices = @transform_2, window_bounds = array<i64: 1, 128>}, {transform_indices = @transform_3, window_bounds = array<i64: 256, 128>}]} {
    %c0_i32 = arith.constant 0 : i32
    %0 = arith.cmpi eq, %arg2, %c0_i32 : i32
    %1 = arith.extui %0 : i1 to i32
    %c0_i32_0 = arith.constant 0 : i32
    %2 = arith.cmpi ne, %1, %c0_i32_0 : i32
    scf.if %2 {
      %cst_10 = arith.constant 0.000000e+00 : f32
      %12 = vector.broadcast %cst_10 : f32 to vector<256x128xf32>
      %c0_11 = arith.constant 0 : index
      %c0_12 = arith.constant 0 : index
      %13 = vector.load %arg7[%c0_11, %c0_12] : memref<256x128xf32, #tpu.memory_space<vmem>>, vector<256x128xf32>
      tpu.vector_store %arg7[%c0_11, %c0_12], %12 {strides = array<i32>} : memref<256x128xf32, #tpu.memory_space<vmem>>, vector<256x128xf32>,
    } else {
    }
    %c0 = arith.constant 0 : index
    %c0_1 = arith.constant 0 : index
    %3 = vector.load %arg7[%c0, %c0_1] : memref<256x128xf32, #tpu.memory_space<vmem>>, vector<256x128xf32>
    %c0_2 = arith.constant 0 : index
    %c0_3 = arith.constant 0 : index
    %4 = vector.load %arg3[%c0_2, %c0_3] : memref<256x72xbf16, #tpu.memory_space<vmem>>, vector<256x72xbf16>
    %c0_4 = arith.constant 0 : index
    %c0_5 = arith.constant 0 : index
    %5 = vector.load %arg4[%c0_4, %c0_5] : memref<72x128xbf16, #tpu.memory_space<vmem>>, vector<72x128xbf16>
    %cst = arith.constant dense<0.000000e+00> : vector<256x128xf32>
    %6 = tpu.matmul %4, %5, %cst {dimension_numbers = #tpu.dot_dimension_numbers<[1], [0], [0], [1], [0, 0, 1, 1], [], []>} : vector<256x72xbf16>, vector<72x128xbf16>, vector<256x128xf32> -> vector<256x128xf32>
    %7 = arith.addf %3, %6 : vector<256x128xf32>
    %c0_6 = arith.constant 0 : index
    %c0_7 = arith.constant 0 : index
    %8 = vector.load %arg7[%c0_6, %c0_7] : memref<256x128xf32, #tpu.memory_space<vmem>>, vector<256x128xf32>
    tpu.vector_store %arg7[%c0_6, %c0_7], %7 {strides = array<i32>} : memref<256x128xf32, #tpu.memory_space<vmem>>, vector<256x128xf32>,
    %c0_i32_8 = arith.constant 0 : i32
    %9 = arith.cmpi eq, %arg2, %c0_i32_8 : i32
    %10 = arith.extui %9 : i1 to i32
    %c0_i32_9 = arith.constant 0 : i32
    %11 = arith.cmpi ne, %10, %c0_i32_9 : i32
    scf.if %11 {
      %c0_10 = arith.constant 0 : index
      %c0_11 = arith.constant 0 : index
      %12 = vector.load %arg7[%c0_10, %c0_11] : memref<256x128xf32, #tpu.memory_space<vmem>>, vector<256x128xf32>
      %c0_12 = arith.constant 0 : index
      %c0_13 = arith.constant 0 : index
      %13 = vector.load %arg5[%c0_12, %c0_13] : memref<1x128xf32, #tpu.memory_space<vmem>>, vector<1x128xf32>
      %14 = vector.broadcast %13 : vector<1x128xf32> to vector<256x128xf32>
      %15 = arith.addf %12, %14 : vector<256x128xf32>
      %c0_14 = arith.constant 0 : index
      %c0_15 = arith.constant 0 : index
      %16 = vector.load %arg6[%c0_14, %c0_15] : memref<256x128xf32, #tpu.memory_space<vmem>>, vector<256x128xf32>
      tpu.vector_store %arg6[%c0_14, %c0_15], %15 {strides = array<i32>} : memref<256x128xf32, #tpu.memory_space<vmem>>, vector<256x128xf32>,
    } else {
    }
    return
  }
  func.func @transform_0(%arg0: i32, %arg1: i32, %arg2: i32) -> (i32, i32) {
    %c0_i32 = arith.constant 0 : i32
    return %arg0, %arg2 : i32, i32
  }
  func.func @transform_1(%arg0: i32, %arg1: i32, %arg2: i32) -> (i32, i32) {
    %c0_i32 = arith.constant 0 : i32
    return %arg2, %arg1 : i32, i32
  }
  func.func @transform_2(%arg0: i32, %arg1: i32, %arg2: i32) -> (i32, i32) {
    %c0_i32 = arith.constant 0 : i32
    %c0_i32_0 = arith.constant 0 : i32
    return %c0_i32, %arg1 : i32, i32
  }
  func.func @transform_3(%arg0: i32, %arg1: i32, %arg2: i32) -> (i32, i32) {
    %c0_i32 = arith.constant 0 : i32
    return %arg0, %arg1 : i32, i32
  }
}

module attributes {stable_mosaic.version = 11 : i64} {
  func.func @_hin_kernel(%arg0: i32, %arg1: memref<1x256x4xf32, #tpu.memory_space<vmem>>, %arg2: memref<1x2xf32, #tpu.memory_space<vmem>>, %arg3: memref<1x2xf32, #tpu.memory_space<vmem>>, %arg4: memref<1x256x4xf32, #tpu.memory_space<vmem>>) attributes {dimension_semantics = [#tpu.dimension_semantics<parallel>], iteration_bounds = array<i64: 2>, scalar_prefetch = 0 : i64, scratch_operands = 0 : i64, tpu.core_type = #tpu.core_type<tc>, window_params = [{transform_indices = @transform_0, window_bounds = array<i64: 1, 256, 4>}, {pipeline_mode = #tpu.pipeline_mode<synchronous>, transform_indices = @transform_1, window_bounds = array<i64: 1, 2>}, {pipeline_mode = #tpu.pipeline_mode<synchronous>, transform_indices = @transform_2, window_bounds = array<i64: 1, 2>}, {transform_indices = @transform_3, window_bounds = array<i64: 1, 256, 4>}]} {
    %c0 = arith.constant 0 : index
    %c0_0 = arith.constant 0 : index
    %c0_1 = arith.constant 0 : index
    %0 = vector.load %arg1[%c0, %c0_0, %c0_1] : memref<1x256x4xf32, #tpu.memory_space<vmem>>, vector<1x256x4xf32>
    %1 = vector.shape_cast %0 : vector<1x256x4xf32> to vector<256x4xf32>
    %2 = vector.extract_strided_slice %1 {offsets = [0, 0], sizes = [256, 2], strides = [1, 1]} : vector<256x4xf32> to vector<256x2xf32>
    %3 = vector.extract_strided_slice %1 {offsets = [0, 2], sizes = [256, 2], strides = [1, 1]} : vector<256x4xf32> to vector<256x2xf32>
    %cst = arith.constant dense<0.000000e+00> : vector<2xf32>
    %4 = vector.multi_reduction <add>, %2, %cst [0] : vector<256x2xf32> to vector<2xf32>
    %5 = vector.shape_cast %4 : vector<2xf32> to vector<1x2xf32>
    %cst_2 = arith.constant 2.560000e+02 : f32
    %6 = vector.broadcast %cst_2 : f32 to vector<1x2xf32>
    %7 = arith.divf %5, %6 : vector<1x2xf32>
    %8 = vector.broadcast %7 : vector<1x2xf32> to vector<256x2xf32>
    %9 = arith.subf %2, %8 : vector<256x2xf32>
    %10 = arith.mulf %9, %9 : vector<256x2xf32>
    %cst_3 = arith.constant dense<0.000000e+00> : vector<2xf32>
    %11 = vector.multi_reduction <add>, %10, %cst_3 [0] : vector<256x2xf32> to vector<2xf32>
    %12 = vector.shape_cast %11 : vector<2xf32> to vector<1x2xf32>
    %cst_4 = arith.constant 2.560000e+02 : f32
    %13 = vector.broadcast %cst_4 : f32 to vector<1x2xf32>
    %14 = arith.divf %12, %13 : vector<1x2xf32>
    %15 = vector.broadcast %7 : vector<1x2xf32> to vector<256x2xf32>
    %16 = arith.subf %2, %15 : vector<256x2xf32>
    %cst_5 = arith.constant 9.99999974E-6 : f32
    %17 = vector.broadcast %cst_5 : f32 to vector<1x2xf32>
    %18 = arith.addf %14, %17 : vector<1x2xf32>
    %19 = math.rsqrt %18 : vector<1x2xf32>
    %20 = vector.broadcast %19 : vector<1x2xf32> to vector<256x2xf32>
    %21 = arith.mulf %16, %20 : vector<256x2xf32>
    %c0_6 = arith.constant 0 : index
    %c0_7 = arith.constant 0 : index
    %22 = vector.load %arg2[%c0_6, %c0_7] : memref<1x2xf32, #tpu.memory_space<vmem>>, vector<1x2xf32>
    %23 = vector.broadcast %22 : vector<1x2xf32> to vector<256x2xf32>
    %24 = arith.mulf %21, %23 : vector<256x2xf32>
    %c0_8 = arith.constant 0 : index
    %c0_9 = arith.constant 0 : index
    %25 = vector.load %arg3[%c0_8, %c0_9] : memref<1x2xf32, #tpu.memory_space<vmem>>, vector<1x2xf32>
    %26 = vector.broadcast %25 : vector<1x2xf32> to vector<256x2xf32>
    %27 = arith.addf %24, %26 : vector<256x2xf32>
    %cst_10 = arith.constant 0.000000e+00 : f32
    %28 = vector.broadcast %cst_10 : f32 to vector<256x2xf32>
    %29 = arith.cmpf oge, %27, %28 : vector<256x2xf32>
    %cst_11 = arith.constant 2.000000e-01 : f32
    %30 = vector.broadcast %cst_11 : f32 to vector<256x2xf32>
    %31 = arith.mulf %27, %30 : vector<256x2xf32>
    %32 = arith.select %29, %27, %31 : vector<256x2xi1>, vector<256x2xf32>
    %cst_12 = arith.constant 0.000000e+00 : f32
    %33 = vector.broadcast %cst_12 : f32 to vector<256x2xf32>
    %34 = arith.cmpf oge, %3, %33 : vector<256x2xf32>
    %cst_13 = arith.constant 2.000000e-01 : f32
    %35 = vector.broadcast %cst_13 : f32 to vector<256x2xf32>
    %36 = arith.mulf %3, %35 : vector<256x2xf32>
    %37 = arith.select %34, %3, %36 : vector<256x2xi1>, vector<256x2xf32>
    %38 = tpu.concatenate %32, %37 in 1 : vector<256x2xf32>, vector<256x2xf32> -> vector<256x4xf32>
    %c0_14 = arith.constant 0 : index
    %c0_15 = arith.constant 0 : index
    %c0_16 = arith.constant 0 : index
    %39 = vector.load %arg4[%c0_14, %c0_15, %c0_16] : memref<1x256x4xf32, #tpu.memory_space<vmem>>, vector<1x256x4xf32>
    %40 = vector.shape_cast %39 : vector<1x256x4xf32> to vector<256x4xf32>
    %41 = vector.shape_cast %38 : vector<256x4xf32> to vector<1x256x4xf32>
    tpu.vector_store %arg4[%c0_14, %c0_15, %c0_16], %41 {strides = array<i32>} : memref<1x256x4xf32, #tpu.memory_space<vmem>>, vector<1x256x4xf32>,
    return
  }
  func.func @transform_0(%arg0: i32) -> (i32, i32, i32) {
    %c0_i32 = arith.constant 0 : i32
    %c0_i32_0 = arith.constant 0 : i32
    %c0_i32_1 = arith.constant 0 : i32
    return %arg0, %c0_i32, %c0_i32_0 : i32, i32, i32
  }
  func.func @transform_1(%arg0: i32) -> (i32, i32) {
    %c0_i32 = arith.constant 0 : i32
    %c0_i32_0 = arith.constant 0 : i32
    %c0_i32_1 = arith.constant 0 : i32
    return %c0_i32, %c0_i32_0 : i32, i32
  }
  func.func @transform_2(%arg0: i32) -> (i32, i32) {
    %c0_i32 = arith.constant 0 : i32
    %c0_i32_0 = arith.constant 0 : i32
    %c0_i32_1 = arith.constant 0 : i32
    return %c0_i32, %c0_i32_0 : i32, i32
  }
  func.func @transform_3(%arg0: i32) -> (i32, i32, i32) {
    %c0_i32 = arith.constant 0 : i32
    %c0_i32_0 = arith.constant 0 : i32
    %c0_i32_1 = arith.constant 0 : i32
    return %arg0, %c0_i32, %c0_i32_0 : i32, i32, i32
  }
}

module attributes {stable_mosaic.version = 11 : i64} {
  func.func @_mm_kernel(%arg0: i32, %arg1: i32, %arg2: i32, %arg3: memref<256x8xbf16, #tpu.memory_space<vmem>>, %arg4: memref<8x128xbf16, #tpu.memory_space<vmem>>, %arg5: memref<1x128xf32, #tpu.memory_space<vmem>>, %arg6: memref<256x128xf32, #tpu.memory_space<vmem>>, %arg7: memref<256x128xf32, #tpu.memory_space<vmem>>) attributes {dimension_semantics = [#tpu.dimension_semantics<parallel>, #tpu.dimension_semantics<parallel>, #tpu.dimension_semantics<arbitrary>], iteration_bounds = array<i64: 2, 1, 1>, scalar_prefetch = 0 : i64, scratch_operands = 1 : i64, tpu.core_type = #tpu.core_type<tc>, window_params = [{transform_indices = @transform_0, window_bounds = array<i64: 256, 8>}, {transform_indices = @transform_1, window_bounds = array<i64: 8, 128>}, {transform_indices = @transform_2, window_bounds = array<i64: 1, 128>}, {transform_indices = @transform_3, window_bounds = array<i64: 256, 128>}]} {
    %c0_i32 = arith.constant 0 : i32
    %0 = arith.cmpi eq, %arg2, %c0_i32 : i32
    %1 = arith.extui %0 : i1 to i32
    %c0_i32_0 = arith.constant 0 : i32
    %2 = arith.cmpi ne, %1, %c0_i32_0 : i32
    scf.if %2 {
      %cst_10 = arith.constant 0.000000e+00 : f32
      %12 = vector.broadcast %cst_10 : f32 to vector<256x128xf32>
      %c0_11 = arith.constant 0 : index
      %c0_12 = arith.constant 0 : index
      %13 = vector.load %arg7[%c0_11, %c0_12] : memref<256x128xf32, #tpu.memory_space<vmem>>, vector<256x128xf32>
      tpu.vector_store %arg7[%c0_11, %c0_12], %12 {strides = array<i32>} : memref<256x128xf32, #tpu.memory_space<vmem>>, vector<256x128xf32>,
    } else {
    }
    %c0 = arith.constant 0 : index
    %c0_1 = arith.constant 0 : index
    %3 = vector.load %arg7[%c0, %c0_1] : memref<256x128xf32, #tpu.memory_space<vmem>>, vector<256x128xf32>
    %c0_2 = arith.constant 0 : index
    %c0_3 = arith.constant 0 : index
    %4 = vector.load %arg3[%c0_2, %c0_3] : memref<256x8xbf16, #tpu.memory_space<vmem>>, vector<256x8xbf16>
    %c0_4 = arith.constant 0 : index
    %c0_5 = arith.constant 0 : index
    %5 = vector.load %arg4[%c0_4, %c0_5] : memref<8x128xbf16, #tpu.memory_space<vmem>>, vector<8x128xbf16>
    %cst = arith.constant dense<0.000000e+00> : vector<256x128xf32>
    %6 = tpu.matmul %4, %5, %cst {dimension_numbers = #tpu.dot_dimension_numbers<[1], [0], [0], [1], [0, 0, 1, 1], [], []>} : vector<256x8xbf16>, vector<8x128xbf16>, vector<256x128xf32> -> vector<256x128xf32>
    %7 = arith.addf %3, %6 : vector<256x128xf32>
    %c0_6 = arith.constant 0 : index
    %c0_7 = arith.constant 0 : index
    %8 = vector.load %arg7[%c0_6, %c0_7] : memref<256x128xf32, #tpu.memory_space<vmem>>, vector<256x128xf32>
    tpu.vector_store %arg7[%c0_6, %c0_7], %7 {strides = array<i32>} : memref<256x128xf32, #tpu.memory_space<vmem>>, vector<256x128xf32>,
    %c0_i32_8 = arith.constant 0 : i32
    %9 = arith.cmpi eq, %arg2, %c0_i32_8 : i32
    %10 = arith.extui %9 : i1 to i32
    %c0_i32_9 = arith.constant 0 : i32
    %11 = arith.cmpi ne, %10, %c0_i32_9 : i32
    scf.if %11 {
      %c0_10 = arith.constant 0 : index
      %c0_11 = arith.constant 0 : index
      %12 = vector.load %arg7[%c0_10, %c0_11] : memref<256x128xf32, #tpu.memory_space<vmem>>, vector<256x128xf32>
      %c0_12 = arith.constant 0 : index
      %c0_13 = arith.constant 0 : index
      %13 = vector.load %arg5[%c0_12, %c0_13] : memref<1x128xf32, #tpu.memory_space<vmem>>, vector<1x128xf32>
      %14 = vector.broadcast %13 : vector<1x128xf32> to vector<256x128xf32>
      %15 = arith.addf %12, %14 : vector<256x128xf32>
      %c0_14 = arith.constant 0 : index
      %c0_15 = arith.constant 0 : index
      %16 = vector.load %arg6[%c0_14, %c0_15] : memref<256x128xf32, #tpu.memory_space<vmem>>, vector<256x128xf32>
      tpu.vector_store %arg6[%c0_14, %c0_15], %15 {strides = array<i32>} : memref<256x128xf32, #tpu.memory_space<vmem>>, vector<256x128xf32>,
    } else {
    }
    return
  }
  func.func @transform_0(%arg0: i32, %arg1: i32, %arg2: i32) -> (i32, i32) {
    %c0_i32 = arith.constant 0 : i32
    return %arg0, %arg2 : i32, i32
  }
  func.func @transform_1(%arg0: i32, %arg1: i32, %arg2: i32) -> (i32, i32) {
    %c0_i32 = arith.constant 0 : i32
    return %arg2, %arg1 : i32, i32
  }
  func.func @transform_2(%arg0: i32, %arg1: i32, %arg2: i32) -> (i32, i32) {
    %c0_i32 = arith.constant 0 : i32
    %c0_i32_0 = arith.constant 0 : i32
    return %c0_i32, %arg1 : i32, i32
  }
  func.func @transform_3(%arg0: i32, %arg1: i32, %arg2: i32) -> (i32, i32) {
    %c0_i32 = arith.constant 0 : i32
    return %arg0, %arg1 : i32, i32
  }
}

module attributes {stable_mosaic.version = 11 : i64} {
  func.func @_mm_res_kernel(%arg0: i32, %arg1: i32, %arg2: i32, %arg3: memref<256x40xbf16, #tpu.memory_space<vmem>>, %arg4: memref<40x128xbf16, #tpu.memory_space<vmem>>, %arg5: memref<1x128xf32, #tpu.memory_space<vmem>>, %arg6: memref<256x128xf32, #tpu.memory_space<vmem>>, %arg7: memref<256x128xf32, #tpu.memory_space<vmem>>, %arg8: memref<256x128xf32, #tpu.memory_space<vmem>>) attributes {dimension_semantics = [#tpu.dimension_semantics<parallel>, #tpu.dimension_semantics<parallel>, #tpu.dimension_semantics<arbitrary>], iteration_bounds = array<i64: 2, 1, 1>, scalar_prefetch = 0 : i64, scratch_operands = 1 : i64, tpu.core_type = #tpu.core_type<tc>, window_params = [{transform_indices = @transform_0, window_bounds = array<i64: 256, 40>}, {transform_indices = @transform_1, window_bounds = array<i64: 40, 128>}, {transform_indices = @transform_2, window_bounds = array<i64: 1, 128>}, {transform_indices = @transform_3, window_bounds = array<i64: 256, 128>}, {transform_indices = @transform_4, window_bounds = array<i64: 256, 128>}]} {
    %c0_i32 = arith.constant 0 : i32
    %0 = arith.cmpi eq, %arg2, %c0_i32 : i32
    %1 = arith.extui %0 : i1 to i32
    %c0_i32_0 = arith.constant 0 : i32
    %2 = arith.cmpi ne, %1, %c0_i32_0 : i32
    scf.if %2 {
      %cst_10 = arith.constant 0.000000e+00 : f32
      %12 = vector.broadcast %cst_10 : f32 to vector<256x128xf32>
      %c0_11 = arith.constant 0 : index
      %c0_12 = arith.constant 0 : index
      %13 = vector.load %arg8[%c0_11, %c0_12] : memref<256x128xf32, #tpu.memory_space<vmem>>, vector<256x128xf32>
      tpu.vector_store %arg8[%c0_11, %c0_12], %12 {strides = array<i32>} : memref<256x128xf32, #tpu.memory_space<vmem>>, vector<256x128xf32>,
    } else {
    }
    %c0 = arith.constant 0 : index
    %c0_1 = arith.constant 0 : index
    %3 = vector.load %arg8[%c0, %c0_1] : memref<256x128xf32, #tpu.memory_space<vmem>>, vector<256x128xf32>
    %c0_2 = arith.constant 0 : index
    %c0_3 = arith.constant 0 : index
    %4 = vector.load %arg3[%c0_2, %c0_3] : memref<256x40xbf16, #tpu.memory_space<vmem>>, vector<256x40xbf16>
    %c0_4 = arith.constant 0 : index
    %c0_5 = arith.constant 0 : index
    %5 = vector.load %arg4[%c0_4, %c0_5] : memref<40x128xbf16, #tpu.memory_space<vmem>>, vector<40x128xbf16>
    %cst = arith.constant dense<0.000000e+00> : vector<256x128xf32>
    %6 = tpu.matmul %4, %5, %cst {dimension_numbers = #tpu.dot_dimension_numbers<[1], [0], [0], [1], [0, 0, 1, 1], [], []>} : vector<256x40xbf16>, vector<40x128xbf16>, vector<256x128xf32> -> vector<256x128xf32>
    %7 = arith.addf %3, %6 : vector<256x128xf32>
    %c0_6 = arith.constant 0 : index
    %c0_7 = arith.constant 0 : index
    %8 = vector.load %arg8[%c0_6, %c0_7] : memref<256x128xf32, #tpu.memory_space<vmem>>, vector<256x128xf32>
    tpu.vector_store %arg8[%c0_6, %c0_7], %7 {strides = array<i32>} : memref<256x128xf32, #tpu.memory_space<vmem>>, vector<256x128xf32>,
    %c0_i32_8 = arith.constant 0 : i32
    %9 = arith.cmpi eq, %arg2, %c0_i32_8 : i32
    %10 = arith.extui %9 : i1 to i32
    %c0_i32_9 = arith.constant 0 : i32
    %11 = arith.cmpi ne, %10, %c0_i32_9 : i32
    scf.if %11 {
      %c0_10 = arith.constant 0 : index
      %c0_11 = arith.constant 0 : index
      %12 = vector.load %arg8[%c0_10, %c0_11] : memref<256x128xf32, #tpu.memory_space<vmem>>, vector<256x128xf32>
      %c0_12 = arith.constant 0 : index
      %c0_13 = arith.constant 0 : index
      %13 = vector.load %arg5[%c0_12, %c0_13] : memref<1x128xf32, #tpu.memory_space<vmem>>, vector<1x128xf32>
      %14 = vector.broadcast %13 : vector<1x128xf32> to vector<256x128xf32>
      %15 = arith.addf %12, %14 : vector<256x128xf32>
      %cst_14 = arith.constant 0.000000e+00 : f32
      %16 = vector.broadcast %cst_14 : f32 to vector<256x128xf32>
      %17 = arith.cmpf oge, %15, %16 : vector<256x128xf32>
      %cst_15 = arith.constant 2.000000e-01 : f32
      %18 = vector.broadcast %cst_15 : f32 to vector<256x128xf32>
      %19 = arith.mulf %15, %18 : vector<256x128xf32>
      %20 = arith.select %17, %15, %19 : vector<256x128xi1>, vector<256x128xf32>
      %c0_16 = arith.constant 0 : index
      %c0_17 = arith.constant 0 : index
      %21 = vector.load %arg6[%c0_16, %c0_17] : memref<256x128xf32, #tpu.memory_space<vmem>>, vector<256x128xf32>
      %22 = arith.addf %20, %21 : vector<256x128xf32>
      %c0_18 = arith.constant 0 : index
      %c0_19 = arith.constant 0 : index
      %23 = vector.load %arg7[%c0_18, %c0_19] : memref<256x128xf32, #tpu.memory_space<vmem>>, vector<256x128xf32>
      tpu.vector_store %arg7[%c0_18, %c0_19], %22 {strides = array<i32>} : memref<256x128xf32, #tpu.memory_space<vmem>>, vector<256x128xf32>,
    } else {
    }
    return
  }
  func.func @transform_0(%arg0: i32, %arg1: i32, %arg2: i32) -> (i32, i32) {
    %c0_i32 = arith.constant 0 : i32
    return %arg0, %arg2 : i32, i32
  }
  func.func @transform_1(%arg0: i32, %arg1: i32, %arg2: i32) -> (i32, i32) {
    %c0_i32 = arith.constant 0 : i32
    return %arg2, %arg1 : i32, i32
  }
  func.func @transform_2(%arg0: i32, %arg1: i32, %arg2: i32) -> (i32, i32) {
    %c0_i32 = arith.constant 0 : i32
    %c0_i32_0 = arith.constant 0 : i32
    return %c0_i32, %arg1 : i32, i32
  }
  func.func @transform_3(%arg0: i32, %arg1: i32, %arg2: i32) -> (i32, i32) {
    %c0_i32 = arith.constant 0 : i32
    return %arg0, %arg1 : i32, i32
  }
  func.func @transform_4(%arg0: i32, %arg1: i32, %arg2: i32) -> (i32, i32) {
    %c0_i32 = arith.constant 0 : i32
    return %arg0, %arg1 : i32, i32
  }
}

module attributes {stable_mosaic.version = 11 : i64} {
  func.func @_mm_kernel(%arg0: i32, %arg1: i32, %arg2: i32, %arg3: memref<144x8xbf16, #tpu.memory_space<vmem>>, %arg4: memref<8x128xbf16, #tpu.memory_space<vmem>>, %arg5: memref<1x128xf32, #tpu.memory_space<vmem>>, %arg6: memref<144x128xf32, #tpu.memory_space<vmem>>, %arg7: memref<144x128xf32, #tpu.memory_space<vmem>>) attributes {dimension_semantics = [#tpu.dimension_semantics<parallel>, #tpu.dimension_semantics<parallel>, #tpu.dimension_semantics<arbitrary>], iteration_bounds = array<i64: 2, 1, 1>, scalar_prefetch = 0 : i64, scratch_operands = 1 : i64, tpu.core_type = #tpu.core_type<tc>, window_params = [{transform_indices = @transform_0, window_bounds = array<i64: 144, 8>}, {transform_indices = @transform_1, window_bounds = array<i64: 8, 128>}, {transform_indices = @transform_2, window_bounds = array<i64: 1, 128>}, {transform_indices = @transform_3, window_bounds = array<i64: 144, 128>}]} {
    %c0_i32 = arith.constant 0 : i32
    %0 = arith.cmpi eq, %arg2, %c0_i32 : i32
    %1 = arith.extui %0 : i1 to i32
    %c0_i32_0 = arith.constant 0 : i32
    %2 = arith.cmpi ne, %1, %c0_i32_0 : i32
    scf.if %2 {
      %cst_10 = arith.constant 0.000000e+00 : f32
      %12 = vector.broadcast %cst_10 : f32 to vector<144x128xf32>
      %c0_11 = arith.constant 0 : index
      %c0_12 = arith.constant 0 : index
      %13 = vector.load %arg7[%c0_11, %c0_12] : memref<144x128xf32, #tpu.memory_space<vmem>>, vector<144x128xf32>
      tpu.vector_store %arg7[%c0_11, %c0_12], %12 {strides = array<i32>} : memref<144x128xf32, #tpu.memory_space<vmem>>, vector<144x128xf32>,
    } else {
    }
    %c0 = arith.constant 0 : index
    %c0_1 = arith.constant 0 : index
    %3 = vector.load %arg7[%c0, %c0_1] : memref<144x128xf32, #tpu.memory_space<vmem>>, vector<144x128xf32>
    %c0_2 = arith.constant 0 : index
    %c0_3 = arith.constant 0 : index
    %4 = vector.load %arg3[%c0_2, %c0_3] : memref<144x8xbf16, #tpu.memory_space<vmem>>, vector<144x8xbf16>
    %c0_4 = arith.constant 0 : index
    %c0_5 = arith.constant 0 : index
    %5 = vector.load %arg4[%c0_4, %c0_5] : memref<8x128xbf16, #tpu.memory_space<vmem>>, vector<8x128xbf16>
    %cst = arith.constant dense<0.000000e+00> : vector<144x128xf32>
    %6 = tpu.matmul %4, %5, %cst {dimension_numbers = #tpu.dot_dimension_numbers<[1], [0], [0], [1], [0, 0, 1, 1], [], []>} : vector<144x8xbf16>, vector<8x128xbf16>, vector<144x128xf32> -> vector<144x128xf32>
    %7 = arith.addf %3, %6 : vector<144x128xf32>
    %c0_6 = arith.constant 0 : index
    %c0_7 = arith.constant 0 : index
    %8 = vector.load %arg7[%c0_6, %c0_7] : memref<144x128xf32, #tpu.memory_space<vmem>>, vector<144x128xf32>
    tpu.vector_store %arg7[%c0_6, %c0_7], %7 {strides = array<i32>} : memref<144x128xf32, #tpu.memory_space<vmem>>, vector<144x128xf32>,
    %c0_i32_8 = arith.constant 0 : i32
    %9 = arith.cmpi eq, %arg2, %c0_i32_8 : i32
    %10 = arith.extui %9 : i1 to i32
    %c0_i32_9 = arith.constant 0 : i32
    %11 = arith.cmpi ne, %10, %c0_i32_9 : i32
    scf.if %11 {
      %c0_10 = arith.constant 0 : index
      %c0_11 = arith.constant 0 : index
      %12 = vector.load %arg7[%c0_10, %c0_11] : memref<144x128xf32, #tpu.memory_space<vmem>>, vector<144x128xf32>
      %c0_12 = arith.constant 0 : index
      %c0_13 = arith.constant 0 : index
      %13 = vector.load %arg5[%c0_12, %c0_13] : memref<1x128xf32, #tpu.memory_space<vmem>>, vector<1x128xf32>
      %14 = vector.broadcast %13 : vector<1x128xf32> to vector<144x128xf32>
      %15 = arith.addf %12, %14 : vector<144x128xf32>
      %cst_14 = arith.constant 0.000000e+00 : f32
      %16 = vector.broadcast %cst_14 : f32 to vector<144x128xf32>
      %17 = arith.maximumf %15, %16 : vector<144x128xf32>
      %c0_15 = arith.constant 0 : index
      %c0_16 = arith.constant 0 : index
      %18 = vector.load %arg6[%c0_15, %c0_16] : memref<144x128xf32, #tpu.memory_space<vmem>>, vector<144x128xf32>
      tpu.vector_store %arg6[%c0_15, %c0_16], %17 {strides = array<i32>} : memref<144x128xf32, #tpu.memory_space<vmem>>, vector<144x128xf32>,
    } else {
    }
    return
  }
  func.func @transform_0(%arg0: i32, %arg1: i32, %arg2: i32) -> (i32, i32) {
    %c0_i32 = arith.constant 0 : i32
    return %arg0, %arg2 : i32, i32
  }
  func.func @transform_1(%arg0: i32, %arg1: i32, %arg2: i32) -> (i32, i32) {
    %c0_i32 = arith.constant 0 : i32
    return %arg2, %arg1 : i32, i32
  }
  func.func @transform_2(%arg0: i32, %arg1: i32, %arg2: i32) -> (i32, i32) {
    %c0_i32 = arith.constant 0 : i32
    %c0_i32_0 = arith.constant 0 : i32
    return %c0_i32, %arg1 : i32, i32
  }
  func.func @transform_3(%arg0: i32, %arg1: i32, %arg2: i32) -> (i32, i32) {
    %c0_i32 = arith.constant 0 : i32
    return %arg0, %arg1 : i32, i32
  }
}

module attributes {stable_mosaic.version = 11 : i64} {
  func.func @_mm_kernel(%arg0: i32, %arg1: i32, %arg2: i32, %arg3: memref<144x8xbf16, #tpu.memory_space<vmem>>, %arg4: memref<8x128xbf16, #tpu.memory_space<vmem>>, %arg5: memref<1x128xf32, #tpu.memory_space<vmem>>, %arg6: memref<144x128xf32, #tpu.memory_space<vmem>>, %arg7: memref<144x128xf32, #tpu.memory_space<vmem>>) attributes {dimension_semantics = [#tpu.dimension_semantics<parallel>, #tpu.dimension_semantics<parallel>, #tpu.dimension_semantics<arbitrary>], iteration_bounds = array<i64: 2, 1, 1>, scalar_prefetch = 0 : i64, scratch_operands = 1 : i64, tpu.core_type = #tpu.core_type<tc>, window_params = [{transform_indices = @transform_0, window_bounds = array<i64: 144, 8>}, {transform_indices = @transform_1, window_bounds = array<i64: 8, 128>}, {transform_indices = @transform_2, window_bounds = array<i64: 1, 128>}, {transform_indices = @transform_3, window_bounds = array<i64: 144, 128>}]} {
    %c0_i32 = arith.constant 0 : i32
    %0 = arith.cmpi eq, %arg2, %c0_i32 : i32
    %1 = arith.extui %0 : i1 to i32
    %c0_i32_0 = arith.constant 0 : i32
    %2 = arith.cmpi ne, %1, %c0_i32_0 : i32
    scf.if %2 {
      %cst_10 = arith.constant 0.000000e+00 : f32
      %12 = vector.broadcast %cst_10 : f32 to vector<144x128xf32>
      %c0_11 = arith.constant 0 : index
      %c0_12 = arith.constant 0 : index
      %13 = vector.load %arg7[%c0_11, %c0_12] : memref<144x128xf32, #tpu.memory_space<vmem>>, vector<144x128xf32>
      tpu.vector_store %arg7[%c0_11, %c0_12], %12 {strides = array<i32>} : memref<144x128xf32, #tpu.memory_space<vmem>>, vector<144x128xf32>,
    } else {
    }
    %c0 = arith.constant 0 : index
    %c0_1 = arith.constant 0 : index
    %3 = vector.load %arg7[%c0, %c0_1] : memref<144x128xf32, #tpu.memory_space<vmem>>, vector<144x128xf32>
    %c0_2 = arith.constant 0 : index
    %c0_3 = arith.constant 0 : index
    %4 = vector.load %arg3[%c0_2, %c0_3] : memref<144x8xbf16, #tpu.memory_space<vmem>>, vector<144x8xbf16>
    %c0_4 = arith.constant 0 : index
    %c0_5 = arith.constant 0 : index
    %5 = vector.load %arg4[%c0_4, %c0_5] : memref<8x128xbf16, #tpu.memory_space<vmem>>, vector<8x128xbf16>
    %cst = arith.constant dense<0.000000e+00> : vector<144x128xf32>
    %6 = tpu.matmul %4, %5, %cst {dimension_numbers = #tpu.dot_dimension_numbers<[1], [0], [0], [1], [0, 0, 1, 1], [], []>} : vector<144x8xbf16>, vector<8x128xbf16>, vector<144x128xf32> -> vector<144x128xf32>
    %7 = arith.addf %3, %6 : vector<144x128xf32>
    %c0_6 = arith.constant 0 : index
    %c0_7 = arith.constant 0 : index
    %8 = vector.load %arg7[%c0_6, %c0_7] : memref<144x128xf32, #tpu.memory_space<vmem>>, vector<144x128xf32>
    tpu.vector_store %arg7[%c0_6, %c0_7], %7 {strides = array<i32>} : memref<144x128xf32, #tpu.memory_space<vmem>>, vector<144x128xf32>,
    %c0_i32_8 = arith.constant 0 : i32
    %9 = arith.cmpi eq, %arg2, %c0_i32_8 : i32
    %10 = arith.extui %9 : i1 to i32
    %c0_i32_9 = arith.constant 0 : i32
    %11 = arith.cmpi ne, %10, %c0_i32_9 : i32
    scf.if %11 {
      %c0_10 = arith.constant 0 : index
      %c0_11 = arith.constant 0 : index
      %12 = vector.load %arg7[%c0_10, %c0_11] : memref<144x128xf32, #tpu.memory_space<vmem>>, vector<144x128xf32>
      %c0_12 = arith.constant 0 : index
      %c0_13 = arith.constant 0 : index
      %13 = vector.load %arg5[%c0_12, %c0_13] : memref<1x128xf32, #tpu.memory_space<vmem>>, vector<1x128xf32>
      %14 = vector.broadcast %13 : vector<1x128xf32> to vector<144x128xf32>
      %15 = arith.addf %12, %14 : vector<144x128xf32>
      %c0_14 = arith.constant 0 : index
      %c0_15 = arith.constant 0 : index
      %16 = vector.load %arg6[%c0_14, %c0_15] : memref<144x128xf32, #tpu.memory_space<vmem>>, vector<144x128xf32>
      tpu.vector_store %arg6[%c0_14, %c0_15], %15 {strides = array<i32>} : memref<144x128xf32, #tpu.memory_space<vmem>>, vector<144x128xf32>,
    } else {
    }
    return
  }
  func.func @transform_0(%arg0: i32, %arg1: i32, %arg2: i32) -> (i32, i32) {
    %c0_i32 = arith.constant 0 : i32
    return %arg0, %arg2 : i32, i32
  }
  func.func @transform_1(%arg0: i32, %arg1: i32, %arg2: i32) -> (i32, i32) {
    %c0_i32 = arith.constant 0 : i32
    return %arg2, %arg1 : i32, i32
  }
  func.func @transform_2(%arg0: i32, %arg1: i32, %arg2: i32) -> (i32, i32) {
    %c0_i32 = arith.constant 0 : i32
    %c0_i32_0 = arith.constant 0 : i32
    return %c0_i32, %arg1 : i32, i32
  }
  func.func @transform_3(%arg0: i32, %arg1: i32, %arg2: i32) -> (i32, i32) {
    %c0_i32 = arith.constant 0 : i32
    return %arg0, %arg1 : i32, i32
  }
}

</mosaic_0001>

<llo_original>
// kernel: reverse.5
$region0: #{reverse.5}
  %s0 = inlined_call_operand.vmem [shape: f32[2,4,16,7], index: 0, kind: input, shape index: {}]
  %s1 = inlined_call_operand.vmem [shape: f32[2,4,16,7], index: 1, kind: output, shape index: {}]
  $region1: #{reverse.5} parent=0
    #allocation0 [shape = 'u8[65536]{0}', space=vmem, size = 0x10000, scoped, tag = 'operand span for operand 0']
    #allocation1 [shape = 'u8[32768]{0}', space=vmem, size = 0x8000, scoped, tag = 'operand span for operand 1']
    %s2 = scalar_lea.vmem [#allocation0], 8
    // Predicated region
    $region2: #{reverse.5} parent=1 // pred_check
      _
    $region3: #{reverse.5} parent=1 // pred_check_branch
      %4 = sbr.rel (0) target = $region5
    $region4: #{reverse.5} parent=1 // pred_region
      // Predicated region
      $region6: #{reverse.5} parent=4 // pred_check
        _
      $region7: #{reverse.5} parent=4 // pred_check_branch
        %6 = sbr.rel (0) target = $region9
      $region8: #{reverse.5} parent=4 // pred_region
        // Predicated region
        $region21: #{reverse.5} parent=8 // pred_check
          _
        $region22: #{reverse.5} parent=8 // pred_check_branch
          %35 = sbr.rel (0) target = $region24
        $region23: #{reverse.5} parent=8 // pred_region
          loop: start=0, step=1, limit=1
          $region25: #{reverse.5} parent=23 // loop_pre_header
            _
          $region26: #{reverse.5} parent=23 // loop_header
            %s37 = sphi 0, %s41
            %p38 = scmp.ge.s32.totalorder %s37, 1
            %s42 = sphi %s0, %s0
            %s43 = sphi %s2, %s2
          $region27: #{reverse.5} parent=23 // loop_header_branch
            %40 = sbr.rel (%p38) target = $region31
          $region28: #{reverse.5} parent=23 // loop_body
            %v44 = vld [vmem:[%s42] sm:$0xff]
            %45 = vst [vmem:[%s43] sm:$0xff] %v44
            %v46 = vld [vmem:[%s42 + $0x8] sm:$0xff]
            %47 = vst [vmem:[%s43 + $0x10] sm:$0xff] %v46
            %v48 = vld [vmem:[%s42 + $0x10] sm:$0xff]
            %49 = vst [vmem:[%s43 + $0x20] sm:$0xff] %v48
            %v50 = vld [vmem:[%s42 + $0x18] sm:$0xff]
            %51 = vst [vmem:[%s43 + $0x30] sm:$0xff] %v50
            %v52 = vld [vmem:[%s42 + $0x20] sm:$0xff]
            %53 = vst [vmem:[%s43 + $0x40] sm:$0xff] %v52
            %v54 = vld [vmem:[%s42 + $0x28] sm:$0xff]
            %55 = vst [vmem:[%s43 + $0x50] sm:$0xff] %v54
            %v56 = vld [vmem:[%s42 + $0x30] sm:$0xff]
            %57 = vst [vmem:[%s43 + $0x60] sm:$0xff] %v56
            %v58 = vld [vmem:[%s42 + $0x38] sm:$0xff]
            %59 = vst [vmem:[%s43 + $0x70] sm:$0xff] %v58
          $region29: #{reverse.5} parent=23 // loop_footer
            %s41 = sadd.s32 1, %s37
          $region30: #{reverse.5} parent=23 // loop_footer_branch
            %36 = sbr.rel target = $region26
          $region31: #{reverse.5} parent=23 // loop_exit
            _
        $region24: #{reverse.5} parent=8 // pred_fallthru
          _
        // Predicated region
        $region32: #{reverse.5} parent=8 // pred_check
          _
        $region33: #{reverse.5} parent=8 // pred_check_branch
          %61 = sbr.rel target = $region35
        $region34: #{reverse.5} parent=8 // pred_region
          _
        $region35: #{reverse.5} parent=8 // pred_fallthru
          _
      $region9: #{reverse.5} parent=4 // pred_fallthru
        _
      // Predicated region
      $region10: #{reverse.5} parent=4 // pred_check
        _
      $region11: #{reverse.5} parent=4 // pred_check_branch
        %8 = sbr.rel target = $region13
      $region12: #{reverse.5} parent=4 // pred_region
        loop: start=0, step=1, limit=1
        $region14: #{reverse.5} parent=12 // loop_pre_header
          _
        $region15: #{reverse.5} parent=12 // loop_header
          %s11 = sphi 0, %s15
          %p12 = scmp.ge.s32.totalorder %s11, 1
          %s16 = sphi %s0, %s0
          %s17 = sphi %s2, %s2
        $region16: #{reverse.5} parent=12 // loop_header_branch
          %14 = sbr.rel (%p12) target = $region20
        $region17: #{reverse.5} parent=12 // loop_body
          %v18 = vld [vmem:[%s16] sm:$0xff]
          %19 = vst [vmem:[%s17] sm:$0xff] %v18
          %v20 = vld [vmem:[%s16 + $0x8] sm:$0xff]
          %21 = vst [vmem:[%s17 + $0x10] sm:$0xff] %v20
          %v22 = vld [vmem:[%s16 + $0x10] sm:$0xff]
          %23 = vst [vmem:[%s17 + $0x20] sm:$0xff] %v22
          %v24 = vld [vmem:[%s16 + $0x18] sm:$0xff]
          %25 = vst [vmem:[%s17 + $0x30] sm:$0xff] %v24
          %v26 = vld [vmem:[%s16 + $0x20] sm:$0xff]
          %27 = vst [vmem:[%s17 + $0x40] sm:$0xff] %v26
          %v28 = vld [vmem:[%s16 + $0x28] sm:$0xff]
          %29 = vst [vmem:[%s17 + $0x50] sm:$0xff] %v28
          %v30 = vld [vmem:[%s16 + $0x30] sm:$0xff]
          %31 = vst [vmem:[%s17 + $0x60] sm:$0xff] %v30
          %v32 = vld [vmem:[%s16 + $0x38] sm:$0xff]
          %33 = vst [vmem:[%s17 + $0x70] sm:$0xff] %v32
        $region18: #{reverse.5} parent=12 // loop_footer
          %s15 = sadd.s32 1, %s11
        $region19: #{reverse.5} parent=12 // loop_footer_branch
          %10 = sbr.rel target = $region15
        $region20: #{reverse.5} parent=12 // loop_exit
          _
      $region13: #{reverse.5} parent=4 // pred_fallthru
        _
    $region5: #{reverse.5} parent=1 // pred_fallthru
      _
    %62 = vnop
    %s63 = scalar_lea.vmem [#allocation0], 7
    %v64 = vld [vmem:[%s63] ss:$-1 sm:$0xff]
    %v65 = vrot.slane %v64, 1
    %66 = vst [vmem:[#allocation1] sm:$0xff] %v65
    %s67 = scalar_lea.vmem [#allocation0], 8
    %s68 = scalar_lea.vmem %s67, 7 [#allocation0]
    %v69 = vld [vmem:[%s68] ss:$-1 sm:$0xff]
    %v70 = vrot.slane %v69, 1
    %v71 = vlaneseq
    %v72 = vshrl.u32 %v71, 7
    %vm73 = vcmp.lt.s32.totalorder %v72, 7
    %74 = vst.msk [vmem:[#allocation1] sm:$0xff] %vm73, %v70
    %s75 = scalar_lea.vmem [#allocation1], 8
    %s76 = scalar_lea.vmem [#allocation0], 16
    %s77 = scalar_lea.vmem %s76, 7 [#allocation0]
    %v78 = vld [vmem:[%s77] ss:$-1 sm:$0xff]
    %v79 = vrot.slane %v78, 1
    %80 = vst [vmem:[%s75] sm:$0xff] %v79
    %s81 = scalar_lea.vmem %s76, 8 [#allocation0]
    %s82 = scalar_lea.vmem %s81, 7 [#allocation0]
    %v83 = vld [vmem:[%s82] ss:$-1 sm:$0xff]
    %v84 = vrot.slane %v83, 1
    %v85 = vlaneseq
    %v86 = vshrl.u32 %v85, 7
    %vm87 = vcmp.lt.s32.totalorder %v86, 7
    %88 = vst.msk [vmem:[%s75] sm:$0xff] %vm87, %v84
    %s89 = scalar_lea.vmem [#allocation1], 16
    %s90 = scalar_lea.vmem [#allocation0], 32
    %s91 = scalar_lea.vmem %s90, 7 [#allocation0]
    %v92 = vld [vmem:[%s91] ss:$-1 sm:$0xff]
    %v93 = vrot.slane %v92, 1
    %94 = vst [vmem:[%s89] sm:$0xff] %v93
    %s95 = scalar_lea.vmem %s90, 8 [#allocation0]
    %s96 = scalar_lea.vmem %s95, 7 [#allocation0]
    %v97 = vld [vmem:[%s96] ss:$-1 sm:$0xff]
    %v98 = vrot.slane %v97, 1
    %v99 = vlaneseq
    %v100 = vshrl.u32 %v99, 7
    %vm101 = vcmp.lt.s32.totalorder %v100, 7
    %102 = vst.msk [vmem:[%s89] sm:$0xff] %vm101, %v98
    %s103 = scalar_lea.vmem [#allocation1], 24
    %s104 = scalar_lea.vmem [#allocation0], 48
    %s105 = scalar_lea.vmem %s104, 7 [#allocation0]
    %v106 = vld [vmem:[%s105] ss:$-1 sm:$0xff]
    %v107 = vrot.slane %v106, 1
    %108 = vst [vmem:[%s103] sm:$0xff] %v107
    %s109 = scalar_lea.vmem %s104, 8 [#allocation0]
    %s110 = scalar_lea.vmem %s109, 7 [#allocation0]
    %v111 = vld [vmem:[%s110] ss:$-1 sm:$0xff]
    %v112 = vrot.slane %v111, 1
    %v113 = vlaneseq
    %v114 = vshrl.u32 %v113, 7
    %vm115 = vcmp.lt.s32.totalorder %v114, 7
    %116 = vst.msk [vmem:[%s103] sm:$0xff] %vm115, %v112
    %s117 = scalar_lea.vmem [#allocation1], 32
    %s118 = scalar_lea.vmem [#allocation0], 64
    %s119 = scalar_lea.vmem %s118, 7 [#allocation0]
    %v120 = vld [vmem:[%s119] ss:$-1 sm:$0xff]
    %v121 = vrot.slane %v120, 1
    %122 = vst [vmem:[%s117] sm:$0xff] %v121
    %s123 = scalar_lea.vmem %s118, 8 [#allocation0]
    %s124 = scalar_lea.vmem %s123, 7 [#allocation0]
    %v125 = vld [vmem:[%s124] ss:$-1 sm:$0xff]
    %v126 = vrot.slane %v125, 1
    %v127 = vlaneseq
    %v128 = vshrl.u32 %v127, 7
    %vm129 = vcmp.lt.s32.totalorder %v128, 7
    %130 = vst.msk [vmem:[%s117] sm:$0xff] %vm129, %v126
    %s131 = scalar_lea.vmem [#allocation1], 40
    %s132 = scalar_lea.vmem [#allocation0], 80
    %s133 = scalar_lea.vmem %s132, 7 [#allocation0]
    %v134 = vld [vmem:[%s133] ss:$-1 sm:$0xff]
    %v135 = vrot.slane %v134, 1
    %136 = vst [vmem:[%s131] sm:$0xff] %v135
    %s137 = scalar_lea.vmem %s132, 8 [#allocation0]
    %s138 = scalar_lea.vmem %s137, 7 [#allocation0]
    %v139 = vld [vmem:[%s138] ss:$-1 sm:$0xff]
    %v140 = vrot.slane %v139, 1
    %v141 = vlaneseq
    %v142 = vshrl.u32 %v141, 7
    %vm143 = vcmp.lt.s32.totalorder %v142, 7
    %144 = vst.msk [vmem:[%s131] sm:$0xff] %vm143, %v140
    %s145 = scalar_lea.vmem [#allocation1], 48
    %s146 = scalar_lea.vmem [#allocation0], 96
    %s147 = scalar_lea.vmem %s146, 7 [#allocation0]
    %v148 = vld [vmem:[%s147] ss:$-1 sm:$0xff]
    %v149 = vrot.slane %v148, 1
    %150 = vst [vmem:[%s145] sm:$0xff] %v149
    %s151 = scalar_lea.vmem %s146, 8 [#allocation0]
    %s152 = scalar_lea.vmem %s151, 7 [#allocation0]
    %v153 = vld [vmem:[%s152] ss:$-1 sm:$0xff]
    %v154 = vrot.slane %v153, 1
    %v155 = vlaneseq
    %v156 = vshrl.u32 %v155, 7
    %vm157 = vcmp.lt.s32.totalorder %v156, 7
    %158 = vst.msk [vmem:[%s145] sm:$0xff] %vm157, %v154
    %s159 = scalar_lea.vmem [#allocation1], 56
    %s160 = scalar_lea.vmem [#allocation0], 112
    %s161 = scalar_lea.vmem %s160, 7 [#allocation0]
    %v162 = vld [vmem:[%s161] ss:$-1 sm:$0xff]
    %v163 = vrot.slane %v162, 1
    %164 = vst [vmem:[%s159] sm:$0xff] %v163
    %s165 = scalar_lea.vmem %s160, 8 [#allocation0]
    %s166 = scalar_lea.vmem %s165, 7 [#allocation0]
    %v167 = vld [vmem:[%s166] ss:$-1 sm:$0xff]
    %v168 = vrot.slane %v167, 1
    %v169 = vlaneseq
    %v170 = vshrl.u32 %v169, 7
    %vm171 = vcmp.lt.s32.totalorder %v170, 7
    %172 = vst.msk [vmem:[%s159] sm:$0xff] %vm171, %v168
    // Predicated region
    $region36: #{reverse.5} parent=1 // pred_check
      _
    $region37: #{reverse.5} parent=1 // pred_check_branch
      %174 = sbr.rel (0) target = $region39
    $region38: #{reverse.5} parent=1 // pred_region
      // Predicated region
      $region40: #{reverse.5} parent=38 // pred_check
        _
      $region41: #{reverse.5} parent=38 // pred_check_branch
        %176 = sbr.rel (0) target = $region43
      $region42: #{reverse.5} parent=38 // pred_region
        // Predicated region
        $region55: #{reverse.5} parent=42 // pred_check
          _
        $region56: #{reverse.5} parent=42 // pred_check_branch
          %205 = sbr.rel (0) target = $region58
        $region57: #{reverse.5} parent=42 // pred_region
          loop: start=0, step=1, limit=1
          $region59: #{reverse.5} parent=57 // loop_pre_header
            _
          $region60: #{reverse.5} parent=57 // loop_header
            %s207 = sphi 0, %s211
            %p208 = scmp.ge.s32.totalorder %s207, 1
            %s212 = sphi [#allocation1], [#allocation1]
            %s213 = sphi %s1, %s1
          $region61: #{reverse.5} parent=57 // loop_header_branch
            %210 = sbr.rel (%p208) target = $region65
          $region62: #{reverse.5} parent=57 // loop_body
            %v214 = vld [vmem:[%s212] sm:$0xff]
            %215 = vst [vmem:[%s213] sm:$0xff] %v214
            %v216 = vld [vmem:[%s212 + $0x8] sm:$0xff]
            %217 = vst [vmem:[%s213 + $0x8] sm:$0xff] %v216
            %v218 = vld [vmem:[%s212 + $0x10] sm:$0xff]
            %219 = vst [vmem:[%s213 + $0x10] sm:$0xff] %v218
            %v220 = vld [vmem:[%s212 + $0x18] sm:$0xff]
            %221 = vst [vmem:[%s213 + $0x18] sm:$0xff] %v220
            %v222 = vld [vmem:[%s212 + $0x20] sm:$0xff]
            %223 = vst [vmem:[%s213 + $0x20] sm:$0xff] %v222
            %v224 = vld [vmem:[%s212 + $0x28] sm:$0xff]
            %225 = vst [vmem:[%s213 + $0x28] sm:$0xff] %v224
            %v226 = vld [vmem:[%s212 + $0x30] sm:$0xff]
            %227 = vst [vmem:[%s213 + $0x30] sm:$0xff] %v226
            %v228 = vld [vmem:[%s212 + $0x38] sm:$0xff]
            %229 = vst [vmem:[%s213 + $0x38] sm:$0xff] %v228
          $region63: #{reverse.5} parent=57 // loop_footer
            %s211 = sadd.s32 1, %s207
          $region64: #{reverse.5} parent=57 // loop_footer_branch
            %206 = sbr.rel target = $region60
          $region65: #{reverse.5} parent=57 // loop_exit
            _
        $region58: #{reverse.5} parent=42 // pred_fallthru
          _
        // Predicated region
        $region66: #{reverse.5} parent=42 // pred_check
          _
        $region67: #{reverse.5} parent=42 // pred_check_branch
          %231 = sbr.rel target = $region69
        $region68: #{reverse.5} parent=42 // pred_region
          _
        $region69: #{reverse.5} parent=42 // pred_fallthru
          _
      $region43: #{reverse.5} parent=38 // pred_fallthru
        _
      // Predicated region
      $region44: #{reverse.5} parent=38 // pred_check
        _
      $region45: #{reverse.5} parent=38 // pred_check_branch
        %178 = sbr.rel target = $region47
      $region46: #{reverse.5} parent=38 // pred_region
        loop: start=0, step=1, limit=1
        $region48: #{reverse.5} parent=46 // loop_pre_header
          _
        $region49: #{reverse.5} parent=46 // loop_header
          %s181 = sphi 0, %s185
          %p182 = scmp.ge.s32.totalorder %s181, 1
          %s186 = sphi [#allocation1], [#allocation1]
          %s187 = sphi %s1, %s1
        $region50: #{reverse.5} parent=46 // loop_header_branch
          %184 = sbr.rel (%p182) target = $region54
        $region51: #{reverse.5} parent=46 // loop_body
          %v188 = vld [vmem:[%s186] sm:$0xff]
          %189 = vst [vmem:[%s187] sm:$0xff] %v188
          %v190 = vld [vmem:[%s186 + $0x8] sm:$0xff]
          %191 = vst [vmem:[%s187 + $0x8] sm:$0xff] %v190
          %v192 = vld [vmem:[%s186 + $0x10] sm:$0xff]
          %193 = vst [vmem:[%s187 + $0x10] sm:$0xff] %v192
          %v194 = vld [vmem:[%s186 + $0x18] sm:$0xff]
          %195 = vst [vmem:[%s187 + $0x18] sm:$0xff] %v194
          %v196 = vld [vmem:[%s186 + $0x20] sm:$0xff]
          %197 = vst [vmem:[%s187 + $0x20] sm:$0xff] %v196
          %v198 = vld [vmem:[%s186 + $0x28] sm:$0xff]
          %199 = vst [vmem:[%s187 + $0x28] sm:$0xff] %v198
          %v200 = vld [vmem:[%s186 + $0x30] sm:$0xff]
          %201 = vst [vmem:[%s187 + $0x30] sm:$0xff] %v200
          %v202 = vld [vmem:[%s186 + $0x38] sm:$0xff]
          %203 = vst [vmem:[%s187 + $0x38] sm:$0xff] %v202
        $region52: #{reverse.5} parent=46 // loop_footer
          %s185 = sadd.s32 1, %s181
        $region53: #{reverse.5} parent=46 // loop_footer_branch
          %180 = sbr.rel target = $region49
        $region54: #{reverse.5} parent=46 // loop_exit
          _
      $region47: #{reverse.5} parent=38 // pred_fallthru
        _
    $region39: #{reverse.5} parent=1 // pred_fallthru
      _
    %232 = vnop

// kernel: fgmm_forward.13
$region0: #{fgmm_forward.13}
  #allocation0 [shape = 'u32[]', space=smem, size = 0x4, offset = 0x4, fixed_abs, tag = 'smem constant byte address 0x4 - core index']
  #allocation1 [shape = 'u32[144,128]{1,0:T(1,128)}', space=vmem, size = 0x12000, scoped, tag = 'internal scratch']
  %s0 = inlined_call_operand.vmem [shape: f32[2,18,11,8], index: 0, kind: input, shape index: {}]
  %s1 = inlined_call_operand.vmem [shape: f32[9,1,8], index: 1, kind: input, shape index: {}]
  %s2 = inlined_call_operand.vmem [shape: f32[1,8], index: 2, kind: input, shape index: {}]
  %s3 = inlined_call_operand.vmem [shape: f32[2,16,9,8], index: 3, kind: output, shape index: {}]
  %s4 = sld [smem:[#allocation0]]
  $region45: #{fgmm_forward.13} parent=0
    _
  %s6 = ssub.s32 1, %s4
  %s7 = scalar_select 0, %s6, %s4
  loop: start=0, step=1, limit=4
  $region2: #{fgmm_forward.13} parent=0 // loop_pre_header
    _
  $region3: #{fgmm_forward.13} parent=0 // loop_header
    %s9 = sphi 0, %s13
    %p10 = scmp.ge.s32.totalorder %s9, 4
    %s19 = sphi 0, %s21
    %s22 = sphi 0, %s19
    %s23 = sphi 0, %s22
    %s39 = sphi 0, %s23
    %s43 = sphi 0, %s43
    %s45 = sphi 0, %s43
    %s46 = sphi 0, %s45
    %s60 = sphi 0, %s46
    %s64 = sphi 0, %s64
    %s66 = sphi 0, %s64
    %s67 = sphi 0, %s66
    %s81 = sphi 0, %s67
    %s87 = sphi 0, %s89
    %s90 = sphi 0, %s87
    %s91 = sphi 0, %s90
    %s107 = sphi 0, %s91
  $region4: #{fgmm_forward.13} parent=0 // loop_header_branch
    %12 = sbr.rel (%p10) target = $region8
  $region5: #{fgmm_forward.13} parent=0 // loop_body
    %s14 = ssub.s32 %s9, 1
    %s15 = ssub.s32 %s9, 2
    %s16 = sadd.s32 %s9, 1
    %s17 = ssub.s32 %s9, %s16
    %p18 = scmp.eq.s32.totalorder %s17, 0
    %s20 = sadd.s32 %s19, 1
    %s21 = scalar_select %p18, %s19, %s20
    %p24 = pneg %p18
    %p25 = scmp.eq.s32.totalorder %s9, 1
    %p26 = por %p24, %p25
    %p27 = scmp.ne.s32.totalorder %s19, %s22
    %p28 = scmp.eq.s32.totalorder %s9, 0
    %p29 = por %p27, %p28
    %p30 = scmp.ne.s32.totalorder %s19, %s22
    %p31 = scmp.eq.s32.totalorder %s14, 1
    %p32 = por %p30, %p31
    %p33 = scmp.ne.s32.totalorder %s22, %s23
    %p34 = scmp.eq.s32.totalorder %s14, 0
    %p35 = por %p33, %p34
    %p36 = scmp.ne.s32.totalorder %s22, %s23
    %p37 = scmp.eq.s32.totalorder %s15, 1
    %p38 = por %p36, %p37
    %p40 = scmp.ne.s32.totalorder %s23, %s39
    %p41 = scmp.eq.s32.totalorder %s15, 0
    %p42 = por %p40, %p41
    %s44 = sadd.s32 %s43, 1
    %p47 = scmp.eq.s32.totalorder %s9, 1
    %p48 = scmp.ne.s32.totalorder %s43, %s45
    %p49 = scmp.eq.s32.totalorder %s9, 0
    %p50 = por %p48, %p49
    %p51 = scmp.ne.s32.totalorder %s43, %s45
    %p52 = scmp.eq.s32.totalorder %s14, 1
    %p53 = por %p51, %p52
    %p54 = scmp.ne.s32.totalorder %s45, %s46
    %p55 = scmp.eq.s32.totalorder %s14, 0
    %p56 = por %p54, %p55
    %p57 = scmp.ne.s32.totalorder %s45, %s46
    %p58 = scmp.eq.s32.totalorder %s15, 1
    %p59 = por %p57, %p58
    %p61 = scmp.ne.s32.totalorder %s46, %s60
    %p62 = scmp.eq.s32.totalorder %s15, 0
    %p63 = por %p61, %p62
    %s65 = sadd.s32 %s64, 1
    %p68 = scmp.eq.s32.totalorder %s9, 1
    %p69 = scmp.ne.s32.totalorder %s64, %s66
    %p70 = scmp.eq.s32.totalorder %s9, 0
    %p71 = por %p69, %p70
    %p72 = scmp.ne.s32.totalorder %s64, %s66
    %p73 = scmp.eq.s32.totalorder %s14, 1
    %p74 = por %p72, %p73
    %p75 = scmp.ne.s32.totalorder %s66, %s67
    %p76 = scmp.eq.s32.totalorder %s14, 0
    %p77 = por %p75, %p76
    %p78 = scmp.ne.s32.totalorder %s66, %s67
    %p79 = scmp.eq.s32.totalorder %s15, 1
    %p80 = por %p78, %p79
    %p82 = scmp.ne.s32.totalorder %s67, %s81
    %p83 = scmp.eq.s32.totalorder %s15, 0
    %p84 = por %p82, %p83
    %s85 = ssub.s32 %s9, %s16
    %p86 = scmp.eq.s32.totalorder %s85, 0
    %s88 = sadd.s32 %s87, 1
    %s89 = scalar_select %p86, %s87, %s88
    %p92 = pneg %p86
    %p93 = scmp.eq.s32.totalorder %s9, 1
    %p94 = por %p92, %p93
    %p95 = scmp.ne.s32.totalorder %s87, %s90
    %p96 = scmp.eq.s32.totalorder %s9, 0
    %p97 = por %p95, %p96
    %p98 = scmp.ne.s32.totalorder %s87, %s90
    %p99 = scmp.eq.s32.totalorder %s14, 1
    %p100 = por %p98, %p99
    %p101 = scmp.ne.s32.totalorder %s90, %s91
    %p102 = scmp.eq.s32.totalorder %s14, 0
    %p103 = por %p101, %p102
    %p104 = scmp.ne.s32.totalorder %s90, %s91
    %p105 = scmp.eq.s32.totalorder %s15, 1
    %p106 = por %p104, %p105
    %p108 = scmp.ne.s32.totalorder %s91, %s107
    %p109 = scmp.eq.s32.totalorder %s15, 0
    %p110 = por %p108, %p109
    %p111 = scmp.le.s32.totalorder 1, %s9
    %p112 = scmp.lt.s32.totalorder %s9, 3
    %p113 = pnand %p111, %p112
    %p114 = pneg %p113
    // Predicated region
    $region9: #{fgmm_forward.13} parent=5 // pred_check
      _
    $region10: #{fgmm_forward.13} parent=5 // pred_check_branch
      %116 = sbr.rel (%p113) target = $region12
    $region11: #{fgmm_forward.13} parent=5 // pred_region
      %s117 = ssub.s32 %s9, 1
      // Predicated region
      $region13: #{fgmm_forward.13} parent=11 // pred_check
        %p118 = pneg %p56
      $region14: #{fgmm_forward.13} parent=11 // pred_check_branch
        %120 = sbr.rel (%p118) target = $region16
      $region15: #{fgmm_forward.13} parent=11 // pred_region
        _
      $region16: #{fgmm_forward.13} parent=11 // pred_fallthru
        _
      // Predicated region
      $region17: #{fgmm_forward.13} parent=11 // pred_check
        %p121 = pneg %p77
      $region18: #{fgmm_forward.13} parent=11 // pred_check_branch
        %123 = sbr.rel (%p121) target = $region20
      $region19: #{fgmm_forward.13} parent=11 // pred_region
        _
      $region20: #{fgmm_forward.13} parent=11 // pred_fallthru
        _
    $region12: #{fgmm_forward.13} parent=5 // pred_fallthru
      _
    %p124 = scmp.lt.s32.totalorder %s9, 2
    // Predicated region
    $region21: #{fgmm_forward.13} parent=5 // pred_check
      %p125 = pneg %p124
    $region22: #{fgmm_forward.13} parent=5 // pred_check_branch
      %127 = sbr.rel (%p125) target = $region24
    $region23: #{fgmm_forward.13} parent=5 // pred_region
      // Predicated region
      $region25: #{fgmm_forward.13} parent=23 // pred_check
        %p128 = pneg %p29
      $region26: #{fgmm_forward.13} parent=23 // pred_check_branch
        %130 = sbr.rel (%p128) target = $region28
      $region27: #{fgmm_forward.13} parent=23 // pred_region
        %p131 = scmp.lt.s32.totalorder %s9, 1
        %s132 = scalar_select %p131, %s9, 1
        %s133 = smul.addr %s132, 36
        %s134 = smul.addr %s133, 8
        %s135 = scalar_lea.vmem %s0, %s134
      $region28: #{fgmm_forward.13} parent=23 // pred_fallthru
        _
    $region24: #{fgmm_forward.13} parent=5 // pred_fallthru
      _
    %p136 = scmp.le.s32.totalorder 1, %s9
    %p137 = scmp.lt.s32.totalorder %s9, 3
    %p138 = pnand %p136, %p137
    %p139 = pneg %p138
    // Predicated region
    $region29: #{fgmm_forward.13} parent=5 // pred_check
      _
    $region30: #{fgmm_forward.13} parent=5 // pred_check_branch
      %141 = sbr.rel (%p138) target = $region32
    $region31: #{fgmm_forward.13} parent=5 // pred_region
      %s142 = ssub.s32 %s9, 1
      %p143 = scmp.lt.s32.totalorder %s14, 1
      %s144 = scalar_select %p143, %s14, 1
      %s145 = smul.addr %s144, 36
      %s146 = smul.addr %s145, 8
      %s147 = scalar_lea.vmem %s0, %s146
      %p148 = pneg %p35
      %p149 = pneg %p32
      %p150 = pneg %p56
      %p151 = pneg %p53
      %p152 = pneg %p77
      %p153 = pneg %p74
      %p154 = pneg %p103
      %p155 = pneg %p100
      %p156 = scmp.lt.s32.totalorder %s14, 1
      %s157 = scalar_select %p156, %s14, 1
      %s158 = smul.addr %s157, 32
      %s159 = smul.addr %s158, 8
      %s160 = scalar_lea.vmem %s3, %s159
      %p161 = scmp.lt.s32.totalorder %s14, 1
      %s162 = scalar_select %p161, %s14, 1
      %s163 = smul.addr %s162, 36
      %s164 = smul.addr %s163, 8
      %s165 = scalar_lea.vmem %s0, %s164
      %p166 = scmp.lt.s32.totalorder %s14, 1
      %s167 = scalar_select %p166, %s14, 1
      %s168 = smul.addr %s167, 32
      %s169 = smul.addr %s168, 8
      %s170 = scalar_lea.vmem %s3, %s169
      %v171 = vld [vmem:[%s165] sm:$0xff]
      %v172 = vld [vmem:[%s165 + $0x8] sm:$0x7]
      %v173 = vld [vmem:[%s165 + $0x10] sm:$0xff]
      %v174 = vld [vmem:[%s165 + $0x18] sm:$0x7]
      %v175 = vld [vmem:[%s165 + $0x20] sm:$0xff]
      %v176 = vld [vmem:[%s165 + $0x28] sm:$0x7]
      %v177 = vld [vmem:[%s165 + $0x30] sm:$0xff]
      %v178 = vld [vmem:[%s165 + $0x38] sm:$0x7]
      %v179 = vld [vmem:[%s165 + $0x40] sm:$0xff]
      %v180 = vld [vmem:[%s165 + $0x48] sm:$0x7]
      %v181 = vld [vmem:[%s165 + $0x50] sm:$0xff]
      %v182 = vld [vmem:[%s165 + $0x58] sm:$0x7]
      %v183 = vld [vmem:[%s165 + $0x60] sm:$0xff]
      %v184 = vld [vmem:[%s165 + $0x68] sm:$0x7]
      %v185 = vld [vmem:[%s165 + $0x70] sm:$0xff]
      %v186 = vld [vmem:[%s165 + $0x78] sm:$0x7]
      %v187 = vld [vmem:[%s165 + $0x80] sm:$0xff]
      %v188 = vld [vmem:[%s165 + $0x88] sm:$0x7]
      %v189 = vld [vmem:[%s165 + $0x90] sm:$0xff]
      %v190 = vld [vmem:[%s165 + $0x98] sm:$0x7]
      %v191 = vld [vmem:[%s165 + $0xa0] sm:$0xff]
      %v192 = vld [vmem:[%s165 + $0xa8] sm:$0x7]
      %v193 = vld [vmem:[%s165 + $0xb0] sm:$0xff]
      %v194 = vld [vmem:[%s165 + $0xb8] sm:$0x7]
      %v195 = vld [vmem:[%s165 + $0xc0] sm:$0xff]
      %v196 = vld [vmem:[%s165 + $0xc8] sm:$0x7]
      %v197 = vld [vmem:[%s165 + $0xd0] sm:$0xff]
      %v198 = vld [vmem:[%s165 + $0xd8] sm:$0x7]
      %v199 = vld [vmem:[%s165 + $0xe0] sm:$0xff]
      %v200 = vld [vmem:[%s165 + $0xe8] sm:$0x7]
      %v201 = vld [vmem:[%s165 + $0xf0] sm:$0xff]
      %v202 = vld [vmem:[%s165 + $0xf8] sm:$0x7]
      %v203 = vld [vmem:[%s165 + $0x100] sm:$0xff]
      %v204 = vld [vmem:[%s165 + $0x108] sm:$0x7]
      %v205 = vld [vmem:[%s165 + $0x110] sm:$0xff]
      %v206 = vld [vmem:[%s165 + $0x118] sm:$0x7]
      %v207 = vld [vmem:[%s1] sm:$0x1]
      %v209 = vlaneseq
      %v210 = vshrl.u32 %v209, 7
      %v211 = vsub.s32 0, %v210
      %v212 = vrot.slane %v207, %v211
      %v214 = vmul.f32 %v171, %v212
      %v215 = vmul.f32 %v172, %v212
      %v216 = vmul.f32 %v173, %v212
      %v217 = vmul.f32 %v174, %v212
      %v218 = vmul.f32 %v175, %v212
      %v219 = vmul.f32 %v176, %v212
      %v220 = vmul.f32 %v177, %v212
      %v221 = vmul.f32 %v178, %v212
      %v222 = vmul.f32 %v179, %v212
      %v223 = vmul.f32 %v180, %v212
      %v224 = vmul.f32 %v181, %v212
      %v225 = vmul.f32 %v182, %v212
      %v226 = vmul.f32 %v183, %v212
      %v227 = vmul.f32 %v184, %v212
      %v228 = vmul.f32 %v185, %v212
      %v229 = vmul.f32 %v186, %v212
      %v230 = vmul.f32 %v187, %v212
      %v231 = vmul.f32 %v188, %v212
      %v232 = vmul.f32 %v189, %v212
      %v233 = vmul.f32 %v190, %v212
      %v234 = vmul.f32 %v191, %v212
      %v235 = vmul.f32 %v192, %v212
      %v236 = vmul.f32 %v193, %v212
      %v237 = vmul.f32 %v194, %v212
      %v238 = vmul.f32 %v195, %v212
      %v239 = vmul.f32 %v196, %v212
      %v240 = vmul.f32 %v197, %v212
      %v241 = vmul.f32 %v198, %v212
      %v242 = vmul.f32 %v199, %v212
      %v243 = vmul.f32 %v200, %v212
      %v244 = vmul.f32 %v201, %v212
      %v245 = vmul.f32 %v202, %v212
      %v246 = vadd.f32 %v214, 0.0
      %v247 = vadd.f32 %v215, 0.0
      %v248 = vadd.f32 %v216, 0.0
      %v249 = vadd.f32 %v217, 0.0
      %v250 = vadd.f32 %v218, 0.0
      %v251 = vadd.f32 %v219, 0.0
      %v252 = vadd.f32 %v220, 0.0
      %v253 = vadd.f32 %v221, 0.0
      %v254 = vadd.f32 %v222, 0.0
      %v255 = vadd.f32 %v223, 0.0
      %v256 = vadd.f32 %v224, 0.0
      %v257 = vadd.f32 %v225, 0.0
      %v258 = vadd.f32 %v226, 0.0
      %v259 = vadd.f32 %v227, 0.0
      %v260 = vadd.f32 %v228, 0.0
      %v261 = vadd.f32 %v229, 0.0
      %v262 = vadd.f32 %v230, 0.0
      %v263 = vadd.f32 %v231, 0.0
      %v264 = vadd.f32 %v232, 0.0
      %v265 = vadd.f32 %v233, 0.0
      %v266 = vadd.f32 %v234, 0.0
      %v267 = vadd.f32 %v235, 0.0
      %v268 = vadd.f32 %v236, 0.0
      %v269 = vadd.f32 %v237, 0.0
      %v270 = vadd.f32 %v238, 0.0
      %v271 = vadd.f32 %v239, 0.0
      %v272 = vadd.f32 %v240, 0.0
      %v273 = vadd.f32 %v241, 0.0
      %v274 = vadd.f32 %v242, 0.0
      %v275 = vadd.f32 %v243, 0.0
      %v276 = vadd.f32 %v244, 0.0
      %v277 = vadd.f32 %v245, 0.0
      %s278 = scalar_lea.vmem %s1, 1
      %v279 = vld [vmem:[%s278] sm:$0x1]
      %v281 = vlaneseq
      %v282 = vshrl.u32 %v281, 7
      %v283 = vsub.s32 0, %v282
      %v284 = vrot.slane %v279, %v283
      %v286 = vmul.f32 %v171, %v284
      %v287 = vmul.f32 %v172, %v284
      %v288 = vmul.f32 %v173, %v284
      %v289 = vmul.f32 %v174, %v284
      %v290 = vmul.f32 %v175, %v284
      %v291 = vmul.f32 %v176, %v284
      %v292 = vmul.f32 %v177, %v284
      %v293 = vmul.f32 %v178, %v284
      %v294 = vmul.f32 %v179, %v284
      %v295 = vmul.f32 %v180, %v284
      %v296 = vmul.f32 %v181, %v284
      %v297 = vmul.f32 %v182, %v284
      %v298 = vmul.f32 %v183, %v284
      %v299 = vmul.f32 %v184, %v284
      %v300 = vmul.f32 %v185, %v284
      %v301 = vmul.f32 %v186, %v284
      %v302 = vmul.f32 %v187, %v284
      %v303 = vmul.f32 %v188, %v284
      %v304 = vmul.f32 %v189, %v284
      %v305 = vmul.f32 %v190, %v284
      %v306 = vmul.f32 %v191, %v284
      %v307 = vmul.f32 %v192, %v284
      %v308 = vmul.f32 %v193, %v284
      %v309 = vmul.f32 %v194, %v284
      %v310 = vmul.f32 %v195, %v284
      %v311 = vmul.f32 %v196, %v284
      %v312 = vmul.f32 %v197, %v284
      %v313 = vmul.f32 %v198, %v284
      %v314 = vmul.f32 %v199, %v284
      %v315 = vmul.f32 %v200, %v284
      %v316 = vmul.f32 %v201, %v284
      %v317 = vmul.f32 %v202, %v284
      %vm350 = vcmask 1046528
      %v351 = vrot.slane %v286, 1
      %v352 = vrot.slane %v287, 1
      %v353 = vsel %vm350, %v351, %v352
      %v354 = vrot.slane %v288, 1
      %v355 = vrot.slane %v289, 1
      %v356 = vsel %vm350, %v354, %v355
      %v357 = vrot.slane %v290, 1
      %v358 = vrot.slane %v291, 1
      %v359 = vsel %vm350, %v357, %v358
      %v360 = vrot.slane %v292, 1
      %v361 = vrot.slane %v293, 1
      %v362 = vsel %vm350, %v360, %v361
      %v363 = vrot.slane %v294, 1
      %v364 = vrot.slane %v295, 1
      %v365 = vsel %vm350, %v363, %v364
      %v366 = vrot.slane %v296, 1
      %v367 = vrot.slane %v297, 1
      %v368 = vsel %vm350, %v366, %v367
      %v369 = vrot.slane %v298, 1
      %v370 = vrot.slane %v299, 1
      %v371 = vsel %vm350, %v369, %v370
      %v372 = vrot.slane %v300, 1
      %v373 = vrot.slane %v301, 1
      %v374 = vsel %vm350, %v372, %v373
      %v375 = vrot.slane %v302, 1
      %v376 = vrot.slane %v303, 1
      %v377 = vsel %vm350, %v375, %v376
      %v378 = vrot.slane %v304, 1
      %v379 = vrot.slane %v305, 1
      %v380 = vsel %vm350, %v378, %v379
      %v381 = vrot.slane %v306, 1
      %v382 = vrot.slane %v307, 1
      %v383 = vsel %vm350, %v381, %v382
      %v384 = vrot.slane %v308, 1
      %v385 = vrot.slane %v309, 1
      %v386 = vsel %vm350, %v384, %v385
      %v387 = vrot.slane %v310, 1
      %v388 = vrot.slane %v311, 1
      %v389 = vsel %vm350, %v387, %v388
      %v390 = vrot.slane %v312, 1
      %v391 = vrot.slane %v313, 1
      %v392 = vsel %vm350, %v390, %v391
      %v393 = vrot.slane %v314, 1
      %v394 = vrot.slane %v315, 1
      %v395 = vsel %vm350, %v393, %v394
      %v396 = vrot.slane %v316, 1
      %v397 = vrot.slane %v317, 1
      %v398 = vsel %vm350, %v396, %v397
      %v431 = vadd.f32 %v246, %v353
      %v432 = vadd.f32 %v247, %v352
      %v433 = vadd.f32 %v248, %v356
      %v434 = vadd.f32 %v249, %v355
      %v435 = vadd.f32 %v250, %v359
      %v436 = vadd.f32 %v251, %v358
      %v437 = vadd.f32 %v252, %v362
      %v438 = vadd.f32 %v253, %v361
      %v439 = vadd.f32 %v254, %v365
      %v440 = vadd.f32 %v255, %v364
      %v441 = vadd.f32 %v256, %v368
      %v442 = vadd.f32 %v257, %v367
      %v443 = vadd.f32 %v258, %v371
      %v444 = vadd.f32 %v259, %v370
      %v445 = vadd.f32 %v260, %v374
      %v446 = vadd.f32 %v261, %v373
      %v447 = vadd.f32 %v262, %v377
      %v448 = vadd.f32 %v263, %v376
      %v449 = vadd.f32 %v264, %v380
      %v450 = vadd.f32 %v265, %v379
      %v451 = vadd.f32 %v266, %v383
      %v452 = vadd.f32 %v267, %v382
      %v453 = vadd.f32 %v268, %v386
      %v454 = vadd.f32 %v269, %v385
      %v455 = vadd.f32 %v270, %v389
      %v456 = vadd.f32 %v271, %v388
      %v457 = vadd.f32 %v272, %v392
      %v458 = vadd.f32 %v273, %v391
      %v459 = vadd.f32 %v274, %v395
      %v460 = vadd.f32 %v275, %v394
      %v461 = vadd.f32 %v276, %v398
      %v462 = vadd.f32 %v277, %v397
      %s463 = scalar_lea.vmem %s1, 2
      %v464 = vld [vmem:[%s463] sm:$0x1]
      %v466 = vlaneseq
      %v467 = vshrl.u32 %v466, 7
      %v468 = vsub.s32 0, %v467
      %v469 = vrot.slane %v464, %v468
      %v471 = vmul.f32 %v171, %v469
      %v472 = vmul.f32 %v172, %v469
      %v473 = vmul.f32 %v173, %v469
      %v474 = vmul.f32 %v174, %v469
      %v475 = vmul.f32 %v175, %v469
      %v476 = vmul.f32 %v176, %v469
      %v477 = vmul.f32 %v177, %v469
      %v478 = vmul.f32 %v178, %v469
      %v479 = vmul.f32 %v179, %v469
      %v480 = vmul.f32 %v180, %v469
      %v481 = vmul.f32 %v181, %v469
      %v482 = vmul.f32 %v182, %v469
      %v483 = vmul.f32 %v183, %v469
      %v484 = vmul.f32 %v184, %v469
      %v485 = vmul.f32 %v185, %v469
      %v486 = vmul.f32 %v186, %v469
      %v487 = vmul.f32 %v187, %v469
      %v488 = vmul.f32 %v188, %v469
      %v489 = vmul.f32 %v189, %v469
      %v490 = vmul.f32 %v190, %v469
      %v491 = vmul.f32 %v191, %v469
      %v492 = vmul.f32 %v192, %v469
      %v493 = vmul.f32 %v193, %v469
      %v494 = vmul.f32 %v194, %v469
      %v495 = vmul.f32 %v195, %v469
      %v496 = vmul.f32 %v196, %v469
      %v497 = vmul.f32 %v197, %v469
      %v498 = vmul.f32 %v198, %v469
      %v499 = vmul.f32 %v199, %v469
      %v500 = vmul.f32 %v200, %v469
      %v501 = vmul.f32 %v201, %v469
      %v502 = vmul.f32 %v202, %v469
      %vm535 = vcmask 1045504
      %v536 = vrot.slane %v471, 2
      %v537 = vrot.slane %v472, 2
      %v538 = vsel %vm535, %v536, %v537
      %v539 = vrot.slane %v473, 2
      %v540 = vrot.slane %v474, 2
      %v541 = vsel %vm535, %v539, %v540
      %v542 = vrot.slane %v475, 2
      %v543 = vrot.slane %v476, 2
      %v544 = vsel %vm535, %v542, %v543
      %v545 = vrot.slane %v477, 2
      %v546 = vrot.slane %v478, 2
      %v547 = vsel %vm535, %v545, %v546
      %v548 = vrot.slane %v479, 2
      %v549 = vrot.slane %v480, 2
      %v550 = vsel %vm535, %v548, %v549
      %v551 = vrot.slane %v481, 2
      %v552 = vrot.slane %v482, 2
      %v553 = vsel %vm535, %v551, %v552
      %v554 = vrot.slane %v483, 2
      %v555 = vrot.slane %v484, 2
      %v556 = vsel %vm535, %v554, %v555
      %v557 = vrot.slane %v485, 2
      %v558 = vrot.slane %v486, 2
      %v559 = vsel %vm535, %v557, %v558
      %v560 = vrot.slane %v487, 2
      %v561 = vrot.slane %v488, 2
      %v562 = vsel %vm535, %v560, %v561
      %v563 = vrot.slane %v489, 2
      %v564 = vrot.slane %v490, 2
      %v565 = vsel %vm535, %v563, %v564
      %v566 = vrot.slane %v491, 2
      %v567 = vrot.slane %v492, 2
      %v568 = vsel %vm535, %v566, %v567
      %v569 = vrot.slane %v493, 2
      %v570 = vrot.slane %v494, 2
      %v571 = vsel %vm535, %v569, %v570
      %v572 = vrot.slane %v495, 2
      %v573 = vrot.slane %v496, 2
      %v574 = vsel %vm535, %v572, %v573
      %v575 = vrot.slane %v497, 2
      %v576 = vrot.slane %v498, 2
      %v577 = vsel %vm535, %v575, %v576
      %v578 = vrot.slane %v499, 2
      %v579 = vrot.slane %v500, 2
      %v580 = vsel %vm535, %v578, %v579
      %v581 = vrot.slane %v501, 2
      %v582 = vrot.slane %v502, 2
      %v583 = vsel %vm535, %v581, %v582
      %v616 = vadd.f32 %v431, %v538
      %v617 = vadd.f32 %v432, %v537
      %v618 = vadd.f32 %v433, %v541
      %v619 = vadd.f32 %v434, %v540
      %v620 = vadd.f32 %v435, %v544
      %v621 = vadd.f32 %v436, %v543
      %v622 = vadd.f32 %v437, %v547
      %v623 = vadd.f32 %v438, %v546
      %v624 = vadd.f32 %v439, %v550
      %v625 = vadd.f32 %v440, %v549
      %v626 = vadd.f32 %v441, %v553
      %v627 = vadd.f32 %v442, %v552
      %v628 = vadd.f32 %v443, %v556
      %v629 = vadd.f32 %v444, %v555
      %v630 = vadd.f32 %v445, %v559
      %v631 = vadd.f32 %v446, %v558
      %v632 = vadd.f32 %v447, %v562
      %v633 = vadd.f32 %v448, %v561
      %v634 = vadd.f32 %v449, %v565
      %v635 = vadd.f32 %v450, %v564
      %v636 = vadd.f32 %v451, %v568
      %v637 = vadd.f32 %v452, %v567
      %v638 = vadd.f32 %v453, %v571
      %v639 = vadd.f32 %v454, %v570
      %v640 = vadd.f32 %v455, %v574
      %v641 = vadd.f32 %v456, %v573
      %v642 = vadd.f32 %v457, %v577
      %v643 = vadd.f32 %v458, %v576
      %v644 = vadd.f32 %v459, %v580
      %v645 = vadd.f32 %v460, %v579
      %v646 = vadd.f32 %v461, %v583
      %v647 = vadd.f32 %v462, %v582
      %s648 = scalar_lea.vmem %s1, 3
      %v649 = vld [vmem:[%s648] sm:$0x1]
      %v651 = vlaneseq
      %v652 = vshrl.u32 %v651, 7
      %v653 = vsub.s32 0, %v652
      %v654 = vrot.slane %v649, %v653
      %v656 = vmul.f32 %v173, %v654
      %v657 = vmul.f32 %v174, %v654
      %v658 = vmul.f32 %v175, %v654
      %v659 = vmul.f32 %v176, %v654
      %v660 = vmul.f32 %v177, %v654
      %v661 = vmul.f32 %v178, %v654
      %v662 = vmul.f32 %v179, %v654
      %v663 = vmul.f32 %v180, %v654
      %v664 = vmul.f32 %v181, %v654
      %v665 = vmul.f32 %v182, %v654
      %v666 = vmul.f32 %v183, %v654
      %v667 = vmul.f32 %v184, %v654
      %v668 = vmul.f32 %v185, %v654
      %v669 = vmul.f32 %v186, %v654
      %v670 = vmul.f32 %v187, %v654
      %v671 = vmul.f32 %v188, %v654
      %v672 = vmul.f32 %v189, %v654
      %v673 = vmul.f32 %v190, %v654
      %v674 = vmul.f32 %v191, %v654
      %v675 = vmul.f32 %v192, %v654
      %v676 = vmul.f32 %v193, %v654
      %v677 = vmul.f32 %v194, %v654
      %v678 = vmul.f32 %v195, %v654
      %v679 = vmul.f32 %v196, %v654
      %v680 = vmul.f32 %v197, %v654
      %v681 = vmul.f32 %v198, %v654
      %v682 = vmul.f32 %v199, %v654
      %v683 = vmul.f32 %v200, %v654
      %v684 = vmul.f32 %v201, %v654
      %v685 = vmul.f32 %v202, %v654
      %v686 = vmul.f32 %v203, %v654
      %v687 = vmul.f32 %v204, %v654
      %v688 = vadd.f32 %v616, %v656
      %v689 = vadd.f32 %v617, %v657
      %v690 = vadd.f32 %v618, %v658
      %v691 = vadd.f32 %v619, %v659
      %v692 = vadd.f32 %v620, %v660
      %v693 = vadd.f32 %v621, %v661
      %v694 = vadd.f32 %v622, %v662
      %v695 = vadd.f32 %v623, %v663
      %v696 = vadd.f32 %v624, %v664
      %v697 = vadd.f32 %v625, %v665
      %v698 = vadd.f32 %v626, %v666
      %v699 = vadd.f32 %v627, %v667
      %v700 = vadd.f32 %v628, %v668
      %v701 = vadd.f32 %v629, %v669
      %v702 = vadd.f32 %v630, %v670
      %v703 = vadd.f32 %v631, %v671
      %v704 = vadd.f32 %v632, %v672
      %v705 = vadd.f32 %v633, %v673
      %v706 = vadd.f32 %v634, %v674
      %v707 = vadd.f32 %v635, %v675
      %v708 = vadd.f32 %v636, %v676
      %v709 = vadd.f32 %v637, %v677
      %v710 = vadd.f32 %v638, %v678
      %v711 = vadd.f32 %v639, %v679
      %v712 = vadd.f32 %v640, %v680
      %v713 = vadd.f32 %v641, %v681
      %v714 = vadd.f32 %v642, %v682
      %v715 = vadd.f32 %v643, %v683
      %v716 = vadd.f32 %v644, %v684
      %v717 = vadd.f32 %v645, %v685
      %v718 = vadd.f32 %v646, %v686
      %v719 = vadd.f32 %v647, %v687
      %s720 = scalar_lea.vmem %s1, 4
      %v721 = vld [vmem:[%s720] sm:$0x1]
      %v723 = vlaneseq
      %v724 = vshrl.u32 %v723, 7
      %v725 = vsub.s32 0, %v724
      %v726 = vrot.slane %v721, %v725
      %v728 = vmul.f32 %v173, %v726
      %v729 = vmul.f32 %v174, %v726
      %v730 = vmul.f32 %v175, %v726
      %v731 = vmul.f32 %v176, %v726
      %v732 = vmul.f32 %v177, %v726
      %v733 = vmul.f32 %v178, %v726
      %v734 = vmul.f32 %v179, %v726
      %v735 = vmul.f32 %v180, %v726
      %v736 = vmul.f32 %v181, %v726
      %v737 = vmul.f32 %v182, %v726
      %v738 = vmul.f32 %v183, %v726
      %v739 = vmul.f32 %v184, %v726
      %v740 = vmul.f32 %v185, %v726
      %v741 = vmul.f32 %v186, %v726
      %v742 = vmul.f32 %v187, %v726
      %v743 = vmul.f32 %v188, %v726
      %v744 = vmul.f32 %v189, %v726
      %v745 = vmul.f32 %v190, %v726
      %v746 = vmul.f32 %v191, %v726
      %v747 = vmul.f32 %v192, %v726
      %v748 = vmul.f32 %v193, %v726
      %v749 = vmul.f32 %v194, %v726
      %v750 = vmul.f32 %v195, %v726
      %v751 = vmul.f32 %v196, %v726
      %v752 = vmul.f32 %v197, %v726
      %v753 = vmul.f32 %v198, %v726
      %v754 = vmul.f32 %v199, %v726
      %v755 = vmul.f32 %v200, %v726
      %v756 = vmul.f32 %v201, %v726
      %v757 = vmul.f32 %v202, %v726
      %v758 = vmul.f32 %v203, %v726
      %v759 = vmul.f32 %v204, %v726
      %v792 = vrot.slane %v728, 1
      %v793 = vrot.slane %v729, 1
      %v794 = vsel %vm350, %v792, %v793
      %v795 = vrot.slane %v730, 1
      %v796 = vrot.slane %v731, 1
      %v797 = vsel %vm350, %v795, %v796
      %v798 = vrot.slane %v732, 1
      %v799 = vrot.slane %v733, 1
      %v800 = vsel %vm350, %v798, %v799
      %v801 = vrot.slane %v734, 1
      %v802 = vrot.slane %v735, 1
      %v803 = vsel %vm350, %v801, %v802
      %v804 = vrot.slane %v736, 1
      %v805 = vrot.slane %v737, 1
      %v806 = vsel %vm350, %v804, %v805
      %v807 = vrot.slane %v738, 1
      %v808 = vrot.slane %v739, 1
      %v809 = vsel %vm350, %v807, %v808
      %v810 = vrot.slane %v740, 1
      %v811 = vrot.slane %v741, 1
      %v812 = vsel %vm350, %v810, %v811
      %v813 = vrot.slane %v742, 1
      %v814 = vrot.slane %v743, 1
      %v815 = vsel %vm350, %v813, %v814
      %v816 = vrot.slane %v744, 1
      %v817 = vrot.slane %v745, 1
      %v818 = vsel %vm350, %v816, %v817
      %v819 = vrot.slane %v746, 1
      %v820 = vrot.slane %v747, 1
      %v821 = vsel %vm350, %v819, %v820
      %v822 = vrot.slane %v748, 1
      %v823 = vrot.slane %v749, 1
      %v824 = vsel %vm350, %v822, %v823
      %v825 = vrot.slane %v750, 1
      %v826 = vrot.slane %v751, 1
      %v827 = vsel %vm350, %v825, %v826
      %v828 = vrot.slane %v752, 1
      %v829 = vrot.slane %v753, 1
      %v830 = vsel %vm350, %v828, %v829
      %v831 = vrot.slane %v754, 1
      %v832 = vrot.slane %v755, 1
      %v833 = vsel %vm350, %v831, %v832
      %v834 = vrot.slane %v756, 1
      %v835 = vrot.slane %v757, 1
      %v836 = vsel %vm350, %v834, %v835
      %v837 = vrot.slane %v758, 1
      %v838 = vrot.slane %v759, 1
      %v839 = vsel %vm350, %v837, %v838
      %v872 = vadd.f32 %v688, %v794
      %v873 = vadd.f32 %v689, %v793
      %v874 = vadd.f32 %v690, %v797
      %v875 = vadd.f32 %v691, %v796
      %v876 = vadd.f32 %v692, %v800
      %v877 = vadd.f32 %v693, %v799
      %v878 = vadd.f32 %v694, %v803
      %v879 = vadd.f32 %v695, %v802
      %v880 = vadd.f32 %v696, %v806
      %v881 = vadd.f32 %v697, %v805
      %v882 = vadd.f32 %v698, %v809
      %v883 = vadd.f32 %v699, %v808
      %v884 = vadd.f32 %v700, %v812
      %v885 = vadd.f32 %v701, %v811
      %v886 = vadd.f32 %v702, %v815
      %v887 = vadd.f32 %v703, %v814
      %v888 = vadd.f32 %v704, %v818
      %v889 = vadd.f32 %v705, %v817
      %v890 = vadd.f32 %v706, %v821
      %v891 = vadd.f32 %v707, %v820
      %v892 = vadd.f32 %v708, %v824
      %v893 = vadd.f32 %v709, %v823
      %v894 = vadd.f32 %v710, %v827
      %v895 = vadd.f32 %v711, %v826
      %v896 = vadd.f32 %v712, %v830
      %v897 = vadd.f32 %v713, %v829
      %v898 = vadd.f32 %v714, %v833
      %v899 = vadd.f32 %v715, %v832
      %v900 = vadd.f32 %v716, %v836
      %v901 = vadd.f32 %v717, %v835
      %v902 = vadd.f32 %v718, %v839
      %v903 = vadd.f32 %v719, %v838
      %s904 = scalar_lea.vmem %s1, 5
      %v905 = vld [vmem:[%s904] sm:$0x1]
      %v907 = vlaneseq
      %v908 = vshrl.u32 %v907, 7
      %v909 = vsub.s32 0, %v908
      %v910 = vrot.slane %v905, %v909
      %v912 = vmul.f32 %v173, %v910
      %v913 = vmul.f32 %v174, %v910
      %v914 = vmul.f32 %v175, %v910
      %v915 = vmul.f32 %v176, %v910
      %v916 = vmul.f32 %v177, %v910
      %v917 = vmul.f32 %v178, %v910
      %v918 = vmul.f32 %v179, %v910
      %v919 = vmul.f32 %v180, %v910
      %v920 = vmul.f32 %v181, %v910
      %v921 = vmul.f32 %v182, %v910
      %v922 = vmul.f32 %v183, %v910
      %v923 = vmul.f32 %v184, %v910
      %v924 = vmul.f32 %v185, %v910
      %v925 = vmul.f32 %v186, %v910
      %v926 = vmul.f32 %v187, %v910
      %v927 = vmul.f32 %v188, %v910
      %v928 = vmul.f32 %v189, %v910
      %v929 = vmul.f32 %v190, %v910
      %v930 = vmul.f32 %v191, %v910
      %v931 = vmul.f32 %v192, %v910
      %v932 = vmul.f32 %v193, %v910
      %v933 = vmul.f32 %v194, %v910
      %v934 = vmul.f32 %v195, %v910
      %v935 = vmul.f32 %v196, %v910
      %v936 = vmul.f32 %v197, %v910
      %v937 = vmul.f32 %v198, %v910
      %v938 = vmul.f32 %v199, %v910
      %v939 = vmul.f32 %v200, %v910
      %v940 = vmul.f32 %v201, %v910
      %v941 = vmul.f32 %v202, %v910
      %v942 = vmul.f32 %v203, %v910
      %v943 = vmul.f32 %v204, %v910
      %v976 = vrot.slane %v912, 2
      %v977 = vrot.slane %v913, 2
      %v978 = vsel %vm535, %v976, %v977
      %v979 = vrot.slane %v914, 2
      %v980 = vrot.slane %v915, 2
      %v981 = vsel %vm535, %v979, %v980
      %v982 = vrot.slane %v916, 2
      %v983 = vrot.slane %v917, 2
      %v984 = vsel %vm535, %v982, %v983
      %v985 = vrot.slane %v918, 2
      %v986 = vrot.slane %v919, 2
      %v987 = vsel %vm535, %v985, %v986
      %v988 = vrot.slane %v920, 2
      %v989 = vrot.slane %v921, 2
      %v990 = vsel %vm535, %v988, %v989
      %v991 = vrot.slane %v922, 2
      %v992 = vrot.slane %v923, 2
      %v993 = vsel %vm535, %v991, %v992
      %v994 = vrot.slane %v924, 2
      %v995 = vrot.slane %v925, 2
      %v996 = vsel %vm535, %v994, %v995
      %v997 = vrot.slane %v926, 2
      %v998 = vrot.slane %v927, 2
      %v999 = vsel %vm535, %v997, %v998
      %v1000 = vrot.slane %v928, 2
      %v1001 = vrot.slane %v929, 2
      %v1002 = vsel %vm535, %v1000, %v1001
      %v1003 = vrot.slane %v930, 2
      %v1004 = vrot.slane %v931, 2
      %v1005 = vsel %vm535, %v1003, %v1004
      %v1006 = vrot.slane %v932, 2
      %v1007 = vrot.slane %v933, 2
      %v1008 = vsel %vm535, %v1006, %v1007
      %v1009 = vrot.slane %v934, 2
      %v1010 = vrot.slane %v935, 2
      %v1011 = vsel %vm535, %v1009, %v1010
      %v1012 = vrot.slane %v936, 2
      %v1013 = vrot.slane %v937, 2
      %v1014 = vsel %vm535, %v1012, %v1013
      %v1015 = vrot.slane %v938, 2
      %v1016 = vrot.slane %v939, 2
      %v1017 = vsel %vm535, %v1015, %v1016
      %v1018 = vrot.slane %v940, 2
      %v1019 = vrot.slane %v941, 2
      %v1020 = vsel %vm535, %v1018, %v1019
      %v1021 = vrot.slane %v942, 2
      %v1022 = vrot.slane %v943, 2
      %v1023 = vsel %vm535, %v1021, %v1022
      %v1056 = vadd.f32 %v872, %v978
      %v1057 = vadd.f32 %v873, %v977
      %v1058 = vadd.f32 %v874, %v981
      %v1059 = vadd.f32 %v875, %v980
      %v1060 = vadd.f32 %v876, %v984
      %v1061 = vadd.f32 %v877, %v983
      %v1062 = vadd.f32 %v878, %v987
      %v1063 = vadd.f32 %v879, %v986
      %v1064 = vadd.f32 %v880, %v990
      %v1065 = vadd.f32 %v881, %v989
      %v1066 = vadd.f32 %v882, %v993
      %v1067 = vadd.f32 %v883, %v992
      %v1068 = vadd.f32 %v884, %v996
      %v1069 = vadd.f32 %v885, %v995
      %v1070 = vadd.f32 %v886, %v999
      %v1071 = vadd.f32 %v887, %v998
      %v1072 = vadd.f32 %v888, %v1002
      %v1073 = vadd.f32 %v889, %v1001
      %v1074 = vadd.f32 %v890, %v1005
      %v1075 = vadd.f32 %v891, %v1004
      %v1076 = vadd.f32 %v892, %v1008
      %v1077 = vadd.f32 %v893, %v1007
      %v1078 = vadd.f32 %v894, %v1011
      %v1079 = vadd.f32 %v895, %v1010
      %v1080 = vadd.f32 %v896, %v1014
      %v1081 = vadd.f32 %v897, %v1013
      %v1082 = vadd.f32 %v898, %v1017
      %v1083 = vadd.f32 %v899, %v1016
      %v1084 = vadd.f32 %v900, %v1020
      %v1085 = vadd.f32 %v901, %v1019
      %v1086 = vadd.f32 %v902, %v1023
      %v1087 = vadd.f32 %v903, %v1022
      %s1088 = scalar_lea.vmem %s1, 6
      %v1089 = vld [vmem:[%s1088] sm:$0x1]
      %v1091 = vlaneseq
      %v1092 = vshrl.u32 %v1091, 7
      %v1093 = vsub.s32 0, %v1092
      %v1094 = vrot.slane %v1089, %v1093
      %v1096 = vmul.f32 %v175, %v1094
      %v1097 = vmul.f32 %v176, %v1094
      %v1098 = vmul.f32 %v177, %v1094
      %v1099 = vmul.f32 %v178, %v1094
      %v1100 = vmul.f32 %v179, %v1094
      %v1101 = vmul.f32 %v180, %v1094
      %v1102 = vmul.f32 %v181, %v1094
      %v1103 = vmul.f32 %v182, %v1094
      %v1104 = vmul.f32 %v183, %v1094
      %v1105 = vmul.f32 %v184, %v1094
      %v1106 = vmul.f32 %v185, %v1094
      %v1107 = vmul.f32 %v186, %v1094
      %v1108 = vmul.f32 %v187, %v1094
      %v1109 = vmul.f32 %v188, %v1094
      %v1110 = vmul.f32 %v189, %v1094
      %v1111 = vmul.f32 %v190, %v1094
      %v1112 = vmul.f32 %v191, %v1094
      %v1113 = vmul.f32 %v192, %v1094
      %v1114 = vmul.f32 %v193, %v1094
      %v1115 = vmul.f32 %v194, %v1094
      %v1116 = vmul.f32 %v195, %v1094
      %v1117 = vmul.f32 %v196, %v1094
      %v1118 = vmul.f32 %v197, %v1094
      %v1119 = vmul.f32 %v198, %v1094
      %v1120 = vmul.f32 %v199, %v1094
      %v1121 = vmul.f32 %v200, %v1094
      %v1122 = vmul.f32 %v201, %v1094
      %v1123 = vmul.f32 %v202, %v1094
      %v1124 = vmul.f32 %v203, %v1094
      %v1125 = vmul.f32 %v204, %v1094
      %v1126 = vmul.f32 %v205, %v1094
      %v1127 = vmul.f32 %v206, %v1094
      %v1128 = vadd.f32 %v1056, %v1096
      %v1129 = vadd.f32 %v1057, %v1097
      %v1130 = vadd.f32 %v1058, %v1098
      %v1131 = vadd.f32 %v1059, %v1099
      %v1132 = vadd.f32 %v1060, %v1100
      %v1133 = vadd.f32 %v1061, %v1101
      %v1134 = vadd.f32 %v1062, %v1102
      %v1135 = vadd.f32 %v1063, %v1103
      %v1136 = vadd.f32 %v1064, %v1104
      %v1137 = vadd.f32 %v1065, %v1105
      %v1138 = vadd.f32 %v1066, %v1106
      %v1139 = vadd.f32 %v1067, %v1107
      %v1140 = vadd.f32 %v1068, %v1108
      %v1141 = vadd.f32 %v1069, %v1109
      %v1142 = vadd.f32 %v1070, %v1110
      %v1143 = vadd.f32 %v1071, %v1111
      %v1144 = vadd.f32 %v1072, %v1112
      %v1145 = vadd.f32 %v1073, %v1113
      %v1146 = vadd.f32 %v1074, %v1114
      %v1147 = vadd.f32 %v1075, %v1115
      %v1148 = vadd.f32 %v1076, %v1116
      %v1149 = vadd.f32 %v1077, %v1117
      %v1150 = vadd.f32 %v1078, %v1118
      %v1151 = vadd.f32 %v1079, %v1119
      %v1152 = vadd.f32 %v1080, %v1120
      %v1153 = vadd.f32 %v1081, %v1121
      %v1154 = vadd.f32 %v1082, %v1122
      %v1155 = vadd.f32 %v1083, %v1123
      %v1156 = vadd.f32 %v1084, %v1124
      %v1157 = vadd.f32 %v1085, %v1125
      %v1158 = vadd.f32 %v1086, %v1126
      %v1159 = vadd.f32 %v1087, %v1127
      %s1160 = scalar_lea.vmem %s1, 7
      %v1161 = vld [vmem:[%s1160] sm:$0x1]
      %v1163 = vlaneseq
      %v1164 = vshrl.u32 %v1163, 7
      %v1165 = vsub.s32 0, %v1164
      %v1166 = vrot.slane %v1161, %v1165
      %v1168 = vmul.f32 %v175, %v1166
      %v1169 = vmul.f32 %v176, %v1166
      %v1170 = vmul.f32 %v177, %v1166
      %v1171 = vmul.f32 %v178, %v1166
      %v1172 = vmul.f32 %v179, %v1166
      %v1173 = vmul.f32 %v180, %v1166
      %v1174 = vmul.f32 %v181, %v1166
      %v1175 = vmul.f32 %v182, %v1166
      %v1176 = vmul.f32 %v183, %v1166
      %v1177 = vmul.f32 %v184, %v1166
      %v1178 = vmul.f32 %v185, %v1166
      %v1179 = vmul.f32 %v186, %v1166
      %v1180 = vmul.f32 %v187, %v1166
      %v1181 = vmul.f32 %v188, %v1166
      %v1182 = vmul.f32 %v189, %v1166
      %v1183 = vmul.f32 %v190, %v1166
      %v1184 = vmul.f32 %v191, %v1166
      %v1185 = vmul.f32 %v192, %v1166
      %v1186 = vmul.f32 %v193, %v1166
      %v1187 = vmul.f32 %v194, %v1166
      %v1188 = vmul.f32 %v195, %v1166
      %v1189 = vmul.f32 %v196, %v1166
      %v1190 = vmul.f32 %v197, %v1166
      %v1191 = vmul.f32 %v198, %v1166
      %v1192 = vmul.f32 %v199, %v1166
      %v1193 = vmul.f32 %v200, %v1166
      %v1194 = vmul.f32 %v201, %v1166
      %v1195 = vmul.f32 %v202, %v1166
      %v1196 = vmul.f32 %v203, %v1166
      %v1197 = vmul.f32 %v204, %v1166
      %v1198 = vmul.f32 %v205, %v1166
      %v1199 = vmul.f32 %v206, %v1166
      %v1232 = vrot.slane %v1168, 1
      %v1233 = vrot.slane %v1169, 1
      %v1234 = vsel %vm350, %v1232, %v1233
      %v1235 = vrot.slane %v1170, 1
      %v1236 = vrot.slane %v1171, 1
      %v1237 = vsel %vm350, %v1235, %v1236
      %v1238 = vrot.slane %v1172, 1
      %v1239 = vrot.slane %v1173, 1
      %v1240 = vsel %vm350, %v1238, %v1239
      %v1241 = vrot.slane %v1174, 1
      %v1242 = vrot.slane %v1175, 1
      %v1243 = vsel %vm350, %v1241, %v1242
      %v1244 = vrot.slane %v1176, 1
      %v1245 = vrot.slane %v1177, 1
      %v1246 = vsel %vm350, %v1244, %v1245
      %v1247 = vrot.slane %v1178, 1
      %v1248 = vrot.slane %v1179, 1
      %v1249 = vsel %vm350, %v1247, %v1248
      %v1250 = vrot.slane %v1180, 1
      %v1251 = vrot.slane %v1181, 1
      %v1252 = vsel %vm350, %v1250, %v1251
      %v1253 = vrot.slane %v1182, 1
      %v1254 = vrot.slane %v1183, 1
      %v1255 = vsel %vm350, %v1253, %v1254
      %v1256 = vrot.slane %v1184, 1
      %v1257 = vrot.slane %v1185, 1
      %v1258 = vsel %vm350, %v1256, %v1257
      %v1259 = vrot.slane %v1186, 1
      %v1260 = vrot.slane %v1187, 1
      %v1261 = vsel %vm350, %v1259, %v1260
      %v1262 = vrot.slane %v1188, 1
      %v1263 = vrot.slane %v1189, 1
      %v1264 = vsel %vm350, %v1262, %v1263
      %v1265 = vrot.slane %v1190, 1
      %v1266 = vrot.slane %v1191, 1
      %v1267 = vsel %vm350, %v1265, %v1266
      %v1268 = vrot.slane %v1192, 1
      %v1269 = vrot.slane %v1193, 1
      %v1270 = vsel %vm350, %v1268, %v1269
      %v1271 = vrot.slane %v1194, 1
      %v1272 = vrot.slane %v1195, 1
      %v1273 = vsel %vm350, %v1271, %v1272
      %v1274 = vrot.slane %v1196, 1
      %v1275 = vrot.slane %v1197, 1
      %v1276 = vsel %vm350, %v1274, %v1275
      %v1277 = vrot.slane %v1198, 1
      %v1278 = vrot.slane %v1199, 1
      %v1279 = vsel %vm350, %v1277, %v1278
      %v1312 = vadd.f32 %v1128, %v1234
      %v1313 = vadd.f32 %v1129, %v1233
      %v1314 = vadd.f32 %v1130, %v1237
      %v1315 = vadd.f32 %v1131, %v1236
      %v1316 = vadd.f32 %v1132, %v1240
      %v1317 = vadd.f32 %v1133, %v1239
      %v1318 = vadd.f32 %v1134, %v1243
      %v1319 = vadd.f32 %v1135, %v1242
      %v1320 = vadd.f32 %v1136, %v1246
      %v1321 = vadd.f32 %v1137, %v1245
      %v1322 = vadd.f32 %v1138, %v1249
      %v1323 = vadd.f32 %v1139, %v1248
      %v1324 = vadd.f32 %v1140, %v1252
      %v1325 = vadd.f32 %v1141, %v1251
      %v1326 = vadd.f32 %v1142, %v1255
      %v1327 = vadd.f32 %v1143, %v1254
      %v1328 = vadd.f32 %v1144, %v1258
      %v1329 = vadd.f32 %v1145, %v1257
      %v1330 = vadd.f32 %v1146, %v1261
      %v1331 = vadd.f32 %v1147, %v1260
      %v1332 = vadd.f32 %v1148, %v1264
      %v1333 = vadd.f32 %v1149, %v1263
      %v1334 = vadd.f32 %v1150, %v1267
      %v1335 = vadd.f32 %v1151, %v1266
      %v1336 = vadd.f32 %v1152, %v1270
      %v1337 = vadd.f32 %v1153, %v1269
      %v1338 = vadd.f32 %v1154, %v1273
      %v1339 = vadd.f32 %v1155, %v1272
      %v1340 = vadd.f32 %v1156, %v1276
      %v1341 = vadd.f32 %v1157, %v1275
      %v1342 = vadd.f32 %v1158, %v1279
      %v1343 = vadd.f32 %v1159, %v1278
      %s1344 = scalar_lea.vmem %s1, 8
      %v1345 = vld [vmem:[%s1344] sm:$0x1]
      %v1347 = vlaneseq
      %v1348 = vshrl.u32 %v1347, 7
      %v1349 = vsub.s32 0, %v1348
      %v1350 = vrot.slane %v1345, %v1349
      %v1352 = vmul.f32 %v175, %v1350
      %v1353 = vmul.f32 %v176, %v1350
      %v1354 = vmul.f32 %v177, %v1350
      %v1355 = vmul.f32 %v178, %v1350
      %v1356 = vmul.f32 %v179, %v1350
      %v1357 = vmul.f32 %v180, %v1350
      %v1358 = vmul.f32 %v181, %v1350
      %v1359 = vmul.f32 %v182, %v1350
      %v1360 = vmul.f32 %v183, %v1350
      %v1361 = vmul.f32 %v184, %v1350
      %v1362 = vmul.f32 %v185, %v1350
      %v1363 = vmul.f32 %v186, %v1350
      %v1364 = vmul.f32 %v187, %v1350
      %v1365 = vmul.f32 %v188, %v1350
      %v1366 = vmul.f32 %v189, %v1350
      %v1367 = vmul.f32 %v190, %v1350
      %v1368 = vmul.f32 %v191, %v1350
      %v1369 = vmul.f32 %v192, %v1350
      %v1370 = vmul.f32 %v193, %v1350
      %v1371 = vmul.f32 %v194, %v1350
      %v1372 = vmul.f32 %v195, %v1350
      %v1373 = vmul.f32 %v196, %v1350
      %v1374 = vmul.f32 %v197, %v1350
      %v1375 = vmul.f32 %v198, %v1350
      %v1376 = vmul.f32 %v199, %v1350
      %v1377 = vmul.f32 %v200, %v1350
      %v1378 = vmul.f32 %v201, %v1350
      %v1379 = vmul.f32 %v202, %v1350
      %v1380 = vmul.f32 %v203, %v1350
      %v1381 = vmul.f32 %v204, %v1350
      %v1382 = vmul.f32 %v205, %v1350
      %v1383 = vmul.f32 %v206, %v1350
      %v1416 = vrot.slane %v1352, 2
      %v1417 = vrot.slane %v1353, 2
      %v1418 = vsel %vm535, %v1416, %v1417
      %v1419 = vrot.slane %v1354, 2
      %v1420 = vrot.slane %v1355, 2
      %v1421 = vsel %vm535, %v1419, %v1420
      %v1422 = vrot.slane %v1356, 2
      %v1423 = vrot.slane %v1357, 2
      %v1424 = vsel %vm535, %v1422, %v1423
      %v1425 = vrot.slane %v1358, 2
      %v1426 = vrot.slane %v1359, 2
      %v1427 = vsel %vm535, %v1425, %v1426
      %v1428 = vrot.slane %v1360, 2
      %v1429 = vrot.slane %v1361, 2
      %v1430 = vsel %vm535, %v1428, %v1429
      %v1431 = vrot.slane %v1362, 2
      %v1432 = vrot.slane %v1363, 2
      %v1433 = vsel %vm535, %v1431, %v1432
      %v1434 = vrot.slane %v1364, 2
      %v1435 = vrot.slane %v1365, 2
      %v1436 = vsel %vm535, %v1434, %v1435
      %v1437 = vrot.slane %v1366, 2
      %v1438 = vrot.slane %v1367, 2
      %v1439 = vsel %vm535, %v1437, %v1438
      %v1440 = vrot.slane %v1368, 2
      %v1441 = vrot.slane %v1369, 2
      %v1442 = vsel %vm535, %v1440, %v1441
      %v1443 = vrot.slane %v1370, 2
      %v1444 = vrot.slane %v1371, 2
      %v1445 = vsel %vm535, %v1443, %v1444
      %v1446 = vrot.slane %v1372, 2
      %v1447 = vrot.slane %v1373, 2
      %v1448 = vsel %vm535, %v1446, %v1447
      %v1449 = vrot.slane %v1374, 2
      %v1450 = vrot.slane %v1375, 2
      %v1451 = vsel %vm535, %v1449, %v1450
      %v1452 = vrot.slane %v1376, 2
      %v1453 = vrot.slane %v1377, 2
      %v1454 = vsel %vm535, %v1452, %v1453
      %v1455 = vrot.slane %v1378, 2
      %v1456 = vrot.slane %v1379, 2
      %v1457 = vsel %vm535, %v1455, %v1456
      %v1458 = vrot.slane %v1380, 2
      %v1459 = vrot.slane %v1381, 2
      %v1460 = vsel %vm535, %v1458, %v1459
      %v1461 = vrot.slane %v1382, 2
      %v1462 = vrot.slane %v1383, 2
      %v1463 = vsel %vm535, %v1461, %v1462
      %v1496 = vadd.f32 %v1312, %v1418
      %v1497 = vadd.f32 %v1313, %v1417
      %v1498 = vadd.f32 %v1314, %v1421
      %v1499 = vadd.f32 %v1315, %v1420
      %v1500 = vadd.f32 %v1316, %v1424
      %v1501 = vadd.f32 %v1317, %v1423
      %v1502 = vadd.f32 %v1318, %v1427
      %v1503 = vadd.f32 %v1319, %v1426
      %v1504 = vadd.f32 %v1320, %v1430
      %v1505 = vadd.f32 %v1321, %v1429
      %v1506 = vadd.f32 %v1322, %v1433
      %v1507 = vadd.f32 %v1323, %v1432
      %v1508 = vadd.f32 %v1324, %v1436
      %v1509 = vadd.f32 %v1325, %v1435
      %v1510 = vadd.f32 %v1326, %v1439
      %v1511 = vadd.f32 %v1327, %v1438
      %v1512 = vadd.f32 %v1328, %v1442
      %v1513 = vadd.f32 %v1329, %v1441
      %v1514 = vadd.f32 %v1330, %v1445
      %v1515 = vadd.f32 %v1331, %v1444
      %v1516 = vadd.f32 %v1332, %v1448
      %v1517 = vadd.f32 %v1333, %v1447
      %v1518 = vadd.f32 %v1334, %v1451
      %v1519 = vadd.f32 %v1335, %v1450
      %v1520 = vadd.f32 %v1336, %v1454
      %v1521 = vadd.f32 %v1337, %v1453
      %v1522 = vadd.f32 %v1338, %v1457
      %v1523 = vadd.f32 %v1339, %v1456
      %v1524 = vadd.f32 %v1340, %v1460
      %v1525 = vadd.f32 %v1341, %v1459
      %v1526 = vadd.f32 %v1342, %v1463
      %v1527 = vadd.f32 %v1343, %v1462
      %v1528 = vld [vmem:[%s2] sm:$0x1]
      %v1530 = vlaneseq
      %v1531 = vshrl.u32 %v1530, 7
      %v1532 = vsub.s32 0, %v1531
      %v1533 = vrot.slane %v1528, %v1532
      %v1535 = vadd.f32 %v1496, %v1533
      %v1536 = vadd.f32 %v1497, %v1533
      %v1537 = vadd.f32 %v1498, %v1533
      %v1538 = vadd.f32 %v1499, %v1533
      %v1539 = vadd.f32 %v1500, %v1533
      %v1540 = vadd.f32 %v1501, %v1533
      %v1541 = vadd.f32 %v1502, %v1533
      %v1542 = vadd.f32 %v1503, %v1533
      %v1543 = vadd.f32 %v1504, %v1533
      %v1544 = vadd.f32 %v1505, %v1533
      %v1545 = vadd.f32 %v1506, %v1533
      %v1546 = vadd.f32 %v1507, %v1533
      %v1547 = vadd.f32 %v1508, %v1533
      %v1548 = vadd.f32 %v1509, %v1533
      %v1549 = vadd.f32 %v1510, %v1533
      %v1550 = vadd.f32 %v1511, %v1533
      %v1551 = vadd.f32 %v1512, %v1533
      %v1552 = vadd.f32 %v1513, %v1533
      %v1553 = vadd.f32 %v1514, %v1533
      %v1554 = vadd.f32 %v1515, %v1533
      %v1555 = vadd.f32 %v1516, %v1533
      %v1556 = vadd.f32 %v1517, %v1533
      %v1557 = vadd.f32 %v1518, %v1533
      %v1558 = vadd.f32 %v1519, %v1533
      %v1559 = vadd.f32 %v1520, %v1533
      %v1560 = vadd.f32 %v1521, %v1533
      %v1561 = vadd.f32 %v1522, %v1533
      %v1562 = vadd.f32 %v1523, %v1533
      %v1563 = vadd.f32 %v1524, %v1533
      %v1564 = vadd.f32 %v1525, %v1533
      %v1565 = vadd.f32 %v1526, %v1533
      %v1566 = vadd.f32 %v1527, %v1533
      %vm1567 = vcmask 64512
      %1568 = vst.msk [vmem:[%s170] sm:$0xff] %vm1567, %v1535
      %vm1569 = vcmask 57344
      %1570 = vst.msk [vmem:[%s170 + $0x8] sm:$0x1] %vm1569, %v1536
      %1571 = vst.msk [vmem:[%s170 + $0x10] sm:$0xff] %vm1567, %v1537
      %1572 = vst.msk [vmem:[%s170 + $0x18] sm:$0x1] %vm1569, %v1538
      %1573 = vst.msk [vmem:[%s170 + $0x20] sm:$0xff] %vm1567, %v1539
      %1574 = vst.msk [vmem:[%s170 + $0x28] sm:$0x1] %vm1569, %v1540
      %1575 = vst.msk [vmem:[%s170 + $0x30] sm:$0xff] %vm1567, %v1541
      %1576 = vst.msk [vmem:[%s170 + $0x38] sm:$0x1] %vm1569, %v1542
      %1577 = vst.msk [vmem:[%s170 + $0x40] sm:$0xff] %vm1567, %v1543
      %1578 = vst.msk [vmem:[%s170 + $0x48] sm:$0x1] %vm1569, %v1544
      %1579 = vst.msk [vmem:[%s170 + $0x50] sm:$0xff] %vm1567, %v1545
      %1580 = vst.msk [vmem:[%s170 + $0x58] sm:$0x1] %vm1569, %v1546
      %1581 = vst.msk [vmem:[%s170 + $0x60] sm:$0xff] %vm1567, %v1547
      %1582 = vst.msk [vmem:[%s170 + $0x68] sm:$0x1] %vm1569, %v1548
      %1583 = vst.msk [vmem:[%s170 + $0x70] sm:$0xff] %vm1567, %v1549
      %1584 = vst.msk [vmem:[%s170 + $0x78] sm:$0x1] %vm1569, %v1550
      %1585 = vst.msk [vmem:[%s170 + $0x80] sm:$0xff] %vm1567, %v1551
      %1586 = vst.msk [vmem:[%s170 + $0x88] sm:$0x1] %vm1569, %v1552
      %1587 = vst.msk [vmem:[%s170 + $0x90] sm:$0xff] %vm1567, %v1553
      %1588 = vst.msk [vmem:[%s170 + $0x98] sm:$0x1] %vm1569, %v1554
      %1589 = vst.msk [vmem:[%s170 + $0xa0] sm:$0xff] %vm1567, %v1555
      %1590 = vst.msk [vmem:[%s170 + $0xa8] sm:$0x1] %vm1569, %v1556
      %1591 = vst.msk [vmem:[%s170 + $0xb0] sm:$0xff] %vm1567, %v1557
      %1592 = vst.msk [vmem:[%s170 + $0xb8] sm:$0x1] %vm1569, %v1558
      %1593 = vst.msk [vmem:[%s170 + $0xc0] sm:$0xff] %vm1567, %v1559
      %1594 = vst.msk [vmem:[%s170 + $0xc8] sm:$0x1] %vm1569, %v1560
      %1595 = vst.msk [vmem:[%s170 + $0xd0] sm:$0xff] %vm1567, %v1561
      %1596 = vst.msk [vmem:[%s170 + $0xd8] sm:$0x1] %vm1569, %v1562
      %1597 = vst.msk [vmem:[%s170 + $0xe0] sm:$0xff] %vm1567, %v1563
      %1598 = vst.msk [vmem:[%s170 + $0xe8] sm:$0x1] %vm1569, %v1564
      %1599 = vst.msk [vmem:[%s170 + $0xf0] sm:$0xff] %vm1567, %v1565
      %1600 = vst.msk [vmem:[%s170 + $0xf8] sm:$0x1] %vm1569, %v1566
      %p1601 = scmp.lt.s32.totalorder %s14, 1
      %s1602 = scalar_select %p1601, %s14, 1
      %s1603 = smul.addr %s1602, 32
      %s1604 = smul.addr %s1603, 8
      %s1605 = scalar_lea.vmem %s3, %s1604
      // Predicated region
      $region33: #{fgmm_forward.13} parent=31 // pred_check
        %p1606 = pneg %p100
      $region34: #{fgmm_forward.13} parent=31 // pred_check_branch
        %1608 = sbr.rel (%p1606) target = $region36
      $region35: #{fgmm_forward.13} parent=31 // pred_region
        _
      $region36: #{fgmm_forward.13} parent=31 // pred_fallthru
        _
    $region32: #{fgmm_forward.13} parent=5 // pred_fallthru
      _
    %p1609 = scmp.le.s32.totalorder 2, %s9
    // Predicated region
    $region37: #{fgmm_forward.13} parent=5 // pred_check
      %p1610 = pneg %p1609
    $region38: #{fgmm_forward.13} parent=5 // pred_check_branch
      %1612 = sbr.rel (%p1610) target = $region40
    $region39: #{fgmm_forward.13} parent=5 // pred_region
      %s1613 = ssub.s32 %s9, 2
      // Predicated region
      $region41: #{fgmm_forward.13} parent=39 // pred_check
        %p1614 = pneg %p106
      $region42: #{fgmm_forward.13} parent=39 // pred_check_branch
        %1616 = sbr.rel (%p1614) target = $region44
      $region43: #{fgmm_forward.13} parent=39 // pred_region
        %p1617 = scmp.lt.s32.totalorder %s15, 1
        %s1618 = scalar_select %p1617, %s15, 1
        %s1619 = smul.addr %s1618, 32
        %s1620 = smul.addr %s1619, 8
        %s1621 = scalar_lea.vmem %s3, %s1620
      $region44: #{fgmm_forward.13} parent=39 // pred_fallthru
        _
    $region40: #{fgmm_forward.13} parent=5 // pred_fallthru
      _
  $region6: #{fgmm_forward.13} parent=0 // loop_footer
    %s13 = sadd.s32 1, %s9
  $region7: #{fgmm_forward.13} parent=0 // loop_footer_branch
    %8 = sbr.rel target = $region3
  $region8: #{fgmm_forward.13} parent=0 // loop_exit
    _

// kernel: fgmm_forward.12
$region0: #{fgmm_forward.12}
  #allocation0 [shape = 'u32[]', space=smem, size = 0x4, offset = 0x4, fixed_abs, tag = 'smem constant byte address 0x4 - core index']
  #allocation1 [shape = 'u32[144,128]{1,0:T(1,128)}', space=vmem, size = 0x12000, scoped, tag = 'internal scratch']
  %s0 = inlined_call_operand.vmem [shape: f32[2,18,11,8], index: 0, kind: input, shape index: {}]
  %s1 = inlined_call_operand.vmem [shape: f32[9,1,8], index: 1, kind: input, shape index: {}]
  %s2 = inlined_call_operand.vmem [shape: f32[1,8], index: 2, kind: input, shape index: {}]
  %s3 = inlined_call_operand.vmem [shape: f32[2,16,9,8], index: 3, kind: output, shape index: {}]
  %s4 = sld [smem:[#allocation0]]
  $region45: #{fgmm_forward.12} parent=0
    _
  %s6 = ssub.s32 1, %s4
  %s7 = scalar_select 0, %s6, %s4
  loop: start=0, step=1, limit=4
  $region2: #{fgmm_forward.12} parent=0 // loop_pre_header
    _
  $region3: #{fgmm_forward.12} parent=0 // loop_header
    %s9 = sphi 0, %s13
    %p10 = scmp.ge.s32.totalorder %s9, 4
    %s19 = sphi 0, %s21
    %s22 = sphi 0, %s19
    %s23 = sphi 0, %s22
    %s39 = sphi 0, %s23
    %s43 = sphi 0, %s43
    %s45 = sphi 0, %s43
    %s46 = sphi 0, %s45
    %s60 = sphi 0, %s46
    %s64 = sphi 0, %s64
    %s66 = sphi 0, %s64
    %s67 = sphi 0, %s66
    %s81 = sphi 0, %s67
    %s87 = sphi 0, %s89
    %s90 = sphi 0, %s87
    %s91 = sphi 0, %s90
    %s107 = sphi 0, %s91
  $region4: #{fgmm_forward.12} parent=0 // loop_header_branch
    %12 = sbr.rel (%p10) target = $region8
  $region5: #{fgmm_forward.12} parent=0 // loop_body
    %s14 = ssub.s32 %s9, 1
    %s15 = ssub.s32 %s9, 2
    %s16 = sadd.s32 %s9, 1
    %s17 = ssub.s32 %s9, %s16
    %p18 = scmp.eq.s32.totalorder %s17, 0
    %s20 = sadd.s32 %s19, 1
    %s21 = scalar_select %p18, %s19, %s20
    %p24 = pneg %p18
    %p25 = scmp.eq.s32.totalorder %s9, 1
    %p26 = por %p24, %p25
    %p27 = scmp.ne.s32.totalorder %s19, %s22
    %p28 = scmp.eq.s32.totalorder %s9, 0
    %p29 = por %p27, %p28
    %p30 = scmp.ne.s32.totalorder %s19, %s22
    %p31 = scmp.eq.s32.totalorder %s14, 1
    %p32 = por %p30, %p31
    %p33 = scmp.ne.s32.totalorder %s22, %s23
    %p34 = scmp.eq.s32.totalorder %s14, 0
    %p35 = por %p33, %p34
    %p36 = scmp.ne.s32.totalorder %s22, %s23
    %p37 = scmp.eq.s32.totalorder %s15, 1
    %p38 = por %p36, %p37
    %p40 = scmp.ne.s32.totalorder %s23, %s39
    %p41 = scmp.eq.s32.totalorder %s15, 0
    %p42 = por %p40, %p41
    %s44 = sadd.s32 %s43, 1
    %p47 = scmp.eq.s32.totalorder %s9, 1
    %p48 = scmp.ne.s32.totalorder %s43, %s45
    %p49 = scmp.eq.s32.totalorder %s9, 0
    %p50 = por %p48, %p49
    %p51 = scmp.ne.s32.totalorder %s43, %s45
    %p52 = scmp.eq.s32.totalorder %s14, 1
    %p53 = por %p51, %p52
    %p54 = scmp.ne.s32.totalorder %s45, %s46
    %p55 = scmp.eq.s32.totalorder %s14, 0
    %p56 = por %p54, %p55
    %p57 = scmp.ne.s32.totalorder %s45, %s46
    %p58 = scmp.eq.s32.totalorder %s15, 1
    %p59 = por %p57, %p58
    %p61 = scmp.ne.s32.totalorder %s46, %s60
    %p62 = scmp.eq.s32.totalorder %s15, 0
    %p63 = por %p61, %p62
    %s65 = sadd.s32 %s64, 1
    %p68 = scmp.eq.s32.totalorder %s9, 1
    %p69 = scmp.ne.s32.totalorder %s64, %s66
    %p70 = scmp.eq.s32.totalorder %s9, 0
    %p71 = por %p69, %p70
    %p72 = scmp.ne.s32.totalorder %s64, %s66
    %p73 = scmp.eq.s32.totalorder %s14, 1
    %p74 = por %p72, %p73
    %p75 = scmp.ne.s32.totalorder %s66, %s67
    %p76 = scmp.eq.s32.totalorder %s14, 0
    %p77 = por %p75, %p76
    %p78 = scmp.ne.s32.totalorder %s66, %s67
    %p79 = scmp.eq.s32.totalorder %s15, 1
    %p80 = por %p78, %p79
    %p82 = scmp.ne.s32.totalorder %s67, %s81
    %p83 = scmp.eq.s32.totalorder %s15, 0
    %p84 = por %p82, %p83
    %s85 = ssub.s32 %s9, %s16
    %p86 = scmp.eq.s32.totalorder %s85, 0
    %s88 = sadd.s32 %s87, 1
    %s89 = scalar_select %p86, %s87, %s88
    %p92 = pneg %p86
    %p93 = scmp.eq.s32.totalorder %s9, 1
    %p94 = por %p92, %p93
    %p95 = scmp.ne.s32.totalorder %s87, %s90
    %p96 = scmp.eq.s32.totalorder %s9, 0
    %p97 = por %p95, %p96
    %p98 = scmp.ne.s32.totalorder %s87, %s90
    %p99 = scmp.eq.s32.totalorder %s14, 1
    %p100 = por %p98, %p99
    %p101 = scmp.ne.s32.totalorder %s90, %s91
    %p102 = scmp.eq.s32.totalorder %s14, 0
    %p103 = por %p101, %p102
    %p104 = scmp.ne.s32.totalorder %s90, %s91
    %p105 = scmp.eq.s32.totalorder %s15, 1
    %p106 = por %p104, %p105
    %p108 = scmp.ne.s32.totalorder %s91, %s107
    %p109 = scmp.eq.s32.totalorder %s15, 0
    %p110 = por %p108, %p109
    %p111 = scmp.le.s32.totalorder 1, %s9
    %p112 = scmp.lt.s32.totalorder %s9, 3
    %p113 = pnand %p111, %p112
    %p114 = pneg %p113
    // Predicated region
    $region9: #{fgmm_forward.12} parent=5 // pred_check
      _
    $region10: #{fgmm_forward.12} parent=5 // pred_check_branch
      %116 = sbr.rel (%p113) target = $region12
    $region11: #{fgmm_forward.12} parent=5 // pred_region
      %s117 = ssub.s32 %s9, 1
      // Predicated region
      $region13: #{fgmm_forward.12} parent=11 // pred_check
        %p118 = pneg %p56
      $region14: #{fgmm_forward.12} parent=11 // pred_check_branch
        %120 = sbr.rel (%p118) target = $region16
      $region15: #{fgmm_forward.12} parent=11 // pred_region
        _
      $region16: #{fgmm_forward.12} parent=11 // pred_fallthru
        _
      // Predicated region
      $region17: #{fgmm_forward.12} parent=11 // pred_check
        %p121 = pneg %p77
      $region18: #{fgmm_forward.12} parent=11 // pred_check_branch
        %123 = sbr.rel (%p121) target = $region20
      $region19: #{fgmm_forward.12} parent=11 // pred_region
        _
      $region20: #{fgmm_forward.12} parent=11 // pred_fallthru
        _
    $region12: #{fgmm_forward.12} parent=5 // pred_fallthru
      _
    %p124 = scmp.lt.s32.totalorder %s9, 2
    // Predicated region
    $region21: #{fgmm_forward.12} parent=5 // pred_check
      %p125 = pneg %p124
    $region22: #{fgmm_forward.12} parent=5 // pred_check_branch
      %127 = sbr.rel (%p125) target = $region24
    $region23: #{fgmm_forward.12} parent=5 // pred_region
      // Predicated region
      $region25: #{fgmm_forward.12} parent=23 // pred_check
        %p128 = pneg %p29
      $region26: #{fgmm_forward.12} parent=23 // pred_check_branch
        %130 = sbr.rel (%p128) target = $region28
      $region27: #{fgmm_forward.12} parent=23 // pred_region
        %p131 = scmp.lt.s32.totalorder %s9, 1
        %s132 = scalar_select %p131, %s9, 1
        %s133 = smul.addr %s132, 36
        %s134 = smul.addr %s133, 8
        %s135 = scalar_lea.vmem %s0, %s134
      $region28: #{fgmm_forward.12} parent=23 // pred_fallthru
        _
    $region24: #{fgmm_forward.12} parent=5 // pred_fallthru
      _
    %p136 = scmp.le.s32.totalorder 1, %s9
    %p137 = scmp.lt.s32.totalorder %s9, 3
    %p138 = pnand %p136, %p137
    %p139 = pneg %p138
    // Predicated region
    $region29: #{fgmm_forward.12} parent=5 // pred_check
      _
    $region30: #{fgmm_forward.12} parent=5 // pred_check_branch
      %141 = sbr.rel (%p138) target = $region32
    $region31: #{fgmm_forward.12} parent=5 // pred_region
      %s142 = ssub.s32 %s9, 1
      %p143 = scmp.lt.s32.totalorder %s14, 1
      %s144 = scalar_select %p143, %s14, 1
      %s145 = smul.addr %s144, 36
      %s146 = smul.addr %s145, 8
      %s147 = scalar_lea.vmem %s0, %s146
      %p148 = pneg %p35
      %p149 = pneg %p32
      %p150 = pneg %p56
      %p151 = pneg %p53
      %p152 = pneg %p77
      %p153 = pneg %p74
      %p154 = pneg %p103
      %p155 = pneg %p100
      %p156 = scmp.lt.s32.totalorder %s14, 1
      %s157 = scalar_select %p156, %s14, 1
      %s158 = smul.addr %s157, 32
      %s159 = smul.addr %s158, 8
      %s160 = scalar_lea.vmem %s3, %s159
      %p161 = scmp.lt.s32.totalorder %s14, 1
      %s162 = scalar_select %p161, %s14, 1
      %s163 = smul.addr %s162, 36
      %s164 = smul.addr %s163, 8
      %s165 = scalar_lea.vmem %s0, %s164
      %p166 = scmp.lt.s32.totalorder %s14, 1
      %s167 = scalar_select %p166, %s14, 1
      %s168 = smul.addr %s167, 32
      %s169 = smul.addr %s168, 8
      %s170 = scalar_lea.vmem %s3, %s169
      %v171 = vld [vmem:[%s165] sm:$0xff]
      %v172 = vld [vmem:[%s165 + $0x8] sm:$0x7]
      %v173 = vld [vmem:[%s165 + $0x10] sm:$0xff]
      %v174 = vld [vmem:[%s165 + $0x18] sm:$0x7]
      %v175 = vld [vmem:[%s165 + $0x20] sm:$0xff]
      %v176 = vld [vmem:[%s165 + $0x28] sm:$0x7]
      %v177 = vld [vmem:[%s165 + $0x30] sm:$0xff]
      %v178 = vld [vmem:[%s165 + $0x38] sm:$0x7]
      %v179 = vld [vmem:[%s165 + $0x40] sm:$0xff]
      %v180 = vld [vmem:[%s165 + $0x48] sm:$0x7]
      %v181 = vld [vmem:[%s165 + $0x50] sm:$0xff]
      %v182 = vld [vmem:[%s165 + $0x58] sm:$0x7]
      %v183 = vld [vmem:[%s165 + $0x60] sm:$0xff]
      %v184 = vld [vmem:[%s165 + $0x68] sm:$0x7]
      %v185 = vld [vmem:[%s165 + $0x70] sm:$0xff]
      %v186 = vld [vmem:[%s165 + $0x78] sm:$0x7]
      %v187 = vld [vmem:[%s165 + $0x80] sm:$0xff]
      %v188 = vld [vmem:[%s165 + $0x88] sm:$0x7]
      %v189 = vld [vmem:[%s165 + $0x90] sm:$0xff]
      %v190 = vld [vmem:[%s165 + $0x98] sm:$0x7]
      %v191 = vld [vmem:[%s165 + $0xa0] sm:$0xff]
      %v192 = vld [vmem:[%s165 + $0xa8] sm:$0x7]
      %v193 = vld [vmem:[%s165 + $0xb0] sm:$0xff]
      %v194 = vld [vmem:[%s165 + $0xb8] sm:$0x7]
      %v195 = vld [vmem:[%s165 + $0xc0] sm:$0xff]
      %v196 = vld [vmem:[%s165 + $0xc8] sm:$0x7]
      %v197 = vld [vmem:[%s165 + $0xd0] sm:$0xff]
      %v198 = vld [vmem:[%s165 + $0xd8] sm:$0x7]
      %v199 = vld [vmem:[%s165 + $0xe0] sm:$0xff]
      %v200 = vld [vmem:[%s165 + $0xe8] sm:$0x7]
      %v201 = vld [vmem:[%s165 + $0xf0] sm:$0xff]
      %v202 = vld [vmem:[%s165 + $0xf8] sm:$0x7]
      %v203 = vld [vmem:[%s165 + $0x100] sm:$0xff]
      %v204 = vld [vmem:[%s165 + $0x108] sm:$0x7]
      %v205 = vld [vmem:[%s165 + $0x110] sm:$0xff]
      %v206 = vld [vmem:[%s165 + $0x118] sm:$0x7]
      %v207 = vld [vmem:[%s1] sm:$0x1]
      %v209 = vlaneseq
      %v210 = vshrl.u32 %v209, 7
      %v211 = vsub.s32 0, %v210
      %v212 = vrot.slane %v207, %v211
      %v214 = vmul.f32 %v171, %v212
      %v215 = vmul.f32 %v172, %v212
      %v216 = vmul.f32 %v173, %v212
      %v217 = vmul.f32 %v174, %v212
      %v218 = vmul.f32 %v175, %v212
      %v219 = vmul.f32 %v176, %v212
      %v220 = vmul.f32 %v177, %v212
      %v221 = vmul.f32 %v178, %v212
      %v222 = vmul.f32 %v179, %v212
      %v223 = vmul.f32 %v180, %v212
      %v224 = vmul.f32 %v181, %v212
      %v225 = vmul.f32 %v182, %v212
      %v226 = vmul.f32 %v183, %v212
      %v227 = vmul.f32 %v184, %v212
      %v228 = vmul.f32 %v185, %v212
      %v229 = vmul.f32 %v186, %v212
      %v230 = vmul.f32 %v187, %v212
      %v231 = vmul.f32 %v188, %v212
      %v232 = vmul.f32 %v189, %v212
      %v233 = vmul.f32 %v190, %v212
      %v234 = vmul.f32 %v191, %v212
      %v235 = vmul.f32 %v192, %v212
      %v236 = vmul.f32 %v193, %v212
      %v237 = vmul.f32 %v194, %v212
      %v238 = vmul.f32 %v195, %v212
      %v239 = vmul.f32 %v196, %v212
      %v240 = vmul.f32 %v197, %v212
      %v241 = vmul.f32 %v198, %v212
      %v242 = vmul.f32 %v199, %v212
      %v243 = vmul.f32 %v200, %v212
      %v244 = vmul.f32 %v201, %v212
      %v245 = vmul.f32 %v202, %v212
      %v246 = vadd.f32 %v214, 0.0
      %v247 = vadd.f32 %v215, 0.0
      %v248 = vadd.f32 %v216, 0.0
      %v249 = vadd.f32 %v217, 0.0
      %v250 = vadd.f32 %v218, 0.0
      %v251 = vadd.f32 %v219, 0.0
      %v252 = vadd.f32 %v220, 0.0
      %v253 = vadd.f32 %v221, 0.0
      %v254 = vadd.f32 %v222, 0.0
      %v255 = vadd.f32 %v223, 0.0
      %v256 = vadd.f32 %v224, 0.0
      %v257 = vadd.f32 %v225, 0.0
      %v258 = vadd.f32 %v226, 0.0
      %v259 = vadd.f32 %v227, 0.0
      %v260 = vadd.f32 %v228, 0.0
      %v261 = vadd.f32 %v229, 0.0
      %v262 = vadd.f32 %v230, 0.0
      %v263 = vadd.f32 %v231, 0.0
      %v264 = vadd.f32 %v232, 0.0
      %v265 = vadd.f32 %v233, 0.0
      %v266 = vadd.f32 %v234, 0.0
      %v267 = vadd.f32 %v235, 0.0
      %v268 = vadd.f32 %v236, 0.0
      %v269 = vadd.f32 %v237, 0.0
      %v270 = vadd.f32 %v238, 0.0
      %v271 = vadd.f32 %v239, 0.0
      %v272 = vadd.f32 %v240, 0.0
      %v273 = vadd.f32 %v241, 0.0
      %v274 = vadd.f32 %v242, 0.0
      %v275 = vadd.f32 %v243, 0.0
      %v276 = vadd.f32 %v244, 0.0
      %v277 = vadd.f32 %v245, 0.0
      %s278 = scalar_lea.vmem %s1, 1
      %v279 = vld [vmem:[%s278] sm:$0x1]
      %v281 = vlaneseq
      %v282 = vshrl.u32 %v281, 7
      %v283 = vsub.s32 0, %v282
      %v284 = vrot.slane %v279, %v283
      %v286 = vmul.f32 %v171, %v284
      %v287 = vmul.f32 %v172, %v284
      %v288 = vmul.f32 %v173, %v284
      %v289 = vmul.f32 %v174, %v284
      %v290 = vmul.f32 %v175, %v284
      %v291 = vmul.f32 %v176, %v284
      %v292 = vmul.f32 %v177, %v284
      %v293 = vmul.f32 %v178, %v284
      %v294 = vmul.f32 %v179, %v284
      %v295 = vmul.f32 %v180, %v284
      %v296 = vmul.f32 %v181, %v284
      %v297 = vmul.f32 %v182, %v284
      %v298 = vmul.f32 %v183, %v284
      %v299 = vmul.f32 %v184, %v284
      %v300 = vmul.f32 %v185, %v284
      %v301 = vmul.f32 %v186, %v284
      %v302 = vmul.f32 %v187, %v284
      %v303 = vmul.f32 %v188, %v284
      %v304 = vmul.f32 %v189, %v284
      %v305 = vmul.f32 %v190, %v284
      %v306 = vmul.f32 %v191, %v284
      %v307 = vmul.f32 %v192, %v284
      %v308 = vmul.f32 %v193, %v284
      %v309 = vmul.f32 %v194, %v284
      %v310 = vmul.f32 %v195, %v284
      %v311 = vmul.f32 %v196, %v284
      %v312 = vmul.f32 %v197, %v284
      %v313 = vmul.f32 %v198, %v284
      %v314 = vmul.f32 %v199, %v284
      %v315 = vmul.f32 %v200, %v284
      %v316 = vmul.f32 %v201, %v284
      %v317 = vmul.f32 %v202, %v284
      %vm350 = vcmask 1046528
      %v351 = vrot.slane %v286, 1
      %v352 = vrot.slane %v287, 1
      %v353 = vsel %vm350, %v351, %v352
      %v354 = vrot.slane %v288, 1
      %v355 = vrot.slane %v289, 1
      %v356 = vsel %vm350, %v354, %v355
      %v357 = vrot.slane %v290, 1
      %v358 = vrot.slane %v291, 1
      %v359 = vsel %vm350, %v357, %v358
      %v360 = vrot.slane %v292, 1
      %v361 = vrot.slane %v293, 1
      %v362 = vsel %vm350, %v360, %v361
      %v363 = vrot.slane %v294, 1
      %v364 = vrot.slane %v295, 1
      %v365 = vsel %vm350, %v363, %v364
      %v366 = vrot.slane %v296, 1
      %v367 = vrot.slane %v297, 1
      %v368 = vsel %vm350, %v366, %v367
      %v369 = vrot.slane %v298, 1
      %v370 = vrot.slane %v299, 1
      %v371 = vsel %vm350, %v369, %v370
      %v372 = vrot.slane %v300, 1
      %v373 = vrot.slane %v301, 1
      %v374 = vsel %vm350, %v372, %v373
      %v375 = vrot.slane %v302, 1
      %v376 = vrot.slane %v303, 1
      %v377 = vsel %vm350, %v375, %v376
      %v378 = vrot.slane %v304, 1
      %v379 = vrot.slane %v305, 1
      %v380 = vsel %vm350, %v378, %v379
      %v381 = vrot.slane %v306, 1
      %v382 = vrot.slane %v307, 1
      %v383 = vsel %vm350, %v381, %v382
      %v384 = vrot.slane %v308, 1
      %v385 = vrot.slane %v309, 1
      %v386 = vsel %vm350, %v384, %v385
      %v387 = vrot.slane %v310, 1
      %v388 = vrot.slane %v311, 1
      %v389 = vsel %vm350, %v387, %v388
      %v390 = vrot.slane %v312, 1
      %v391 = vrot.slane %v313, 1
      %v392 = vsel %vm350, %v390, %v391
      %v393 = vrot.slane %v314, 1
      %v394 = vrot.slane %v315, 1
      %v395 = vsel %vm350, %v393, %v394
      %v396 = vrot.slane %v316, 1
      %v397 = vrot.slane %v317, 1
      %v398 = vsel %vm350, %v396, %v397
      %v431 = vadd.f32 %v246, %v353
      %v432 = vadd.f32 %v247, %v352
      %v433 = vadd.f32 %v248, %v356
      %v434 = vadd.f32 %v249, %v355
      %v435 = vadd.f32 %v250, %v359
      %v436 = vadd.f32 %v251, %v358
      %v437 = vadd.f32 %v252, %v362
      %v438 = vadd.f32 %v253, %v361
      %v439 = vadd.f32 %v254, %v365
      %v440 = vadd.f32 %v255, %v364
      %v441 = vadd.f32 %v256, %v368
      %v442 = vadd.f32 %v257, %v367
      %v443 = vadd.f32 %v258, %v371
      %v444 = vadd.f32 %v259, %v370
      %v445 = vadd.f32 %v260, %v374
      %v446 = vadd.f32 %v261, %v373
      %v447 = vadd.f32 %v262, %v377
      %v448 = vadd.f32 %v263, %v376
      %v449 = vadd.f32 %v264, %v380
      %v450 = vadd.f32 %v265, %v379
      %v451 = vadd.f32 %v266, %v383
      %v452 = vadd.f32 %v267, %v382
      %v453 = vadd.f32 %v268, %v386
      %v454 = vadd.f32 %v269, %v385
      %v455 = vadd.f32 %v270, %v389
      %v456 = vadd.f32 %v271, %v388
      %v457 = vadd.f32 %v272, %v392
      %v458 = vadd.f32 %v273, %v391
      %v459 = vadd.f32 %v274, %v395
      %v460 = vadd.f32 %v275, %v394
      %v461 = vadd.f32 %v276, %v398
      %v462 = vadd.f32 %v277, %v397
      %s463 = scalar_lea.vmem %s1, 2
      %v464 = vld [vmem:[%s463] sm:$0x1]
      %v466 = vlaneseq
      %v467 = vshrl.u32 %v466, 7
      %v468 = vsub.s32 0, %v467
      %v469 = vrot.slane %v464, %v468
      %v471 = vmul.f32 %v171, %v469
      %v472 = vmul.f32 %v172, %v469
      %v473 = vmul.f32 %v173, %v469
      %v474 = vmul.f32 %v174, %v469
      %v475 = vmul.f32 %v175, %v469
      %v476 = vmul.f32 %v176, %v469
      %v477 = vmul.f32 %v177, %v469
      %v478 = vmul.f32 %v178, %v469
      %v479 = vmul.f32 %v179, %v469
      %v480 = vmul.f32 %v180, %v469
      %v481 = vmul.f32 %v181, %v469
      %v482 = vmul.f32 %v182, %v469
      %v483 = vmul.f32 %v183, %v469
      %v484 = vmul.f32 %v184, %v469
      %v485 = vmul.f32 %v185, %v469
      %v486 = vmul.f32 %v186, %v469
      %v487 = vmul.f32 %v187, %v469
      %v488 = vmul.f32 %v188, %v469
      %v489 = vmul.f32 %v189, %v469
      %v490 = vmul.f32 %v190, %v469
      %v491 = vmul.f32 %v191, %v469
      %v492 = vmul.f32 %v192, %v469
      %v493 = vmul.f32 %v193, %v469
      %v494 = vmul.f32 %v194, %v469
      %v495 = vmul.f32 %v195, %v469
      %v496 = vmul.f32 %v196, %v469
      %v497 = vmul.f32 %v197, %v469
      %v498 = vmul.f32 %v198, %v469
      %v499 = vmul.f32 %v199, %v469
      %v500 = vmul.f32 %v200, %v469
      %v501 = vmul.f32 %v201, %v469
      %v502 = vmul.f32 %v202, %v469
      %vm535 = vcmask 1045504
      %v536 = vrot.slane %v471, 2
      %v537 = vrot.slane %v472, 2
      %v538 = vsel %vm535, %v536, %v537
      %v539 = vrot.slane %v473, 2
      %v540 = vrot.slane %v474, 2
      %v541 = vsel %vm535, %v539, %v540
      %v542 = vrot.slane %v475, 2
      %v543 = vrot.slane %v476, 2
      %v544 = vsel %vm535, %v542, %v543
      %v545 = vrot.slane %v477, 2
      %v546 = vrot.slane %v478, 2
      %v547 = vsel %vm535, %v545, %v546
      %v548 = vrot.slane %v479, 2
      %v549 = vrot.slane %v480, 2
      %v550 = vsel %vm535, %v548, %v549
      %v551 = vrot.slane %v481, 2
      %v552 = vrot.slane %v482, 2
      %v553 = vsel %vm535, %v551, %v552
      %v554 = vrot.slane %v483, 2
      %v555 = vrot.slane %v484, 2
      %v556 = vsel %vm535, %v554, %v555
      %v557 = vrot.slane %v485, 2
      %v558 = vrot.slane %v486, 2
      %v559 = vsel %vm535, %v557, %v558
      %v560 = vrot.slane %v487, 2
      %v561 = vrot.slane %v488, 2
      %v562 = vsel %vm535, %v560, %v561
      %v563 = vrot.slane %v489, 2
      %v564 = vrot.slane %v490, 2
      %v565 = vsel %vm535, %v563, %v564
      %v566 = vrot.slane %v491, 2
      %v567 = vrot.slane %v492, 2
      %v568 = vsel %vm535, %v566, %v567
      %v569 = vrot.slane %v493, 2
      %v570 = vrot.slane %v494, 2
      %v571 = vsel %vm535, %v569, %v570
      %v572 = vrot.slane %v495, 2
      %v573 = vrot.slane %v496, 2
      %v574 = vsel %vm535, %v572, %v573
      %v575 = vrot.slane %v497, 2
      %v576 = vrot.slane %v498, 2
      %v577 = vsel %vm535, %v575, %v576
      %v578 = vrot.slane %v499, 2
      %v579 = vrot.slane %v500, 2
      %v580 = vsel %vm535, %v578, %v579
      %v581 = vrot.slane %v501, 2
      %v582 = vrot.slane %v502, 2
      %v583 = vsel %vm535, %v581, %v582
      %v616 = vadd.f32 %v431, %v538
      %v617 = vadd.f32 %v432, %v537
      %v618 = vadd.f32 %v433, %v541
      %v619 = vadd.f32 %v434, %v540
      %v620 = vadd.f32 %v435, %v544
      %v621 = vadd.f32 %v436, %v543
      %v622 = vadd.f32 %v437, %v547
      %v623 = vadd.f32 %v438, %v546
      %v624 = vadd.f32 %v439, %v550
      %v625 = vadd.f32 %v440, %v549
      %v626 = vadd.f32 %v441, %v553
      %v627 = vadd.f32 %v442, %v552
      %v628 = vadd.f32 %v443, %v556
      %v629 = vadd.f32 %v444, %v555
      %v630 = vadd.f32 %v445, %v559
      %v631 = vadd.f32 %v446, %v558
      %v632 = vadd.f32 %v447, %v562
      %v633 = vadd.f32 %v448, %v561
      %v634 = vadd.f32 %v449, %v565
      %v635 = vadd.f32 %v450, %v564
      %v636 = vadd.f32 %v451, %v568
      %v637 = vadd.f32 %v452, %v567
      %v638 = vadd.f32 %v453, %v571
      %v639 = vadd.f32 %v454, %v570
      %v640 = vadd.f32 %v455, %v574
      %v641 = vadd.f32 %v456, %v573
      %v642 = vadd.f32 %v457, %v577
      %v643 = vadd.f32 %v458, %v576
      %v644 = vadd.f32 %v459, %v580
      %v645 = vadd.f32 %v460, %v579
      %v646 = vadd.f32 %v461, %v583
      %v647 = vadd.f32 %v462, %v582
      %s648 = scalar_lea.vmem %s1, 3
      %v649 = vld [vmem:[%s648] sm:$0x1]
      %v651 = vlaneseq
      %v652 = vshrl.u32 %v651, 7
      %v653 = vsub.s32 0, %v652
      %v654 = vrot.slane %v649, %v653
      %v656 = vmul.f32 %v173, %v654
      %v657 = vmul.f32 %v174, %v654
      %v658 = vmul.f32 %v175, %v654
      %v659 = vmul.f32 %v176, %v654
      %v660 = vmul.f32 %v177, %v654
      %v661 = vmul.f32 %v178, %v654
      %v662 = vmul.f32 %v179, %v654
      %v663 = vmul.f32 %v180, %v654
      %v664 = vmul.f32 %v181, %v654
      %v665 = vmul.f32 %v182, %v654
      %v666 = vmul.f32 %v183, %v654
      %v667 = vmul.f32 %v184, %v654
      %v668 = vmul.f32 %v185, %v654
      %v669 = vmul.f32 %v186, %v654
      %v670 = vmul.f32 %v187, %v654
      %v671 = vmul.f32 %v188, %v654
      %v672 = vmul.f32 %v189, %v654
      %v673 = vmul.f32 %v190, %v654
      %v674 = vmul.f32 %v191, %v654
      %v675 = vmul.f32 %v192, %v654
      %v676 = vmul.f32 %v193, %v654
      %v677 = vmul.f32 %v194, %v654
      %v678 = vmul.f32 %v195, %v654
      %v679 = vmul.f32 %v196, %v654
      %v680 = vmul.f32 %v197, %v654
      %v681 = vmul.f32 %v198, %v654
      %v682 = vmul.f32 %v199, %v654
      %v683 = vmul.f32 %v200, %v654
      %v684 = vmul.f32 %v201, %v654
      %v685 = vmul.f32 %v202, %v654
      %v686 = vmul.f32 %v203, %v654
      %v687 = vmul.f32 %v204, %v654
      %v688 = vadd.f32 %v616, %v656
      %v689 = vadd.f32 %v617, %v657
      %v690 = vadd.f32 %v618, %v658
      %v691 = vadd.f32 %v619, %v659
      %v692 = vadd.f32 %v620, %v660
      %v693 = vadd.f32 %v621, %v661
      %v694 = vadd.f32 %v622, %v662
      %v695 = vadd.f32 %v623, %v663
      %v696 = vadd.f32 %v624, %v664
      %v697 = vadd.f32 %v625, %v665
      %v698 = vadd.f32 %v626, %v666
      %v699 = vadd.f32 %v627, %v667
      %v700 = vadd.f32 %v628, %v668
      %v701 = vadd.f32 %v629, %v669
      %v702 = vadd.f32 %v630, %v670
      %v703 = vadd.f32 %v631, %v671
      %v704 = vadd.f32 %v632, %v672
      %v705 = vadd.f32 %v633, %v673
      %v706 = vadd.f32 %v634, %v674
      %v707 = vadd.f32 %v635, %v675
      %v708 = vadd.f32 %v636, %v676
      %v709 = vadd.f32 %v637, %v677
      %v710 = vadd.f32 %v638, %v678
      %v711 = vadd.f32 %v639, %v679
      %v712 = vadd.f32 %v640, %v680
      %v713 = vadd.f32 %v641, %v681
      %v714 = vadd.f32 %v642, %v682
      %v715 = vadd.f32 %v643, %v683
      %v716 = vadd.f32 %v644, %v684
      %v717 = vadd.f32 %v645, %v685
      %v718 = vadd.f32 %v646, %v686
      %v719 = vadd.f32 %v647, %v687
      %s720 = scalar_lea.vmem %s1, 4
      %v721 = vld [vmem:[%s720] sm:$0x1]
      %v723 = vlaneseq
      %v724 = vshrl.u32 %v723, 7
      %v725 = vsub.s32 0, %v724
      %v726 = vrot.slane %v721, %v725
      %v728 = vmul.f32 %v173, %v726
      %v729 = vmul.f32 %v174, %v726
      %v730 = vmul.f32 %v175, %v726
      %v731 = vmul.f32 %v176, %v726
      %v732 = vmul.f32 %v177, %v726
      %v733 = vmul.f32 %v178, %v726
      %v734 = vmul.f32 %v179, %v726
      %v735 = vmul.f32 %v180, %v726
      %v736 = vmul.f32 %v181, %v726
      %v737 = vmul.f32 %v182, %v726
      %v738 = vmul.f32 %v183, %v726
      %v739 = vmul.f32 %v184, %v726
      %v740 = vmul.f32 %v185, %v726
      %v741 = vmul.f32 %v186, %v726
      %v742 = vmul.f32 %v187, %v726
      %v743 = vmul.f32 %v188, %v726
      %v744 = vmul.f32 %v189, %v726
      %v745 = vmul.f32 %v190, %v726
      %v746 = vmul.f32 %v191, %v726
      %v747 = vmul.f32 %v192, %v726
      %v748 = vmul.f32 %v193, %v726
      %v749 = vmul.f32 %v194, %v726
      %v750 = vmul.f32 %v195, %v726
      %v751 = vmul.f32 %v196, %v726
      %v752 = vmul.f32 %v197, %v726
      %v753 = vmul.f32 %v198, %v726
      %v754 = vmul.f32 %v199, %v726
      %v755 = vmul.f32 %v200, %v726
      %v756 = vmul.f32 %v201, %v726
      %v757 = vmul.f32 %v202, %v726
      %v758 = vmul.f32 %v203, %v726
      %v759 = vmul.f32 %v204, %v726
      %v792 = vrot.slane %v728, 1
      %v793 = vrot.slane %v729, 1
      %v794 = vsel %vm350, %v792, %v793
      %v795 = vrot.slane %v730, 1
      %v796 = vrot.slane %v731, 1
      %v797 = vsel %vm350, %v795, %v796
      %v798 = vrot.slane %v732, 1
      %v799 = vrot.slane %v733, 1
      %v800 = vsel %vm350, %v798, %v799
      %v801 = vrot.slane %v734, 1
      %v802 = vrot.slane %v735, 1
      %v803 = vsel %vm350, %v801, %v802
      %v804 = vrot.slane %v736, 1
      %v805 = vrot.slane %v737, 1
      %v806 = vsel %vm350, %v804, %v805
      %v807 = vrot.slane %v738, 1
      %v808 = vrot.slane %v739, 1
      %v809 = vsel %vm350, %v807, %v808
      %v810 = vrot.slane %v740, 1
      %v811 = vrot.slane %v741, 1
      %v812 = vsel %vm350, %v810, %v811
      %v813 = vrot.slane %v742, 1
      %v814 = vrot.slane %v743, 1
      %v815 = vsel %vm350, %v813, %v814
      %v816 = vrot.slane %v744, 1
      %v817 = vrot.slane %v745, 1
      %v818 = vsel %vm350, %v816, %v817
      %v819 = vrot.slane %v746, 1
      %v820 = vrot.slane %v747, 1
      %v821 = vsel %vm350, %v819, %v820
      %v822 = vrot.slane %v748, 1
      %v823 = vrot.slane %v749, 1
      %v824 = vsel %vm350, %v822, %v823
      %v825 = vrot.slane %v750, 1
      %v826 = vrot.slane %v751, 1
      %v827 = vsel %vm350, %v825, %v826
      %v828 = vrot.slane %v752, 1
      %v829 = vrot.slane %v753, 1
      %v830 = vsel %vm350, %v828, %v829
      %v831 = vrot.slane %v754, 1
      %v832 = vrot.slane %v755, 1
      %v833 = vsel %vm350, %v831, %v832
      %v834 = vrot.slane %v756, 1
      %v835 = vrot.slane %v757, 1
      %v836 = vsel %vm350, %v834, %v835
      %v837 = vrot.slane %v758, 1
      %v838 = vrot.slane %v759, 1
      %v839 = vsel %vm350, %v837, %v838
      %v872 = vadd.f32 %v688, %v794
      %v873 = vadd.f32 %v689, %v793
      %v874 = vadd.f32 %v690, %v797
      %v875 = vadd.f32 %v691, %v796
      %v876 = vadd.f32 %v692, %v800
      %v877 = vadd.f32 %v693, %v799
      %v878 = vadd.f32 %v694, %v803
      %v879 = vadd.f32 %v695, %v802
      %v880 = vadd.f32 %v696, %v806
      %v881 = vadd.f32 %v697, %v805
      %v882 = vadd.f32 %v698, %v809
      %v883 = vadd.f32 %v699, %v808
      %v884 = vadd.f32 %v700, %v812
      %v885 = vadd.f32 %v701, %v811
      %v886 = vadd.f32 %v702, %v815
      %v887 = vadd.f32 %v703, %v814
      %v888 = vadd.f32 %v704, %v818
      %v889 = vadd.f32 %v705, %v817
      %v890 = vadd.f32 %v706, %v821
      %v891 = vadd.f32 %v707, %v820
      %v892 = vadd.f32 %v708, %v824
      %v893 = vadd.f32 %v709, %v823
      %v894 = vadd.f32 %v710, %v827
      %v895 = vadd.f32 %v711, %v826
      %v896 = vadd.f32 %v712, %v830
      %v897 = vadd.f32 %v713, %v829
      %v898 = vadd.f32 %v714, %v833
      %v899 = vadd.f32 %v715, %v832
      %v900 = vadd.f32 %v716, %v836
      %v901 = vadd.f32 %v717, %v835
      %v902 = vadd.f32 %v718, %v839
      %v903 = vadd.f32 %v719, %v838
      %s904 = scalar_lea.vmem %s1, 5
      %v905 = vld [vmem:[%s904] sm:$0x1]
      %v907 = vlaneseq
      %v908 = vshrl.u32 %v907, 7
      %v909 = vsub.s32 0, %v908
      %v910 = vrot.slane %v905, %v909
      %v912 = vmul.f32 %v173, %v910
      %v913 = vmul.f32 %v174, %v910
      %v914 = vmul.f32 %v175, %v910
      %v915 = vmul.f32 %v176, %v910
      %v916 = vmul.f32 %v177, %v910
      %v917 = vmul.f32 %v178, %v910
      %v918 = vmul.f32 %v179, %v910
      %v919 = vmul.f32 %v180, %v910
      %v920 = vmul.f32 %v181, %v910
      %v921 = vmul.f32 %v182, %v910
      %v922 = vmul.f32 %v183, %v910
      %v923 = vmul.f32 %v184, %v910
      %v924 = vmul.f32 %v185, %v910
      %v925 = vmul.f32 %v186, %v910
      %v926 = vmul.f32 %v187, %v910
      %v927 = vmul.f32 %v188, %v910
      %v928 = vmul.f32 %v189, %v910
      %v929 = vmul.f32 %v190, %v910
      %v930 = vmul.f32 %v191, %v910
      %v931 = vmul.f32 %v192, %v910
      %v932 = vmul.f32 %v193, %v910
      %v933 = vmul.f32 %v194, %v910
      %v934 = vmul.f32 %v195, %v910
      %v935 = vmul.f32 %v196, %v910
      %v936 = vmul.f32 %v197, %v910
      %v937 = vmul.f32 %v198, %v910
      %v938 = vmul.f32 %v199, %v910
      %v939 = vmul.f32 %v200, %v910
      %v940 = vmul.f32 %v201, %v910
      %v941 = vmul.f32 %v202, %v910
      %v942 = vmul.f32 %v203, %v910
      %v943 = vmul.f32 %v204, %v910
      %v976 = vrot.slane %v912, 2
      %v977 = vrot.slane %v913, 2
      %v978 = vsel %vm535, %v976, %v977
      %v979 = vrot.slane %v914, 2
      %v980 = vrot.slane %v915, 2
      %v981 = vsel %vm535, %v979, %v980
      %v982 = vrot.slane %v916, 2
      %v983 = vrot.slane %v917, 2
      %v984 = vsel %vm535, %v982, %v983
      %v985 = vrot.slane %v918, 2
      %v986 = vrot.slane %v919, 2
      %v987 = vsel %vm535, %v985, %v986
      %v988 = vrot.slane %v920, 2
      %v989 = vrot.slane %v921, 2
      %v990 = vsel %vm535, %v988, %v989
      %v991 = vrot.slane %v922, 2
      %v992 = vrot.slane %v923, 2
      %v993 = vsel %vm535, %v991, %v992
      %v994 = vrot.slane %v924, 2
      %v995 = vrot.slane %v925, 2
      %v996 = vsel %vm535, %v994, %v995
      %v997 = vrot.slane %v926, 2
      %v998 = vrot.slane %v927, 2
      %v999 = vsel %vm535, %v997, %v998
      %v1000 = vrot.slane %v928, 2
      %v1001 = vrot.slane %v929, 2
      %v1002 = vsel %vm535, %v1000, %v1001
      %v1003 = vrot.slane %v930, 2
      %v1004 = vrot.slane %v931, 2
      %v1005 = vsel %vm535, %v1003, %v1004
      %v1006 = vrot.slane %v932, 2
      %v1007 = vrot.slane %v933, 2
      %v1008 = vsel %vm535, %v1006, %v1007
      %v1009 = vrot.slane %v934, 2
      %v1010 = vrot.slane %v935, 2
      %v1011 = vsel %vm535, %v1009, %v1010
      %v1012 = vrot.slane %v936, 2
      %v1013 = vrot.slane %v937, 2
      %v1014 = vsel %vm535, %v1012, %v1013
      %v1015 = vrot.slane %v938, 2
      %v1016 = vrot.slane %v939, 2
      %v1017 = vsel %vm535, %v1015, %v1016
      %v1018 = vrot.slane %v940, 2
      %v1019 = vrot.slane %v941, 2
      %v1020 = vsel %vm535, %v1018, %v1019
      %v1021 = vrot.slane %v942, 2
      %v1022 = vrot.slane %v943, 2
      %v1023 = vsel %vm535, %v1021, %v1022
      %v1056 = vadd.f32 %v872, %v978
      %v1057 = vadd.f32 %v873, %v977
      %v1058 = vadd.f32 %v874, %v981
      %v1059 = vadd.f32 %v875, %v980
      %v1060 = vadd.f32 %v876, %v984
      %v1061 = vadd.f32 %v877, %v983
      %v1062 = vadd.f32 %v878, %v987
      %v1063 = vadd.f32 %v879, %v986
      %v1064 = vadd.f32 %v880, %v990
      %v1065 = vadd.f32 %v881, %v989
      %v1066 = vadd.f32 %v882, %v993
      %v1067 = vadd.f32 %v883, %v992
      %v1068 = vadd.f32 %v884, %v996
      %v1069 = vadd.f32 %v885, %v995
      %v1070 = vadd.f32 %v886, %v999
      %v1071 = vadd.f32 %v887, %v998
      %v1072 = vadd.f32 %v888, %v1002
      %v1073 = vadd.f32 %v889, %v1001
      %v1074 = vadd.f32 %v890, %v1005
      %v1075 = vadd.f32 %v891, %v1004
      %v1076 = vadd.f32 %v892, %v1008
      %v1077 = vadd.f32 %v893, %v1007
      %v1078 = vadd.f32 %v894, %v1011
      %v1079 = vadd.f32 %v895, %v1010
      %v1080 = vadd.f32 %v896, %v1014
      %v1081 = vadd.f32 %v897, %v1013
      %v1082 = vadd.f32 %v898, %v1017
      %v1083 = vadd.f32 %v899, %v1016
      %v1084 = vadd.f32 %v900, %v1020
      %v1085 = vadd.f32 %v901, %v1019
      %v1086 = vadd.f32 %v902, %v1023
      %v1087 = vadd.f32 %v903, %v1022
      %s1088 = scalar_lea.vmem %s1, 6
      %v1089 = vld [vmem:[%s1088] sm:$0x1]
      %v1091 = vlaneseq
      %v1092 = vshrl.u32 %v1091, 7
      %v1093 = vsub.s32 0, %v1092
      %v1094 = vrot.slane %v1089, %v1093
      %v1096 = vmul.f32 %v175, %v1094
      %v1097 = vmul.f32 %v176, %v1094
      %v1098 = vmul.f32 %v177, %v1094
      %v1099 = vmul.f32 %v178, %v1094
      %v1100 = vmul.f32 %v179, %v1094
      %v1101 = vmul.f32 %v180, %v1094
      %v1102 = vmul.f32 %v181, %v1094
      %v1103 = vmul.f32 %v182, %v1094
      %v1104 = vmul.f32 %v183, %v1094
      %v1105 = vmul.f32 %v184, %v1094
      %v1106 = vmul.f32 %v185, %v1094
      %v1107 = vmul.f32 %v186, %v1094
      %v1108 = vmul.f32 %v187, %v1094
      %v1109 = vmul.f32 %v188, %v1094
      %v1110 = vmul.f32 %v189, %v1094
      %v1111 = vmul.f32 %v190, %v1094
      %v1112 = vmul.f32 %v191, %v1094
      %v1113 = vmul.f32 %v192, %v1094
      %v1114 = vmul.f32 %v193, %v1094
      %v1115 = vmul.f32 %v194, %v1094
      %v1116 = vmul.f32 %v195, %v1094
      %v1117 = vmul.f32 %v196, %v1094
      %v1118 = vmul.f32 %v197, %v1094
      %v1119 = vmul.f32 %v198, %v1094
      %v1120 = vmul.f32 %v199, %v1094
      %v1121 = vmul.f32 %v200, %v1094
      %v1122 = vmul.f32 %v201, %v1094
      %v1123 = vmul.f32 %v202, %v1094
      %v1124 = vmul.f32 %v203, %v1094
      %v1125 = vmul.f32 %v204, %v1094
      %v1126 = vmul.f32 %v205, %v1094
      %v1127 = vmul.f32 %v206, %v1094
      %v1128 = vadd.f32 %v1056, %v1096
      %v1129 = vadd.f32 %v1057, %v1097
      %v1130 = vadd.f32 %v1058, %v1098
      %v1131 = vadd.f32 %v1059, %v1099
      %v1132 = vadd.f32 %v1060, %v1100
      %v1133 = vadd.f32 %v1061, %v1101
      %v1134 = vadd.f32 %v1062, %v1102
      %v1135 = vadd.f32 %v1063, %v1103
      %v1136 = vadd.f32 %v1064, %v1104
      %v1137 = vadd.f32 %v1065, %v1105
      %v1138 = vadd.f32 %v1066, %v1106
      %v1139 = vadd.f32 %v1067, %v1107
      %v1140 = vadd.f32 %v1068, %v1108
      %v1141 = vadd.f32 %v1069, %v1109
      %v1142 = vadd.f32 %v1070, %v1110
      %v1143 = vadd.f32 %v1071, %v1111
      %v1144 = vadd.f32 %v1072, %v1112
      %v1145 = vadd.f32 %v1073, %v1113
      %v1146 = vadd.f32 %v1074, %v1114
      %v1147 = vadd.f32 %v1075, %v1115
      %v1148 = vadd.f32 %v1076, %v1116
      %v1149 = vadd.f32 %v1077, %v1117
      %v1150 = vadd.f32 %v1078, %v1118
      %v1151 = vadd.f32 %v1079, %v1119
      %v1152 = vadd.f32 %v1080, %v1120
      %v1153 = vadd.f32 %v1081, %v1121
      %v1154 = vadd.f32 %v1082, %v1122
      %v1155 = vadd.f32 %v1083, %v1123
      %v1156 = vadd.f32 %v1084, %v1124
      %v1157 = vadd.f32 %v1085, %v1125
      %v1158 = vadd.f32 %v1086, %v1126
      %v1159 = vadd.f32 %v1087, %v1127
      %s1160 = scalar_lea.vmem %s1, 7
      %v1161 = vld [vmem:[%s1160] sm:$0x1]
      %v1163 = vlaneseq
      %v1164 = vshrl.u32 %v1163, 7
      %v1165 = vsub.s32 0, %v1164
      %v1166 = vrot.slane %v1161, %v1165
      %v1168 = vmul.f32 %v175, %v1166
      %v1169 = vmul.f32 %v176, %v1166
      %v1170 = vmul.f32 %v177, %v1166
      %v1171 = vmul.f32 %v178, %v1166
      %v1172 = vmul.f32 %v179, %v1166
      %v1173 = vmul.f32 %v180, %v1166
      %v1174 = vmul.f32 %v181, %v1166
      %v1175 = vmul.f32 %v182, %v1166
      %v1176 = vmul.f32 %v183, %v1166
      %v1177 = vmul.f32 %v184, %v1166
      %v1178 = vmul.f32 %v185, %v1166
      %v1179 = vmul.f32 %v186, %v1166
      %v1180 = vmul.f32 %v187, %v1166
      %v1181 = vmul.f32 %v188, %v1166
      %v1182 = vmul.f32 %v189, %v1166
      %v1183 = vmul.f32 %v190, %v1166
      %v1184 = vmul.f32 %v191, %v1166
      %v1185 = vmul.f32 %v192, %v1166
      %v1186 = vmul.f32 %v193, %v1166
      %v1187 = vmul.f32 %v194, %v1166
      %v1188 = vmul.f32 %v195, %v1166
      %v1189 = vmul.f32 %v196, %v1166
      %v1190 = vmul.f32 %v197, %v1166
      %v1191 = vmul.f32 %v198, %v1166
      %v1192 = vmul.f32 %v199, %v1166
      %v1193 = vmul.f32 %v200, %v1166
      %v1194 = vmul.f32 %v201, %v1166
      %v1195 = vmul.f32 %v202, %v1166
      %v1196 = vmul.f32 %v203, %v1166
      %v1197 = vmul.f32 %v204, %v1166
      %v1198 = vmul.f32 %v205, %v1166
      %v1199 = vmul.f32 %v206, %v1166
      %v1232 = vrot.slane %v1168, 1
      %v1233 = vrot.slane %v1169, 1
      %v1234 = vsel %vm350, %v1232, %v1233
      %v1235 = vrot.slane %v1170, 1
      %v1236 = vrot.slane %v1171, 1
      %v1237 = vsel %vm350, %v1235, %v1236
      %v1238 = vrot.slane %v1172, 1
      %v1239 = vrot.slane %v1173, 1
      %v1240 = vsel %vm350, %v1238, %v1239
      %v1241 = vrot.slane %v1174, 1
      %v1242 = vrot.slane %v1175, 1
      %v1243 = vsel %vm350, %v1241, %v1242
      %v1244 = vrot.slane %v1176, 1
      %v1245 = vrot.slane %v1177, 1
      %v1246 = vsel %vm350, %v1244, %v1245
      %v1247 = vrot.slane %v1178, 1
      %v1248 = vrot.slane %v1179, 1
      %v1249 = vsel %vm350, %v1247, %v1248
      %v1250 = vrot.slane %v1180, 1
      %v1251 = vrot.slane %v1181, 1
      %v1252 = vsel %vm350, %v1250, %v1251
      %v1253 = vrot.slane %v1182, 1
      %v1254 = vrot.slane %v1183, 1
      %v1255 = vsel %vm350, %v1253, %v1254
      %v1256 = vrot.slane %v1184, 1
      %v1257 = vrot.slane %v1185, 1
      %v1258 = vsel %vm350, %v1256, %v1257
      %v1259 = vrot.slane %v1186, 1
      %v1260 = vrot.slane %v1187, 1
      %v1261 = vsel %vm350, %v1259, %v1260
      %v1262 = vrot.slane %v1188, 1
      %v1263 = vrot.slane %v1189, 1
      %v1264 = vsel %vm350, %v1262, %v1263
      %v1265 = vrot.slane %v1190, 1
      %v1266 = vrot.slane %v1191, 1
      %v1267 = vsel %vm350, %v1265, %v1266
      %v1268 = vrot.slane %v1192, 1
      %v1269 = vrot.slane %v1193, 1
      %v1270 = vsel %vm350, %v1268, %v1269
      %v1271 = vrot.slane %v1194, 1
      %v1272 = vrot.slane %v1195, 1
      %v1273 = vsel %vm350, %v1271, %v1272
      %v1274 = vrot.slane %v1196, 1
      %v1275 = vrot.slane %v1197, 1
      %v1276 = vsel %vm350, %v1274, %v1275
      %v1277 = vrot.slane %v1198, 1
      %v1278 = vrot.slane %v1199, 1
      %v1279 = vsel %vm350, %v1277, %v1278
      %v1312 = vadd.f32 %v1128, %v1234
      %v1313 = vadd.f32 %v1129, %v1233
      %v1314 = vadd.f32 %v1130, %v1237
      %v1315 = vadd.f32 %v1131, %v1236
      %v1316 = vadd.f32 %v1132, %v1240
      %v1317 = vadd.f32 %v1133, %v1239
      %v1318 = vadd.f32 %v1134, %v1243
      %v1319 = vadd.f32 %v1135, %v1242
      %v1320 = vadd.f32 %v1136, %v1246
      %v1321 = vadd.f32 %v1137, %v1245
      %v1322 = vadd.f32 %v1138, %v1249
      %v1323 = vadd.f32 %v1139, %v1248
      %v1324 = vadd.f32 %v1140, %v1252
      %v1325 = vadd.f32 %v1141, %v1251
      %v1326 = vadd.f32 %v1142, %v1255
      %v1327 = vadd.f32 %v1143, %v1254
      %v1328 = vadd.f32 %v1144, %v1258
      %v1329 = vadd.f32 %v1145, %v1257
      %v1330 = vadd.f32 %v1146, %v1261
      %v1331 = vadd.f32 %v1147, %v1260
      %v1332 = vadd.f32 %v1148, %v1264
      %v1333 = vadd.f32 %v1149, %v1263
      %v1334 = vadd.f32 %v1150, %v1267
      %v1335 = vadd.f32 %v1151, %v1266
      %v1336 = vadd.f32 %v1152, %v1270
      %v1337 = vadd.f32 %v1153, %v1269
      %v1338 = vadd.f32 %v1154, %v1273
      %v1339 = vadd.f32 %v1155, %v1272
      %v1340 = vadd.f32 %v1156, %v1276
      %v1341 = vadd.f32 %v1157, %v1275
      %v1342 = vadd.f32 %v1158, %v1279
      %v1343 = vadd.f32 %v1159, %v1278
      %s1344 = scalar_lea.vmem %s1, 8
      %v1345 = vld [vmem:[%s1344] sm:$0x1]
      %v1347 = vlaneseq
      %v1348 = vshrl.u32 %v1347, 7
      %v1349 = vsub.s32 0, %v1348
      %v1350 = vrot.slane %v1345, %v1349
      %v1352 = vmul.f32 %v175, %v1350
      %v1353 = vmul.f32 %v176, %v1350
      %v1354 = vmul.f32 %v177, %v1350
      %v1355 = vmul.f32 %v178, %v1350
      %v1356 = vmul.f32 %v179, %v1350
      %v1357 = vmul.f32 %v180, %v1350
      %v1358 = vmul.f32 %v181, %v1350
      %v1359 = vmul.f32 %v182, %v1350
      %v1360 = vmul.f32 %v183, %v1350
      %v1361 = vmul.f32 %v184, %v1350
      %v1362 = vmul.f32 %v185, %v1350
      %v1363 = vmul.f32 %v186, %v1350
      %v1364 = vmul.f32 %v187, %v1350
      %v1365 = vmul.f32 %v188, %v1350
      %v1366 = vmul.f32 %v189, %v1350
      %v1367 = vmul.f32 %v190, %v1350
      %v1368 = vmul.f32 %v191, %v1350
      %v1369 = vmul.f32 %v192, %v1350
      %v1370 = vmul.f32 %v193, %v1350
      %v1371 = vmul.f32 %v194, %v1350
      %v1372 = vmul.f32 %v195, %v1350
      %v1373 = vmul.f32 %v196, %v1350
      %v1374 = vmul.f32 %v197, %v1350
      %v1375 = vmul.f32 %v198, %v1350
      %v1376 = vmul.f32 %v199, %v1350
      %v1377 = vmul.f32 %v200, %v1350
      %v1378 = vmul.f32 %v201, %v1350
      %v1379 = vmul.f32 %v202, %v1350
      %v1380 = vmul.f32 %v203, %v1350
      %v1381 = vmul.f32 %v204, %v1350
      %v1382 = vmul.f32 %v205, %v1350
      %v1383 = vmul.f32 %v206, %v1350
      %v1416 = vrot.slane %v1352, 2
      %v1417 = vrot.slane %v1353, 2
      %v1418 = vsel %vm535, %v1416, %v1417
      %v1419 = vrot.slane %v1354, 2
      %v1420 = vrot.slane %v1355, 2
      %v1421 = vsel %vm535, %v1419, %v1420
      %v1422 = vrot.slane %v1356, 2
      %v1423 = vrot.slane %v1357, 2
      %v1424 = vsel %vm535, %v1422, %v1423
      %v1425 = vrot.slane %v1358, 2
      %v1426 = vrot.slane %v1359, 2
      %v1427 = vsel %vm535, %v1425, %v1426
      %v1428 = vrot.slane %v1360, 2
      %v1429 = vrot.slane %v1361, 2
      %v1430 = vsel %vm535, %v1428, %v1429
      %v1431 = vrot.slane %v1362, 2
      %v1432 = vrot.slane %v1363, 2
      %v1433 = vsel %vm535, %v1431, %v1432
      %v1434 = vrot.slane %v1364, 2
      %v1435 = vrot.slane %v1365, 2
      %v1436 = vsel %vm535, %v1434, %v1435
      %v1437 = vrot.slane %v1366, 2
      %v1438 = vrot.slane %v1367, 2
      %v1439 = vsel %vm535, %v1437, %v1438
      %v1440 = vrot.slane %v1368, 2
      %v1441 = vrot.slane %v1369, 2
      %v1442 = vsel %vm535, %v1440, %v1441
      %v1443 = vrot.slane %v1370, 2
      %v1444 = vrot.slane %v1371, 2
      %v1445 = vsel %vm535, %v1443, %v1444
      %v1446 = vrot.slane %v1372, 2
      %v1447 = vrot.slane %v1373, 2
      %v1448 = vsel %vm535, %v1446, %v1447
      %v1449 = vrot.slane %v1374, 2
      %v1450 = vrot.slane %v1375, 2
      %v1451 = vsel %vm535, %v1449, %v1450
      %v1452 = vrot.slane %v1376, 2
      %v1453 = vrot.slane %v1377, 2
      %v1454 = vsel %vm535, %v1452, %v1453
      %v1455 = vrot.slane %v1378, 2
      %v1456 = vrot.slane %v1379, 2
      %v1457 = vsel %vm535, %v1455, %v1456
      %v1458 = vrot.slane %v1380, 2
      %v1459 = vrot.slane %v1381, 2
      %v1460 = vsel %vm535, %v1458, %v1459
      %v1461 = vrot.slane %v1382, 2
      %v1462 = vrot.slane %v1383, 2
      %v1463 = vsel %vm535, %v1461, %v1462
      %v1496 = vadd.f32 %v1312, %v1418
      %v1497 = vadd.f32 %v1313, %v1417
      %v1498 = vadd.f32 %v1314, %v1421
      %v1499 = vadd.f32 %v1315, %v1420
      %v1500 = vadd.f32 %v1316, %v1424
      %v1501 = vadd.f32 %v1317, %v1423
      %v1502 = vadd.f32 %v1318, %v1427
      %v1503 = vadd.f32 %v1319, %v1426
      %v1504 = vadd.f32 %v1320, %v1430
      %v1505 = vadd.f32 %v1321, %v1429
      %v1506 = vadd.f32 %v1322, %v1433
      %v1507 = vadd.f32 %v1323, %v1432
      %v1508 = vadd.f32 %v1324, %v1436
      %v1509 = vadd.f32 %v1325, %v1435
      %v1510 = vadd.f32 %v1326, %v1439
      %v1511 = vadd.f32 %v1327, %v1438
      %v1512 = vadd.f32 %v1328, %v1442
      %v1513 = vadd.f32 %v1329, %v1441
      %v1514 = vadd.f32 %v1330, %v1445
      %v1515 = vadd.f32 %v1331, %v1444
      %v1516 = vadd.f32 %v1332, %v1448
      %v1517 = vadd.f32 %v1333, %v1447
      %v1518 = vadd.f32 %v1334, %v1451
      %v1519 = vadd.f32 %v1335, %v1450
      %v1520 = vadd.f32 %v1336, %v1454
      %v1521 = vadd.f32 %v1337, %v1453
      %v1522 = vadd.f32 %v1338, %v1457
      %v1523 = vadd.f32 %v1339, %v1456
      %v1524 = vadd.f32 %v1340, %v1460
      %v1525 = vadd.f32 %v1341, %v1459
      %v1526 = vadd.f32 %v1342, %v1463
      %v1527 = vadd.f32 %v1343, %v1462
      %v1528 = vld [vmem:[%s2] sm:$0x1]
      %v1530 = vlaneseq
      %v1531 = vshrl.u32 %v1530, 7
      %v1532 = vsub.s32 0, %v1531
      %v1533 = vrot.slane %v1528, %v1532
      %v1535 = vadd.f32 %v1496, %v1533
      %v1536 = vadd.f32 %v1497, %v1533
      %v1537 = vadd.f32 %v1498, %v1533
      %v1538 = vadd.f32 %v1499, %v1533
      %v1539 = vadd.f32 %v1500, %v1533
      %v1540 = vadd.f32 %v1501, %v1533
      %v1541 = vadd.f32 %v1502, %v1533
      %v1542 = vadd.f32 %v1503, %v1533
      %v1543 = vadd.f32 %v1504, %v1533
      %v1544 = vadd.f32 %v1505, %v1533
      %v1545 = vadd.f32 %v1506, %v1533
      %v1546 = vadd.f32 %v1507, %v1533
      %v1547 = vadd.f32 %v1508, %v1533
      %v1548 = vadd.f32 %v1509, %v1533
      %v1549 = vadd.f32 %v1510, %v1533
      %v1550 = vadd.f32 %v1511, %v1533
      %v1551 = vadd.f32 %v1512, %v1533
      %v1552 = vadd.f32 %v1513, %v1533
      %v1553 = vadd.f32 %v1514, %v1533
      %v1554 = vadd.f32 %v1515, %v1533
      %v1555 = vadd.f32 %v1516, %v1533
      %v1556 = vadd.f32 %v1517, %v1533
      %v1557 = vadd.f32 %v1518, %v1533
      %v1558 = vadd.f32 %v1519, %v1533
      %v1559 = vadd.f32 %v1520, %v1533
      %v1560 = vadd.f32 %v1521, %v1533
      %v1561 = vadd.f32 %v1522, %v1533
      %v1562 = vadd.f32 %v1523, %v1533
      %v1563 = vadd.f32 %v1524, %v1533
      %v1564 = vadd.f32 %v1525, %v1533
      %v1565 = vadd.f32 %v1526, %v1533
      %v1566 = vadd.f32 %v1527, %v1533
      %v1567 = vmax.f32 %v1535, 0.0
      %v1568 = vmax.f32 %v1536, 0.0
      %v1569 = vmax.f32 %v1537, 0.0
      %v1570 = vmax.f32 %v1538, 0.0
      %v1571 = vmax.f32 %v1539, 0.0
      %v1572 = vmax.f32 %v1540, 0.0
      %v1573 = vmax.f32 %v1541, 0.0
      %v1574 = vmax.f32 %v1542, 0.0
      %v1575 = vmax.f32 %v1543, 0.0
      %v1576 = vmax.f32 %v1544, 0.0
      %v1577 = vmax.f32 %v1545, 0.0
      %v1578 = vmax.f32 %v1546, 0.0
      %v1579 = vmax.f32 %v1547, 0.0
      %v1580 = vmax.f32 %v1548, 0.0
      %v1581 = vmax.f32 %v1549, 0.0
      %v1582 = vmax.f32 %v1550, 0.0
      %v1583 = vmax.f32 %v1551, 0.0
      %v1584 = vmax.f32 %v1552, 0.0
      %v1585 = vmax.f32 %v1553, 0.0
      %v1586 = vmax.f32 %v1554, 0.0
      %v1587 = vmax.f32 %v1555, 0.0
      %v1588 = vmax.f32 %v1556, 0.0
      %v1589 = vmax.f32 %v1557, 0.0
      %v1590 = vmax.f32 %v1558, 0.0
      %v1591 = vmax.f32 %v1559, 0.0
      %v1592 = vmax.f32 %v1560, 0.0
      %v1593 = vmax.f32 %v1561, 0.0
      %v1594 = vmax.f32 %v1562, 0.0
      %v1595 = vmax.f32 %v1563, 0.0
      %v1596 = vmax.f32 %v1564, 0.0
      %v1597 = vmax.f32 %v1565, 0.0
      %v1598 = vmax.f32 %v1566, 0.0
      %vm1599 = vcmask 64512
      %1600 = vst.msk [vmem:[%s170] sm:$0xff] %vm1599, %v1567
      %vm1601 = vcmask 57344
      %1602 = vst.msk [vmem:[%s170 + $0x8] sm:$0x1] %vm1601, %v1568
      %1603 = vst.msk [vmem:[%s170 + $0x10] sm:$0xff] %vm1599, %v1569
      %1604 = vst.msk [vmem:[%s170 + $0x18] sm:$0x1] %vm1601, %v1570
      %1605 = vst.msk [vmem:[%s170 + $0x20] sm:$0xff] %vm1599, %v1571
      %1606 = vst.msk [vmem:[%s170 + $0x28] sm:$0x1] %vm1601, %v1572
      %1607 = vst.msk [vmem:[%s170 + $0x30] sm:$0xff] %vm1599, %v1573
      %1608 = vst.msk [vmem:[%s170 + $0x38] sm:$0x1] %vm1601, %v1574
      %1609 = vst.msk [vmem:[%s170 + $0x40] sm:$0xff] %vm1599, %v1575
      %1610 = vst.msk [vmem:[%s170 + $0x48] sm:$0x1] %vm1601, %v1576
      %1611 = vst.msk [vmem:[%s170 + $0x50] sm:$0xff] %vm1599, %v1577
      %1612 = vst.msk [vmem:[%s170 + $0x58] sm:$0x1] %vm1601, %v1578
      %1613 = vst.msk [vmem:[%s170 + $0x60] sm:$0xff] %vm1599, %v1579
      %1614 = vst.msk [vmem:[%s170 + $0x68] sm:$0x1] %vm1601, %v1580
      %1615 = vst.msk [vmem:[%s170 + $0x70] sm:$0xff] %vm1599, %v1581
      %1616 = vst.msk [vmem:[%s170 + $0x78] sm:$0x1] %vm1601, %v1582
      %1617 = vst.msk [vmem:[%s170 + $0x80] sm:$0xff] %vm1599, %v1583
      %1618 = vst.msk [vmem:[%s170 + $0x88] sm:$0x1] %vm1601, %v1584
      %1619 = vst.msk [vmem:[%s170 + $0x90] sm:$0xff] %vm1599, %v1585
      %1620 = vst.msk [vmem:[%s170 + $0x98] sm:$0x1] %vm1601, %v1586
      %1621 = vst.msk [vmem:[%s170 + $0xa0] sm:$0xff] %vm1599, %v1587
      %1622 = vst.msk [vmem:[%s170 + $0xa8] sm:$0x1] %vm1601, %v1588
      %1623 = vst.msk [vmem:[%s170 + $0xb0] sm:$0xff] %vm1599, %v1589
      %1624 = vst.msk [vmem:[%s170 + $0xb8] sm:$0x1] %vm1601, %v1590
      %1625 = vst.msk [vmem:[%s170 + $0xc0] sm:$0xff] %vm1599, %v1591
      %1626 = vst.msk [vmem:[%s170 + $0xc8] sm:$0x1] %vm1601, %v1592
      %1627 = vst.msk [vmem:[%s170 + $0xd0] sm:$0xff] %vm1599, %v1593
      %1628 = vst.msk [vmem:[%s170 + $0xd8] sm:$0x1] %vm1601, %v1594
      %1629 = vst.msk [vmem:[%s170 + $0xe0] sm:$0xff] %vm1599, %v1595
      %1630 = vst.msk [vmem:[%s170 + $0xe8] sm:$0x1] %vm1601, %v1596
      %1631 = vst.msk [vmem:[%s170 + $0xf0] sm:$0xff] %vm1599, %v1597
      %1632 = vst.msk [vmem:[%s170 + $0xf8] sm:$0x1] %vm1601, %v1598
      %p1633 = scmp.lt.s32.totalorder %s14, 1
      %s1634 = scalar_select %p1633, %s14, 1
      %s1635 = smul.addr %s1634, 32
      %s1636 = smul.addr %s1635, 8
      %s1637 = scalar_lea.vmem %s3, %s1636
      // Predicated region
      $region33: #{fgmm_forward.12} parent=31 // pred_check
        %p1638 = pneg %p100
      $region34: #{fgmm_forward.12} parent=31 // pred_check_branch
        %1640 = sbr.rel (%p1638) target = $region36
      $region35: #{fgmm_forward.12} parent=31 // pred_region
        _
      $region36: #{fgmm_forward.12} parent=31 // pred_fallthru
        _
    $region32: #{fgmm_forward.12} parent=5 // pred_fallthru
      _
    %p1641 = scmp.le.s32.totalorder 2, %s9
    // Predicated region
    $region37: #{fgmm_forward.12} parent=5 // pred_check
      %p1642 = pneg %p1641
    $region38: #{fgmm_forward.12} parent=5 // pred_check_branch
      %1644 = sbr.rel (%p1642) target = $region40
    $region39: #{fgmm_forward.12} parent=5 // pred_region
      %s1645 = ssub.s32 %s9, 2
      // Predicated region
      $region41: #{fgmm_forward.12} parent=39 // pred_check
        %p1646 = pneg %p106
      $region42: #{fgmm_forward.12} parent=39 // pred_check_branch
        %1648 = sbr.rel (%p1646) target = $region44
      $region43: #{fgmm_forward.12} parent=39 // pred_region
        %p1649 = scmp.lt.s32.totalorder %s15, 1
        %s1650 = scalar_select %p1649, %s15, 1
        %s1651 = smul.addr %s1650, 32
        %s1652 = smul.addr %s1651, 8
        %s1653 = scalar_lea.vmem %s3, %s1652
      $region44: #{fgmm_forward.12} parent=39 // pred_fallthru
        _
    $region40: #{fgmm_forward.12} parent=5 // pred_fallthru
      _
  $region6: #{fgmm_forward.12} parent=0 // loop_footer
    %s13 = sadd.s32 1, %s9
  $region7: #{fgmm_forward.12} parent=0 // loop_footer_branch
    %8 = sbr.rel target = $region3
  $region8: #{fgmm_forward.12} parent=0 // loop_exit
    _

// kernel: fgmm_forward.14
$region0: #{fgmm_forward.14}
  #allocation0 [shape = 'u32[]', space=smem, size = 0x4, offset = 0x4, fixed_abs, tag = 'smem constant byte address 0x4 - core index']
  #allocation1 [shape = 'u32[144,128]{1,0:T(1,128)}', space=vmem, size = 0x12000, scoped, tag = 'internal scratch']
  #allocation2 [shape = 'f32[256,128]{1,0:T(8,128)}', space=vmem, size = 0x20000, scoped, tag = 'scratch operand']
  %s0 = inlined_call_operand.vmem [shape: bf16[512,72], index: 0, kind: input, shape index: {}]
  %s1 = inlined_call_operand.vmem [shape: bf16[72,128], index: 1, kind: input, shape index: {}]
  %s2 = inlined_call_operand.vmem [shape: f32[1,128], index: 2, kind: input, shape index: {}]
  %s3 = inlined_call_operand.vmem [shape: f32[512,128], index: 3, kind: output, shape index: {}]
  %s4 = sld [smem:[#allocation0]]
  $region53: #{fgmm_forward.14} parent=0
    _
  %s6 = ssub.s32 1, %s4
  %s7 = scalar_select 0, %s6, %s4
  loop: start=0, step=1, limit=4
  $region2: #{fgmm_forward.14} parent=0 // loop_pre_header
    _
  $region3: #{fgmm_forward.14} parent=0 // loop_header
    %s9 = sphi 0, %s13
    %p10 = scmp.ge.s32.totalorder %s9, 4
    %s16 = sphi 0, %s35
    %s17 = sphi 0, %s31
    %s18 = sphi 0, %s27
    %s19 = sphi 0, %s16
    %s20 = sphi 0, %s17
    %s21 = sphi 0, %s18
    %s22 = sphi 0, %s19
    %s23 = sphi 0, %s20
    %s24 = sphi 0, %s21
    %s40 = sphi 0, %s42
    %s43 = sphi 0, %s40
    %s44 = sphi 0, %s43
    %s60 = sphi 0, %s44
    %s68 = sphi 0, %s70
    %s71 = sphi 0, %s68
    %s72 = sphi 0, %s71
    %s88 = sphi 0, %s72
    %s94 = sphi 0, %s96
    %s97 = sphi 0, %s94
    %s98 = sphi 0, %s97
    %s114 = sphi 0, %s98
    %s122 = sphi 0, %s124
    %s125 = sphi 0, %s122
    %s126 = sphi 0, %s125
    %s142 = sphi 0, %s126
  $region4: #{fgmm_forward.14} parent=0 // loop_header_branch
    %12 = sbr.rel (%p10) target = $region8
  $region5: #{fgmm_forward.14} parent=0 // loop_body
    %s14 = ssub.s32 %s9, 1
    %s15 = ssub.s32 %s9, 2
    %s25 = sadd.s32 1, %s18
    %p26 = scmp.ge.s32.totalorder %s25, 1
    %s27 = scalar_select %p26, 0, %s25
    %s28 = sadd.s32 1, %s17
    %s29 = scalar_select %p26, %s28, %s17
    %p30 = scmp.ge.s32.totalorder %s29, 1
    %s31 = scalar_select %p30, 0, %s29
    %s32 = sadd.s32 1, %s16
    %s33 = scalar_select %p30, %s32, %s16
    %p34 = scmp.ge.s32.totalorder %s33, 2
    %s35 = scalar_select %p34, 0, %s33
    %s36 = ssub.s32 %s16, %s35
    %s37 = ssub.s32 %s18, %s27
    %s38 = sor.u32 %s36, %s37
    %p39 = scmp.eq.s32.totalorder %s38, 0
    %s41 = sadd.s32 %s40, 1
    %s42 = scalar_select %p39, %s40, %s41
    %p45 = pneg %p39
    %p46 = scmp.eq.s32.totalorder %s9, 1
    %p47 = por %p45, %p46
    %p48 = scmp.ne.s32.totalorder %s40, %s43
    %p49 = scmp.eq.s32.totalorder %s9, 0
    %p50 = por %p48, %p49
    %p51 = scmp.ne.s32.totalorder %s40, %s43
    %p52 = scmp.eq.s32.totalorder %s14, 1
    %p53 = por %p51, %p52
    %p54 = scmp.ne.s32.totalorder %s43, %s44
    %p55 = scmp.eq.s32.totalorder %s14, 0
    %p56 = por %p54, %p55
    %p57 = scmp.ne.s32.totalorder %s43, %s44
    %p58 = scmp.eq.s32.totalorder %s15, 1
    %p59 = por %p57, %p58
    %p61 = scmp.ne.s32.totalorder %s44, %s60
    %p62 = scmp.eq.s32.totalorder %s15, 0
    %p63 = por %p61, %p62
    %s64 = ssub.s32 %s18, %s27
    %s65 = ssub.s32 %s17, %s31
    %s66 = sor.u32 %s64, %s65
    %p67 = scmp.eq.s32.totalorder %s66, 0
    %s69 = sadd.s32 %s68, 1
    %s70 = scalar_select %p67, %s68, %s69
    %p73 = pneg %p67
    %p74 = scmp.eq.s32.totalorder %s9, 1
    %p75 = por %p73, %p74
    %p76 = scmp.ne.s32.totalorder %s68, %s71
    %p77 = scmp.eq.s32.totalorder %s9, 0
    %p78 = por %p76, %p77
    %p79 = scmp.ne.s32.totalorder %s68, %s71
    %p80 = scmp.eq.s32.totalorder %s14, 1
    %p81 = por %p79, %p80
    %p82 = scmp.ne.s32.totalorder %s71, %s72
    %p83 = scmp.eq.s32.totalorder %s14, 0
    %p84 = por %p82, %p83
    %p85 = scmp.ne.s32.totalorder %s71, %s72
    %p86 = scmp.eq.s32.totalorder %s15, 1
    %p87 = por %p85, %p86
    %p89 = scmp.ne.s32.totalorder %s72, %s88
    %p90 = scmp.eq.s32.totalorder %s15, 0
    %p91 = por %p89, %p90
    %s92 = ssub.s32 %s17, %s31
    %p93 = scmp.eq.s32.totalorder %s92, 0
    %s95 = sadd.s32 %s94, 1
    %s96 = scalar_select %p93, %s94, %s95
    %p99 = pneg %p93
    %p100 = scmp.eq.s32.totalorder %s9, 1
    %p101 = por %p99, %p100
    %p102 = scmp.ne.s32.totalorder %s94, %s97
    %p103 = scmp.eq.s32.totalorder %s9, 0
    %p104 = por %p102, %p103
    %p105 = scmp.ne.s32.totalorder %s94, %s97
    %p106 = scmp.eq.s32.totalorder %s14, 1
    %p107 = por %p105, %p106
    %p108 = scmp.ne.s32.totalorder %s97, %s98
    %p109 = scmp.eq.s32.totalorder %s14, 0
    %p110 = por %p108, %p109
    %p111 = scmp.ne.s32.totalorder %s97, %s98
    %p112 = scmp.eq.s32.totalorder %s15, 1
    %p113 = por %p111, %p112
    %p115 = scmp.ne.s32.totalorder %s98, %s114
    %p116 = scmp.eq.s32.totalorder %s15, 0
    %p117 = por %p115, %p116
    %s118 = ssub.s32 %s16, %s35
    %s119 = ssub.s32 %s17, %s31
    %s120 = sor.u32 %s118, %s119
    %p121 = scmp.eq.s32.totalorder %s120, 0
    %s123 = sadd.s32 %s122, 1
    %s124 = scalar_select %p121, %s122, %s123
    %p127 = pneg %p121
    %p128 = scmp.eq.s32.totalorder %s9, 1
    %p129 = por %p127, %p128
    %p130 = scmp.ne.s32.totalorder %s122, %s125
    %p131 = scmp.eq.s32.totalorder %s9, 0
    %p132 = por %p130, %p131
    %p133 = scmp.ne.s32.totalorder %s122, %s125
    %p134 = scmp.eq.s32.totalorder %s14, 1
    %p135 = por %p133, %p134
    %p136 = scmp.ne.s32.totalorder %s125, %s126
    %p137 = scmp.eq.s32.totalorder %s14, 0
    %p138 = por %p136, %p137
    %p139 = scmp.ne.s32.totalorder %s125, %s126
    %p140 = scmp.eq.s32.totalorder %s15, 1
    %p141 = por %p139, %p140
    %p143 = scmp.ne.s32.totalorder %s126, %s142
    %p144 = scmp.eq.s32.totalorder %s15, 0
    %p145 = por %p143, %p144
    %p146 = scmp.le.s32.totalorder 1, %s9
    %p147 = scmp.lt.s32.totalorder %s9, 3
    %p148 = pnand %p146, %p147
    %p149 = pneg %p148
    // Predicated region
    $region9: #{fgmm_forward.14} parent=5 // pred_check
      _
    $region10: #{fgmm_forward.14} parent=5 // pred_check_branch
      %151 = sbr.rel (%p148) target = $region12
    $region11: #{fgmm_forward.14} parent=5 // pred_region
      %s152 = ssub.s32 %s9, 1
      // Predicated region
      $region13: #{fgmm_forward.14} parent=11 // pred_check
        %p153 = pneg %p84
      $region14: #{fgmm_forward.14} parent=11 // pred_check_branch
        %155 = sbr.rel (%p153) target = $region16
      $region15: #{fgmm_forward.14} parent=11 // pred_region
        %s156 = smul.u32 9, %s21
        %p157 = scmp.lt.s32.totalorder %s156, 8
        %s158 = scalar_select %p157, %s156, 8
        %p159 = scmp.lt.s32.totalorder %s20, 0
        %s160 = scalar_select %p159, %s20, 0
        %s161 = sadd.s32 %s160, %s158
        %s162 = smul.addr %s161, 4
        %s163 = scalar_lea.vmem %s1, %s162
        %s164 = smul.u32 9, %s21
      $region16: #{fgmm_forward.14} parent=11 // pred_fallthru
        _
      // Predicated region
      $region17: #{fgmm_forward.14} parent=11 // pred_check
        %p165 = pneg %p110
      $region18: #{fgmm_forward.14} parent=11 // pred_check_branch
        %167 = sbr.rel (%p165) target = $region20
      $region19: #{fgmm_forward.14} parent=11 // pred_region
        %p168 = scmp.lt.s32.totalorder %s20, 0
        %s169 = scalar_select %p168, %s20, 0
        %s170 = scalar_lea.vmem %s2, %s169
      $region20: #{fgmm_forward.14} parent=11 // pred_fallthru
        _
    $region12: #{fgmm_forward.14} parent=5 // pred_fallthru
      _
    %p171 = scmp.lt.s32.totalorder %s9, 2
    // Predicated region
    $region21: #{fgmm_forward.14} parent=5 // pred_check
      %p172 = pneg %p171
    $region22: #{fgmm_forward.14} parent=5 // pred_check_branch
      %174 = sbr.rel (%p172) target = $region24
    $region23: #{fgmm_forward.14} parent=5 // pred_region
      // Predicated region
      $region25: #{fgmm_forward.14} parent=23 // pred_check
        %p175 = pneg %p50
      $region26: #{fgmm_forward.14} parent=23 // pred_check_branch
        %177 = sbr.rel (%p175) target = $region28
      $region27: #{fgmm_forward.14} parent=23 // pred_region
        %s178 = smul.u32 32, %s16
        %p179 = scmp.lt.s32.totalorder %s178, 63
        %s180 = scalar_select %p179, %s178, 63
        %p181 = scmp.lt.s32.totalorder %s18, 0
        %s182 = scalar_select %p181, %s18, 0
        %s183 = sadd.s32 %s182, %s180
        %s184 = smul.addr %s183, 4
        %s185 = scalar_lea.vmem %s0, %s184
        %s186 = smul.u32 32, %s16
      $region28: #{fgmm_forward.14} parent=23 // pred_fallthru
        _
    $region24: #{fgmm_forward.14} parent=5 // pred_fallthru
      _
    %p187 = scmp.le.s32.totalorder 1, %s9
    %p188 = scmp.lt.s32.totalorder %s9, 3
    %p189 = pnand %p187, %p188
    %p190 = pneg %p189
    // Predicated region
    $region29: #{fgmm_forward.14} parent=5 // pred_check
      _
    $region30: #{fgmm_forward.14} parent=5 // pred_check_branch
      %192 = sbr.rel (%p189) target = $region32
    $region31: #{fgmm_forward.14} parent=5 // pred_region
      %s193 = ssub.s32 %s9, 1
      %s194 = smul.u32 32, %s19
      %p195 = scmp.lt.s32.totalorder %s194, 63
      %s196 = scalar_select %p195, %s194, 63
      %p197 = scmp.lt.s32.totalorder %s21, 0
      %s198 = scalar_select %p197, %s21, 0
      %s199 = sadd.s32 %s198, %s196
      %s200 = smul.addr %s199, 4
      %s201 = scalar_lea.vmem %s0, %s200
      %p202 = pneg %p56
      %p203 = pneg %p53
      %s204 = smul.u32 9, %s21
      %p205 = scmp.lt.s32.totalorder %s204, 8
      %s206 = scalar_select %p205, %s204, 8
      %p207 = scmp.lt.s32.totalorder %s20, 0
      %s208 = scalar_select %p207, %s20, 0
      %s209 = sadd.s32 %s208, %s206
      %s210 = smul.addr %s209, 4
      %s211 = scalar_lea.vmem %s1, %s210
      %p212 = pneg %p84
      %p213 = pneg %p81
      %p214 = scmp.lt.s32.totalorder %s20, 0
      %s215 = scalar_select %p214, %s20, 0
      %s216 = scalar_lea.vmem %s2, %s215
      %p217 = pneg %p110
      %p218 = pneg %p107
      %p219 = pneg %p138
      %p220 = pneg %p135
      %s221 = smul.u32 32, %s19
      %p222 = scmp.lt.s32.totalorder %s221, 63
      %s223 = scalar_select %p222, %s221, 63
      %p224 = scmp.lt.s32.totalorder %s20, 0
      %s225 = scalar_select %p224, %s20, 0
      %s226 = sadd.s32 %s225, %s223
      %s227 = smul.addr %s226, 8
      %s228 = scalar_lea.vmem %s3, %s227
      %s229 = smul.u32 32, %s19
      %p230 = scmp.lt.s32.totalorder %s229, 63
      %s231 = scalar_select %p230, %s229, 63
      %p232 = scmp.lt.s32.totalorder %s21, 0
      %s233 = scalar_select %p232, %s21, 0
      %s234 = sadd.s32 %s233, %s231
      %s235 = smul.addr %s234, 4
      %s236 = scalar_lea.vmem %s0, %s235
      %s237 = smul.u32 32, %s19
      %s238 = smul.u32 9, %s21
      %p239 = scmp.lt.s32.totalorder %s238, 8
      %s240 = scalar_select %p239, %s238, 8
      %p241 = scmp.lt.s32.totalorder %s20, 0
      %s242 = scalar_select %p241, %s20, 0
      %s243 = sadd.s32 %s242, %s240
      %s244 = smul.addr %s243, 4
      %s245 = scalar_lea.vmem %s1, %s244
      %s246 = smul.u32 9, %s21
      %p247 = scmp.lt.s32.totalorder %s20, 0
      %s248 = scalar_select %p247, %s20, 0
      %s249 = scalar_lea.vmem %s2, %s248
      %s250 = smul.u32 32, %s19
      %p251 = scmp.lt.s32.totalorder %s250, 63
      %s252 = scalar_select %p251, %s250, 63
      %p253 = scmp.lt.s32.totalorder %s20, 0
      %s254 = scalar_select %p253, %s20, 0
      %s255 = sadd.s32 %s254, %s252
      %s256 = smul.addr %s255, 8
      %s257 = scalar_lea.vmem %s3, %s256
      %s258 = smul.u32 32, %s19
      %p260 = scmp.eq.s32.totalorder %s21, 0
      // Predicated region
      $region33: #{fgmm_forward.14} parent=31 // pred_check
        %p261 = pneg %p260
      $region34: #{fgmm_forward.14} parent=31 // pred_check_branch
        %263 = sbr.rel (%p261) target = $region36
      $region35: #{fgmm_forward.14} parent=31 // pred_region
        %264 = vst [vmem:[#allocation2] sm:$0xff] 0.0
        %265 = vst [vmem:[#allocation2 + $0x8] sm:$0xff] 0.0
        %266 = vst [vmem:[#allocation2 + $0x10] sm:$0xff] 0.0
        %267 = vst [vmem:[#allocation2 + $0x18] sm:$0xff] 0.0
        %268 = vst [vmem:[#allocation2 + $0x20] sm:$0xff] 0.0
        %269 = vst [vmem:[#allocation2 + $0x28] sm:$0xff] 0.0
        %270 = vst [vmem:[#allocation2 + $0x30] sm:$0xff] 0.0
        %271 = vst [vmem:[#allocation2 + $0x38] sm:$0xff] 0.0
        %272 = vst [vmem:[#allocation2 + $0x40] sm:$0xff] 0.0
        %273 = vst [vmem:[#allocation2 + $0x48] sm:$0xff] 0.0
        %274 = vst [vmem:[#allocation2 + $0x50] sm:$0xff] 0.0
        %275 = vst [vmem:[#allocation2 + $0x58] sm:$0xff] 0.0
        %276 = vst [vmem:[#allocation2 + $0x60] sm:$0xff] 0.0
        %277 = vst [vmem:[#allocation2 + $0x68] sm:$0xff] 0.0
        %278 = vst [vmem:[#allocation2 + $0x70] sm:$0xff] 0.0
        %279 = vst [vmem:[#allocation2 + $0x78] sm:$0xff] 0.0
        %280 = vst [vmem:[#allocation2 + $0x80] sm:$0xff] 0.0
        %281 = vst [vmem:[#allocation2 + $0x88] sm:$0xff] 0.0
        %282 = vst [vmem:[#allocation2 + $0x90] sm:$0xff] 0.0
        %283 = vst [vmem:[#allocation2 + $0x98] sm:$0xff] 0.0
        %284 = vst [vmem:[#allocation2 + $0xa0] sm:$0xff] 0.0
        %285 = vst [vmem:[#allocation2 + $0xa8] sm:$0xff] 0.0
        %286 = vst [vmem:[#allocation2 + $0xb0] sm:$0xff] 0.0
        %287 = vst [vmem:[#allocation2 + $0xb8] sm:$0xff] 0.0
        %288 = vst [vmem:[#allocation2 + $0xc0] sm:$0xff] 0.0
        %289 = vst [vmem:[#allocation2 + $0xc8] sm:$0xff] 0.0
        %290 = vst [vmem:[#allocation2 + $0xd0] sm:$0xff] 0.0
        %291 = vst [vmem:[#allocation2 + $0xd8] sm:$0xff] 0.0
        %292 = vst [vmem:[#allocation2 + $0xe0] sm:$0xff] 0.0
        %293 = vst [vmem:[#allocation2 + $0xe8] sm:$0xff] 0.0
        %294 = vst [vmem:[#allocation2 + $0xf0] sm:$0xff] 0.0
        %295 = vst [vmem:[#allocation2 + $0xf8] sm:$0xff] 0.0
      $region36: #{fgmm_forward.14} parent=31 // pred_fallthru
        _
      %v296 = vld [vmem:[#allocation2] sm:$0xff]
      %v297 = vld [vmem:[#allocation2 + $0x8] sm:$0xff]
      %v298 = vld [vmem:[#allocation2 + $0x10] sm:$0xff]
      %v299 = vld [vmem:[#allocation2 + $0x18] sm:$0xff]
      %v300 = vld [vmem:[#allocation2 + $0x20] sm:$0xff]
      %v301 = vld [vmem:[#allocation2 + $0x28] sm:$0xff]
      %v302 = vld [vmem:[#allocation2 + $0x30] sm:$0xff]
      %v303 = vld [vmem:[#allocation2 + $0x38] sm:$0xff]
      %v304 = vld [vmem:[#allocation2 + $0x40] sm:$0xff]
      %v305 = vld [vmem:[#allocation2 + $0x48] sm:$0xff]
      %v306 = vld [vmem:[#allocation2 + $0x50] sm:$0xff]
      %v307 = vld [vmem:[#allocation2 + $0x58] sm:$0xff]
      %v308 = vld [vmem:[#allocation2 + $0x60] sm:$0xff]
      %v309 = vld [vmem:[#allocation2 + $0x68] sm:$0xff]
      %v310 = vld [vmem:[#allocation2 + $0x70] sm:$0xff]
      %v311 = vld [vmem:[#allocation2 + $0x78] sm:$0xff]
      %v312 = vld [vmem:[#allocation2 + $0x80] sm:$0xff]
      %v313 = vld [vmem:[#allocation2 + $0x88] sm:$0xff]
      %v314 = vld [vmem:[#allocation2 + $0x90] sm:$0xff]
      %v315 = vld [vmem:[#allocation2 + $0x98] sm:$0xff]
      %v316 = vld [vmem:[#allocation2 + $0xa0] sm:$0xff]
      %v317 = vld [vmem:[#allocation2 + $0xa8] sm:$0xff]
      %v318 = vld [vmem:[#allocation2 + $0xb0] sm:$0xff]
      %v319 = vld [vmem:[#allocation2 + $0xb8] sm:$0xff]
      %v320 = vld [vmem:[#allocation2 + $0xc0] sm:$0xff]
      %v321 = vld [vmem:[#allocation2 + $0xc8] sm:$0xff]
      %v322 = vld [vmem:[#allocation2 + $0xd0] sm:$0xff]
      %v323 = vld [vmem:[#allocation2 + $0xd8] sm:$0xff]
      %v324 = vld [vmem:[#allocation2 + $0xe0] sm:$0xff]
      %v325 = vld [vmem:[#allocation2 + $0xe8] sm:$0xff]
      %v326 = vld [vmem:[#allocation2 + $0xf0] sm:$0xff]
      %v327 = vld [vmem:[#allocation2 + $0xf8] sm:$0xff]
      %v328 = vld [vmem:[%s236] sm:$0xf]
      %v329 = vld [vmem:[%s236 + $0x4] sm:$0xf]
      %v330 = vld [vmem:[%s236 + $0x8] sm:$0xf]
      %v331 = vld [vmem:[%s236 + $0xc] sm:$0xf]
      %v332 = vld [vmem:[%s236 + $0x10] sm:$0xf]
      %v333 = vld [vmem:[%s236 + $0x14] sm:$0xf]
      %v334 = vld [vmem:[%s236 + $0x18] sm:$0xf]
      %v335 = vld [vmem:[%s236 + $0x1c] sm:$0xf]
      %v336 = vld [vmem:[%s236 + $0x20] sm:$0xf]
      %v337 = vld [vmem:[%s236 + $0x24] sm:$0xf]
      %v338 = vld [vmem:[%s236 + $0x28] sm:$0xf]
      %v339 = vld [vmem:[%s236 + $0x2c] sm:$0xf]
      %v340 = vld [vmem:[%s236 + $0x30] sm:$0xf]
      %v341 = vld [vmem:[%s236 + $0x34] sm:$0xf]
      %v342 = vld [vmem:[%s236 + $0x38] sm:$0xf]
      %v343 = vld [vmem:[%s236 + $0x3c] sm:$0xf]
      %v344 = vld [vmem:[%s236 + $0x40] sm:$0xf]
      %v345 = vld [vmem:[%s236 + $0x44] sm:$0xf]
      %v346 = vld [vmem:[%s236 + $0x48] sm:$0xf]
      %v347 = vld [vmem:[%s236 + $0x4c] sm:$0xf]
      %v348 = vld [vmem:[%s236 + $0x50] sm:$0xf]
      %v349 = vld [vmem:[%s236 + $0x54] sm:$0xf]
      %v350 = vld [vmem:[%s236 + $0x58] sm:$0xf]
      %v351 = vld [vmem:[%s236 + $0x5c] sm:$0xf]
      %v352 = vld [vmem:[%s236 + $0x60] sm:$0xf]
      %v353 = vld [vmem:[%s236 + $0x64] sm:$0xf]
      %v354 = vld [vmem:[%s236 + $0x68] sm:$0xf]
      %v355 = vld [vmem:[%s236 + $0x6c] sm:$0xf]
      %v356 = vld [vmem:[%s236 + $0x70] sm:$0xf]
      %v357 = vld [vmem:[%s236 + $0x74] sm:$0xf]
      %v358 = vld [vmem:[%s236 + $0x78] sm:$0xf]
      %v359 = vld [vmem:[%s236 + $0x7c] sm:$0xf]
      %v360 = vld [vmem:[%s245] sm:$0xf]
      %v361 = vld [vmem:[%s245 + $0x4] sm:$0xf]
      %v362 = vld [vmem:[%s245 + $0x8] sm:$0xf]
      %v363 = vld [vmem:[%s245 + $0xc] sm:$0xf]
      %v364 = vld [vmem:[%s245 + $0x10] sm:$0xf]
      %v365 = vld [vmem:[%s245 + $0x14] sm:$0xf]
      %v366 = vld [vmem:[%s245 + $0x18] sm:$0xf]
      %v367 = vld [vmem:[%s245 + $0x1c] sm:$0xf]
      %v368 = vld [vmem:[%s245 + $0x20] sm:$0xf]
      %v401 = vunpack.c.l.b16 %v328
      %v402 = vunpack.c.l.b16 %v329
      %v403 = vunpack.c.l.b16 %v330
      %v404 = vunpack.c.l.b16 %v331
      %v405 = vunpack.c.l.b16 %v332
      %v406 = vunpack.c.l.b16 %v333
      %v407 = vunpack.c.l.b16 %v334
      %v408 = vunpack.c.l.b16 %v335
      %v409 = vunpack.c.l.b16 %v336
      %v410 = vunpack.c.l.b16 %v337
      %v411 = vunpack.c.l.b16 %v338
      %v412 = vunpack.c.l.b16 %v339
      %v413 = vunpack.c.l.b16 %v340
      %v414 = vunpack.c.l.b16 %v341
      %v415 = vunpack.c.l.b16 %v342
      %v416 = vunpack.c.l.b16 %v343
      %v417 = vunpack.c.l.b16 %v344
      %v418 = vunpack.c.l.b16 %v345
      %v419 = vunpack.c.l.b16 %v346
      %v420 = vunpack.c.l.b16 %v347
      %v421 = vunpack.c.l.b16 %v348
      %v422 = vunpack.c.l.b16 %v349
      %v423 = vunpack.c.l.b16 %v350
      %v424 = vunpack.c.l.b16 %v351
      %v425 = vunpack.c.l.b16 %v352
      %v426 = vunpack.c.l.b16 %v353
      %v427 = vunpack.c.l.b16 %v354
      %v428 = vunpack.c.l.b16 %v355
      %v429 = vunpack.c.l.b16 %v356
      %v430 = vunpack.c.l.b16 %v357
      %v431 = vunpack.c.l.b16 %v358
      %v432 = vunpack.c.l.b16 %v359
      %v433 = vpack.c.b16 %v402, %v401
      %v434 = vpack.c.b16 %v404, %v403
      %v435 = vpack.c.b16 %v406, %v405
      %v436 = vpack.c.b16 %v408, %v407
      %v437 = vpack.c.b16 %v410, %v409
      %v438 = vpack.c.b16 %v412, %v411
      %v439 = vpack.c.b16 %v414, %v413
      %v440 = vpack.c.b16 %v416, %v415
      %v441 = vpack.c.b16 %v418, %v417
      %v442 = vpack.c.b16 %v420, %v419
      %v443 = vpack.c.b16 %v422, %v421
      %v444 = vpack.c.b16 %v424, %v423
      %v445 = vpack.c.b16 %v426, %v425
      %v446 = vpack.c.b16 %v428, %v427
      %v447 = vpack.c.b16 %v430, %v429
      %v448 = vpack.c.b16 %v432, %v431
      %v458 = vunpack.c.l.b16 %v360
      %v459 = vunpack.c.l.b16 %v361
      %v460 = vunpack.c.l.b16 %v362
      %v461 = vunpack.c.l.b16 %v363
      %v462 = vunpack.c.l.b16 %v364
      %v463 = vunpack.c.l.b16 %v365
      %v464 = vunpack.c.l.b16 %v366
      %v465 = vunpack.c.l.b16 %v367
      %v466 = vunpack.c.l.b16 %v368
      %v467 = vpack.c.b16 %v459, %v458
      %v468 = vpack.c.b16 %v461, %v460
      %v469 = vpack.c.b16 %v463, %v462
      %v470 = vpack.c.b16 %v465, %v464
      %v471 = vpack.c.b16 %v466, %v466
      %vm476 = vcmask 588800
      %v478 = vsel %vm476, %v433, 0
      %v481 = vsel %vm476, %v434, 0
      %v484 = vsel %vm476, %v435, 0
      %v487 = vsel %vm476, %v436, 0
      %v490 = vsel %vm476, %v437, 0
      %v493 = vsel %vm476, %v438, 0
      %v496 = vsel %vm476, %v439, 0
      %v499 = vsel %vm476, %v440, 0
      %v502 = vsel %vm476, %v441, 0
      %v505 = vsel %vm476, %v442, 0
      %v508 = vsel %vm476, %v443, 0
      %v511 = vsel %vm476, %v444, 0
      %v514 = vsel %vm476, %v445, 0
      %v517 = vsel %vm476, %v446, 0
      %v520 = vsel %vm476, %v447, 0
      %v523 = vsel %vm476, %v448, 0
      %vm525 = vcmask 1043456
      %v527 = vsel %vm525, %v471, 0
      %529 = vmatprep.subr.bf16.mxu0 0
      %530 = vmatpush1.bf16.msra.mxu0 %v467
      %531 = vmatprep.subr.bf16.mxu0 0
      %532 = vmatpush1.bf16.msra.mxu0 %v468
      %533 = vmatprep.subr.bf16.mxu0 0
      %534 = vmatpush1.bf16.msra.mxu0 %v469
      %535 = vmatprep.subr.bf16.mxu0 0
      %536 = vmatpush1.bf16.msra.mxu0 %v470
      %537 = vmatprep.subr.bf16.mxu0 0
      %538 = vmatpush1.bf16.msra.mxu0 %v527
      %539 = vmatprep.subr.bf16.mxu0 0
      %540 = vmatpush1.bf16.msra.mxu0 0
      %541 = vmatprep.subr.bf16.mxu0 0
      %542 = vmatpush1.bf16.msra.mxu0 0
      %543 = vmatprep.subr.bf16.mxu0 0
      %544 = vmatpush1.bf16.msra.mxu0 0
      %545 = vmatprep.subr.bf16.mxu0 0
      %546 = vmatpush1.bf16.msra.mxu0 0
      %547 = vmatprep.subr.bf16.mxu0 0
      %548 = vmatpush1.bf16.msra.mxu0 0
      %549 = vmatprep.subr.bf16.mxu0 0
      %550 = vmatpush1.bf16.msra.mxu0 0
      %551 = vmatprep.subr.bf16.mxu0 0
      %552 = vmatpush1.bf16.msra.mxu0 0
      %553 = vmatprep.subr.bf16.mxu0 0
      %554 = vmatpush1.bf16.msra.mxu0 0
      %555 = vmatprep.subr.bf16.mxu0 0
      %556 = vmatpush1.bf16.msra.mxu0 0
      %557 = vmatprep.subr.bf16.mxu0 0
      %558 = vmatpush1.bf16.msra.mxu0 0
      %559 = vmatprep.subr.bf16.mxu0 0
      %560 = vmatpush1.bf16.msra.mxu0 0
      %561 = vmatprep.mubr.bf16.mxu0 0
      %562 = vmatmul.mubr.bf16.gmra.mrb[0].mxu0 %v478
      %v563 = vpop.f32.mrb[0].mxu0
      %v564 = vadd.f32 0.0, %v563
      %v565 = vpop.f32.mrb[0].mxu0
      %v566 = vpop.f32.mrb[0].mxu0
      %v567 = vadd.f32 0.0, %v566
      %v568 = vpop.f32.mrb[0].mxu0
      %569 = vmatprep.mubr.bf16.mxu0 0
      %570 = vmatmul.mubr.bf16.gmra.mrb[0].mxu0 %v481
      %v571 = vpop.f32.mrb[0].mxu0
      %v572 = vadd.f32 0.0, %v571
      %v573 = vpop.f32.mrb[0].mxu0
      %v574 = vpop.f32.mrb[0].mxu0
      %v575 = vadd.f32 0.0, %v574
      %v576 = vpop.f32.mrb[0].mxu0
      %577 = vmatprep.mubr.bf16.mxu0 0
      %578 = vmatmul.mubr.bf16.gmra.mrb[0].mxu0 %v484
      %v579 = vpop.f32.mrb[0].mxu0
      %v580 = vadd.f32 0.0, %v579
      %v581 = vpop.f32.mrb[0].mxu0
      %v582 = vpop.f32.mrb[0].mxu0
      %v583 = vadd.f32 0.0, %v582
      %v584 = vpop.f32.mrb[0].mxu0
      %585 = vmatprep.mubr.bf16.mxu0 0
      %586 = vmatmul.mubr.bf16.gmra.mrb[0].mxu0 %v487
      %v587 = vpop.f32.mrb[0].mxu0
      %v588 = vadd.f32 0.0, %v587
      %v589 = vpop.f32.mrb[0].mxu0
      %v590 = vpop.f32.mrb[0].mxu0
      %v591 = vadd.f32 0.0, %v590
      %v592 = vpop.f32.mrb[0].mxu0
      %593 = vmatprep.mubr.bf16.mxu0 0
      %594 = vmatmul.mubr.bf16.gmra.mrb[0].mxu0 %v490
      %v595 = vpop.f32.mrb[0].mxu0
      %v596 = vadd.f32 0.0, %v595
      %v597 = vpop.f32.mrb[0].mxu0
      %v598 = vpop.f32.mrb[0].mxu0
      %v599 = vadd.f32 0.0, %v598
      %v600 = vpop.f32.mrb[0].mxu0
      %601 = vmatprep.mubr.bf16.mxu0 0
      %602 = vmatmul.mubr.bf16.gmra.mrb[0].mxu0 %v493
      %v603 = vpop.f32.mrb[0].mxu0
      %v604 = vadd.f32 0.0, %v603
      %v605 = vpop.f32.mrb[0].mxu0
      %v606 = vpop.f32.mrb[0].mxu0
      %v607 = vadd.f32 0.0, %v606
      %v608 = vpop.f32.mrb[0].mxu0
      %609 = vmatprep.mubr.bf16.mxu0 0
      %610 = vmatmul.mubr.bf16.gmra.mrb[0].mxu0 %v496
      %v611 = vpop.f32.mrb[0].mxu0
      %v612 = vadd.f32 0.0, %v611
      %v613 = vpop.f32.mrb[0].mxu0
      %v614 = vpop.f32.mrb[0].mxu0
      %v615 = vadd.f32 0.0, %v614
      %v616 = vpop.f32.mrb[0].mxu0
      %617 = vmatprep.mubr.bf16.mxu0 0
      %618 = vmatmul.mubr.bf16.gmra.mrb[0].mxu0 %v499
      %v619 = vpop.f32.mrb[0].mxu0
      %v620 = vadd.f32 0.0, %v619
      %v621 = vpop.f32.mrb[0].mxu0
      %v622 = vpop.f32.mrb[0].mxu0
      %v623 = vadd.f32 0.0, %v622
      %v624 = vpop.f32.mrb[0].mxu0
      %625 = vmatprep.mubr.bf16.mxu0 0
      %626 = vmatmul.mubr.bf16.gmra.mrb[0].mxu0 %v502
      %v627 = vpop.f32.mrb[0].mxu0
      %v628 = vadd.f32 0.0, %v627
      %v629 = vpop.f32.mrb[0].mxu0
      %v630 = vpop.f32.mrb[0].mxu0
      %v631 = vadd.f32 0.0, %v630
      %v632 = vpop.f32.mrb[0].mxu0
      %633 = vmatprep.mubr.bf16.mxu0 0
      %634 = vmatmul.mubr.bf16.gmra.mrb[0].mxu0 %v505
      %v635 = vpop.f32.mrb[0].mxu0
      %v636 = vadd.f32 0.0, %v635
      %v637 = vpop.f32.mrb[0].mxu0
      %v638 = vpop.f32.mrb[0].mxu0
      %v639 = vadd.f32 0.0, %v638
      %v640 = vpop.f32.mrb[0].mxu0
      %641 = vmatprep.mubr.bf16.mxu0 0
      %642 = vmatmul.mubr.bf16.gmra.mrb[0].mxu0 %v508
      %v643 = vpop.f32.mrb[0].mxu0
      %v644 = vadd.f32 0.0, %v643
      %v645 = vpop.f32.mrb[0].mxu0
      %v646 = vpop.f32.mrb[0].mxu0
      %v647 = vadd.f32 0.0, %v646
      %v648 = vpop.f32.mrb[0].mxu0
      %649 = vmatprep.mubr.bf16.mxu0 0
      %650 = vmatmul.mubr.bf16.gmra.mrb[0].mxu0 %v511
      %v651 = vpop.f32.mrb[0].mxu0
      %v652 = vadd.f32 0.0, %v651
      %v653 = vpop.f32.mrb[0].mxu0
      %v654 = vpop.f32.mrb[0].mxu0
      %v655 = vadd.f32 0.0, %v654
      %v656 = vpop.f32.mrb[0].mxu0
      %657 = vmatprep.mubr.bf16.mxu0 0
      %658 = vmatmul.mubr.bf16.gmra.mrb[0].mxu0 %v514
      %v659 = vpop.f32.mrb[0].mxu0
      %v660 = vadd.f32 0.0, %v659
      %v661 = vpop.f32.mrb[0].mxu0
      %v662 = vpop.f32.mrb[0].mxu0
      %v663 = vadd.f32 0.0, %v662
      %v664 = vpop.f32.mrb[0].mxu0
      %665 = vmatprep.mubr.bf16.mxu0 0
      %666 = vmatmul.mubr.bf16.gmra.mrb[0].mxu0 %v517
      %v667 = vpop.f32.mrb[0].mxu0
      %v668 = vadd.f32 0.0, %v667
      %v669 = vpop.f32.mrb[0].mxu0
      %v670 = vpop.f32.mrb[0].mxu0
      %v671 = vadd.f32 0.0, %v670
      %v672 = vpop.f32.mrb[0].mxu0
      %673 = vmatprep.mubr.bf16.mxu0 0
      %674 = vmatmul.mubr.bf16.gmra.mrb[0].mxu0 %v520
      %v675 = vpop.f32.mrb[0].mxu0
      %v676 = vadd.f32 0.0, %v675
      %v677 = vpop.f32.mrb[0].mxu0
      %v678 = vpop.f32.mrb[0].mxu0
      %v679 = vadd.f32 0.0, %v678
      %v680 = vpop.f32.mrb[0].mxu0
      %681 = vmatprep.mubr.bf16.mxu0 0
      %682 = vmatmul.mubr.bf16.gmra.mrb[0].mxu0 %v523
      %v683 = vpop.f32.mrb[0].mxu0
      %v684 = vadd.f32 0.0, %v683
      %v685 = vpop.f32.mrb[0].mxu0
      %v686 = vpop.f32.mrb[0].mxu0
      %v687 = vadd.f32 0.0, %v686
      %v688 = vpop.f32.mrb[0].mxu0
      %689 = vdwg.mxu0
      %v690 = vadd.f32 %v296, %v564
      %v691 = vadd.f32 %v297, %v567
      %v692 = vadd.f32 %v298, %v572
      %v693 = vadd.f32 %v299, %v575
      %v694 = vadd.f32 %v300, %v580
      %v695 = vadd.f32 %v301, %v583
      %v696 = vadd.f32 %v302, %v588
      %v697 = vadd.f32 %v303, %v591
      %v698 = vadd.f32 %v304, %v596
      %v699 = vadd.f32 %v305, %v599
      %v700 = vadd.f32 %v306, %v604
      %v701 = vadd.f32 %v307, %v607
      %v702 = vadd.f32 %v308, %v612
      %v703 = vadd.f32 %v309, %v615
      %v704 = vadd.f32 %v310, %v620
      %v705 = vadd.f32 %v311, %v623
      %v706 = vadd.f32 %v312, %v628
      %v707 = vadd.f32 %v313, %v631
      %v708 = vadd.f32 %v314, %v636
      %v709 = vadd.f32 %v315, %v639
      %v710 = vadd.f32 %v316, %v644
      %v711 = vadd.f32 %v317, %v647
      %v712 = vadd.f32 %v318, %v652
      %v713 = vadd.f32 %v319, %v655
      %v714 = vadd.f32 %v320, %v660
      %v715 = vadd.f32 %v321, %v663
      %v716 = vadd.f32 %v322, %v668
      %v717 = vadd.f32 %v323, %v671
      %v718 = vadd.f32 %v324, %v676
      %v719 = vadd.f32 %v325, %v679
      %v720 = vadd.f32 %v326, %v684
      %v721 = vadd.f32 %v327, %v687
      %722 = vst [vmem:[#allocation2] sm:$0xff] %v690
      %723 = vst [vmem:[#allocation2 + $0x8] sm:$0xff] %v691
      %724 = vst [vmem:[#allocation2 + $0x10] sm:$0xff] %v692
      %725 = vst [vmem:[#allocation2 + $0x18] sm:$0xff] %v693
      %726 = vst [vmem:[#allocation2 + $0x20] sm:$0xff] %v694
      %727 = vst [vmem:[#allocation2 + $0x28] sm:$0xff] %v695
      %728 = vst [vmem:[#allocation2 + $0x30] sm:$0xff] %v696
      %729 = vst [vmem:[#allocation2 + $0x38] sm:$0xff] %v697
      %730 = vst [vmem:[#allocation2 + $0x40] sm:$0xff] %v698
      %731 = vst [vmem:[#allocation2 + $0x48] sm:$0xff] %v699
      %732 = vst [vmem:[#allocation2 + $0x50] sm:$0xff] %v700
      %733 = vst [vmem:[#allocation2 + $0x58] sm:$0xff] %v701
      %734 = vst [vmem:[#allocation2 + $0x60] sm:$0xff] %v702
      %735 = vst [vmem:[#allocation2 + $0x68] sm:$0xff] %v703
      %736 = vst [vmem:[#allocation2 + $0x70] sm:$0xff] %v704
      %737 = vst [vmem:[#allocation2 + $0x78] sm:$0xff] %v705
      %738 = vst [vmem:[#allocation2 + $0x80] sm:$0xff] %v706
      %739 = vst [vmem:[#allocation2 + $0x88] sm:$0xff] %v707
      %740 = vst [vmem:[#allocation2 + $0x90] sm:$0xff] %v708
      %741 = vst [vmem:[#allocation2 + $0x98] sm:$0xff] %v709
      %742 = vst [vmem:[#allocation2 + $0xa0] sm:$0xff] %v710
      %743 = vst [vmem:[#allocation2 + $0xa8] sm:$0xff] %v711
      %744 = vst [vmem:[#allocation2 + $0xb0] sm:$0xff] %v712
      %745 = vst [vmem:[#allocation2 + $0xb8] sm:$0xff] %v713
      %746 = vst [vmem:[#allocation2 + $0xc0] sm:$0xff] %v714
      %747 = vst [vmem:[#allocation2 + $0xc8] sm:$0xff] %v715
      %748 = vst [vmem:[#allocation2 + $0xd0] sm:$0xff] %v716
      %749 = vst [vmem:[#allocation2 + $0xd8] sm:$0xff] %v717
      %750 = vst [vmem:[#allocation2 + $0xe0] sm:$0xff] %v718
      %751 = vst [vmem:[#allocation2 + $0xe8] sm:$0xff] %v719
      %752 = vst [vmem:[#allocation2 + $0xf0] sm:$0xff] %v720
      %753 = vst [vmem:[#allocation2 + $0xf8] sm:$0xff] %v721
      // Predicated region
      $region37: #{fgmm_forward.14} parent=31 // pred_check
        %p754 = pneg %p260
      $region38: #{fgmm_forward.14} parent=31 // pred_check_branch
        %756 = sbr.rel (%p754) target = $region40
      $region39: #{fgmm_forward.14} parent=31 // pred_region
        %v757 = vld [vmem:[#allocation2] sm:$0xff]
        %v758 = vld [vmem:[#allocation2 + $0x8] sm:$0xff]
        %v759 = vld [vmem:[#allocation2 + $0x10] sm:$0xff]
        %v760 = vld [vmem:[#allocation2 + $0x18] sm:$0xff]
        %v761 = vld [vmem:[#allocation2 + $0x20] sm:$0xff]
        %v762 = vld [vmem:[#allocation2 + $0x28] sm:$0xff]
        %v763 = vld [vmem:[#allocation2 + $0x30] sm:$0xff]
        %v764 = vld [vmem:[#allocation2 + $0x38] sm:$0xff]
        %v765 = vld [vmem:[#allocation2 + $0x40] sm:$0xff]
        %v766 = vld [vmem:[#allocation2 + $0x48] sm:$0xff]
        %v767 = vld [vmem:[#allocation2 + $0x50] sm:$0xff]
        %v768 = vld [vmem:[#allocation2 + $0x58] sm:$0xff]
        %v769 = vld [vmem:[#allocation2 + $0x60] sm:$0xff]
        %v770 = vld [vmem:[#allocation2 + $0x68] sm:$0xff]
        %v771 = vld [vmem:[#allocation2 + $0x70] sm:$0xff]
        %v772 = vld [vmem:[#allocation2 + $0x78] sm:$0xff]
        %v773 = vld [vmem:[#allocation2 + $0x80] sm:$0xff]
        %v774 = vld [vmem:[#allocation2 + $0x88] sm:$0xff]
        %v775 = vld [vmem:[#allocation2 + $0x90] sm:$0xff]
        %v776 = vld [vmem:[#allocation2 + $0x98] sm:$0xff]
        %v777 = vld [vmem:[#allocation2 + $0xa0] sm:$0xff]
        %v778 = vld [vmem:[#allocation2 + $0xa8] sm:$0xff]
        %v779 = vld [vmem:[#allocation2 + $0xb0] sm:$0xff]
        %v780 = vld [vmem:[#allocation2 + $0xb8] sm:$0xff]
        %v781 = vld [vmem:[#allocation2 + $0xc0] sm:$0xff]
        %v782 = vld [vmem:[#allocation2 + $0xc8] sm:$0xff]
        %v783 = vld [vmem:[#allocation2 + $0xd0] sm:$0xff]
        %v784 = vld [vmem:[#allocation2 + $0xd8] sm:$0xff]
        %v785 = vld [vmem:[#allocation2 + $0xe0] sm:$0xff]
        %v786 = vld [vmem:[#allocation2 + $0xe8] sm:$0xff]
        %v787 = vld [vmem:[#allocation2 + $0xf0] sm:$0xff]
        %v788 = vld [vmem:[#allocation2 + $0xf8] sm:$0xff]
        %v789 = vld [vmem:[%s249] sm:$0x1]
        %v791 = vlaneseq
        %v792 = vshrl.u32 %v791, 7
        %v793 = vsub.s32 0, %v792
        %v794 = vrot.slane %v789, %v793
        %v796 = vadd.f32 %v757, %v794
        %v797 = vadd.f32 %v758, %v794
        %v798 = vadd.f32 %v759, %v794
        %v799 = vadd.f32 %v760, %v794
        %v800 = vadd.f32 %v761, %v794
        %v801 = vadd.f32 %v762, %v794
        %v802 = vadd.f32 %v763, %v794
        %v803 = vadd.f32 %v764, %v794
        %v804 = vadd.f32 %v765, %v794
        %v805 = vadd.f32 %v766, %v794
        %v806 = vadd.f32 %v767, %v794
        %v807 = vadd.f32 %v768, %v794
        %v808 = vadd.f32 %v769, %v794
        %v809 = vadd.f32 %v770, %v794
        %v810 = vadd.f32 %v771, %v794
        %v811 = vadd.f32 %v772, %v794
        %v812 = vadd.f32 %v773, %v794
        %v813 = vadd.f32 %v774, %v794
        %v814 = vadd.f32 %v775, %v794
        %v815 = vadd.f32 %v776, %v794
        %v816 = vadd.f32 %v777, %v794
        %v817 = vadd.f32 %v778, %v794
        %v818 = vadd.f32 %v779, %v794
        %v819 = vadd.f32 %v780, %v794
        %v820 = vadd.f32 %v781, %v794
        %v821 = vadd.f32 %v782, %v794
        %v822 = vadd.f32 %v783, %v794
        %v823 = vadd.f32 %v784, %v794
        %v824 = vadd.f32 %v785, %v794
        %v825 = vadd.f32 %v786, %v794
        %v826 = vadd.f32 %v787, %v794
        %v827 = vadd.f32 %v788, %v794
        %828 = vst [vmem:[%s257] sm:$0xff] %v796
        %829 = vst [vmem:[%s257 + $0x8] sm:$0xff] %v797
        %830 = vst [vmem:[%s257 + $0x10] sm:$0xff] %v798
        %831 = vst [vmem:[%s257 + $0x18] sm:$0xff] %v799
        %832 = vst [vmem:[%s257 + $0x20] sm:$0xff] %v800
        %833 = vst [vmem:[%s257 + $0x28] sm:$0xff] %v801
        %834 = vst [vmem:[%s257 + $0x30] sm:$0xff] %v802
        %835 = vst [vmem:[%s257 + $0x38] sm:$0xff] %v803
        %836 = vst [vmem:[%s257 + $0x40] sm:$0xff] %v804
        %837 = vst [vmem:[%s257 + $0x48] sm:$0xff] %v805
        %838 = vst [vmem:[%s257 + $0x50] sm:$0xff] %v806
        %839 = vst [vmem:[%s257 + $0x58] sm:$0xff] %v807
        %840 = vst [vmem:[%s257 + $0x60] sm:$0xff] %v808
        %841 = vst [vmem:[%s257 + $0x68] sm:$0xff] %v809
        %842 = vst [vmem:[%s257 + $0x70] sm:$0xff] %v810
        %843 = vst [vmem:[%s257 + $0x78] sm:$0xff] %v811
        %844 = vst [vmem:[%s257 + $0x80] sm:$0xff] %v812
        %845 = vst [vmem:[%s257 + $0x88] sm:$0xff] %v813
        %846 = vst [vmem:[%s257 + $0x90] sm:$0xff] %v814
        %847 = vst [vmem:[%s257 + $0x98] sm:$0xff] %v815
        %848 = vst [vmem:[%s257 + $0xa0] sm:$0xff] %v816
        %849 = vst [vmem:[%s257 + $0xa8] sm:$0xff] %v817
        %850 = vst [vmem:[%s257 + $0xb0] sm:$0xff] %v818
        %851 = vst [vmem:[%s257 + $0xb8] sm:$0xff] %v819
        %852 = vst [vmem:[%s257 + $0xc0] sm:$0xff] %v820
        %853 = vst [vmem:[%s257 + $0xc8] sm:$0xff] %v821
        %854 = vst [vmem:[%s257 + $0xd0] sm:$0xff] %v822
        %855 = vst [vmem:[%s257 + $0xd8] sm:$0xff] %v823
        %856 = vst [vmem:[%s257 + $0xe0] sm:$0xff] %v824
        %857 = vst [vmem:[%s257 + $0xe8] sm:$0xff] %v825
        %858 = vst [vmem:[%s257 + $0xf0] sm:$0xff] %v826
        %859 = vst [vmem:[%s257 + $0xf8] sm:$0xff] %v827
      $region40: #{fgmm_forward.14} parent=31 // pred_fallthru
        _
      %s860 = smul.u32 32, %s19
      %p861 = scmp.lt.s32.totalorder %s860, 63
      %s862 = scalar_select %p861, %s860, 63
      %p863 = scmp.lt.s32.totalorder %s20, 0
      %s864 = scalar_select %p863, %s20, 0
      %s865 = sadd.s32 %s864, %s862
      %s866 = smul.addr %s865, 8
      %s867 = scalar_lea.vmem %s3, %s866
      // Predicated region
      $region41: #{fgmm_forward.14} parent=31 // pred_check
        %p868 = pneg %p135
      $region42: #{fgmm_forward.14} parent=31 // pred_check_branch
        %870 = sbr.rel (%p868) target = $region44
      $region43: #{fgmm_forward.14} parent=31 // pred_region
        %s871 = smul.u32 32, %s19
      $region44: #{fgmm_forward.14} parent=31 // pred_fallthru
        _
    $region32: #{fgmm_forward.14} parent=5 // pred_fallthru
      _
    %p872 = scmp.le.s32.totalorder 2, %s9
    // Predicated region
    $region45: #{fgmm_forward.14} parent=5 // pred_check
      %p873 = pneg %p872
    $region46: #{fgmm_forward.14} parent=5 // pred_check_branch
      %875 = sbr.rel (%p873) target = $region48
    $region47: #{fgmm_forward.14} parent=5 // pred_region
      %s876 = ssub.s32 %s9, 2
      // Predicated region
      $region49: #{fgmm_forward.14} parent=47 // pred_check
        %p877 = pneg %p141
      $region50: #{fgmm_forward.14} parent=47 // pred_check_branch
        %879 = sbr.rel (%p877) target = $region52
      $region51: #{fgmm_forward.14} parent=47 // pred_region
        %s880 = smul.u32 32, %s22
        %p881 = scmp.lt.s32.totalorder %s880, 63
        %s882 = scalar_select %p881, %s880, 63
        %p883 = scmp.lt.s32.totalorder %s23, 0
        %s884 = scalar_select %p883, %s23, 0
        %s885 = sadd.s32 %s884, %s882
        %s886 = smul.addr %s885, 8
        %s887 = scalar_lea.vmem %s3, %s886
      $region52: #{fgmm_forward.14} parent=47 // pred_fallthru
        _
    $region48: #{fgmm_forward.14} parent=5 // pred_fallthru
      _
  $region6: #{fgmm_forward.14} parent=0 // loop_footer
    %s13 = sadd.s32 1, %s9
  $region7: #{fgmm_forward.14} parent=0 // loop_footer_branch
    %8 = sbr.rel target = $region3
  $region8: #{fgmm_forward.14} parent=0 // loop_exit
    _

// kernel: fgmm_forward.15
$region0: #{fgmm_forward.15}
  #allocation0 [shape = 'u32[]', space=smem, size = 0x4, offset = 0x4, fixed_abs, tag = 'smem constant byte address 0x4 - core index']
  #allocation1 [shape = 'u32[144,128]{1,0:T(1,128)}', space=vmem, size = 0x12000, scoped, tag = 'internal scratch']
  %s0 = inlined_call_operand.vmem [shape: f32[2,256,4], index: 0, kind: input, shape index: {}]
  %s1 = inlined_call_operand.vmem [shape: f32[1,2], index: 1, kind: input, shape index: {}]
  %s2 = inlined_call_operand.vmem [shape: f32[1,2], index: 2, kind: input, shape index: {}]
  %s3 = inlined_call_operand.vmem [shape: f32[2,256,4], index: 3, kind: output, shape index: {}]
  %s4 = sld [smem:[#allocation0]]
  $region45: #{fgmm_forward.15} parent=0
    _
  %s6 = ssub.s32 1, %s4
  %s7 = scalar_select 0, %s6, %s4
  loop: start=0, step=1, limit=4
  $region2: #{fgmm_forward.15} parent=0 // loop_pre_header
    _
  $region3: #{fgmm_forward.15} parent=0 // loop_header
    %s9 = sphi 0, %s13
    %p10 = scmp.ge.s32.totalorder %s9, 4
    %s19 = sphi 0, %s21
    %s22 = sphi 0, %s19
    %s23 = sphi 0, %s22
    %s39 = sphi 0, %s23
    %s43 = sphi 0, %s43
    %s45 = sphi 0, %s43
    %s46 = sphi 0, %s45
    %s60 = sphi 0, %s46
    %s64 = sphi 0, %s64
    %s66 = sphi 0, %s64
    %s67 = sphi 0, %s66
    %s81 = sphi 0, %s67
    %s87 = sphi 0, %s89
    %s90 = sphi 0, %s87
    %s91 = sphi 0, %s90
    %s107 = sphi 0, %s91
  $region4: #{fgmm_forward.15} parent=0 // loop_header_branch
    %12 = sbr.rel (%p10) target = $region8
  $region5: #{fgmm_forward.15} parent=0 // loop_body
    %s14 = ssub.s32 %s9, 1
    %s15 = ssub.s32 %s9, 2
    %s16 = sadd.s32 %s9, 1
    %s17 = ssub.s32 %s9, %s16
    %p18 = scmp.eq.s32.totalorder %s17, 0
    %s20 = sadd.s32 %s19, 1
    %s21 = scalar_select %p18, %s19, %s20
    %p24 = pneg %p18
    %p25 = scmp.eq.s32.totalorder %s9, 1
    %p26 = por %p24, %p25
    %p27 = scmp.ne.s32.totalorder %s19, %s22
    %p28 = scmp.eq.s32.totalorder %s9, 0
    %p29 = por %p27, %p28
    %p30 = scmp.ne.s32.totalorder %s19, %s22
    %p31 = scmp.eq.s32.totalorder %s14, 1
    %p32 = por %p30, %p31
    %p33 = scmp.ne.s32.totalorder %s22, %s23
    %p34 = scmp.eq.s32.totalorder %s14, 0
    %p35 = por %p33, %p34
    %p36 = scmp.ne.s32.totalorder %s22, %s23
    %p37 = scmp.eq.s32.totalorder %s15, 1
    %p38 = por %p36, %p37
    %p40 = scmp.ne.s32.totalorder %s23, %s39
    %p41 = scmp.eq.s32.totalorder %s15, 0
    %p42 = por %p40, %p41
    %s44 = sadd.s32 %s43, 1
    %p47 = scmp.eq.s32.totalorder %s9, 1
    %p48 = scmp.ne.s32.totalorder %s43, %s45
    %p49 = scmp.eq.s32.totalorder %s9, 0
    %p50 = por %p48, %p49
    %p51 = scmp.ne.s32.totalorder %s43, %s45
    %p52 = scmp.eq.s32.totalorder %s14, 1
    %p53 = por %p51, %p52
    %p54 = scmp.ne.s32.totalorder %s45, %s46
    %p55 = scmp.eq.s32.totalorder %s14, 0
    %p56 = por %p54, %p55
    %p57 = scmp.ne.s32.totalorder %s45, %s46
    %p58 = scmp.eq.s32.totalorder %s15, 1
    %p59 = por %p57, %p58
    %p61 = scmp.ne.s32.totalorder %s46, %s60
    %p62 = scmp.eq.s32.totalorder %s15, 0
    %p63 = por %p61, %p62
    %s65 = sadd.s32 %s64, 1
    %p68 = scmp.eq.s32.totalorder %s9, 1
    %p69 = scmp.ne.s32.totalorder %s64, %s66
    %p70 = scmp.eq.s32.totalorder %s9, 0
    %p71 = por %p69, %p70
    %p72 = scmp.ne.s32.totalorder %s64, %s66
    %p73 = scmp.eq.s32.totalorder %s14, 1
    %p74 = por %p72, %p73
    %p75 = scmp.ne.s32.totalorder %s66, %s67
    %p76 = scmp.eq.s32.totalorder %s14, 0
    %p77 = por %p75, %p76
    %p78 = scmp.ne.s32.totalorder %s66, %s67
    %p79 = scmp.eq.s32.totalorder %s15, 1
    %p80 = por %p78, %p79
    %p82 = scmp.ne.s32.totalorder %s67, %s81
    %p83 = scmp.eq.s32.totalorder %s15, 0
    %p84 = por %p82, %p83
    %s85 = ssub.s32 %s9, %s16
    %p86 = scmp.eq.s32.totalorder %s85, 0
    %s88 = sadd.s32 %s87, 1
    %s89 = scalar_select %p86, %s87, %s88
    %p92 = pneg %p86
    %p93 = scmp.eq.s32.totalorder %s9, 1
    %p94 = por %p92, %p93
    %p95 = scmp.ne.s32.totalorder %s87, %s90
    %p96 = scmp.eq.s32.totalorder %s9, 0
    %p97 = por %p95, %p96
    %p98 = scmp.ne.s32.totalorder %s87, %s90
    %p99 = scmp.eq.s32.totalorder %s14, 1
    %p100 = por %p98, %p99
    %p101 = scmp.ne.s32.totalorder %s90, %s91
    %p102 = scmp.eq.s32.totalorder %s14, 0
    %p103 = por %p101, %p102
    %p104 = scmp.ne.s32.totalorder %s90, %s91
    %p105 = scmp.eq.s32.totalorder %s15, 1
    %p106 = por %p104, %p105
    %p108 = scmp.ne.s32.totalorder %s91, %s107
    %p109 = scmp.eq.s32.totalorder %s15, 0
    %p110 = por %p108, %p109
    %p111 = scmp.le.s32.totalorder 1, %s9
    %p112 = scmp.lt.s32.totalorder %s9, 3
    %p113 = pnand %p111, %p112
    %p114 = pneg %p113
    // Predicated region
    $region9: #{fgmm_forward.15} parent=5 // pred_check
      _
    $region10: #{fgmm_forward.15} parent=5 // pred_check_branch
      %116 = sbr.rel (%p113) target = $region12
    $region11: #{fgmm_forward.15} parent=5 // pred_region
      %s117 = ssub.s32 %s9, 1
      // Predicated region
      $region13: #{fgmm_forward.15} parent=11 // pred_check
        %p118 = pneg %p56
      $region14: #{fgmm_forward.15} parent=11 // pred_check_branch
        %120 = sbr.rel (%p118) target = $region16
      $region15: #{fgmm_forward.15} parent=11 // pred_region
        _
      $region16: #{fgmm_forward.15} parent=11 // pred_fallthru
        _
      // Predicated region
      $region17: #{fgmm_forward.15} parent=11 // pred_check
        %p121 = pneg %p77
      $region18: #{fgmm_forward.15} parent=11 // pred_check_branch
        %123 = sbr.rel (%p121) target = $region20
      $region19: #{fgmm_forward.15} parent=11 // pred_region
        _
      $region20: #{fgmm_forward.15} parent=11 // pred_fallthru
        _
    $region12: #{fgmm_forward.15} parent=5 // pred_fallthru
      _
    %p124 = scmp.lt.s32.totalorder %s9, 2
    // Predicated region
    $region21: #{fgmm_forward.15} parent=5 // pred_check
      %p125 = pneg %p124
    $region22: #{fgmm_forward.15} parent=5 // pred_check_branch
      %127 = sbr.rel (%p125) target = $region24
    $region23: #{fgmm_forward.15} parent=5 // pred_region
      // Predicated region
      $region25: #{fgmm_forward.15} parent=23 // pred_check
        %p128 = pneg %p29
      $region26: #{fgmm_forward.15} parent=23 // pred_check_branch
        %130 = sbr.rel (%p128) target = $region28
      $region27: #{fgmm_forward.15} parent=23 // pred_region
        %p131 = scmp.lt.s32.totalorder %s9, 1
        %s132 = scalar_select %p131, %s9, 1
        %s133 = smul.addr %s132, 32
        %s134 = smul.addr %s133, 8
        %s135 = scalar_lea.vmem %s0, %s134
      $region28: #{fgmm_forward.15} parent=23 // pred_fallthru
        _
    $region24: #{fgmm_forward.15} parent=5 // pred_fallthru
      _
    %p136 = scmp.le.s32.totalorder 1, %s9
    %p137 = scmp.lt.s32.totalorder %s9, 3
    %p138 = pnand %p136, %p137
    %p139 = pneg %p138
    // Predicated region
    $region29: #{fgmm_forward.15} parent=5 // pred_check
      _
    $region30: #{fgmm_forward.15} parent=5 // pred_check_branch
      %141 = sbr.rel (%p138) target = $region32
    $region31: #{fgmm_forward.15} parent=5 // pred_region
      %s142 = ssub.s32 %s9, 1
      %p143 = scmp.lt.s32.totalorder %s14, 1
      %s144 = scalar_select %p143, %s14, 1
      %s145 = smul.addr %s144, 32
      %s146 = smul.addr %s145, 8
      %s147 = scalar_lea.vmem %s0, %s146
      %p148 = pneg %p35
      %p149 = pneg %p32
      %p150 = pneg %p56
      %p151 = pneg %p53
      %p152 = pneg %p77
      %p153 = pneg %p74
      %p154 = pneg %p103
      %p155 = pneg %p100
      %p156 = scmp.lt.s32.totalorder %s14, 1
      %s157 = scalar_select %p156, %s14, 1
      %s158 = smul.addr %s157, 32
      %s159 = smul.addr %s158, 8
      %s160 = scalar_lea.vmem %s3, %s159
      %p161 = scmp.lt.s32.totalorder %s14, 1
      %s162 = scalar_select %p161, %s14, 1
      %s163 = smul.addr %s162, 32
      %s164 = smul.addr %s163, 8
      %s165 = scalar_lea.vmem %s0, %s164
      %p166 = scmp.lt.s32.totalorder %s14, 1
      %s167 = scalar_select %p166, %s14, 1
      %s168 = smul.addr %s167, 32
      %s169 = smul.addr %s168, 8
      %s170 = scalar_lea.vmem %s3, %s169
      %v171 = vld [vmem:[%s165] sm:$0xff]
      %v172 = vld [vmem:[%s165 + $0x8] sm:$0xff]
      %v173 = vld [vmem:[%s165 + $0x10] sm:$0xff]
      %v174 = vld [vmem:[%s165 + $0x18] sm:$0xff]
      %v175 = vld [vmem:[%s165 + $0x20] sm:$0xff]
      %v176 = vld [vmem:[%s165 + $0x28] sm:$0xff]
      %v177 = vld [vmem:[%s165 + $0x30] sm:$0xff]
      %v178 = vld [vmem:[%s165 + $0x38] sm:$0xff]
      %v179 = vld [vmem:[%s165 + $0x40] sm:$0xff]
      %v180 = vld [vmem:[%s165 + $0x48] sm:$0xff]
      %v181 = vld [vmem:[%s165 + $0x50] sm:$0xff]
      %v182 = vld [vmem:[%s165 + $0x58] sm:$0xff]
      %v183 = vld [vmem:[%s165 + $0x60] sm:$0xff]
      %v184 = vld [vmem:[%s165 + $0x68] sm:$0xff]
      %v185 = vld [vmem:[%s165 + $0x70] sm:$0xff]
      %v186 = vld [vmem:[%s165 + $0x78] sm:$0xff]
      %v187 = vld [vmem:[%s165 + $0x80] sm:$0xff]
      %v188 = vld [vmem:[%s165 + $0x88] sm:$0xff]
      %v189 = vld [vmem:[%s165 + $0x90] sm:$0xff]
      %v190 = vld [vmem:[%s165 + $0x98] sm:$0xff]
      %v191 = vld [vmem:[%s165 + $0xa0] sm:$0xff]
      %v192 = vld [vmem:[%s165 + $0xa8] sm:$0xff]
      %v193 = vld [vmem:[%s165 + $0xb0] sm:$0xff]
      %v194 = vld [vmem:[%s165 + $0xb8] sm:$0xff]
      %v195 = vld [vmem:[%s165 + $0xc0] sm:$0xff]
      %v196 = vld [vmem:[%s165 + $0xc8] sm:$0xff]
      %v197 = vld [vmem:[%s165 + $0xd0] sm:$0xff]
      %v198 = vld [vmem:[%s165 + $0xd8] sm:$0xff]
      %v199 = vld [vmem:[%s165 + $0xe0] sm:$0xff]
      %v200 = vld [vmem:[%s165 + $0xe8] sm:$0xff]
      %v201 = vld [vmem:[%s165 + $0xf0] sm:$0xff]
      %v202 = vld [vmem:[%s165 + $0xf8] sm:$0xff]
      %vm203 = vcmask 15360
      %v204 = vsel %vm203, %v171, 0.0
      %v205 = vsel %vm203, %v172, 0.0
      %v206 = vadd.f32 %v204, %v205
      %v207 = vsel %vm203, %v173, 0.0
      %v208 = vadd.f32 %v206, %v207
      %v209 = vsel %vm203, %v174, 0.0
      %v210 = vadd.f32 %v208, %v209
      %v211 = vsel %vm203, %v175, 0.0
      %v212 = vadd.f32 %v210, %v211
      %v213 = vsel %vm203, %v176, 0.0
      %v214 = vadd.f32 %v212, %v213
      %v215 = vsel %vm203, %v177, 0.0
      %v216 = vadd.f32 %v214, %v215
      %v217 = vsel %vm203, %v178, 0.0
      %v218 = vadd.f32 %v216, %v217
      %v219 = vsel %vm203, %v179, 0.0
      %v220 = vadd.f32 %v218, %v219
      %v221 = vsel %vm203, %v180, 0.0
      %v222 = vadd.f32 %v220, %v221
      %v223 = vsel %vm203, %v181, 0.0
      %v224 = vadd.f32 %v222, %v223
      %v225 = vsel %vm203, %v182, 0.0
      %v226 = vadd.f32 %v224, %v225
      %v227 = vsel %vm203, %v183, 0.0
      %v228 = vadd.f32 %v226, %v227
      %v229 = vsel %vm203, %v184, 0.0
      %v230 = vadd.f32 %v228, %v229
      %v231 = vsel %vm203, %v185, 0.0
      %v232 = vadd.f32 %v230, %v231
      %v233 = vsel %vm203, %v186, 0.0
      %v234 = vadd.f32 %v232, %v233
      %v235 = vsel %vm203, %v187, 0.0
      %v236 = vadd.f32 %v234, %v235
      %v237 = vsel %vm203, %v188, 0.0
      %v238 = vadd.f32 %v236, %v237
      %v239 = vsel %vm203, %v189, 0.0
      %v240 = vadd.f32 %v238, %v239
      %v241 = vsel %vm203, %v190, 0.0
      %v242 = vadd.f32 %v240, %v241
      %v243 = vsel %vm203, %v191, 0.0
      %v244 = vadd.f32 %v242, %v243
      %v245 = vsel %vm203, %v192, 0.0
      %v246 = vadd.f32 %v244, %v245
      %v247 = vsel %vm203, %v193, 0.0
      %v248 = vadd.f32 %v246, %v247
      %v249 = vsel %vm203, %v194, 0.0
      %v250 = vadd.f32 %v248, %v249
      %v251 = vsel %vm203, %v195, 0.0
      %v252 = vadd.f32 %v250, %v251
      %v253 = vsel %vm203, %v196, 0.0
      %v254 = vadd.f32 %v252, %v253
      %v255 = vsel %vm203, %v197, 0.0
      %v256 = vadd.f32 %v254, %v255
      %v257 = vsel %vm203, %v198, 0.0
      %v258 = vadd.f32 %v256, %v257
      %v259 = vsel %vm203, %v199, 0.0
      %v260 = vadd.f32 %v258, %v259
      %v261 = vsel %vm203, %v200, 0.0
      %v262 = vadd.f32 %v260, %v261
      %v263 = vsel %vm203, %v201, 0.0
      %v264 = vadd.f32 %v262, %v263
      %v265 = vsel %vm203, %v202, 0.0
      %v266 = vadd.f32 %v264, %v265
      %v267 = vrot.slane %v266, 4
      %v268 = vadd.f32 %v266, %v267
      %v269 = vrot.slane %v268, 2
      %v270 = vadd.f32 %v268, %v269
      %v271 = vrot.slane %v270, 1
      %v272 = vadd.f32 %v270, %v271
      %v273 = vrcp.pop 256.0
      %v274 = vmul.f32 %v272, %v273
      %v275 = vsub.f32 %v171, %v274
      %v276 = vsub.f32 %v172, %v274
      %v277 = vsub.f32 %v173, %v274
      %v278 = vsub.f32 %v174, %v274
      %v279 = vsub.f32 %v175, %v274
      %v280 = vsub.f32 %v176, %v274
      %v281 = vsub.f32 %v177, %v274
      %v282 = vsub.f32 %v178, %v274
      %v283 = vsub.f32 %v179, %v274
      %v284 = vsub.f32 %v180, %v274
      %v285 = vsub.f32 %v181, %v274
      %v286 = vsub.f32 %v182, %v274
      %v287 = vsub.f32 %v183, %v274
      %v288 = vsub.f32 %v184, %v274
      %v289 = vsub.f32 %v185, %v274
      %v290 = vsub.f32 %v186, %v274
      %v291 = vsub.f32 %v187, %v274
      %v292 = vsub.f32 %v188, %v274
      %v293 = vsub.f32 %v189, %v274
      %v294 = vsub.f32 %v190, %v274
      %v295 = vsub.f32 %v191, %v274
      %v296 = vsub.f32 %v192, %v274
      %v297 = vsub.f32 %v193, %v274
      %v298 = vsub.f32 %v194, %v274
      %v299 = vsub.f32 %v195, %v274
      %v300 = vsub.f32 %v196, %v274
      %v301 = vsub.f32 %v197, %v274
      %v302 = vsub.f32 %v198, %v274
      %v303 = vsub.f32 %v199, %v274
      %v304 = vsub.f32 %v200, %v274
      %v305 = vsub.f32 %v201, %v274
      %v306 = vsub.f32 %v202, %v274
      %v307 = vmul.f32 %v275, %v275
      %v308 = vmul.f32 %v276, %v276
      %v309 = vmul.f32 %v277, %v277
      %v310 = vmul.f32 %v278, %v278
      %v311 = vmul.f32 %v279, %v279
      %v312 = vmul.f32 %v280, %v280
      %v313 = vmul.f32 %v281, %v281
      %v314 = vmul.f32 %v282, %v282
      %v315 = vmul.f32 %v283, %v283
      %v316 = vmul.f32 %v284, %v284
      %v317 = vmul.f32 %v285, %v285
      %v318 = vmul.f32 %v286, %v286
      %v319 = vmul.f32 %v287, %v287
      %v320 = vmul.f32 %v288, %v288
      %v321 = vmul.f32 %v289, %v289
      %v322 = vmul.f32 %v290, %v290
      %v323 = vmul.f32 %v291, %v291
      %v324 = vmul.f32 %v292, %v292
      %v325 = vmul.f32 %v293, %v293
      %v326 = vmul.f32 %v294, %v294
      %v327 = vmul.f32 %v295, %v295
      %v328 = vmul.f32 %v296, %v296
      %v329 = vmul.f32 %v297, %v297
      %v330 = vmul.f32 %v298, %v298
      %v331 = vmul.f32 %v299, %v299
      %v332 = vmul.f32 %v300, %v300
      %v333 = vmul.f32 %v301, %v301
      %v334 = vmul.f32 %v302, %v302
      %v335 = vmul.f32 %v303, %v303
      %v336 = vmul.f32 %v304, %v304
      %v337 = vmul.f32 %v305, %v305
      %v338 = vmul.f32 %v306, %v306
      %v339 = vsel %vm203, %v307, 0.0
      %v340 = vsel %vm203, %v308, 0.0
      %v341 = vadd.f32 %v339, %v340
      %v342 = vsel %vm203, %v309, 0.0
      %v343 = vadd.f32 %v341, %v342
      %v344 = vsel %vm203, %v310, 0.0
      %v345 = vadd.f32 %v343, %v344
      %v346 = vsel %vm203, %v311, 0.0
      %v347 = vadd.f32 %v345, %v346
      %v348 = vsel %vm203, %v312, 0.0
      %v349 = vadd.f32 %v347, %v348
      %v350 = vsel %vm203, %v313, 0.0
      %v351 = vadd.f32 %v349, %v350
      %v352 = vsel %vm203, %v314, 0.0
      %v353 = vadd.f32 %v351, %v352
      %v354 = vsel %vm203, %v315, 0.0
      %v355 = vadd.f32 %v353, %v354
      %v356 = vsel %vm203, %v316, 0.0
      %v357 = vadd.f32 %v355, %v356
      %v358 = vsel %vm203, %v317, 0.0
      %v359 = vadd.f32 %v357, %v358
      %v360 = vsel %vm203, %v318, 0.0
      %v361 = vadd.f32 %v359, %v360
      %v362 = vsel %vm203, %v319, 0.0
      %v363 = vadd.f32 %v361, %v362
      %v364 = vsel %vm203, %v320, 0.0
      %v365 = vadd.f32 %v363, %v364
      %v366 = vsel %vm203, %v321, 0.0
      %v367 = vadd.f32 %v365, %v366
      %v368 = vsel %vm203, %v322, 0.0
      %v369 = vadd.f32 %v367, %v368
      %v370 = vsel %vm203, %v323, 0.0
      %v371 = vadd.f32 %v369, %v370
      %v372 = vsel %vm203, %v324, 0.0
      %v373 = vadd.f32 %v371, %v372
      %v374 = vsel %vm203, %v325, 0.0
      %v375 = vadd.f32 %v373, %v374
      %v376 = vsel %vm203, %v326, 0.0
      %v377 = vadd.f32 %v375, %v376
      %v378 = vsel %vm203, %v327, 0.0
      %v379 = vadd.f32 %v377, %v378
      %v380 = vsel %vm203, %v328, 0.0
      %v381 = vadd.f32 %v379, %v380
      %v382 = vsel %vm203, %v329, 0.0
      %v383 = vadd.f32 %v381, %v382
      %v384 = vsel %vm203, %v330, 0.0
      %v385 = vadd.f32 %v383, %v384
      %v386 = vsel %vm203, %v331, 0.0
      %v387 = vadd.f32 %v385, %v386
      %v388 = vsel %vm203, %v332, 0.0
      %v389 = vadd.f32 %v387, %v388
      %v390 = vsel %vm203, %v333, 0.0
      %v391 = vadd.f32 %v389, %v390
      %v392 = vsel %vm203, %v334, 0.0
      %v393 = vadd.f32 %v391, %v392
      %v394 = vsel %vm203, %v335, 0.0
      %v395 = vadd.f32 %v393, %v394
      %v396 = vsel %vm203, %v336, 0.0
      %v397 = vadd.f32 %v395, %v396
      %v398 = vsel %vm203, %v337, 0.0
      %v399 = vadd.f32 %v397, %v398
      %v400 = vsel %vm203, %v338, 0.0
      %v401 = vadd.f32 %v399, %v400
      %v402 = vrot.slane %v401, 4
      %v403 = vadd.f32 %v401, %v402
      %v404 = vrot.slane %v403, 2
      %v405 = vadd.f32 %v403, %v404
      %v406 = vrot.slane %v405, 1
      %v407 = vadd.f32 %v405, %v406
      %v408 = vmul.f32 %v407, %v273
      %v409 = vadd.f32 %v408, 1e-05
      %v410 = vrsqrt.pop %v409
      %v411 = vmul.f32 %v275, %v410
      %v412 = vmul.f32 %v276, %v410
      %v413 = vmul.f32 %v277, %v410
      %v414 = vmul.f32 %v278, %v410
      %v415 = vmul.f32 %v279, %v410
      %v416 = vmul.f32 %v280, %v410
      %v417 = vmul.f32 %v281, %v410
      %v418 = vmul.f32 %v282, %v410
      %v419 = vmul.f32 %v283, %v410
      %v420 = vmul.f32 %v284, %v410
      %v421 = vmul.f32 %v285, %v410
      %v422 = vmul.f32 %v286, %v410
      %v423 = vmul.f32 %v287, %v410
      %v424 = vmul.f32 %v288, %v410
      %v425 = vmul.f32 %v289, %v410
      %v426 = vmul.f32 %v290, %v410
      %v427 = vmul.f32 %v291, %v410
      %v428 = vmul.f32 %v292, %v410
      %v429 = vmul.f32 %v293, %v410
      %v430 = vmul.f32 %v294, %v410
      %v431 = vmul.f32 %v295, %v410
      %v432 = vmul.f32 %v296, %v410
      %v433 = vmul.f32 %v297, %v410
      %v434 = vmul.f32 %v298, %v410
      %v435 = vmul.f32 %v299, %v410
      %v436 = vmul.f32 %v300, %v410
      %v437 = vmul.f32 %v301, %v410
      %v438 = vmul.f32 %v302, %v410
      %v439 = vmul.f32 %v303, %v410
      %v440 = vmul.f32 %v304, %v410
      %v441 = vmul.f32 %v305, %v410
      %v442 = vmul.f32 %v306, %v410
      %v443 = vld [vmem:[%s1] sm:$0x1]
      %v445 = vlaneseq
      %v446 = vshrl.u32 %v445, 7
      %v447 = vsub.s32 0, %v446
      %v448 = vrot.slane %v443, %v447
      %v450 = vmul.f32 %v411, %v448
      %v451 = vmul.f32 %v412, %v448
      %v452 = vmul.f32 %v413, %v448
      %v453 = vmul.f32 %v414, %v448
      %v454 = vmul.f32 %v415, %v448
      %v455 = vmul.f32 %v416, %v448
      %v456 = vmul.f32 %v417, %v448
      %v457 = vmul.f32 %v418, %v448
      %v458 = vmul.f32 %v419, %v448
      %v459 = vmul.f32 %v420, %v448
      %v460 = vmul.f32 %v421, %v448
      %v461 = vmul.f32 %v422, %v448
      %v462 = vmul.f32 %v423, %v448
      %v463 = vmul.f32 %v424, %v448
      %v464 = vmul.f32 %v425, %v448
      %v465 = vmul.f32 %v426, %v448
      %v466 = vmul.f32 %v427, %v448
      %v467 = vmul.f32 %v428, %v448
      %v468 = vmul.f32 %v429, %v448
      %v469 = vmul.f32 %v430, %v448
      %v470 = vmul.f32 %v431, %v448
      %v471 = vmul.f32 %v432, %v448
      %v472 = vmul.f32 %v433, %v448
      %v473 = vmul.f32 %v434, %v448
      %v474 = vmul.f32 %v435, %v448
      %v475 = vmul.f32 %v436, %v448
      %v476 = vmul.f32 %v437, %v448
      %v477 = vmul.f32 %v438, %v448
      %v478 = vmul.f32 %v439, %v448
      %v479 = vmul.f32 %v440, %v448
      %v480 = vmul.f32 %v441, %v448
      %v481 = vmul.f32 %v442, %v448
      %v482 = vld [vmem:[%s2] sm:$0x1]
      %v484 = vlaneseq
      %v485 = vshrl.u32 %v484, 7
      %v486 = vsub.s32 0, %v485
      %v487 = vrot.slane %v482, %v486
      %v489 = vadd.f32 %v450, %v487
      %v490 = vadd.f32 %v451, %v487
      %v491 = vadd.f32 %v452, %v487
      %v492 = vadd.f32 %v453, %v487
      %v493 = vadd.f32 %v454, %v487
      %v494 = vadd.f32 %v455, %v487
      %v495 = vadd.f32 %v456, %v487
      %v496 = vadd.f32 %v457, %v487
      %v497 = vadd.f32 %v458, %v487
      %v498 = vadd.f32 %v459, %v487
      %v499 = vadd.f32 %v460, %v487
      %v500 = vadd.f32 %v461, %v487
      %v501 = vadd.f32 %v462, %v487
      %v502 = vadd.f32 %v463, %v487
      %v503 = vadd.f32 %v464, %v487
      %v504 = vadd.f32 %v465, %v487
      %v505 = vadd.f32 %v466, %v487
      %v506 = vadd.f32 %v467, %v487
      %v507 = vadd.f32 %v468, %v487
      %v508 = vadd.f32 %v469, %v487
      %v509 = vadd.f32 %v470, %v487
      %v510 = vadd.f32 %v471, %v487
      %v511 = vadd.f32 %v472, %v487
      %v512 = vadd.f32 %v473, %v487
      %v513 = vadd.f32 %v474, %v487
      %v514 = vadd.f32 %v475, %v487
      %v515 = vadd.f32 %v476, %v487
      %v516 = vadd.f32 %v477, %v487
      %v517 = vadd.f32 %v478, %v487
      %v518 = vadd.f32 %v479, %v487
      %v519 = vadd.f32 %v480, %v487
      %v520 = vadd.f32 %v481, %v487
      %vm521 = vcmp.ge.f32.partialorder %v489, 0.0
      %vm522 = vcmp.ge.f32.partialorder %v490, 0.0
      %vm523 = vcmp.ge.f32.partialorder %v491, 0.0
      %vm524 = vcmp.ge.f32.partialorder %v492, 0.0
      %vm525 = vcmp.ge.f32.partialorder %v493, 0.0
      %vm526 = vcmp.ge.f32.partialorder %v494, 0.0
      %vm527 = vcmp.ge.f32.partialorder %v495, 0.0
      %vm528 = vcmp.ge.f32.partialorder %v496, 0.0
      %vm529 = vcmp.ge.f32.partialorder %v497, 0.0
      %vm530 = vcmp.ge.f32.partialorder %v498, 0.0
      %vm531 = vcmp.ge.f32.partialorder %v499, 0.0
      %vm532 = vcmp.ge.f32.partialorder %v500, 0.0
      %vm533 = vcmp.ge.f32.partialorder %v501, 0.0
      %vm534 = vcmp.ge.f32.partialorder %v502, 0.0
      %vm535 = vcmp.ge.f32.partialorder %v503, 0.0
      %vm536 = vcmp.ge.f32.partialorder %v504, 0.0
      %vm537 = vcmp.ge.f32.partialorder %v505, 0.0
      %vm538 = vcmp.ge.f32.partialorder %v506, 0.0
      %vm539 = vcmp.ge.f32.partialorder %v507, 0.0
      %vm540 = vcmp.ge.f32.partialorder %v508, 0.0
      %vm541 = vcmp.ge.f32.partialorder %v509, 0.0
      %vm542 = vcmp.ge.f32.partialorder %v510, 0.0
      %vm543 = vcmp.ge.f32.partialorder %v511, 0.0
      %vm544 = vcmp.ge.f32.partialorder %v512, 0.0
      %vm545 = vcmp.ge.f32.partialorder %v513, 0.0
      %vm546 = vcmp.ge.f32.partialorder %v514, 0.0
      %vm547 = vcmp.ge.f32.partialorder %v515, 0.0
      %vm548 = vcmp.ge.f32.partialorder %v516, 0.0
      %vm549 = vcmp.ge.f32.partialorder %v517, 0.0
      %vm550 = vcmp.ge.f32.partialorder %v518, 0.0
      %vm551 = vcmp.ge.f32.partialorder %v519, 0.0
      %vm552 = vcmp.ge.f32.partialorder %v520, 0.0
      %v553 = vmul.f32 %v489, 0.2
      %v554 = vmul.f32 %v490, 0.2
      %v555 = vmul.f32 %v491, 0.2
      %v556 = vmul.f32 %v492, 0.2
      %v557 = vmul.f32 %v493, 0.2
      %v558 = vmul.f32 %v494, 0.2
      %v559 = vmul.f32 %v495, 0.2
      %v560 = vmul.f32 %v496, 0.2
      %v561 = vmul.f32 %v497, 0.2
      %v562 = vmul.f32 %v498, 0.2
      %v563 = vmul.f32 %v499, 0.2
      %v564 = vmul.f32 %v500, 0.2
      %v565 = vmul.f32 %v501, 0.2
      %v566 = vmul.f32 %v502, 0.2
      %v567 = vmul.f32 %v503, 0.2
      %v568 = vmul.f32 %v504, 0.2
      %v569 = vmul.f32 %v505, 0.2
      %v570 = vmul.f32 %v506, 0.2
      %v571 = vmul.f32 %v507, 0.2
      %v572 = vmul.f32 %v508, 0.2
      %v573 = vmul.f32 %v509, 0.2
      %v574 = vmul.f32 %v510, 0.2
      %v575 = vmul.f32 %v511, 0.2
      %v576 = vmul.f32 %v512, 0.2
      %v577 = vmul.f32 %v513, 0.2
      %v578 = vmul.f32 %v514, 0.2
      %v579 = vmul.f32 %v515, 0.2
      %v580 = vmul.f32 %v516, 0.2
      %v581 = vmul.f32 %v517, 0.2
      %v582 = vmul.f32 %v518, 0.2
      %v583 = vmul.f32 %v519, 0.2
      %v584 = vmul.f32 %v520, 0.2
      %v585 = vsel %vm521, %v489, %v553
      %v586 = vsel %vm522, %v490, %v554
      %v587 = vsel %vm523, %v491, %v555
      %v588 = vsel %vm524, %v492, %v556
      %v589 = vsel %vm525, %v493, %v557
      %v590 = vsel %vm526, %v494, %v558
      %v591 = vsel %vm527, %v495, %v559
      %v592 = vsel %vm528, %v496, %v560
      %v593 = vsel %vm529, %v497, %v561
      %v594 = vsel %vm530, %v498, %v562
      %v595 = vsel %vm531, %v499, %v563
      %v596 = vsel %vm532, %v500, %v564
      %v597 = vsel %vm533, %v501, %v565
      %v598 = vsel %vm534, %v502, %v566
      %v599 = vsel %vm535, %v503, %v567
      %v600 = vsel %vm536, %v504, %v568
      %v601 = vsel %vm537, %v505, %v569
      %v602 = vsel %vm538, %v506, %v570
      %v603 = vsel %vm539, %v507, %v571
      %v604 = vsel %vm540, %v508, %v572
      %v605 = vsel %vm541, %v509, %v573
      %v606 = vsel %vm542, %v510, %v574
      %v607 = vsel %vm543, %v511, %v575
      %v608 = vsel %vm544, %v512, %v576
      %v609 = vsel %vm545, %v513, %v577
      %v610 = vsel %vm546, %v514, %v578
      %v611 = vsel %vm547, %v515, %v579
      %v612 = vsel %vm548, %v516, %v580
      %v613 = vsel %vm549, %v517, %v581
      %v614 = vsel %vm550, %v518, %v582
      %v615 = vsel %vm551, %v519, %v583
      %v616 = vsel %vm552, %v520, %v584
      %vm617 = vcmp.ge.f32.partialorder %v171, 0.0
      %vm618 = vcmp.ge.f32.partialorder %v172, 0.0
      %vm619 = vcmp.ge.f32.partialorder %v173, 0.0
      %vm620 = vcmp.ge.f32.partialorder %v174, 0.0
      %vm621 = vcmp.ge.f32.partialorder %v175, 0.0
      %vm622 = vcmp.ge.f32.partialorder %v176, 0.0
      %vm623 = vcmp.ge.f32.partialorder %v177, 0.0
      %vm624 = vcmp.ge.f32.partialorder %v178, 0.0
      %vm625 = vcmp.ge.f32.partialorder %v179, 0.0
      %vm626 = vcmp.ge.f32.partialorder %v180, 0.0
      %vm627 = vcmp.ge.f32.partialorder %v181, 0.0
      %vm628 = vcmp.ge.f32.partialorder %v182, 0.0
      %vm629 = vcmp.ge.f32.partialorder %v183, 0.0
      %vm630 = vcmp.ge.f32.partialorder %v184, 0.0
      %vm631 = vcmp.ge.f32.partialorder %v185, 0.0
      %vm632 = vcmp.ge.f32.partialorder %v186, 0.0
      %vm633 = vcmp.ge.f32.partialorder %v187, 0.0
      %vm634 = vcmp.ge.f32.partialorder %v188, 0.0
      %vm635 = vcmp.ge.f32.partialorder %v189, 0.0
      %vm636 = vcmp.ge.f32.partialorder %v190, 0.0
      %vm637 = vcmp.ge.f32.partialorder %v191, 0.0
      %vm638 = vcmp.ge.f32.partialorder %v192, 0.0
      %vm639 = vcmp.ge.f32.partialorder %v193, 0.0
      %vm640 = vcmp.ge.f32.partialorder %v194, 0.0
      %vm641 = vcmp.ge.f32.partialorder %v195, 0.0
      %vm642 = vcmp.ge.f32.partialorder %v196, 0.0
      %vm643 = vcmp.ge.f32.partialorder %v197, 0.0
      %vm644 = vcmp.ge.f32.partialorder %v198, 0.0
      %vm645 = vcmp.ge.f32.partialorder %v199, 0.0
      %vm646 = vcmp.ge.f32.partialorder %v200, 0.0
      %vm647 = vcmp.ge.f32.partialorder %v201, 0.0
      %vm648 = vcmp.ge.f32.partialorder %v202, 0.0
      %v649 = vmul.f32 %v171, 0.2
      %v650 = vmul.f32 %v172, 0.2
      %v651 = vmul.f32 %v173, 0.2
      %v652 = vmul.f32 %v174, 0.2
      %v653 = vmul.f32 %v175, 0.2
      %v654 = vmul.f32 %v176, 0.2
      %v655 = vmul.f32 %v177, 0.2
      %v656 = vmul.f32 %v178, 0.2
      %v657 = vmul.f32 %v179, 0.2
      %v658 = vmul.f32 %v180, 0.2
      %v659 = vmul.f32 %v181, 0.2
      %v660 = vmul.f32 %v182, 0.2
      %v661 = vmul.f32 %v183, 0.2
      %v662 = vmul.f32 %v184, 0.2
      %v663 = vmul.f32 %v185, 0.2
      %v664 = vmul.f32 %v186, 0.2
      %v665 = vmul.f32 %v187, 0.2
      %v666 = vmul.f32 %v188, 0.2
      %v667 = vmul.f32 %v189, 0.2
      %v668 = vmul.f32 %v190, 0.2
      %v669 = vmul.f32 %v191, 0.2
      %v670 = vmul.f32 %v192, 0.2
      %v671 = vmul.f32 %v193, 0.2
      %v672 = vmul.f32 %v194, 0.2
      %v673 = vmul.f32 %v195, 0.2
      %v674 = vmul.f32 %v196, 0.2
      %v675 = vmul.f32 %v197, 0.2
      %v676 = vmul.f32 %v198, 0.2
      %v677 = vmul.f32 %v199, 0.2
      %v678 = vmul.f32 %v200, 0.2
      %v679 = vmul.f32 %v201, 0.2
      %v680 = vmul.f32 %v202, 0.2
      %v681 = vsel %vm617, %v171, %v649
      %v682 = vsel %vm618, %v172, %v650
      %v683 = vsel %vm619, %v173, %v651
      %v684 = vsel %vm620, %v174, %v652
      %v685 = vsel %vm621, %v175, %v653
      %v686 = vsel %vm622, %v176, %v654
      %v687 = vsel %vm623, %v177, %v655
      %v688 = vsel %vm624, %v178, %v656
      %v689 = vsel %vm625, %v179, %v657
      %v690 = vsel %vm626, %v180, %v658
      %v691 = vsel %vm627, %v181, %v659
      %v692 = vsel %vm628, %v182, %v660
      %v693 = vsel %vm629, %v183, %v661
      %v694 = vsel %vm630, %v184, %v662
      %v695 = vsel %vm631, %v185, %v663
      %v696 = vsel %vm632, %v186, %v664
      %v697 = vsel %vm633, %v187, %v665
      %v698 = vsel %vm634, %v188, %v666
      %v699 = vsel %vm635, %v189, %v667
      %v700 = vsel %vm636, %v190, %v668
      %v701 = vsel %vm637, %v191, %v669
      %v702 = vsel %vm638, %v192, %v670
      %v703 = vsel %vm639, %v193, %v671
      %v704 = vsel %vm640, %v194, %v672
      %v705 = vsel %vm641, %v195, %v673
      %v706 = vsel %vm642, %v196, %v674
      %v707 = vsel %vm643, %v197, %v675
      %v708 = vsel %vm644, %v198, %v676
      %v709 = vsel %vm645, %v199, %v677
      %v710 = vsel %vm646, %v200, %v678
      %v711 = vsel %vm647, %v201, %v679
      %v712 = vsel %vm648, %v202, %v680
      %v713 = vsel %vm203, %v585, %v681
      %v714 = vsel %vm203, %v586, %v682
      %v715 = vsel %vm203, %v587, %v683
      %v716 = vsel %vm203, %v588, %v684
      %v717 = vsel %vm203, %v589, %v685
      %v718 = vsel %vm203, %v590, %v686
      %v719 = vsel %vm203, %v591, %v687
      %v720 = vsel %vm203, %v592, %v688
      %v721 = vsel %vm203, %v593, %v689
      %v722 = vsel %vm203, %v594, %v690
      %v723 = vsel %vm203, %v595, %v691
      %v724 = vsel %vm203, %v596, %v692
      %v725 = vsel %vm203, %v597, %v693
      %v726 = vsel %vm203, %v598, %v694
      %v727 = vsel %vm203, %v599, %v695
      %v728 = vsel %vm203, %v600, %v696
      %v729 = vsel %vm203, %v601, %v697
      %v730 = vsel %vm203, %v602, %v698
      %v731 = vsel %vm203, %v603, %v699
      %v732 = vsel %vm203, %v604, %v700
      %v733 = vsel %vm203, %v605, %v701
      %v734 = vsel %vm203, %v606, %v702
      %v735 = vsel %vm203, %v607, %v703
      %v736 = vsel %vm203, %v608, %v704
      %v737 = vsel %vm203, %v609, %v705
      %v738 = vsel %vm203, %v610, %v706
      %v739 = vsel %vm203, %v611, %v707
      %v740 = vsel %vm203, %v612, %v708
      %v741 = vsel %vm203, %v613, %v709
      %v742 = vsel %vm203, %v614, %v710
      %v743 = vsel %vm203, %v615, %v711
      %v744 = vsel %vm203, %v616, %v712
      %vm745 = vcmask 31744
      %746 = vst.msk [vmem:[%s170] sm:$0xff] %vm745, %v713
      %747 = vst.msk [vmem:[%s170 + $0x8] sm:$0xff] %vm745, %v714
      %748 = vst.msk [vmem:[%s170 + $0x10] sm:$0xff] %vm745, %v715
      %749 = vst.msk [vmem:[%s170 + $0x18] sm:$0xff] %vm745, %v716
      %750 = vst.msk [vmem:[%s170 + $0x20] sm:$0xff] %vm745, %v717
      %751 = vst.msk [vmem:[%s170 + $0x28] sm:$0xff] %vm745, %v718
      %752 = vst.msk [vmem:[%s170 + $0x30] sm:$0xff] %vm745, %v719
      %753 = vst.msk [vmem:[%s170 + $0x38] sm:$0xff] %vm745, %v720
      %754 = vst.msk [vmem:[%s170 + $0x40] sm:$0xff] %vm745, %v721
      %755 = vst.msk [vmem:[%s170 + $0x48] sm:$0xff] %vm745, %v722
      %756 = vst.msk [vmem:[%s170 + $0x50] sm:$0xff] %vm745, %v723
      %757 = vst.msk [vmem:[%s170 + $0x58] sm:$0xff] %vm745, %v724
      %758 = vst.msk [vmem:[%s170 + $0x60] sm:$0xff] %vm745, %v725
      %759 = vst.msk [vmem:[%s170 + $0x68] sm:$0xff] %vm745, %v726
      %760 = vst.msk [vmem:[%s170 + $0x70] sm:$0xff] %vm745, %v727
      %761 = vst.msk [vmem:[%s170 + $0x78] sm:$0xff] %vm745, %v728
      %762 = vst.msk [vmem:[%s170 + $0x80] sm:$0xff] %vm745, %v729
      %763 = vst.msk [vmem:[%s170 + $0x88] sm:$0xff] %vm745, %v730
      %764 = vst.msk [vmem:[%s170 + $0x90] sm:$0xff] %vm745, %v731
      %765 = vst.msk [vmem:[%s170 + $0x98] sm:$0xff] %vm745, %v732
      %766 = vst.msk [vmem:[%s170 + $0xa0] sm:$0xff] %vm745, %v733
      %767 = vst.msk [vmem:[%s170 + $0xa8] sm:$0xff] %vm745, %v734
      %768 = vst.msk [vmem:[%s170 + $0xb0] sm:$0xff] %vm745, %v735
      %769 = vst.msk [vmem:[%s170 + $0xb8] sm:$0xff] %vm745, %v736
      %770 = vst.msk [vmem:[%s170 + $0xc0] sm:$0xff] %vm745, %v737
      %771 = vst.msk [vmem:[%s170 + $0xc8] sm:$0xff] %vm745, %v738
      %772 = vst.msk [vmem:[%s170 + $0xd0] sm:$0xff] %vm745, %v739
      %773 = vst.msk [vmem:[%s170 + $0xd8] sm:$0xff] %vm745, %v740
      %774 = vst.msk [vmem:[%s170 + $0xe0] sm:$0xff] %vm745, %v741
      %775 = vst.msk [vmem:[%s170 + $0xe8] sm:$0xff] %vm745, %v742
      %776 = vst.msk [vmem:[%s170 + $0xf0] sm:$0xff] %vm745, %v743
      %777 = vst.msk [vmem:[%s170 + $0xf8] sm:$0xff] %vm745, %v744
      %p778 = scmp.lt.s32.totalorder %s14, 1
      %s779 = scalar_select %p778, %s14, 1
      %s780 = smul.addr %s779, 32
      %s781 = smul.addr %s780, 8
      %s782 = scalar_lea.vmem %s3, %s781
      // Predicated region
      $region33: #{fgmm_forward.15} parent=31 // pred_check
        %p783 = pneg %p100
      $region34: #{fgmm_forward.15} parent=31 // pred_check_branch
        %785 = sbr.rel (%p783) target = $region36
      $region35: #{fgmm_forward.15} parent=31 // pred_region
        _
      $region36: #{fgmm_forward.15} parent=31 // pred_fallthru
        _
    $region32: #{fgmm_forward.15} parent=5 // pred_fallthru
      _
    %p786 = scmp.le.s32.totalorder 2, %s9
    // Predicated region
    $region37: #{fgmm_forward.15} parent=5 // pred_check
      %p787 = pneg %p786
    $region38: #{fgmm_forward.15} parent=5 // pred_check_branch
      %789 = sbr.rel (%p787) target = $region40
    $region39: #{fgmm_forward.15} parent=5 // pred_region
      %s790 = ssub.s32 %s9, 2
      // Predicated region
      $region41: #{fgmm_forward.15} parent=39 // pred_check
        %p791 = pneg %p106
      $region42: #{fgmm_forward.15} parent=39 // pred_check_branch
        %793 = sbr.rel (%p791) target = $region44
      $region43: #{fgmm_forward.15} parent=39 // pred_region
        %p794 = scmp.lt.s32.totalorder %s15, 1
        %s795 = scalar_select %p794, %s15, 1
        %s796 = smul.addr %s795, 32
        %s797 = smul.addr %s796, 8
        %s798 = scalar_lea.vmem %s3, %s797
      $region44: #{fgmm_forward.15} parent=39 // pred_fallthru
        _
    $region40: #{fgmm_forward.15} parent=5 // pred_fallthru
      _
  $region6: #{fgmm_forward.15} parent=0 // loop_footer
    %s13 = sadd.s32 1, %s9
  $region7: #{fgmm_forward.15} parent=0 // loop_footer_branch
    %8 = sbr.rel target = $region3
  $region8: #{fgmm_forward.15} parent=0 // loop_exit
    _

// kernel: fgmm_forward.16
$region0: #{fgmm_forward.16}
  #allocation0 [shape = 'u32[]', space=smem, size = 0x4, offset = 0x4, fixed_abs, tag = 'smem constant byte address 0x4 - core index']
  #allocation1 [shape = 'u32[144,128]{1,0:T(1,128)}', space=vmem, size = 0x12000, scoped, tag = 'internal scratch']
  #allocation2 [shape = 'f32[256,128]{1,0:T(8,128)}', space=vmem, size = 0x20000, scoped, tag = 'scratch operand']
  %s0 = inlined_call_operand.vmem [shape: bf16[512,8], index: 0, kind: input, shape index: {}]
  %s1 = inlined_call_operand.vmem [shape: bf16[8,128], index: 1, kind: input, shape index: {}]
  %s2 = inlined_call_operand.vmem [shape: f32[1,128], index: 2, kind: input, shape index: {}]
  %s3 = inlined_call_operand.vmem [shape: f32[512,128], index: 3, kind: output, shape index: {}]
  %s4 = sld [smem:[#allocation0]]
  $region53: #{fgmm_forward.16} parent=0
    _
  %s6 = ssub.s32 1, %s4
  %s7 = scalar_select 0, %s6, %s4
  loop: start=0, step=1, limit=4
  $region2: #{fgmm_forward.16} parent=0 // loop_pre_header
    _
  $region3: #{fgmm_forward.16} parent=0 // loop_header
    %s9 = sphi 0, %s13
    %p10 = scmp.ge.s32.totalorder %s9, 4
    %s16 = sphi 0, %s35
    %s17 = sphi 0, %s31
    %s18 = sphi 0, %s27
    %s19 = sphi 0, %s16
    %s20 = sphi 0, %s17
    %s21 = sphi 0, %s18
    %s22 = sphi 0, %s19
    %s23 = sphi 0, %s20
    %s24 = sphi 0, %s21
    %s40 = sphi 0, %s42
    %s43 = sphi 0, %s40
    %s44 = sphi 0, %s43
    %s60 = sphi 0, %s44
    %s68 = sphi 0, %s70
    %s71 = sphi 0, %s68
    %s72 = sphi 0, %s71
    %s88 = sphi 0, %s72
    %s94 = sphi 0, %s96
    %s97 = sphi 0, %s94
    %s98 = sphi 0, %s97
    %s114 = sphi 0, %s98
    %s122 = sphi 0, %s124
    %s125 = sphi 0, %s122
    %s126 = sphi 0, %s125
    %s142 = sphi 0, %s126
  $region4: #{fgmm_forward.16} parent=0 // loop_header_branch
    %12 = sbr.rel (%p10) target = $region8
  $region5: #{fgmm_forward.16} parent=0 // loop_body
    %s14 = ssub.s32 %s9, 1
    %s15 = ssub.s32 %s9, 2
    %s25 = sadd.s32 1, %s18
    %p26 = scmp.ge.s32.totalorder %s25, 1
    %s27 = scalar_select %p26, 0, %s25
    %s28 = sadd.s32 1, %s17
    %s29 = scalar_select %p26, %s28, %s17
    %p30 = scmp.ge.s32.totalorder %s29, 1
    %s31 = scalar_select %p30, 0, %s29
    %s32 = sadd.s32 1, %s16
    %s33 = scalar_select %p30, %s32, %s16
    %p34 = scmp.ge.s32.totalorder %s33, 2
    %s35 = scalar_select %p34, 0, %s33
    %s36 = ssub.s32 %s16, %s35
    %s37 = ssub.s32 %s18, %s27
    %s38 = sor.u32 %s36, %s37
    %p39 = scmp.eq.s32.totalorder %s38, 0
    %s41 = sadd.s32 %s40, 1
    %s42 = scalar_select %p39, %s40, %s41
    %p45 = pneg %p39
    %p46 = scmp.eq.s32.totalorder %s9, 1
    %p47 = por %p45, %p46
    %p48 = scmp.ne.s32.totalorder %s40, %s43
    %p49 = scmp.eq.s32.totalorder %s9, 0
    %p50 = por %p48, %p49
    %p51 = scmp.ne.s32.totalorder %s40, %s43
    %p52 = scmp.eq.s32.totalorder %s14, 1
    %p53 = por %p51, %p52
    %p54 = scmp.ne.s32.totalorder %s43, %s44
    %p55 = scmp.eq.s32.totalorder %s14, 0
    %p56 = por %p54, %p55
    %p57 = scmp.ne.s32.totalorder %s43, %s44
    %p58 = scmp.eq.s32.totalorder %s15, 1
    %p59 = por %p57, %p58
    %p61 = scmp.ne.s32.totalorder %s44, %s60
    %p62 = scmp.eq.s32.totalorder %s15, 0
    %p63 = por %p61, %p62
    %s64 = ssub.s32 %s18, %s27
    %s65 = ssub.s32 %s17, %s31
    %s66 = sor.u32 %s64, %s65
    %p67 = scmp.eq.s32.totalorder %s66, 0
    %s69 = sadd.s32 %s68, 1
    %s70 = scalar_select %p67, %s68, %s69
    %p73 = pneg %p67
    %p74 = scmp.eq.s32.totalorder %s9, 1
    %p75 = por %p73, %p74
    %p76 = scmp.ne.s32.totalorder %s68, %s71
    %p77 = scmp.eq.s32.totalorder %s9, 0
    %p78 = por %p76, %p77
    %p79 = scmp.ne.s32.totalorder %s68, %s71
    %p80 = scmp.eq.s32.totalorder %s14, 1
    %p81 = por %p79, %p80
    %p82 = scmp.ne.s32.totalorder %s71, %s72
    %p83 = scmp.eq.s32.totalorder %s14, 0
    %p84 = por %p82, %p83
    %p85 = scmp.ne.s32.totalorder %s71, %s72
    %p86 = scmp.eq.s32.totalorder %s15, 1
    %p87 = por %p85, %p86
    %p89 = scmp.ne.s32.totalorder %s72, %s88
    %p90 = scmp.eq.s32.totalorder %s15, 0
    %p91 = por %p89, %p90
    %s92 = ssub.s32 %s17, %s31
    %p93 = scmp.eq.s32.totalorder %s92, 0
    %s95 = sadd.s32 %s94, 1
    %s96 = scalar_select %p93, %s94, %s95
    %p99 = pneg %p93
    %p100 = scmp.eq.s32.totalorder %s9, 1
    %p101 = por %p99, %p100
    %p102 = scmp.ne.s32.totalorder %s94, %s97
    %p103 = scmp.eq.s32.totalorder %s9, 0
    %p104 = por %p102, %p103
    %p105 = scmp.ne.s32.totalorder %s94, %s97
    %p106 = scmp.eq.s32.totalorder %s14, 1
    %p107 = por %p105, %p106
    %p108 = scmp.ne.s32.totalorder %s97, %s98
    %p109 = scmp.eq.s32.totalorder %s14, 0
    %p110 = por %p108, %p109
    %p111 = scmp.ne.s32.totalorder %s97, %s98
    %p112 = scmp.eq.s32.totalorder %s15, 1
    %p113 = por %p111, %p112
    %p115 = scmp.ne.s32.totalorder %s98, %s114
    %p116 = scmp.eq.s32.totalorder %s15, 0
    %p117 = por %p115, %p116
    %s118 = ssub.s32 %s16, %s35
    %s119 = ssub.s32 %s17, %s31
    %s120 = sor.u32 %s118, %s119
    %p121 = scmp.eq.s32.totalorder %s120, 0
    %s123 = sadd.s32 %s122, 1
    %s124 = scalar_select %p121, %s122, %s123
    %p127 = pneg %p121
    %p128 = scmp.eq.s32.totalorder %s9, 1
    %p129 = por %p127, %p128
    %p130 = scmp.ne.s32.totalorder %s122, %s125
    %p131 = scmp.eq.s32.totalorder %s9, 0
    %p132 = por %p130, %p131
    %p133 = scmp.ne.s32.totalorder %s122, %s125
    %p134 = scmp.eq.s32.totalorder %s14, 1
    %p135 = por %p133, %p134
    %p136 = scmp.ne.s32.totalorder %s125, %s126
    %p137 = scmp.eq.s32.totalorder %s14, 0
    %p138 = por %p136, %p137
    %p139 = scmp.ne.s32.totalorder %s125, %s126
    %p140 = scmp.eq.s32.totalorder %s15, 1
    %p141 = por %p139, %p140
    %p143 = scmp.ne.s32.totalorder %s126, %s142
    %p144 = scmp.eq.s32.totalorder %s15, 0
    %p145 = por %p143, %p144
    %p146 = scmp.le.s32.totalorder 1, %s9
    %p147 = scmp.lt.s32.totalorder %s9, 3
    %p148 = pnand %p146, %p147
    %p149 = pneg %p148
    // Predicated region
    $region9: #{fgmm_forward.16} parent=5 // pred_check
      _
    $region10: #{fgmm_forward.16} parent=5 // pred_check_branch
      %151 = sbr.rel (%p148) target = $region12
    $region11: #{fgmm_forward.16} parent=5 // pred_region
      %s152 = ssub.s32 %s9, 1
      // Predicated region
      $region13: #{fgmm_forward.16} parent=11 // pred_check
        %p153 = pneg %p84
      $region14: #{fgmm_forward.16} parent=11 // pred_check_branch
        %155 = sbr.rel (%p153) target = $region16
      $region15: #{fgmm_forward.16} parent=11 // pred_region
        %p156 = scmp.lt.s32.totalorder %s21, 0
        %s157 = scalar_select %p156, %s21, 0
        %p158 = scmp.lt.s32.totalorder %s20, 0
        %s159 = scalar_select %p158, %s20, 0
        %s160 = sadd.s32 %s159, %s157
        %s161 = smul.addr %s160, 4
        %s162 = scalar_lea.vmem %s1, %s161
      $region16: #{fgmm_forward.16} parent=11 // pred_fallthru
        _
      // Predicated region
      $region17: #{fgmm_forward.16} parent=11 // pred_check
        %p163 = pneg %p110
      $region18: #{fgmm_forward.16} parent=11 // pred_check_branch
        %165 = sbr.rel (%p163) target = $region20
      $region19: #{fgmm_forward.16} parent=11 // pred_region
        %p166 = scmp.lt.s32.totalorder %s20, 0
        %s167 = scalar_select %p166, %s20, 0
        %s168 = scalar_lea.vmem %s2, %s167
      $region20: #{fgmm_forward.16} parent=11 // pred_fallthru
        _
    $region12: #{fgmm_forward.16} parent=5 // pred_fallthru
      _
    %p169 = scmp.lt.s32.totalorder %s9, 2
    // Predicated region
    $region21: #{fgmm_forward.16} parent=5 // pred_check
      %p170 = pneg %p169
    $region22: #{fgmm_forward.16} parent=5 // pred_check_branch
      %172 = sbr.rel (%p170) target = $region24
    $region23: #{fgmm_forward.16} parent=5 // pred_region
      // Predicated region
      $region25: #{fgmm_forward.16} parent=23 // pred_check
        %p173 = pneg %p50
      $region26: #{fgmm_forward.16} parent=23 // pred_check_branch
        %175 = sbr.rel (%p173) target = $region28
      $region27: #{fgmm_forward.16} parent=23 // pred_region
        %s176 = smul.u32 32, %s16
        %p177 = scmp.lt.s32.totalorder %s176, 63
        %s178 = scalar_select %p177, %s176, 63
        %p179 = scmp.lt.s32.totalorder %s18, 0
        %s180 = scalar_select %p179, %s18, 0
        %s181 = sadd.s32 %s180, %s178
        %s182 = smul.addr %s181, 4
        %s183 = scalar_lea.vmem %s0, %s182
        %s184 = smul.u32 32, %s16
      $region28: #{fgmm_forward.16} parent=23 // pred_fallthru
        _
    $region24: #{fgmm_forward.16} parent=5 // pred_fallthru
      _
    %p185 = scmp.le.s32.totalorder 1, %s9
    %p186 = scmp.lt.s32.totalorder %s9, 3
    %p187 = pnand %p185, %p186
    %p188 = pneg %p187
    // Predicated region
    $region29: #{fgmm_forward.16} parent=5 // pred_check
      _
    $region30: #{fgmm_forward.16} parent=5 // pred_check_branch
      %190 = sbr.rel (%p187) target = $region32
    $region31: #{fgmm_forward.16} parent=5 // pred_region
      %s191 = ssub.s32 %s9, 1
      %s192 = smul.u32 32, %s19
      %p193 = scmp.lt.s32.totalorder %s192, 63
      %s194 = scalar_select %p193, %s192, 63
      %p195 = scmp.lt.s32.totalorder %s21, 0
      %s196 = scalar_select %p195, %s21, 0
      %s197 = sadd.s32 %s196, %s194
      %s198 = smul.addr %s197, 4
      %s199 = scalar_lea.vmem %s0, %s198
      %p200 = pneg %p56
      %p201 = pneg %p53
      %p202 = scmp.lt.s32.totalorder %s21, 0
      %s203 = scalar_select %p202, %s21, 0
      %p204 = scmp.lt.s32.totalorder %s20, 0
      %s205 = scalar_select %p204, %s20, 0
      %s206 = sadd.s32 %s205, %s203
      %s207 = smul.addr %s206, 4
      %s208 = scalar_lea.vmem %s1, %s207
      %p209 = pneg %p84
      %p210 = pneg %p81
      %p211 = scmp.lt.s32.totalorder %s20, 0
      %s212 = scalar_select %p211, %s20, 0
      %s213 = scalar_lea.vmem %s2, %s212
      %p214 = pneg %p110
      %p215 = pneg %p107
      %p216 = pneg %p138
      %p217 = pneg %p135
      %s218 = smul.u32 32, %s19
      %p219 = scmp.lt.s32.totalorder %s218, 63
      %s220 = scalar_select %p219, %s218, 63
      %p221 = scmp.lt.s32.totalorder %s20, 0
      %s222 = scalar_select %p221, %s20, 0
      %s223 = sadd.s32 %s222, %s220
      %s224 = smul.addr %s223, 8
      %s225 = scalar_lea.vmem %s3, %s224
      %s226 = smul.u32 32, %s19
      %p227 = scmp.lt.s32.totalorder %s226, 63
      %s228 = scalar_select %p227, %s226, 63
      %p229 = scmp.lt.s32.totalorder %s21, 0
      %s230 = scalar_select %p229, %s21, 0
      %s231 = sadd.s32 %s230, %s228
      %s232 = smul.addr %s231, 4
      %s233 = scalar_lea.vmem %s0, %s232
      %s234 = smul.u32 32, %s19
      %p235 = scmp.lt.s32.totalorder %s21, 0
      %s236 = scalar_select %p235, %s21, 0
      %p237 = scmp.lt.s32.totalorder %s20, 0
      %s238 = scalar_select %p237, %s20, 0
      %s239 = sadd.s32 %s238, %s236
      %s240 = smul.addr %s239, 4
      %s241 = scalar_lea.vmem %s1, %s240
      %p242 = scmp.lt.s32.totalorder %s20, 0
      %s243 = scalar_select %p242, %s20, 0
      %s244 = scalar_lea.vmem %s2, %s243
      %s245 = smul.u32 32, %s19
      %p246 = scmp.lt.s32.totalorder %s245, 63
      %s247 = scalar_select %p246, %s245, 63
      %p248 = scmp.lt.s32.totalorder %s20, 0
      %s249 = scalar_select %p248, %s20, 0
      %s250 = sadd.s32 %s249, %s247
      %s251 = smul.addr %s250, 8
      %s252 = scalar_lea.vmem %s3, %s251
      %s253 = smul.u32 32, %s19
      %p255 = scmp.eq.s32.totalorder %s21, 0
      // Predicated region
      $region33: #{fgmm_forward.16} parent=31 // pred_check
        %p256 = pneg %p255
      $region34: #{fgmm_forward.16} parent=31 // pred_check_branch
        %258 = sbr.rel (%p256) target = $region36
      $region35: #{fgmm_forward.16} parent=31 // pred_region
        %259 = vst [vmem:[#allocation2] sm:$0xff] 0.0
        %260 = vst [vmem:[#allocation2 + $0x8] sm:$0xff] 0.0
        %261 = vst [vmem:[#allocation2 + $0x10] sm:$0xff] 0.0
        %262 = vst [vmem:[#allocation2 + $0x18] sm:$0xff] 0.0
        %263 = vst [vmem:[#allocation2 + $0x20] sm:$0xff] 0.0
        %264 = vst [vmem:[#allocation2 + $0x28] sm:$0xff] 0.0
        %265 = vst [vmem:[#allocation2 + $0x30] sm:$0xff] 0.0
        %266 = vst [vmem:[#allocation2 + $0x38] sm:$0xff] 0.0
        %267 = vst [vmem:[#allocation2 + $0x40] sm:$0xff] 0.0
        %268 = vst [vmem:[#allocation2 + $0x48] sm:$0xff] 0.0
        %269 = vst [vmem:[#allocation2 + $0x50] sm:$0xff] 0.0
        %270 = vst [vmem:[#allocation2 + $0x58] sm:$0xff] 0.0
        %271 = vst [vmem:[#allocation2 + $0x60] sm:$0xff] 0.0
        %272 = vst [vmem:[#allocation2 + $0x68] sm:$0xff] 0.0
        %273 = vst [vmem:[#allocation2 + $0x70] sm:$0xff] 0.0
        %274 = vst [vmem:[#allocation2 + $0x78] sm:$0xff] 0.0
        %275 = vst [vmem:[#allocation2 + $0x80] sm:$0xff] 0.0
        %276 = vst [vmem:[#allocation2 + $0x88] sm:$0xff] 0.0
        %277 = vst [vmem:[#allocation2 + $0x90] sm:$0xff] 0.0
        %278 = vst [vmem:[#allocation2 + $0x98] sm:$0xff] 0.0
        %279 = vst [vmem:[#allocation2 + $0xa0] sm:$0xff] 0.0
        %280 = vst [vmem:[#allocation2 + $0xa8] sm:$0xff] 0.0
        %281 = vst [vmem:[#allocation2 + $0xb0] sm:$0xff] 0.0
        %282 = vst [vmem:[#allocation2 + $0xb8] sm:$0xff] 0.0
        %283 = vst [vmem:[#allocation2 + $0xc0] sm:$0xff] 0.0
        %284 = vst [vmem:[#allocation2 + $0xc8] sm:$0xff] 0.0
        %285 = vst [vmem:[#allocation2 + $0xd0] sm:$0xff] 0.0
        %286 = vst [vmem:[#allocation2 + $0xd8] sm:$0xff] 0.0
        %287 = vst [vmem:[#allocation2 + $0xe0] sm:$0xff] 0.0
        %288 = vst [vmem:[#allocation2 + $0xe8] sm:$0xff] 0.0
        %289 = vst [vmem:[#allocation2 + $0xf0] sm:$0xff] 0.0
        %290 = vst [vmem:[#allocation2 + $0xf8] sm:$0xff] 0.0
      $region36: #{fgmm_forward.16} parent=31 // pred_fallthru
        _
      %v291 = vld [vmem:[#allocation2] sm:$0xff]
      %v292 = vld [vmem:[#allocation2 + $0x8] sm:$0xff]
      %v293 = vld [vmem:[#allocation2 + $0x10] sm:$0xff]
      %v294 = vld [vmem:[#allocation2 + $0x18] sm:$0xff]
      %v295 = vld [vmem:[#allocation2 + $0x20] sm:$0xff]
      %v296 = vld [vmem:[#allocation2 + $0x28] sm:$0xff]
      %v297 = vld [vmem:[#allocation2 + $0x30] sm:$0xff]
      %v298 = vld [vmem:[#allocation2 + $0x38] sm:$0xff]
      %v299 = vld [vmem:[#allocation2 + $0x40] sm:$0xff]
      %v300 = vld [vmem:[#allocation2 + $0x48] sm:$0xff]
      %v301 = vld [vmem:[#allocation2 + $0x50] sm:$0xff]
      %v302 = vld [vmem:[#allocation2 + $0x58] sm:$0xff]
      %v303 = vld [vmem:[#allocation2 + $0x60] sm:$0xff]
      %v304 = vld [vmem:[#allocation2 + $0x68] sm:$0xff]
      %v305 = vld [vmem:[#allocation2 + $0x70] sm:$0xff]
      %v306 = vld [vmem:[#allocation2 + $0x78] sm:$0xff]
      %v307 = vld [vmem:[#allocation2 + $0x80] sm:$0xff]
      %v308 = vld [vmem:[#allocation2 + $0x88] sm:$0xff]
      %v309 = vld [vmem:[#allocation2 + $0x90] sm:$0xff]
      %v310 = vld [vmem:[#allocation2 + $0x98] sm:$0xff]
      %v311 = vld [vmem:[#allocation2 + $0xa0] sm:$0xff]
      %v312 = vld [vmem:[#allocation2 + $0xa8] sm:$0xff]
      %v313 = vld [vmem:[#allocation2 + $0xb0] sm:$0xff]
      %v314 = vld [vmem:[#allocation2 + $0xb8] sm:$0xff]
      %v315 = vld [vmem:[#allocation2 + $0xc0] sm:$0xff]
      %v316 = vld [vmem:[#allocation2 + $0xc8] sm:$0xff]
      %v317 = vld [vmem:[#allocation2 + $0xd0] sm:$0xff]
      %v318 = vld [vmem:[#allocation2 + $0xd8] sm:$0xff]
      %v319 = vld [vmem:[#allocation2 + $0xe0] sm:$0xff]
      %v320 = vld [vmem:[#allocation2 + $0xe8] sm:$0xff]
      %v321 = vld [vmem:[#allocation2 + $0xf0] sm:$0xff]
      %v322 = vld [vmem:[#allocation2 + $0xf8] sm:$0xff]
      %v323 = vld [vmem:[%s233] sm:$0xf]
      %v324 = vld [vmem:[%s233 + $0x4] sm:$0xf]
      %v325 = vld [vmem:[%s233 + $0x8] sm:$0xf]
      %v326 = vld [vmem:[%s233 + $0xc] sm:$0xf]
      %v327 = vld [vmem:[%s233 + $0x10] sm:$0xf]
      %v328 = vld [vmem:[%s233 + $0x14] sm:$0xf]
      %v329 = vld [vmem:[%s233 + $0x18] sm:$0xf]
      %v330 = vld [vmem:[%s233 + $0x1c] sm:$0xf]
      %v331 = vld [vmem:[%s233 + $0x20] sm:$0xf]
      %v332 = vld [vmem:[%s233 + $0x24] sm:$0xf]
      %v333 = vld [vmem:[%s233 + $0x28] sm:$0xf]
      %v334 = vld [vmem:[%s233 + $0x2c] sm:$0xf]
      %v335 = vld [vmem:[%s233 + $0x30] sm:$0xf]
      %v336 = vld [vmem:[%s233 + $0x34] sm:$0xf]
      %v337 = vld [vmem:[%s233 + $0x38] sm:$0xf]
      %v338 = vld [vmem:[%s233 + $0x3c] sm:$0xf]
      %v339 = vld [vmem:[%s233 + $0x40] sm:$0xf]
      %v340 = vld [vmem:[%s233 + $0x44] sm:$0xf]
      %v341 = vld [vmem:[%s233 + $0x48] sm:$0xf]
      %v342 = vld [vmem:[%s233 + $0x4c] sm:$0xf]
      %v343 = vld [vmem:[%s233 + $0x50] sm:$0xf]
      %v344 = vld [vmem:[%s233 + $0x54] sm:$0xf]
      %v345 = vld [vmem:[%s233 + $0x58] sm:$0xf]
      %v346 = vld [vmem:[%s233 + $0x5c] sm:$0xf]
      %v347 = vld [vmem:[%s233 + $0x60] sm:$0xf]
      %v348 = vld [vmem:[%s233 + $0x64] sm:$0xf]
      %v349 = vld [vmem:[%s233 + $0x68] sm:$0xf]
      %v350 = vld [vmem:[%s233 + $0x6c] sm:$0xf]
      %v351 = vld [vmem:[%s233 + $0x70] sm:$0xf]
      %v352 = vld [vmem:[%s233 + $0x74] sm:$0xf]
      %v353 = vld [vmem:[%s233 + $0x78] sm:$0xf]
      %v354 = vld [vmem:[%s233 + $0x7c] sm:$0xf]
      %v355 = vld [vmem:[%s241] sm:$0xf]
      %v388 = vunpack.c.l.b16 %v323
      %v389 = vunpack.c.l.b16 %v324
      %v390 = vunpack.c.l.b16 %v325
      %v391 = vunpack.c.l.b16 %v326
      %v392 = vunpack.c.l.b16 %v327
      %v393 = vunpack.c.l.b16 %v328
      %v394 = vunpack.c.l.b16 %v329
      %v395 = vunpack.c.l.b16 %v330
      %v396 = vunpack.c.l.b16 %v331
      %v397 = vunpack.c.l.b16 %v332
      %v398 = vunpack.c.l.b16 %v333
      %v399 = vunpack.c.l.b16 %v334
      %v400 = vunpack.c.l.b16 %v335
      %v401 = vunpack.c.l.b16 %v336
      %v402 = vunpack.c.l.b16 %v337
      %v403 = vunpack.c.l.b16 %v338
      %v404 = vunpack.c.l.b16 %v339
      %v405 = vunpack.c.l.b16 %v340
      %v406 = vunpack.c.l.b16 %v341
      %v407 = vunpack.c.l.b16 %v342
      %v408 = vunpack.c.l.b16 %v343
      %v409 = vunpack.c.l.b16 %v344
      %v410 = vunpack.c.l.b16 %v345
      %v411 = vunpack.c.l.b16 %v346
      %v412 = vunpack.c.l.b16 %v347
      %v413 = vunpack.c.l.b16 %v348
      %v414 = vunpack.c.l.b16 %v349
      %v415 = vunpack.c.l.b16 %v350
      %v416 = vunpack.c.l.b16 %v351
      %v417 = vunpack.c.l.b16 %v352
      %v418 = vunpack.c.l.b16 %v353
      %v419 = vunpack.c.l.b16 %v354
      %v420 = vpack.c.b16 %v389, %v388
      %v421 = vpack.c.b16 %v391, %v390
      %v422 = vpack.c.b16 %v393, %v392
      %v423 = vpack.c.b16 %v395, %v394
      %v424 = vpack.c.b16 %v397, %v396
      %v425 = vpack.c.b16 %v399, %v398
      %v426 = vpack.c.b16 %v401, %v400
      %v427 = vpack.c.b16 %v403, %v402
      %v428 = vpack.c.b16 %v405, %v404
      %v429 = vpack.c.b16 %v407, %v406
      %v430 = vpack.c.b16 %v409, %v408
      %v431 = vpack.c.b16 %v411, %v410
      %v432 = vpack.c.b16 %v413, %v412
      %v433 = vpack.c.b16 %v415, %v414
      %v434 = vpack.c.b16 %v417, %v416
      %v435 = vpack.c.b16 %v419, %v418
      %vm436 = vcmask 64512
      %v438 = vsel %vm436, %v420, 0
      %v441 = vsel %vm436, %v421, 0
      %v444 = vsel %vm436, %v422, 0
      %v447 = vsel %vm436, %v423, 0
      %v450 = vsel %vm436, %v424, 0
      %v453 = vsel %vm436, %v425, 0
      %v456 = vsel %vm436, %v426, 0
      %v459 = vsel %vm436, %v427, 0
      %v462 = vsel %vm436, %v428, 0
      %v465 = vsel %vm436, %v429, 0
      %v468 = vsel %vm436, %v430, 0
      %v471 = vsel %vm436, %v431, 0
      %v474 = vsel %vm436, %v432, 0
      %v477 = vsel %vm436, %v433, 0
      %v480 = vsel %vm436, %v434, 0
      %v483 = vsel %vm436, %v435, 0
      %vm485 = vcmask 1043456
      %v487 = vsel %vm485, %v355, 0
      %489 = vmatprep.subr.bf16.mxu0 0
      %490 = vmatpush1.bf16.msra.mxu0 %v487
      %491 = vmatprep.subr.bf16.mxu0 0
      %492 = vmatpush1.bf16.msra.mxu0 0
      %493 = vmatprep.subr.bf16.mxu0 0
      %494 = vmatpush1.bf16.msra.mxu0 0
      %495 = vmatprep.subr.bf16.mxu0 0
      %496 = vmatpush1.bf16.msra.mxu0 0
      %497 = vmatprep.subr.bf16.mxu0 0
      %498 = vmatpush1.bf16.msra.mxu0 0
      %499 = vmatprep.subr.bf16.mxu0 0
      %500 = vmatpush1.bf16.msra.mxu0 0
      %501 = vmatprep.subr.bf16.mxu0 0
      %502 = vmatpush1.bf16.msra.mxu0 0
      %503 = vmatprep.subr.bf16.mxu0 0
      %504 = vmatpush1.bf16.msra.mxu0 0
      %505 = vmatprep.subr.bf16.mxu0 0
      %506 = vmatpush1.bf16.msra.mxu0 0
      %507 = vmatprep.subr.bf16.mxu0 0
      %508 = vmatpush1.bf16.msra.mxu0 0
      %509 = vmatprep.subr.bf16.mxu0 0
      %510 = vmatpush1.bf16.msra.mxu0 0
      %511 = vmatprep.subr.bf16.mxu0 0
      %512 = vmatpush1.bf16.msra.mxu0 0
      %513 = vmatprep.subr.bf16.mxu0 0
      %514 = vmatpush1.bf16.msra.mxu0 0
      %515 = vmatprep.subr.bf16.mxu0 0
      %516 = vmatpush1.bf16.msra.mxu0 0
      %517 = vmatprep.subr.bf16.mxu0 0
      %518 = vmatpush1.bf16.msra.mxu0 0
      %519 = vmatprep.subr.bf16.mxu0 0
      %520 = vmatpush1.bf16.msra.mxu0 0
      %521 = vmatprep.mubr.bf16.mxu0 0
      %522 = vmatmul.mubr.bf16.gmra.mrb[0].mxu0 %v438
      %v523 = vpop.f32.mrb[0].mxu0
      %v524 = vadd.f32 0.0, %v523
      %v525 = vpop.f32.mrb[0].mxu0
      %v526 = vpop.f32.mrb[0].mxu0
      %v527 = vadd.f32 0.0, %v526
      %v528 = vpop.f32.mrb[0].mxu0
      %529 = vmatprep.mubr.bf16.mxu0 0
      %530 = vmatmul.mubr.bf16.gmra.mrb[0].mxu0 %v441
      %v531 = vpop.f32.mrb[0].mxu0
      %v532 = vadd.f32 0.0, %v531
      %v533 = vpop.f32.mrb[0].mxu0
      %v534 = vpop.f32.mrb[0].mxu0
      %v535 = vadd.f32 0.0, %v534
      %v536 = vpop.f32.mrb[0].mxu0
      %537 = vmatprep.mubr.bf16.mxu0 0
      %538 = vmatmul.mubr.bf16.gmra.mrb[0].mxu0 %v444
      %v539 = vpop.f32.mrb[0].mxu0
      %v540 = vadd.f32 0.0, %v539
      %v541 = vpop.f32.mrb[0].mxu0
      %v542 = vpop.f32.mrb[0].mxu0
      %v543 = vadd.f32 0.0, %v542
      %v544 = vpop.f32.mrb[0].mxu0
      %545 = vmatprep.mubr.bf16.mxu0 0
      %546 = vmatmul.mubr.bf16.gmra.mrb[0].mxu0 %v447
      %v547 = vpop.f32.mrb[0].mxu0
      %v548 = vadd.f32 0.0, %v547
      %v549 = vpop.f32.mrb[0].mxu0
      %v550 = vpop.f32.mrb[0].mxu0
      %v551 = vadd.f32 0.0, %v550
      %v552 = vpop.f32.mrb[0].mxu0
      %553 = vmatprep.mubr.bf16.mxu0 0
      %554 = vmatmul.mubr.bf16.gmra.mrb[0].mxu0 %v450
      %v555 = vpop.f32.mrb[0].mxu0
      %v556 = vadd.f32 0.0, %v555
      %v557 = vpop.f32.mrb[0].mxu0
      %v558 = vpop.f32.mrb[0].mxu0
      %v559 = vadd.f32 0.0, %v558
      %v560 = vpop.f32.mrb[0].mxu0
      %561 = vmatprep.mubr.bf16.mxu0 0
      %562 = vmatmul.mubr.bf16.gmra.mrb[0].mxu0 %v453
      %v563 = vpop.f32.mrb[0].mxu0
      %v564 = vadd.f32 0.0, %v563
      %v565 = vpop.f32.mrb[0].mxu0
      %v566 = vpop.f32.mrb[0].mxu0
      %v567 = vadd.f32 0.0, %v566
      %v568 = vpop.f32.mrb[0].mxu0
      %569 = vmatprep.mubr.bf16.mxu0 0
      %570 = vmatmul.mubr.bf16.gmra.mrb[0].mxu0 %v456
      %v571 = vpop.f32.mrb[0].mxu0
      %v572 = vadd.f32 0.0, %v571
      %v573 = vpop.f32.mrb[0].mxu0
      %v574 = vpop.f32.mrb[0].mxu0
      %v575 = vadd.f32 0.0, %v574
      %v576 = vpop.f32.mrb[0].mxu0
      %577 = vmatprep.mubr.bf16.mxu0 0
      %578 = vmatmul.mubr.bf16.gmra.mrb[0].mxu0 %v459
      %v579 = vpop.f32.mrb[0].mxu0
      %v580 = vadd.f32 0.0, %v579
      %v581 = vpop.f32.mrb[0].mxu0
      %v582 = vpop.f32.mrb[0].mxu0
      %v583 = vadd.f32 0.0, %v582
      %v584 = vpop.f32.mrb[0].mxu0
      %585 = vmatprep.mubr.bf16.mxu0 0
      %586 = vmatmul.mubr.bf16.gmra.mrb[0].mxu0 %v462
      %v587 = vpop.f32.mrb[0].mxu0
      %v588 = vadd.f32 0.0, %v587
      %v589 = vpop.f32.mrb[0].mxu0
      %v590 = vpop.f32.mrb[0].mxu0
      %v591 = vadd.f32 0.0, %v590
      %v592 = vpop.f32.mrb[0].mxu0
      %593 = vmatprep.mubr.bf16.mxu0 0
      %594 = vmatmul.mubr.bf16.gmra.mrb[0].mxu0 %v465
      %v595 = vpop.f32.mrb[0].mxu0
      %v596 = vadd.f32 0.0, %v595
      %v597 = vpop.f32.mrb[0].mxu0
      %v598 = vpop.f32.mrb[0].mxu0
      %v599 = vadd.f32 0.0, %v598
      %v600 = vpop.f32.mrb[0].mxu0
      %601 = vmatprep.mubr.bf16.mxu0 0
      %602 = vmatmul.mubr.bf16.gmra.mrb[0].mxu0 %v468
      %v603 = vpop.f32.mrb[0].mxu0
      %v604 = vadd.f32 0.0, %v603
      %v605 = vpop.f32.mrb[0].mxu0
      %v606 = vpop.f32.mrb[0].mxu0
      %v607 = vadd.f32 0.0, %v606
      %v608 = vpop.f32.mrb[0].mxu0
      %609 = vmatprep.mubr.bf16.mxu0 0
      %610 = vmatmul.mubr.bf16.gmra.mrb[0].mxu0 %v471
      %v611 = vpop.f32.mrb[0].mxu0
      %v612 = vadd.f32 0.0, %v611
      %v613 = vpop.f32.mrb[0].mxu0
      %v614 = vpop.f32.mrb[0].mxu0
      %v615 = vadd.f32 0.0, %v614
      %v616 = vpop.f32.mrb[0].mxu0
      %617 = vmatprep.mubr.bf16.mxu0 0
      %618 = vmatmul.mubr.bf16.gmra.mrb[0].mxu0 %v474
      %v619 = vpop.f32.mrb[0].mxu0
      %v620 = vadd.f32 0.0, %v619
      %v621 = vpop.f32.mrb[0].mxu0
      %v622 = vpop.f32.mrb[0].mxu0
      %v623 = vadd.f32 0.0, %v622
      %v624 = vpop.f32.mrb[0].mxu0
      %625 = vmatprep.mubr.bf16.mxu0 0
      %626 = vmatmul.mubr.bf16.gmra.mrb[0].mxu0 %v477
      %v627 = vpop.f32.mrb[0].mxu0
      %v628 = vadd.f32 0.0, %v627
      %v629 = vpop.f32.mrb[0].mxu0
      %v630 = vpop.f32.mrb[0].mxu0
      %v631 = vadd.f32 0.0, %v630
      %v632 = vpop.f32.mrb[0].mxu0
      %633 = vmatprep.mubr.bf16.mxu0 0
      %634 = vmatmul.mubr.bf16.gmra.mrb[0].mxu0 %v480
      %v635 = vpop.f32.mrb[0].mxu0
      %v636 = vadd.f32 0.0, %v635
      %v637 = vpop.f32.mrb[0].mxu0
      %v638 = vpop.f32.mrb[0].mxu0
      %v639 = vadd.f32 0.0, %v638
      %v640 = vpop.f32.mrb[0].mxu0
      %641 = vmatprep.mubr.bf16.mxu0 0
      %642 = vmatmul.mubr.bf16.gmra.mrb[0].mxu0 %v483
      %v643 = vpop.f32.mrb[0].mxu0
      %v644 = vadd.f32 0.0, %v643
      %v645 = vpop.f32.mrb[0].mxu0
      %v646 = vpop.f32.mrb[0].mxu0
      %v647 = vadd.f32 0.0, %v646
      %v648 = vpop.f32.mrb[0].mxu0
      %649 = vdwg.mxu0
      %v650 = vadd.f32 %v291, %v524
      %v651 = vadd.f32 %v292, %v527
      %v652 = vadd.f32 %v293, %v532
      %v653 = vadd.f32 %v294, %v535
      %v654 = vadd.f32 %v295, %v540
      %v655 = vadd.f32 %v296, %v543
      %v656 = vadd.f32 %v297, %v548
      %v657 = vadd.f32 %v298, %v551
      %v658 = vadd.f32 %v299, %v556
      %v659 = vadd.f32 %v300, %v559
      %v660 = vadd.f32 %v301, %v564
      %v661 = vadd.f32 %v302, %v567
      %v662 = vadd.f32 %v303, %v572
      %v663 = vadd.f32 %v304, %v575
      %v664 = vadd.f32 %v305, %v580
      %v665 = vadd.f32 %v306, %v583
      %v666 = vadd.f32 %v307, %v588
      %v667 = vadd.f32 %v308, %v591
      %v668 = vadd.f32 %v309, %v596
      %v669 = vadd.f32 %v310, %v599
      %v670 = vadd.f32 %v311, %v604
      %v671 = vadd.f32 %v312, %v607
      %v672 = vadd.f32 %v313, %v612
      %v673 = vadd.f32 %v314, %v615
      %v674 = vadd.f32 %v315, %v620
      %v675 = vadd.f32 %v316, %v623
      %v676 = vadd.f32 %v317, %v628
      %v677 = vadd.f32 %v318, %v631
      %v678 = vadd.f32 %v319, %v636
      %v679 = vadd.f32 %v320, %v639
      %v680 = vadd.f32 %v321, %v644
      %v681 = vadd.f32 %v322, %v647
      %682 = vst [vmem:[#allocation2] sm:$0xff] %v650
      %683 = vst [vmem:[#allocation2 + $0x8] sm:$0xff] %v651
      %684 = vst [vmem:[#allocation2 + $0x10] sm:$0xff] %v652
      %685 = vst [vmem:[#allocation2 + $0x18] sm:$0xff] %v653
      %686 = vst [vmem:[#allocation2 + $0x20] sm:$0xff] %v654
      %687 = vst [vmem:[#allocation2 + $0x28] sm:$0xff] %v655
      %688 = vst [vmem:[#allocation2 + $0x30] sm:$0xff] %v656
      %689 = vst [vmem:[#allocation2 + $0x38] sm:$0xff] %v657
      %690 = vst [vmem:[#allocation2 + $0x40] sm:$0xff] %v658
      %691 = vst [vmem:[#allocation2 + $0x48] sm:$0xff] %v659
      %692 = vst [vmem:[#allocation2 + $0x50] sm:$0xff] %v660
      %693 = vst [vmem:[#allocation2 + $0x58] sm:$0xff] %v661
      %694 = vst [vmem:[#allocation2 + $0x60] sm:$0xff] %v662
      %695 = vst [vmem:[#allocation2 + $0x68] sm:$0xff] %v663
      %696 = vst [vmem:[#allocation2 + $0x70] sm:$0xff] %v664
      %697 = vst [vmem:[#allocation2 + $0x78] sm:$0xff] %v665
      %698 = vst [vmem:[#allocation2 + $0x80] sm:$0xff] %v666
      %699 = vst [vmem:[#allocation2 + $0x88] sm:$0xff] %v667
      %700 = vst [vmem:[#allocation2 + $0x90] sm:$0xff] %v668
      %701 = vst [vmem:[#allocation2 + $0x98] sm:$0xff] %v669
      %702 = vst [vmem:[#allocation2 + $0xa0] sm:$0xff] %v670
      %703 = vst [vmem:[#allocation2 + $0xa8] sm:$0xff] %v671
      %704 = vst [vmem:[#allocation2 + $0xb0] sm:$0xff] %v672
      %705 = vst [vmem:[#allocation2 + $0xb8] sm:$0xff] %v673
      %706 = vst [vmem:[#allocation2 + $0xc0] sm:$0xff] %v674
      %707 = vst [vmem:[#allocation2 + $0xc8] sm:$0xff] %v675
      %708 = vst [vmem:[#allocation2 + $0xd0] sm:$0xff] %v676
      %709 = vst [vmem:[#allocation2 + $0xd8] sm:$0xff] %v677
      %710 = vst [vmem:[#allocation2 + $0xe0] sm:$0xff] %v678
      %711 = vst [vmem:[#allocation2 + $0xe8] sm:$0xff] %v679
      %712 = vst [vmem:[#allocation2 + $0xf0] sm:$0xff] %v680
      %713 = vst [vmem:[#allocation2 + $0xf8] sm:$0xff] %v681
      // Predicated region
      $region37: #{fgmm_forward.16} parent=31 // pred_check
        %p714 = pneg %p255
      $region38: #{fgmm_forward.16} parent=31 // pred_check_branch
        %716 = sbr.rel (%p714) target = $region40
      $region39: #{fgmm_forward.16} parent=31 // pred_region
        %v717 = vld [vmem:[#allocation2] sm:$0xff]
        %v718 = vld [vmem:[#allocation2 + $0x8] sm:$0xff]
        %v719 = vld [vmem:[#allocation2 + $0x10] sm:$0xff]
        %v720 = vld [vmem:[#allocation2 + $0x18] sm:$0xff]
        %v721 = vld [vmem:[#allocation2 + $0x20] sm:$0xff]
        %v722 = vld [vmem:[#allocation2 + $0x28] sm:$0xff]
        %v723 = vld [vmem:[#allocation2 + $0x30] sm:$0xff]
        %v724 = vld [vmem:[#allocation2 + $0x38] sm:$0xff]
        %v725 = vld [vmem:[#allocation2 + $0x40] sm:$0xff]
        %v726 = vld [vmem:[#allocation2 + $0x48] sm:$0xff]
        %v727 = vld [vmem:[#allocation2 + $0x50] sm:$0xff]
        %v728 = vld [vmem:[#allocation2 + $0x58] sm:$0xff]
        %v729 = vld [vmem:[#allocation2 + $0x60] sm:$0xff]
        %v730 = vld [vmem:[#allocation2 + $0x68] sm:$0xff]
        %v731 = vld [vmem:[#allocation2 + $0x70] sm:$0xff]
        %v732 = vld [vmem:[#allocation2 + $0x78] sm:$0xff]
        %v733 = vld [vmem:[#allocation2 + $0x80] sm:$0xff]
        %v734 = vld [vmem:[#allocation2 + $0x88] sm:$0xff]
        %v735 = vld [vmem:[#allocation2 + $0x90] sm:$0xff]
        %v736 = vld [vmem:[#allocation2 + $0x98] sm:$0xff]
        %v737 = vld [vmem:[#allocation2 + $0xa0] sm:$0xff]
        %v738 = vld [vmem:[#allocation2 + $0xa8] sm:$0xff]
        %v739 = vld [vmem:[#allocation2 + $0xb0] sm:$0xff]
        %v740 = vld [vmem:[#allocation2 + $0xb8] sm:$0xff]
        %v741 = vld [vmem:[#allocation2 + $0xc0] sm:$0xff]
        %v742 = vld [vmem:[#allocation2 + $0xc8] sm:$0xff]
        %v743 = vld [vmem:[#allocation2 + $0xd0] sm:$0xff]
        %v744 = vld [vmem:[#allocation2 + $0xd8] sm:$0xff]
        %v745 = vld [vmem:[#allocation2 + $0xe0] sm:$0xff]
        %v746 = vld [vmem:[#allocation2 + $0xe8] sm:$0xff]
        %v747 = vld [vmem:[#allocation2 + $0xf0] sm:$0xff]
        %v748 = vld [vmem:[#allocation2 + $0xf8] sm:$0xff]
        %v749 = vld [vmem:[%s244] sm:$0x1]
        %v751 = vlaneseq
        %v752 = vshrl.u32 %v751, 7
        %v753 = vsub.s32 0, %v752
        %v754 = vrot.slane %v749, %v753
        %v756 = vadd.f32 %v717, %v754
        %v757 = vadd.f32 %v718, %v754
        %v758 = vadd.f32 %v719, %v754
        %v759 = vadd.f32 %v720, %v754
        %v760 = vadd.f32 %v721, %v754
        %v761 = vadd.f32 %v722, %v754
        %v762 = vadd.f32 %v723, %v754
        %v763 = vadd.f32 %v724, %v754
        %v764 = vadd.f32 %v725, %v754
        %v765 = vadd.f32 %v726, %v754
        %v766 = vadd.f32 %v727, %v754
        %v767 = vadd.f32 %v728, %v754
        %v768 = vadd.f32 %v729, %v754
        %v769 = vadd.f32 %v730, %v754
        %v770 = vadd.f32 %v731, %v754
        %v771 = vadd.f32 %v732, %v754
        %v772 = vadd.f32 %v733, %v754
        %v773 = vadd.f32 %v734, %v754
        %v774 = vadd.f32 %v735, %v754
        %v775 = vadd.f32 %v736, %v754
        %v776 = vadd.f32 %v737, %v754
        %v777 = vadd.f32 %v738, %v754
        %v778 = vadd.f32 %v739, %v754
        %v779 = vadd.f32 %v740, %v754
        %v780 = vadd.f32 %v741, %v754
        %v781 = vadd.f32 %v742, %v754
        %v782 = vadd.f32 %v743, %v754
        %v783 = vadd.f32 %v744, %v754
        %v784 = vadd.f32 %v745, %v754
        %v785 = vadd.f32 %v746, %v754
        %v786 = vadd.f32 %v747, %v754
        %v787 = vadd.f32 %v748, %v754
        %788 = vst [vmem:[%s252] sm:$0xff] %v756
        %789 = vst [vmem:[%s252 + $0x8] sm:$0xff] %v757
        %790 = vst [vmem:[%s252 + $0x10] sm:$0xff] %v758
        %791 = vst [vmem:[%s252 + $0x18] sm:$0xff] %v759
        %792 = vst [vmem:[%s252 + $0x20] sm:$0xff] %v760
        %793 = vst [vmem:[%s252 + $0x28] sm:$0xff] %v761
        %794 = vst [vmem:[%s252 + $0x30] sm:$0xff] %v762
        %795 = vst [vmem:[%s252 + $0x38] sm:$0xff] %v763
        %796 = vst [vmem:[%s252 + $0x40] sm:$0xff] %v764
        %797 = vst [vmem:[%s252 + $0x48] sm:$0xff] %v765
        %798 = vst [vmem:[%s252 + $0x50] sm:$0xff] %v766
        %799 = vst [vmem:[%s252 + $0x58] sm:$0xff] %v767
        %800 = vst [vmem:[%s252 + $0x60] sm:$0xff] %v768
        %801 = vst [vmem:[%s252 + $0x68] sm:$0xff] %v769
        %802 = vst [vmem:[%s252 + $0x70] sm:$0xff] %v770
        %803 = vst [vmem:[%s252 + $0x78] sm:$0xff] %v771
        %804 = vst [vmem:[%s252 + $0x80] sm:$0xff] %v772
        %805 = vst [vmem:[%s252 + $0x88] sm:$0xff] %v773
        %806 = vst [vmem:[%s252 + $0x90] sm:$0xff] %v774
        %807 = vst [vmem:[%s252 + $0x98] sm:$0xff] %v775
        %808 = vst [vmem:[%s252 + $0xa0] sm:$0xff] %v776
        %809 = vst [vmem:[%s252 + $0xa8] sm:$0xff] %v777
        %810 = vst [vmem:[%s252 + $0xb0] sm:$0xff] %v778
        %811 = vst [vmem:[%s252 + $0xb8] sm:$0xff] %v779
        %812 = vst [vmem:[%s252 + $0xc0] sm:$0xff] %v780
        %813 = vst [vmem:[%s252 + $0xc8] sm:$0xff] %v781
        %814 = vst [vmem:[%s252 + $0xd0] sm:$0xff] %v782
        %815 = vst [vmem:[%s252 + $0xd8] sm:$0xff] %v783
        %816 = vst [vmem:[%s252 + $0xe0] sm:$0xff] %v784
        %817 = vst [vmem:[%s252 + $0xe8] sm:$0xff] %v785
        %818 = vst [vmem:[%s252 + $0xf0] sm:$0xff] %v786
        %819 = vst [vmem:[%s252 + $0xf8] sm:$0xff] %v787
      $region40: #{fgmm_forward.16} parent=31 // pred_fallthru
        _
      %s820 = smul.u32 32, %s19
      %p821 = scmp.lt.s32.totalorder %s820, 63
      %s822 = scalar_select %p821, %s820, 63
      %p823 = scmp.lt.s32.totalorder %s20, 0
      %s824 = scalar_select %p823, %s20, 0
      %s825 = sadd.s32 %s824, %s822
      %s826 = smul.addr %s825, 8
      %s827 = scalar_lea.vmem %s3, %s826
      // Predicated region
      $region41: #{fgmm_forward.16} parent=31 // pred_check
        %p828 = pneg %p135
      $region42: #{fgmm_forward.16} parent=31 // pred_check_branch
        %830 = sbr.rel (%p828) target = $region44
      $region43: #{fgmm_forward.16} parent=31 // pred_region
        %s831 = smul.u32 32, %s19
      $region44: #{fgmm_forward.16} parent=31 // pred_fallthru
        _
    $region32: #{fgmm_forward.16} parent=5 // pred_fallthru
      _
    %p832 = scmp.le.s32.totalorder 2, %s9
    // Predicated region
    $region45: #{fgmm_forward.16} parent=5 // pred_check
      %p833 = pneg %p832
    $region46: #{fgmm_forward.16} parent=5 // pred_check_branch
      %835 = sbr.rel (%p833) target = $region48
    $region47: #{fgmm_forward.16} parent=5 // pred_region
      %s836 = ssub.s32 %s9, 2
      // Predicated region
      $region49: #{fgmm_forward.16} parent=47 // pred_check
        %p837 = pneg %p141
      $region50: #{fgmm_forward.16} parent=47 // pred_check_branch
        %839 = sbr.rel (%p837) target = $region52
      $region51: #{fgmm_forward.16} parent=47 // pred_region
        %s840 = smul.u32 32, %s22
        %p841 = scmp.lt.s32.totalorder %s840, 63
        %s842 = scalar_select %p841, %s840, 63
        %p843 = scmp.lt.s32.totalorder %s23, 0
        %s844 = scalar_select %p843, %s23, 0
        %s845 = sadd.s32 %s844, %s842
        %s846 = smul.addr %s845, 8
        %s847 = scalar_lea.vmem %s3, %s846
      $region52: #{fgmm_forward.16} parent=47 // pred_fallthru
        _
    $region48: #{fgmm_forward.16} parent=5 // pred_fallthru
      _
  $region6: #{fgmm_forward.16} parent=0 // loop_footer
    %s13 = sadd.s32 1, %s9
  $region7: #{fgmm_forward.16} parent=0 // loop_footer_branch
    %8 = sbr.rel target = $region3
  $region8: #{fgmm_forward.16} parent=0 // loop_exit
    _

// kernel: fgmm_forward.17
$region0: #{fgmm_forward.17}
  #allocation0 [shape = 'u32[]', space=smem, size = 0x4, offset = 0x4, fixed_abs, tag = 'smem constant byte address 0x4 - core index']
  #allocation1 [shape = 'u32[144,128]{1,0:T(1,128)}', space=vmem, size = 0x12000, scoped, tag = 'internal scratch']
  #allocation2 [shape = 'f32[256,128]{1,0:T(8,128)}', space=vmem, size = 0x20000, scoped, tag = 'scratch operand']
  %s0 = inlined_call_operand.vmem [shape: bf16[512,40], index: 0, kind: input, shape index: {}]
  %s1 = inlined_call_operand.vmem [shape: bf16[40,128], index: 1, kind: input, shape index: {}]
  %s2 = inlined_call_operand.vmem [shape: f32[1,128], index: 2, kind: input, shape index: {}]
  %s3 = inlined_call_operand.vmem [shape: f32[512,128], index: 3, kind: input, shape index: {}]
  %s4 = inlined_call_operand.vmem [shape: f32[512,128], index: 4, kind: output, shape index: {}]
  %s5 = sld [smem:[#allocation0]]
  $region57: #{fgmm_forward.17} parent=0
    _
  %s7 = ssub.s32 1, %s5
  %s8 = scalar_select 0, %s7, %s5
  loop: start=0, step=1, limit=4
  $region2: #{fgmm_forward.17} parent=0 // loop_pre_header
    _
  $region3: #{fgmm_forward.17} parent=0 // loop_header
    %s10 = sphi 0, %s14
    %p11 = scmp.ge.s32.totalorder %s10, 4
    %s17 = sphi 0, %s36
    %s18 = sphi 0, %s32
    %s19 = sphi 0, %s28
    %s20 = sphi 0, %s17
    %s21 = sphi 0, %s18
    %s22 = sphi 0, %s19
    %s23 = sphi 0, %s20
    %s24 = sphi 0, %s21
    %s25 = sphi 0, %s22
    %s41 = sphi 0, %s43
    %s44 = sphi 0, %s41
    %s45 = sphi 0, %s44
    %s61 = sphi 0, %s45
    %s69 = sphi 0, %s71
    %s72 = sphi 0, %s69
    %s73 = sphi 0, %s72
    %s89 = sphi 0, %s73
    %s95 = sphi 0, %s97
    %s98 = sphi 0, %s95
    %s99 = sphi 0, %s98
    %s115 = sphi 0, %s99
    %s123 = sphi 0, %s125
    %s126 = sphi 0, %s123
    %s127 = sphi 0, %s126
    %s143 = sphi 0, %s127
    %s151 = sphi 0, %s153
    %s154 = sphi 0, %s151
    %s155 = sphi 0, %s154
    %s171 = sphi 0, %s155
  $region4: #{fgmm_forward.17} parent=0 // loop_header_branch
    %13 = sbr.rel (%p11) target = $region8
  $region5: #{fgmm_forward.17} parent=0 // loop_body
    %s15 = ssub.s32 %s10, 1
    %s16 = ssub.s32 %s10, 2
    %s26 = sadd.s32 1, %s19
    %p27 = scmp.ge.s32.totalorder %s26, 1
    %s28 = scalar_select %p27, 0, %s26
    %s29 = sadd.s32 1, %s18
    %s30 = scalar_select %p27, %s29, %s18
    %p31 = scmp.ge.s32.totalorder %s30, 1
    %s32 = scalar_select %p31, 0, %s30
    %s33 = sadd.s32 1, %s17
    %s34 = scalar_select %p31, %s33, %s17
    %p35 = scmp.ge.s32.totalorder %s34, 2
    %s36 = scalar_select %p35, 0, %s34
    %s37 = ssub.s32 %s17, %s36
    %s38 = ssub.s32 %s19, %s28
    %s39 = sor.u32 %s37, %s38
    %p40 = scmp.eq.s32.totalorder %s39, 0
    %s42 = sadd.s32 %s41, 1
    %s43 = scalar_select %p40, %s41, %s42
    %p46 = pneg %p40
    %p47 = scmp.eq.s32.totalorder %s10, 1
    %p48 = por %p46, %p47
    %p49 = scmp.ne.s32.totalorder %s41, %s44
    %p50 = scmp.eq.s32.totalorder %s10, 0
    %p51 = por %p49, %p50
    %p52 = scmp.ne.s32.totalorder %s41, %s44
    %p53 = scmp.eq.s32.totalorder %s15, 1
    %p54 = por %p52, %p53
    %p55 = scmp.ne.s32.totalorder %s44, %s45
    %p56 = scmp.eq.s32.totalorder %s15, 0
    %p57 = por %p55, %p56
    %p58 = scmp.ne.s32.totalorder %s44, %s45
    %p59 = scmp.eq.s32.totalorder %s16, 1
    %p60 = por %p58, %p59
    %p62 = scmp.ne.s32.totalorder %s45, %s61
    %p63 = scmp.eq.s32.totalorder %s16, 0
    %p64 = por %p62, %p63
    %s65 = ssub.s32 %s19, %s28
    %s66 = ssub.s32 %s18, %s32
    %s67 = sor.u32 %s65, %s66
    %p68 = scmp.eq.s32.totalorder %s67, 0
    %s70 = sadd.s32 %s69, 1
    %s71 = scalar_select %p68, %s69, %s70
    %p74 = pneg %p68
    %p75 = scmp.eq.s32.totalorder %s10, 1
    %p76 = por %p74, %p75
    %p77 = scmp.ne.s32.totalorder %s69, %s72
    %p78 = scmp.eq.s32.totalorder %s10, 0
    %p79 = por %p77, %p78
    %p80 = scmp.ne.s32.totalorder %s69, %s72
    %p81 = scmp.eq.s32.totalorder %s15, 1
    %p82 = por %p80, %p81
    %p83 = scmp.ne.s32.totalorder %s72, %s73
    %p84 = scmp.eq.s32.totalorder %s15, 0
    %p85 = por %p83, %p84
    %p86 = scmp.ne.s32.totalorder %s72, %s73
    %p87 = scmp.eq.s32.totalorder %s16, 1
    %p88 = por %p86, %p87
    %p90 = scmp.ne.s32.totalorder %s73, %s89
    %p91 = scmp.eq.s32.totalorder %s16, 0
    %p92 = por %p90, %p91
    %s93 = ssub.s32 %s18, %s32
    %p94 = scmp.eq.s32.totalorder %s93, 0
    %s96 = sadd.s32 %s95, 1
    %s97 = scalar_select %p94, %s95, %s96
    %p100 = pneg %p94
    %p101 = scmp.eq.s32.totalorder %s10, 1
    %p102 = por %p100, %p101
    %p103 = scmp.ne.s32.totalorder %s95, %s98
    %p104 = scmp.eq.s32.totalorder %s10, 0
    %p105 = por %p103, %p104
    %p106 = scmp.ne.s32.totalorder %s95, %s98
    %p107 = scmp.eq.s32.totalorder %s15, 1
    %p108 = por %p106, %p107
    %p109 = scmp.ne.s32.totalorder %s98, %s99
    %p110 = scmp.eq.s32.totalorder %s15, 0
    %p111 = por %p109, %p110
    %p112 = scmp.ne.s32.totalorder %s98, %s99
    %p113 = scmp.eq.s32.totalorder %s16, 1
    %p114 = por %p112, %p113
    %p116 = scmp.ne.s32.totalorder %s99, %s115
    %p117 = scmp.eq.s32.totalorder %s16, 0
    %p118 = por %p116, %p117
    %s119 = ssub.s32 %s17, %s36
    %s120 = ssub.s32 %s18, %s32
    %s121 = sor.u32 %s119, %s120
    %p122 = scmp.eq.s32.totalorder %s121, 0
    %s124 = sadd.s32 %s123, 1
    %s125 = scalar_select %p122, %s123, %s124
    %p128 = pneg %p122
    %p129 = scmp.eq.s32.totalorder %s10, 1
    %p130 = por %p128, %p129
    %p131 = scmp.ne.s32.totalorder %s123, %s126
    %p132 = scmp.eq.s32.totalorder %s10, 0
    %p133 = por %p131, %p132
    %p134 = scmp.ne.s32.totalorder %s123, %s126
    %p135 = scmp.eq.s32.totalorder %s15, 1
    %p136 = por %p134, %p135
    %p137 = scmp.ne.s32.totalorder %s126, %s127
    %p138 = scmp.eq.s32.totalorder %s15, 0
    %p139 = por %p137, %p138
    %p140 = scmp.ne.s32.totalorder %s126, %s127
    %p141 = scmp.eq.s32.totalorder %s16, 1
    %p142 = por %p140, %p141
    %p144 = scmp.ne.s32.totalorder %s127, %s143
    %p145 = scmp.eq.s32.totalorder %s16, 0
    %p146 = por %p144, %p145
    %s147 = ssub.s32 %s17, %s36
    %s148 = ssub.s32 %s18, %s32
    %s149 = sor.u32 %s147, %s148
    %p150 = scmp.eq.s32.totalorder %s149, 0
    %s152 = sadd.s32 %s151, 1
    %s153 = scalar_select %p150, %s151, %s152
    %p156 = pneg %p150
    %p157 = scmp.eq.s32.totalorder %s10, 1
    %p158 = por %p156, %p157
    %p159 = scmp.ne.s32.totalorder %s151, %s154
    %p160 = scmp.eq.s32.totalorder %s10, 0
    %p161 = por %p159, %p160
    %p162 = scmp.ne.s32.totalorder %s151, %s154
    %p163 = scmp.eq.s32.totalorder %s15, 1
    %p164 = por %p162, %p163
    %p165 = scmp.ne.s32.totalorder %s154, %s155
    %p166 = scmp.eq.s32.totalorder %s15, 0
    %p167 = por %p165, %p166
    %p168 = scmp.ne.s32.totalorder %s154, %s155
    %p169 = scmp.eq.s32.totalorder %s16, 1
    %p170 = por %p168, %p169
    %p172 = scmp.ne.s32.totalorder %s155, %s171
    %p173 = scmp.eq.s32.totalorder %s16, 0
    %p174 = por %p172, %p173
    %p175 = scmp.le.s32.totalorder 1, %s10
    %p176 = scmp.lt.s32.totalorder %s10, 3
    %p177 = pnand %p175, %p176
    %p178 = pneg %p177
    // Predicated region
    $region9: #{fgmm_forward.17} parent=5 // pred_check
      _
    $region10: #{fgmm_forward.17} parent=5 // pred_check_branch
      %180 = sbr.rel (%p177) target = $region12
    $region11: #{fgmm_forward.17} parent=5 // pred_region
      %s181 = ssub.s32 %s10, 1
      // Predicated region
      $region13: #{fgmm_forward.17} parent=11 // pred_check
        %p182 = pneg %p85
      $region14: #{fgmm_forward.17} parent=11 // pred_check_branch
        %184 = sbr.rel (%p182) target = $region16
      $region15: #{fgmm_forward.17} parent=11 // pred_region
        %s185 = smul.u32 5, %s22
        %p186 = scmp.lt.s32.totalorder %s185, 4
        %s187 = scalar_select %p186, %s185, 4
        %p188 = scmp.lt.s32.totalorder %s21, 0
        %s189 = scalar_select %p188, %s21, 0
        %s190 = sadd.s32 %s189, %s187
        %s191 = smul.addr %s190, 4
        %s192 = scalar_lea.vmem %s1, %s191
        %s193 = smul.u32 5, %s22
      $region16: #{fgmm_forward.17} parent=11 // pred_fallthru
        _
      // Predicated region
      $region17: #{fgmm_forward.17} parent=11 // pred_check
        %p194 = pneg %p111
      $region18: #{fgmm_forward.17} parent=11 // pred_check_branch
        %196 = sbr.rel (%p194) target = $region20
      $region19: #{fgmm_forward.17} parent=11 // pred_region
        %p197 = scmp.lt.s32.totalorder %s21, 0
        %s198 = scalar_select %p197, %s21, 0
        %s199 = scalar_lea.vmem %s2, %s198
      $region20: #{fgmm_forward.17} parent=11 // pred_fallthru
        _
    $region12: #{fgmm_forward.17} parent=5 // pred_fallthru
      _
    %p200 = scmp.lt.s32.totalorder %s10, 2
    // Predicated region
    $region21: #{fgmm_forward.17} parent=5 // pred_check
      %p201 = pneg %p200
    $region22: #{fgmm_forward.17} parent=5 // pred_check_branch
      %203 = sbr.rel (%p201) target = $region24
    $region23: #{fgmm_forward.17} parent=5 // pred_region
      // Predicated region
      $region25: #{fgmm_forward.17} parent=23 // pred_check
        %p204 = pneg %p51
      $region26: #{fgmm_forward.17} parent=23 // pred_check_branch
        %206 = sbr.rel (%p204) target = $region28
      $region27: #{fgmm_forward.17} parent=23 // pred_region
        %s207 = smul.u32 32, %s17
        %p208 = scmp.lt.s32.totalorder %s207, 63
        %s209 = scalar_select %p208, %s207, 63
        %p210 = scmp.lt.s32.totalorder %s19, 0
        %s211 = scalar_select %p210, %s19, 0
        %s212 = sadd.s32 %s211, %s209
        %s213 = smul.addr %s212, 4
        %s214 = scalar_lea.vmem %s0, %s213
        %s215 = smul.u32 32, %s17
      $region28: #{fgmm_forward.17} parent=23 // pred_fallthru
        _
      // Predicated region
      $region29: #{fgmm_forward.17} parent=23 // pred_check
        %p216 = pneg %p133
      $region30: #{fgmm_forward.17} parent=23 // pred_check_branch
        %218 = sbr.rel (%p216) target = $region32
      $region31: #{fgmm_forward.17} parent=23 // pred_region
        %s219 = smul.u32 32, %s17
        %p220 = scmp.lt.s32.totalorder %s219, 63
        %s221 = scalar_select %p220, %s219, 63
        %p222 = scmp.lt.s32.totalorder %s18, 0
        %s223 = scalar_select %p222, %s18, 0
        %s224 = sadd.s32 %s223, %s221
        %s225 = smul.addr %s224, 8
        %s226 = scalar_lea.vmem %s3, %s225
        %s227 = smul.u32 32, %s17
      $region32: #{fgmm_forward.17} parent=23 // pred_fallthru
        _
    $region24: #{fgmm_forward.17} parent=5 // pred_fallthru
      _
    %p228 = scmp.le.s32.totalorder 1, %s10
    %p229 = scmp.lt.s32.totalorder %s10, 3
    %p230 = pnand %p228, %p229
    %p231 = pneg %p230
    // Predicated region
    $region33: #{fgmm_forward.17} parent=5 // pred_check
      _
    $region34: #{fgmm_forward.17} parent=5 // pred_check_branch
      %233 = sbr.rel (%p230) target = $region36
    $region35: #{fgmm_forward.17} parent=5 // pred_region
      %s234 = ssub.s32 %s10, 1
      %s235 = smul.u32 32, %s20
      %p236 = scmp.lt.s32.totalorder %s235, 63
      %s237 = scalar_select %p236, %s235, 63
      %p238 = scmp.lt.s32.totalorder %s22, 0
      %s239 = scalar_select %p238, %s22, 0
      %s240 = sadd.s32 %s239, %s237
      %s241 = smul.addr %s240, 4
      %s242 = scalar_lea.vmem %s0, %s241
      %p243 = pneg %p57
      %p244 = pneg %p54
      %s245 = smul.u32 5, %s22
      %p246 = scmp.lt.s32.totalorder %s245, 4
      %s247 = scalar_select %p246, %s245, 4
      %p248 = scmp.lt.s32.totalorder %s21, 0
      %s249 = scalar_select %p248, %s21, 0
      %s250 = sadd.s32 %s249, %s247
      %s251 = smul.addr %s250, 4
      %s252 = scalar_lea.vmem %s1, %s251
      %p253 = pneg %p85
      %p254 = pneg %p82
      %p255 = scmp.lt.s32.totalorder %s21, 0
      %s256 = scalar_select %p255, %s21, 0
      %s257 = scalar_lea.vmem %s2, %s256
      %p258 = pneg %p111
      %p259 = pneg %p108
      %s260 = smul.u32 32, %s20
      %p261 = scmp.lt.s32.totalorder %s260, 63
      %s262 = scalar_select %p261, %s260, 63
      %p263 = scmp.lt.s32.totalorder %s21, 0
      %s264 = scalar_select %p263, %s21, 0
      %s265 = sadd.s32 %s264, %s262
      %s266 = smul.addr %s265, 8
      %s267 = scalar_lea.vmem %s3, %s266
      %p268 = pneg %p139
      %p269 = pneg %p136
      %p270 = pneg %p167
      %p271 = pneg %p164
      %s272 = smul.u32 32, %s20
      %p273 = scmp.lt.s32.totalorder %s272, 63
      %s274 = scalar_select %p273, %s272, 63
      %p275 = scmp.lt.s32.totalorder %s21, 0
      %s276 = scalar_select %p275, %s21, 0
      %s277 = sadd.s32 %s276, %s274
      %s278 = smul.addr %s277, 8
      %s279 = scalar_lea.vmem %s4, %s278
      %s280 = smul.u32 32, %s20
      %p281 = scmp.lt.s32.totalorder %s280, 63
      %s282 = scalar_select %p281, %s280, 63
      %p283 = scmp.lt.s32.totalorder %s22, 0
      %s284 = scalar_select %p283, %s22, 0
      %s285 = sadd.s32 %s284, %s282
      %s286 = smul.addr %s285, 4
      %s287 = scalar_lea.vmem %s0, %s286
      %s288 = smul.u32 32, %s20
      %s289 = smul.u32 5, %s22
      %p290 = scmp.lt.s32.totalorder %s289, 4
      %s291 = scalar_select %p290, %s289, 4
      %p292 = scmp.lt.s32.totalorder %s21, 0
      %s293 = scalar_select %p292, %s21, 0
      %s294 = sadd.s32 %s293, %s291
      %s295 = smul.addr %s294, 4
      %s296 = scalar_lea.vmem %s1, %s295
      %s297 = smul.u32 5, %s22
      %p298 = scmp.lt.s32.totalorder %s21, 0
      %s299 = scalar_select %p298, %s21, 0
      %s300 = scalar_lea.vmem %s2, %s299
      %s301 = smul.u32 32, %s20
      %p302 = scmp.lt.s32.totalorder %s301, 63
      %s303 = scalar_select %p302, %s301, 63
      %p304 = scmp.lt.s32.totalorder %s21, 0
      %s305 = scalar_select %p304, %s21, 0
      %s306 = sadd.s32 %s305, %s303
      %s307 = smul.addr %s306, 8
      %s308 = scalar_lea.vmem %s3, %s307
      %s309 = smul.u32 32, %s20
      %s310 = smul.u32 32, %s20
      %p311 = scmp.lt.s32.totalorder %s310, 63
      %s312 = scalar_select %p311, %s310, 63
      %p313 = scmp.lt.s32.totalorder %s21, 0
      %s314 = scalar_select %p313, %s21, 0
      %s315 = sadd.s32 %s314, %s312
      %s316 = smul.addr %s315, 8
      %s317 = scalar_lea.vmem %s4, %s316
      %s318 = smul.u32 32, %s20
      %p320 = scmp.eq.s32.totalorder %s22, 0
      // Predicated region
      $region37: #{fgmm_forward.17} parent=35 // pred_check
        %p321 = pneg %p320
      $region38: #{fgmm_forward.17} parent=35 // pred_check_branch
        %323 = sbr.rel (%p321) target = $region40
      $region39: #{fgmm_forward.17} parent=35 // pred_region
        %324 = vst [vmem:[#allocation2] sm:$0xff] 0.0
        %325 = vst [vmem:[#allocation2 + $0x8] sm:$0xff] 0.0
        %326 = vst [vmem:[#allocation2 + $0x10] sm:$0xff] 0.0
        %327 = vst [vmem:[#allocation2 + $0x18] sm:$0xff] 0.0
        %328 = vst [vmem:[#allocation2 + $0x20] sm:$0xff] 0.0
        %329 = vst [vmem:[#allocation2 + $0x28] sm:$0xff] 0.0
        %330 = vst [vmem:[#allocation2 + $0x30] sm:$0xff] 0.0
        %331 = vst [vmem:[#allocation2 + $0x38] sm:$0xff] 0.0
        %332 = vst [vmem:[#allocation2 + $0x40] sm:$0xff] 0.0
        %333 = vst [vmem:[#allocation2 + $0x48] sm:$0xff] 0.0
        %334 = vst [vmem:[#allocation2 + $0x50] sm:$0xff] 0.0
        %335 = vst [vmem:[#allocation2 + $0x58] sm:$0xff] 0.0
        %336 = vst [vmem:[#allocation2 + $0x60] sm:$0xff] 0.0
        %337 = vst [vmem:[#allocation2 + $0x68] sm:$0xff] 0.0
        %338 = vst [vmem:[#allocation2 + $0x70] sm:$0xff] 0.0
        %339 = vst [vmem:[#allocation2 + $0x78] sm:$0xff] 0.0
        %340 = vst [vmem:[#allocation2 + $0x80] sm:$0xff] 0.0
        %341 = vst [vmem:[#allocation2 + $0x88] sm:$0xff] 0.0
        %342 = vst [vmem:[#allocation2 + $0x90] sm:$0xff] 0.0
        %343 = vst [vmem:[#allocation2 + $0x98] sm:$0xff] 0.0
        %344 = vst [vmem:[#allocation2 + $0xa0] sm:$0xff] 0.0
        %345 = vst [vmem:[#allocation2 + $0xa8] sm:$0xff] 0.0
        %346 = vst [vmem:[#allocation2 + $0xb0] sm:$0xff] 0.0
        %347 = vst [vmem:[#allocation2 + $0xb8] sm:$0xff] 0.0
        %348 = vst [vmem:[#allocation2 + $0xc0] sm:$0xff] 0.0
        %349 = vst [vmem:[#allocation2 + $0xc8] sm:$0xff] 0.0
        %350 = vst [vmem:[#allocation2 + $0xd0] sm:$0xff] 0.0
        %351 = vst [vmem:[#allocation2 + $0xd8] sm:$0xff] 0.0
        %352 = vst [vmem:[#allocation2 + $0xe0] sm:$0xff] 0.0
        %353 = vst [vmem:[#allocation2 + $0xe8] sm:$0xff] 0.0
        %354 = vst [vmem:[#allocation2 + $0xf0] sm:$0xff] 0.0
        %355 = vst [vmem:[#allocation2 + $0xf8] sm:$0xff] 0.0
      $region40: #{fgmm_forward.17} parent=35 // pred_fallthru
        _
      %v356 = vld [vmem:[#allocation2] sm:$0xff]
      %v357 = vld [vmem:[#allocation2 + $0x8] sm:$0xff]
      %v358 = vld [vmem:[#allocation2 + $0x10] sm:$0xff]
      %v359 = vld [vmem:[#allocation2 + $0x18] sm:$0xff]
      %v360 = vld [vmem:[#allocation2 + $0x20] sm:$0xff]
      %v361 = vld [vmem:[#allocation2 + $0x28] sm:$0xff]
      %v362 = vld [vmem:[#allocation2 + $0x30] sm:$0xff]
      %v363 = vld [vmem:[#allocation2 + $0x38] sm:$0xff]
      %v364 = vld [vmem:[#allocation2 + $0x40] sm:$0xff]
      %v365 = vld [vmem:[#allocation2 + $0x48] sm:$0xff]
      %v366 = vld [vmem:[#allocation2 + $0x50] sm:$0xff]
      %v367 = vld [vmem:[#allocation2 + $0x58] sm:$0xff]
      %v368 = vld [vmem:[#allocation2 + $0x60] sm:$0xff]
      %v369 = vld [vmem:[#allocation2 + $0x68] sm:$0xff]
      %v370 = vld [vmem:[#allocation2 + $0x70] sm:$0xff]
      %v371 = vld [vmem:[#allocation2 + $0x78] sm:$0xff]
      %v372 = vld [vmem:[#allocation2 + $0x80] sm:$0xff]
      %v373 = vld [vmem:[#allocation2 + $0x88] sm:$0xff]
      %v374 = vld [vmem:[#allocation2 + $0x90] sm:$0xff]
      %v375 = vld [vmem:[#allocation2 + $0x98] sm:$0xff]
      %v376 = vld [vmem:[#allocation2 + $0xa0] sm:$0xff]
      %v377 = vld [vmem:[#allocation2 + $0xa8] sm:$0xff]
      %v378 = vld [vmem:[#allocation2 + $0xb0] sm:$0xff]
      %v379 = vld [vmem:[#allocation2 + $0xb8] sm:$0xff]
      %v380 = vld [vmem:[#allocation2 + $0xc0] sm:$0xff]
      %v381 = vld [vmem:[#allocation2 + $0xc8] sm:$0xff]
      %v382 = vld [vmem:[#allocation2 + $0xd0] sm:$0xff]
      %v383 = vld [vmem:[#allocation2 + $0xd8] sm:$0xff]
      %v384 = vld [vmem:[#allocation2 + $0xe0] sm:$0xff]
      %v385 = vld [vmem:[#allocation2 + $0xe8] sm:$0xff]
      %v386 = vld [vmem:[#allocation2 + $0xf0] sm:$0xff]
      %v387 = vld [vmem:[#allocation2 + $0xf8] sm:$0xff]
      %v388 = vld [vmem:[%s287] sm:$0xf]
      %v389 = vld [vmem:[%s287 + $0x4] sm:$0xf]
      %v390 = vld [vmem:[%s287 + $0x8] sm:$0xf]
      %v391 = vld [vmem:[%s287 + $0xc] sm:$0xf]
      %v392 = vld [vmem:[%s287 + $0x10] sm:$0xf]
      %v393 = vld [vmem:[%s287 + $0x14] sm:$0xf]
      %v394 = vld [vmem:[%s287 + $0x18] sm:$0xf]
      %v395 = vld [vmem:[%s287 + $0x1c] sm:$0xf]
      %v396 = vld [vmem:[%s287 + $0x20] sm:$0xf]
      %v397 = vld [vmem:[%s287 + $0x24] sm:$0xf]
      %v398 = vld [vmem:[%s287 + $0x28] sm:$0xf]
      %v399 = vld [vmem:[%s287 + $0x2c] sm:$0xf]
      %v400 = vld [vmem:[%s287 + $0x30] sm:$0xf]
      %v401 = vld [vmem:[%s287 + $0x34] sm:$0xf]
      %v402 = vld [vmem:[%s287 + $0x38] sm:$0xf]
      %v403 = vld [vmem:[%s287 + $0x3c] sm:$0xf]
      %v404 = vld [vmem:[%s287 + $0x40] sm:$0xf]
      %v405 = vld [vmem:[%s287 + $0x44] sm:$0xf]
      %v406 = vld [vmem:[%s287 + $0x48] sm:$0xf]
      %v407 = vld [vmem:[%s287 + $0x4c] sm:$0xf]
      %v408 = vld [vmem:[%s287 + $0x50] sm:$0xf]
      %v409 = vld [vmem:[%s287 + $0x54] sm:$0xf]
      %v410 = vld [vmem:[%s287 + $0x58] sm:$0xf]
      %v411 = vld [vmem:[%s287 + $0x5c] sm:$0xf]
      %v412 = vld [vmem:[%s287 + $0x60] sm:$0xf]
      %v413 = vld [vmem:[%s287 + $0x64] sm:$0xf]
      %v414 = vld [vmem:[%s287 + $0x68] sm:$0xf]
      %v415 = vld [vmem:[%s287 + $0x6c] sm:$0xf]
      %v416 = vld [vmem:[%s287 + $0x70] sm:$0xf]
      %v417 = vld [vmem:[%s287 + $0x74] sm:$0xf]
      %v418 = vld [vmem:[%s287 + $0x78] sm:$0xf]
      %v419 = vld [vmem:[%s287 + $0x7c] sm:$0xf]
      %v420 = vld [vmem:[%s296] sm:$0xf]
      %v421 = vld [vmem:[%s296 + $0x4] sm:$0xf]
      %v422 = vld [vmem:[%s296 + $0x8] sm:$0xf]
      %v423 = vld [vmem:[%s296 + $0xc] sm:$0xf]
      %v424 = vld [vmem:[%s296 + $0x10] sm:$0xf]
      %v457 = vunpack.c.l.b16 %v388
      %v458 = vunpack.c.l.b16 %v389
      %v459 = vunpack.c.l.b16 %v390
      %v460 = vunpack.c.l.b16 %v391
      %v461 = vunpack.c.l.b16 %v392
      %v462 = vunpack.c.l.b16 %v393
      %v463 = vunpack.c.l.b16 %v394
      %v464 = vunpack.c.l.b16 %v395
      %v465 = vunpack.c.l.b16 %v396
      %v466 = vunpack.c.l.b16 %v397
      %v467 = vunpack.c.l.b16 %v398
      %v468 = vunpack.c.l.b16 %v399
      %v469 = vunpack.c.l.b16 %v400
      %v470 = vunpack.c.l.b16 %v401
      %v471 = vunpack.c.l.b16 %v402
      %v472 = vunpack.c.l.b16 %v403
      %v473 = vunpack.c.l.b16 %v404
      %v474 = vunpack.c.l.b16 %v405
      %v475 = vunpack.c.l.b16 %v406
      %v476 = vunpack.c.l.b16 %v407
      %v477 = vunpack.c.l.b16 %v408
      %v478 = vunpack.c.l.b16 %v409
      %v479 = vunpack.c.l.b16 %v410
      %v480 = vunpack.c.l.b16 %v411
      %v481 = vunpack.c.l.b16 %v412
      %v482 = vunpack.c.l.b16 %v413
      %v483 = vunpack.c.l.b16 %v414
      %v484 = vunpack.c.l.b16 %v415
      %v485 = vunpack.c.l.b16 %v416
      %v486 = vunpack.c.l.b16 %v417
      %v487 = vunpack.c.l.b16 %v418
      %v488 = vunpack.c.l.b16 %v419
      %v489 = vpack.c.b16 %v458, %v457
      %v490 = vpack.c.b16 %v460, %v459
      %v491 = vpack.c.b16 %v462, %v461
      %v492 = vpack.c.b16 %v464, %v463
      %v493 = vpack.c.b16 %v466, %v465
      %v494 = vpack.c.b16 %v468, %v467
      %v495 = vpack.c.b16 %v470, %v469
      %v496 = vpack.c.b16 %v472, %v471
      %v497 = vpack.c.b16 %v474, %v473
      %v498 = vpack.c.b16 %v476, %v475
      %v499 = vpack.c.b16 %v478, %v477
      %v500 = vpack.c.b16 %v480, %v479
      %v501 = vpack.c.b16 %v482, %v481
      %v502 = vpack.c.b16 %v484, %v483
      %v503 = vpack.c.b16 %v486, %v485
      %v504 = vpack.c.b16 %v488, %v487
      %v510 = vunpack.c.l.b16 %v420
      %v511 = vunpack.c.l.b16 %v421
      %v512 = vunpack.c.l.b16 %v422
      %v513 = vunpack.c.l.b16 %v423
      %v514 = vunpack.c.l.b16 %v424
      %v515 = vpack.c.b16 %v511, %v510
      %v516 = vpack.c.b16 %v513, %v512
      %v517 = vpack.c.b16 %v514, %v514
      %vm520 = vcmask 326656
      %v522 = vsel %vm520, %v489, 0
      %v525 = vsel %vm520, %v490, 0
      %v528 = vsel %vm520, %v491, 0
      %v531 = vsel %vm520, %v492, 0
      %v534 = vsel %vm520, %v493, 0
      %v537 = vsel %vm520, %v494, 0
      %v540 = vsel %vm520, %v495, 0
      %v543 = vsel %vm520, %v496, 0
      %v546 = vsel %vm520, %v497, 0
      %v549 = vsel %vm520, %v498, 0
      %v552 = vsel %vm520, %v499, 0
      %v555 = vsel %vm520, %v500, 0
      %v558 = vsel %vm520, %v501, 0
      %v561 = vsel %vm520, %v502, 0
      %v564 = vsel %vm520, %v503, 0
      %v567 = vsel %vm520, %v504, 0
      %vm569 = vcmask 1043456
      %v571 = vsel %vm569, %v517, 0
      %573 = vmatprep.subr.bf16.mxu0 0
      %574 = vmatpush1.bf16.msra.mxu0 %v515
      %575 = vmatprep.subr.bf16.mxu0 0
      %576 = vmatpush1.bf16.msra.mxu0 %v516
      %577 = vmatprep.subr.bf16.mxu0 0
      %578 = vmatpush1.bf16.msra.mxu0 %v571
      %579 = vmatprep.subr.bf16.mxu0 0
      %580 = vmatpush1.bf16.msra.mxu0 0
      %581 = vmatprep.subr.bf16.mxu0 0
      %582 = vmatpush1.bf16.msra.mxu0 0
      %583 = vmatprep.subr.bf16.mxu0 0
      %584 = vmatpush1.bf16.msra.mxu0 0
      %585 = vmatprep.subr.bf16.mxu0 0
      %586 = vmatpush1.bf16.msra.mxu0 0
      %587 = vmatprep.subr.bf16.mxu0 0
      %588 = vmatpush1.bf16.msra.mxu0 0
      %589 = vmatprep.subr.bf16.mxu0 0
      %590 = vmatpush1.bf16.msra.mxu0 0
      %591 = vmatprep.subr.bf16.mxu0 0
      %592 = vmatpush1.bf16.msra.mxu0 0
      %593 = vmatprep.subr.bf16.mxu0 0
      %594 = vmatpush1.bf16.msra.mxu0 0
      %595 = vmatprep.subr.bf16.mxu0 0
      %596 = vmatpush1.bf16.msra.mxu0 0
      %597 = vmatprep.subr.bf16.mxu0 0
      %598 = vmatpush1.bf16.msra.mxu0 0
      %599 = vmatprep.subr.bf16.mxu0 0
      %600 = vmatpush1.bf16.msra.mxu0 0
      %601 = vmatprep.subr.bf16.mxu0 0
      %602 = vmatpush1.bf16.msra.mxu0 0
      %603 = vmatprep.subr.bf16.mxu0 0
      %604 = vmatpush1.bf16.msra.mxu0 0
      %605 = vmatprep.mubr.bf16.mxu0 0
      %606 = vmatmul.mubr.bf16.gmra.mrb[0].mxu0 %v522
      %v607 = vpop.f32.mrb[0].mxu0
      %v608 = vadd.f32 0.0, %v607
      %v609 = vpop.f32.mrb[0].mxu0
      %v610 = vpop.f32.mrb[0].mxu0
      %v611 = vadd.f32 0.0, %v610
      %v612 = vpop.f32.mrb[0].mxu0
      %613 = vmatprep.mubr.bf16.mxu0 0
      %614 = vmatmul.mubr.bf16.gmra.mrb[0].mxu0 %v525
      %v615 = vpop.f32.mrb[0].mxu0
      %v616 = vadd.f32 0.0, %v615
      %v617 = vpop.f32.mrb[0].mxu0
      %v618 = vpop.f32.mrb[0].mxu0
      %v619 = vadd.f32 0.0, %v618
      %v620 = vpop.f32.mrb[0].mxu0
      %621 = vmatprep.mubr.bf16.mxu0 0
      %622 = vmatmul.mubr.bf16.gmra.mrb[0].mxu0 %v528
      %v623 = vpop.f32.mrb[0].mxu0
      %v624 = vadd.f32 0.0, %v623
      %v625 = vpop.f32.mrb[0].mxu0
      %v626 = vpop.f32.mrb[0].mxu0
      %v627 = vadd.f32 0.0, %v626
      %v628 = vpop.f32.mrb[0].mxu0
      %629 = vmatprep.mubr.bf16.mxu0 0
      %630 = vmatmul.mubr.bf16.gmra.mrb[0].mxu0 %v531
      %v631 = vpop.f32.mrb[0].mxu0
      %v632 = vadd.f32 0.0, %v631
      %v633 = vpop.f32.mrb[0].mxu0
      %v634 = vpop.f32.mrb[0].mxu0
      %v635 = vadd.f32 0.0, %v634
      %v636 = vpop.f32.mrb[0].mxu0
      %637 = vmatprep.mubr.bf16.mxu0 0
      %638 = vmatmul.mubr.bf16.gmra.mrb[0].mxu0 %v534
      %v639 = vpop.f32.mrb[0].mxu0
      %v640 = vadd.f32 0.0, %v639
      %v641 = vpop.f32.mrb[0].mxu0
      %v642 = vpop.f32.mrb[0].mxu0
      %v643 = vadd.f32 0.0, %v642
      %v644 = vpop.f32.mrb[0].mxu0
      %645 = vmatprep.mubr.bf16.mxu0 0
      %646 = vmatmul.mubr.bf16.gmra.mrb[0].mxu0 %v537
      %v647 = vpop.f32.mrb[0].mxu0
      %v648 = vadd.f32 0.0, %v647
      %v649 = vpop.f32.mrb[0].mxu0
      %v650 = vpop.f32.mrb[0].mxu0
      %v651 = vadd.f32 0.0, %v650
      %v652 = vpop.f32.mrb[0].mxu0
      %653 = vmatprep.mubr.bf16.mxu0 0
      %654 = vmatmul.mubr.bf16.gmra.mrb[0].mxu0 %v540
      %v655 = vpop.f32.mrb[0].mxu0
      %v656 = vadd.f32 0.0, %v655
      %v657 = vpop.f32.mrb[0].mxu0
      %v658 = vpop.f32.mrb[0].mxu0
      %v659 = vadd.f32 0.0, %v658
      %v660 = vpop.f32.mrb[0].mxu0
      %661 = vmatprep.mubr.bf16.mxu0 0
      %662 = vmatmul.mubr.bf16.gmra.mrb[0].mxu0 %v543
      %v663 = vpop.f32.mrb[0].mxu0
      %v664 = vadd.f32 0.0, %v663
      %v665 = vpop.f32.mrb[0].mxu0
      %v666 = vpop.f32.mrb[0].mxu0
      %v667 = vadd.f32 0.0, %v666
      %v668 = vpop.f32.mrb[0].mxu0
      %669 = vmatprep.mubr.bf16.mxu0 0
      %670 = vmatmul.mubr.bf16.gmra.mrb[0].mxu0 %v546
      %v671 = vpop.f32.mrb[0].mxu0
      %v672 = vadd.f32 0.0, %v671
      %v673 = vpop.f32.mrb[0].mxu0
      %v674 = vpop.f32.mrb[0].mxu0
      %v675 = vadd.f32 0.0, %v674
      %v676 = vpop.f32.mrb[0].mxu0
      %677 = vmatprep.mubr.bf16.mxu0 0
      %678 = vmatmul.mubr.bf16.gmra.mrb[0].mxu0 %v549
      %v679 = vpop.f32.mrb[0].mxu0
      %v680 = vadd.f32 0.0, %v679
      %v681 = vpop.f32.mrb[0].mxu0
      %v682 = vpop.f32.mrb[0].mxu0
      %v683 = vadd.f32 0.0, %v682
      %v684 = vpop.f32.mrb[0].mxu0
      %685 = vmatprep.mubr.bf16.mxu0 0
      %686 = vmatmul.mubr.bf16.gmra.mrb[0].mxu0 %v552
      %v687 = vpop.f32.mrb[0].mxu0
      %v688 = vadd.f32 0.0, %v687
      %v689 = vpop.f32.mrb[0].mxu0
      %v690 = vpop.f32.mrb[0].mxu0
      %v691 = vadd.f32 0.0, %v690
      %v692 = vpop.f32.mrb[0].mxu0
      %693 = vmatprep.mubr.bf16.mxu0 0
      %694 = vmatmul.mubr.bf16.gmra.mrb[0].mxu0 %v555
      %v695 = vpop.f32.mrb[0].mxu0
      %v696 = vadd.f32 0.0, %v695
      %v697 = vpop.f32.mrb[0].mxu0
      %v698 = vpop.f32.mrb[0].mxu0
      %v699 = vadd.f32 0.0, %v698
      %v700 = vpop.f32.mrb[0].mxu0
      %701 = vmatprep.mubr.bf16.mxu0 0
      %702 = vmatmul.mubr.bf16.gmra.mrb[0].mxu0 %v558
      %v703 = vpop.f32.mrb[0].mxu0
      %v704 = vadd.f32 0.0, %v703
      %v705 = vpop.f32.mrb[0].mxu0
      %v706 = vpop.f32.mrb[0].mxu0
      %v707 = vadd.f32 0.0, %v706
      %v708 = vpop.f32.mrb[0].mxu0
      %709 = vmatprep.mubr.bf16.mxu0 0
      %710 = vmatmul.mubr.bf16.gmra.mrb[0].mxu0 %v561
      %v711 = vpop.f32.mrb[0].mxu0
      %v712 = vadd.f32 0.0, %v711
      %v713 = vpop.f32.mrb[0].mxu0
      %v714 = vpop.f32.mrb[0].mxu0
      %v715 = vadd.f32 0.0, %v714
      %v716 = vpop.f32.mrb[0].mxu0
      %717 = vmatprep.mubr.bf16.mxu0 0
      %718 = vmatmul.mubr.bf16.gmra.mrb[0].mxu0 %v564
      %v719 = vpop.f32.mrb[0].mxu0
      %v720 = vadd.f32 0.0, %v719
      %v721 = vpop.f32.mrb[0].mxu0
      %v722 = vpop.f32.mrb[0].mxu0
      %v723 = vadd.f32 0.0, %v722
      %v724 = vpop.f32.mrb[0].mxu0
      %725 = vmatprep.mubr.bf16.mxu0 0
      %726 = vmatmul.mubr.bf16.gmra.mrb[0].mxu0 %v567
      %v727 = vpop.f32.mrb[0].mxu0
      %v728 = vadd.f32 0.0, %v727
      %v729 = vpop.f32.mrb[0].mxu0
      %v730 = vpop.f32.mrb[0].mxu0
      %v731 = vadd.f32 0.0, %v730
      %v732 = vpop.f32.mrb[0].mxu0
      %733 = vdwg.mxu0
      %v734 = vadd.f32 %v356, %v608
      %v735 = vadd.f32 %v357, %v611
      %v736 = vadd.f32 %v358, %v616
      %v737 = vadd.f32 %v359, %v619
      %v738 = vadd.f32 %v360, %v624
      %v739 = vadd.f32 %v361, %v627
      %v740 = vadd.f32 %v362, %v632
      %v741 = vadd.f32 %v363, %v635
      %v742 = vadd.f32 %v364, %v640
      %v743 = vadd.f32 %v365, %v643
      %v744 = vadd.f32 %v366, %v648
      %v745 = vadd.f32 %v367, %v651
      %v746 = vadd.f32 %v368, %v656
      %v747 = vadd.f32 %v369, %v659
      %v748 = vadd.f32 %v370, %v664
      %v749 = vadd.f32 %v371, %v667
      %v750 = vadd.f32 %v372, %v672
      %v751 = vadd.f32 %v373, %v675
      %v752 = vadd.f32 %v374, %v680
      %v753 = vadd.f32 %v375, %v683
      %v754 = vadd.f32 %v376, %v688
      %v755 = vadd.f32 %v377, %v691
      %v756 = vadd.f32 %v378, %v696
      %v757 = vadd.f32 %v379, %v699
      %v758 = vadd.f32 %v380, %v704
      %v759 = vadd.f32 %v381, %v707
      %v760 = vadd.f32 %v382, %v712
      %v761 = vadd.f32 %v383, %v715
      %v762 = vadd.f32 %v384, %v720
      %v763 = vadd.f32 %v385, %v723
      %v764 = vadd.f32 %v386, %v728
      %v765 = vadd.f32 %v387, %v731
      %766 = vst [vmem:[#allocation2] sm:$0xff] %v734
      %767 = vst [vmem:[#allocation2 + $0x8] sm:$0xff] %v735
      %768 = vst [vmem:[#allocation2 + $0x10] sm:$0xff] %v736
      %769 = vst [vmem:[#allocation2 + $0x18] sm:$0xff] %v737
      %770 = vst [vmem:[#allocation2 + $0x20] sm:$0xff] %v738
      %771 = vst [vmem:[#allocation2 + $0x28] sm:$0xff] %v739
      %772 = vst [vmem:[#allocation2 + $0x30] sm:$0xff] %v740
      %773 = vst [vmem:[#allocation2 + $0x38] sm:$0xff] %v741
      %774 = vst [vmem:[#allocation2 + $0x40] sm:$0xff] %v742
      %775 = vst [vmem:[#allocation2 + $0x48] sm:$0xff] %v743
      %776 = vst [vmem:[#allocation2 + $0x50] sm:$0xff] %v744
      %777 = vst [vmem:[#allocation2 + $0x58] sm:$0xff] %v745
      %778 = vst [vmem:[#allocation2 + $0x60] sm:$0xff] %v746
      %779 = vst [vmem:[#allocation2 + $0x68] sm:$0xff] %v747
      %780 = vst [vmem:[#allocation2 + $0x70] sm:$0xff] %v748
      %781 = vst [vmem:[#allocation2 + $0x78] sm:$0xff] %v749
      %782 = vst [vmem:[#allocation2 + $0x80] sm:$0xff] %v750
      %783 = vst [vmem:[#allocation2 + $0x88] sm:$0xff] %v751
      %784 = vst [vmem:[#allocation2 + $0x90] sm:$0xff] %v752
      %785 = vst [vmem:[#allocation2 + $0x98] sm:$0xff] %v753
      %786 = vst [vmem:[#allocation2 + $0xa0] sm:$0xff] %v754
      %787 = vst [vmem:[#allocation2 + $0xa8] sm:$0xff] %v755
      %788 = vst [vmem:[#allocation2 + $0xb0] sm:$0xff] %v756
      %789 = vst [vmem:[#allocation2 + $0xb8] sm:$0xff] %v757
      %790 = vst [vmem:[#allocation2 + $0xc0] sm:$0xff] %v758
      %791 = vst [vmem:[#allocation2 + $0xc8] sm:$0xff] %v759
      %792 = vst [vmem:[#allocation2 + $0xd0] sm:$0xff] %v760
      %793 = vst [vmem:[#allocation2 + $0xd8] sm:$0xff] %v761
      %794 = vst [vmem:[#allocation2 + $0xe0] sm:$0xff] %v762
      %795 = vst [vmem:[#allocation2 + $0xe8] sm:$0xff] %v763
      %796 = vst [vmem:[#allocation2 + $0xf0] sm:$0xff] %v764
      %797 = vst [vmem:[#allocation2 + $0xf8] sm:$0xff] %v765
      // Predicated region
      $region41: #{fgmm_forward.17} parent=35 // pred_check
        %p798 = pneg %p320
      $region42: #{fgmm_forward.17} parent=35 // pred_check_branch
        %800 = sbr.rel (%p798) target = $region44
      $region43: #{fgmm_forward.17} parent=35 // pred_region
        %v801 = vld [vmem:[#allocation2] sm:$0xff]
        %v802 = vld [vmem:[#allocation2 + $0x8] sm:$0xff]
        %v803 = vld [vmem:[#allocation2 + $0x10] sm:$0xff]
        %v804 = vld [vmem:[#allocation2 + $0x18] sm:$0xff]
        %v805 = vld [vmem:[#allocation2 + $0x20] sm:$0xff]
        %v806 = vld [vmem:[#allocation2 + $0x28] sm:$0xff]
        %v807 = vld [vmem:[#allocation2 + $0x30] sm:$0xff]
        %v808 = vld [vmem:[#allocation2 + $0x38] sm:$0xff]
        %v809 = vld [vmem:[#allocation2 + $0x40] sm:$0xff]
        %v810 = vld [vmem:[#allocation2 + $0x48] sm:$0xff]
        %v811 = vld [vmem:[#allocation2 + $0x50] sm:$0xff]
        %v812 = vld [vmem:[#allocation2 + $0x58] sm:$0xff]
        %v813 = vld [vmem:[#allocation2 + $0x60] sm:$0xff]
        %v814 = vld [vmem:[#allocation2 + $0x68] sm:$0xff]
        %v815 = vld [vmem:[#allocation2 + $0x70] sm:$0xff]
        %v816 = vld [vmem:[#allocation2 + $0x78] sm:$0xff]
        %v817 = vld [vmem:[#allocation2 + $0x80] sm:$0xff]
        %v818 = vld [vmem:[#allocation2 + $0x88] sm:$0xff]
        %v819 = vld [vmem:[#allocation2 + $0x90] sm:$0xff]
        %v820 = vld [vmem:[#allocation2 + $0x98] sm:$0xff]
        %v821 = vld [vmem:[#allocation2 + $0xa0] sm:$0xff]
        %v822 = vld [vmem:[#allocation2 + $0xa8] sm:$0xff]
        %v823 = vld [vmem:[#allocation2 + $0xb0] sm:$0xff]
        %v824 = vld [vmem:[#allocation2 + $0xb8] sm:$0xff]
        %v825 = vld [vmem:[#allocation2 + $0xc0] sm:$0xff]
        %v826 = vld [vmem:[#allocation2 + $0xc8] sm:$0xff]
        %v827 = vld [vmem:[#allocation2 + $0xd0] sm:$0xff]
        %v828 = vld [vmem:[#allocation2 + $0xd8] sm:$0xff]
        %v829 = vld [vmem:[#allocation2 + $0xe0] sm:$0xff]
        %v830 = vld [vmem:[#allocation2 + $0xe8] sm:$0xff]
        %v831 = vld [vmem:[#allocation2 + $0xf0] sm:$0xff]
        %v832 = vld [vmem:[#allocation2 + $0xf8] sm:$0xff]
        %v833 = vld [vmem:[%s300] sm:$0x1]
        %v835 = vlaneseq
        %v836 = vshrl.u32 %v835, 7
        %v837 = vsub.s32 0, %v836
        %v838 = vrot.slane %v833, %v837
        %v840 = vadd.f32 %v801, %v838
        %v841 = vadd.f32 %v802, %v838
        %v842 = vadd.f32 %v803, %v838
        %v843 = vadd.f32 %v804, %v838
        %v844 = vadd.f32 %v805, %v838
        %v845 = vadd.f32 %v806, %v838
        %v846 = vadd.f32 %v807, %v838
        %v847 = vadd.f32 %v808, %v838
        %v848 = vadd.f32 %v809, %v838
        %v849 = vadd.f32 %v810, %v838
        %v850 = vadd.f32 %v811, %v838
        %v851 = vadd.f32 %v812, %v838
        %v852 = vadd.f32 %v813, %v838
        %v853 = vadd.f32 %v814, %v838
        %v854 = vadd.f32 %v815, %v838
        %v855 = vadd.f32 %v816, %v838
        %v856 = vadd.f32 %v817, %v838
        %v857 = vadd.f32 %v818, %v838
        %v858 = vadd.f32 %v819, %v838
        %v859 = vadd.f32 %v820, %v838
        %v860 = vadd.f32 %v821, %v838
        %v861 = vadd.f32 %v822, %v838
        %v862 = vadd.f32 %v823, %v838
        %v863 = vadd.f32 %v824, %v838
        %v864 = vadd.f32 %v825, %v838
        %v865 = vadd.f32 %v826, %v838
        %v866 = vadd.f32 %v827, %v838
        %v867 = vadd.f32 %v828, %v838
        %v868 = vadd.f32 %v829, %v838
        %v869 = vadd.f32 %v830, %v838
        %v870 = vadd.f32 %v831, %v838
        %v871 = vadd.f32 %v832, %v838
        %vm872 = vcmp.ge.f32.partialorder %v840, 0.0
        %vm873 = vcmp.ge.f32.partialorder %v841, 0.0
        %vm874 = vcmp.ge.f32.partialorder %v842, 0.0
        %vm875 = vcmp.ge.f32.partialorder %v843, 0.0
        %vm876 = vcmp.ge.f32.partialorder %v844, 0.0
        %vm877 = vcmp.ge.f32.partialorder %v845, 0.0
        %vm878 = vcmp.ge.f32.partialorder %v846, 0.0
        %vm879 = vcmp.ge.f32.partialorder %v847, 0.0
        %vm880 = vcmp.ge.f32.partialorder %v848, 0.0
        %vm881 = vcmp.ge.f32.partialorder %v849, 0.0
        %vm882 = vcmp.ge.f32.partialorder %v850, 0.0
        %vm883 = vcmp.ge.f32.partialorder %v851, 0.0
        %vm884 = vcmp.ge.f32.partialorder %v852, 0.0
        %vm885 = vcmp.ge.f32.partialorder %v853, 0.0
        %vm886 = vcmp.ge.f32.partialorder %v854, 0.0
        %vm887 = vcmp.ge.f32.partialorder %v855, 0.0
        %vm888 = vcmp.ge.f32.partialorder %v856, 0.0
        %vm889 = vcmp.ge.f32.partialorder %v857, 0.0
        %vm890 = vcmp.ge.f32.partialorder %v858, 0.0
        %vm891 = vcmp.ge.f32.partialorder %v859, 0.0
        %vm892 = vcmp.ge.f32.partialorder %v860, 0.0
        %vm893 = vcmp.ge.f32.partialorder %v861, 0.0
        %vm894 = vcmp.ge.f32.partialorder %v862, 0.0
        %vm895 = vcmp.ge.f32.partialorder %v863, 0.0
        %vm896 = vcmp.ge.f32.partialorder %v864, 0.0
        %vm897 = vcmp.ge.f32.partialorder %v865, 0.0
        %vm898 = vcmp.ge.f32.partialorder %v866, 0.0
        %vm899 = vcmp.ge.f32.partialorder %v867, 0.0
        %vm900 = vcmp.ge.f32.partialorder %v868, 0.0
        %vm901 = vcmp.ge.f32.partialorder %v869, 0.0
        %vm902 = vcmp.ge.f32.partialorder %v870, 0.0
        %vm903 = vcmp.ge.f32.partialorder %v871, 0.0
        %v904 = vmul.f32 %v840, 0.2
        %v905 = vmul.f32 %v841, 0.2
        %v906 = vmul.f32 %v842, 0.2
        %v907 = vmul.f32 %v843, 0.2
        %v908 = vmul.f32 %v844, 0.2
        %v909 = vmul.f32 %v845, 0.2
        %v910 = vmul.f32 %v846, 0.2
        %v911 = vmul.f32 %v847, 0.2
        %v912 = vmul.f32 %v848, 0.2
        %v913 = vmul.f32 %v849, 0.2
        %v914 = vmul.f32 %v850, 0.2
        %v915 = vmul.f32 %v851, 0.2
        %v916 = vmul.f32 %v852, 0.2
        %v917 = vmul.f32 %v853, 0.2
        %v918 = vmul.f32 %v854, 0.2
        %v919 = vmul.f32 %v855, 0.2
        %v920 = vmul.f32 %v856, 0.2
        %v921 = vmul.f32 %v857, 0.2
        %v922 = vmul.f32 %v858, 0.2
        %v923 = vmul.f32 %v859, 0.2
        %v924 = vmul.f32 %v860, 0.2
        %v925 = vmul.f32 %v861, 0.2
        %v926 = vmul.f32 %v862, 0.2
        %v927 = vmul.f32 %v863, 0.2
        %v928 = vmul.f32 %v864, 0.2
        %v929 = vmul.f32 %v865, 0.2
        %v930 = vmul.f32 %v866, 0.2
        %v931 = vmul.f32 %v867, 0.2
        %v932 = vmul.f32 %v868, 0.2
        %v933 = vmul.f32 %v869, 0.2
        %v934 = vmul.f32 %v870, 0.2
        %v935 = vmul.f32 %v871, 0.2
        %v936 = vsel %vm872, %v840, %v904
        %v937 = vsel %vm873, %v841, %v905
        %v938 = vsel %vm874, %v842, %v906
        %v939 = vsel %vm875, %v843, %v907
        %v940 = vsel %vm876, %v844, %v908
        %v941 = vsel %vm877, %v845, %v909
        %v942 = vsel %vm878, %v846, %v910
        %v943 = vsel %vm879, %v847, %v911
        %v944 = vsel %vm880, %v848, %v912
        %v945 = vsel %vm881, %v849, %v913
        %v946 = vsel %vm882, %v850, %v914
        %v947 = vsel %vm883, %v851, %v915
        %v948 = vsel %vm884, %v852, %v916
        %v949 = vsel %vm885, %v853, %v917
        %v950 = vsel %vm886, %v854, %v918
        %v951 = vsel %vm887, %v855, %v919
        %v952 = vsel %vm888, %v856, %v920
        %v953 = vsel %vm889, %v857, %v921
        %v954 = vsel %vm890, %v858, %v922
        %v955 = vsel %vm891, %v859, %v923
        %v956 = vsel %vm892, %v860, %v924
        %v957 = vsel %vm893, %v861, %v925
        %v958 = vsel %vm894, %v862, %v926
        %v959 = vsel %vm895, %v863, %v927
        %v960 = vsel %vm896, %v864, %v928
        %v961 = vsel %vm897, %v865, %v929
        %v962 = vsel %vm898, %v866, %v930
        %v963 = vsel %vm899, %v867, %v931
        %v964 = vsel %vm900, %v868, %v932
        %v965 = vsel %vm901, %v869, %v933
        %v966 = vsel %vm902, %v870, %v934
        %v967 = vsel %vm903, %v871, %v935
        %v968 = vld [vmem:[%s308] sm:$0xff]
        %v969 = vld [vmem:[%s308 + $0x8] sm:$0xff]
        %v970 = vld [vmem:[%s308 + $0x10] sm:$0xff]
        %v971 = vld [vmem:[%s308 + $0x18] sm:$0xff]
        %v972 = vld [vmem:[%s308 + $0x20] sm:$0xff]
        %v973 = vld [vmem:[%s308 + $0x28] sm:$0xff]
        %v974 = vld [vmem:[%s308 + $0x30] sm:$0xff]
        %v975 = vld [vmem:[%s308 + $0x38] sm:$0xff]
        %v976 = vld [vmem:[%s308 + $0x40] sm:$0xff]
        %v977 = vld [vmem:[%s308 + $0x48] sm:$0xff]
        %v978 = vld [vmem:[%s308 + $0x50] sm:$0xff]
        %v979 = vld [vmem:[%s308 + $0x58] sm:$0xff]
        %v980 = vld [vmem:[%s308 + $0x60] sm:$0xff]
        %v981 = vld [vmem:[%s308 + $0x68] sm:$0xff]
        %v982 = vld [vmem:[%s308 + $0x70] sm:$0xff]
        %v983 = vld [vmem:[%s308 + $0x78] sm:$0xff]
        %v984 = vld [vmem:[%s308 + $0x80] sm:$0xff]
        %v985 = vld [vmem:[%s308 + $0x88] sm:$0xff]
        %v986 = vld [vmem:[%s308 + $0x90] sm:$0xff]
        %v987 = vld [vmem:[%s308 + $0x98] sm:$0xff]
        %v988 = vld [vmem:[%s308 + $0xa0] sm:$0xff]
        %v989 = vld [vmem:[%s308 + $0xa8] sm:$0xff]
        %v990 = vld [vmem:[%s308 + $0xb0] sm:$0xff]
        %v991 = vld [vmem:[%s308 + $0xb8] sm:$0xff]
        %v992 = vld [vmem:[%s308 + $0xc0] sm:$0xff]
        %v993 = vld [vmem:[%s308 + $0xc8] sm:$0xff]
        %v994 = vld [vmem:[%s308 + $0xd0] sm:$0xff]
        %v995 = vld [vmem:[%s308 + $0xd8] sm:$0xff]
        %v996 = vld [vmem:[%s308 + $0xe0] sm:$0xff]
        %v997 = vld [vmem:[%s308 + $0xe8] sm:$0xff]
        %v998 = vld [vmem:[%s308 + $0xf0] sm:$0xff]
        %v999 = vld [vmem:[%s308 + $0xf8] sm:$0xff]
        %v1000 = vadd.f32 %v936, %v968
        %v1001 = vadd.f32 %v937, %v969
        %v1002 = vadd.f32 %v938, %v970
        %v1003 = vadd.f32 %v939, %v971
        %v1004 = vadd.f32 %v940, %v972
        %v1005 = vadd.f32 %v941, %v973
        %v1006 = vadd.f32 %v942, %v974
        %v1007 = vadd.f32 %v943, %v975
        %v1008 = vadd.f32 %v944, %v976
        %v1009 = vadd.f32 %v945, %v977
        %v1010 = vadd.f32 %v946, %v978
        %v1011 = vadd.f32 %v947, %v979
        %v1012 = vadd.f32 %v948, %v980
        %v1013 = vadd.f32 %v949, %v981
        %v1014 = vadd.f32 %v950, %v982
        %v1015 = vadd.f32 %v951, %v983
        %v1016 = vadd.f32 %v952, %v984
        %v1017 = vadd.f32 %v953, %v985
        %v1018 = vadd.f32 %v954, %v986
        %v1019 = vadd.f32 %v955, %v987
        %v1020 = vadd.f32 %v956, %v988
        %v1021 = vadd.f32 %v957, %v989
        %v1022 = vadd.f32 %v958, %v990
        %v1023 = vadd.f32 %v959, %v991
        %v1024 = vadd.f32 %v960, %v992
        %v1025 = vadd.f32 %v961, %v993
        %v1026 = vadd.f32 %v962, %v994
        %v1027 = vadd.f32 %v963, %v995
        %v1028 = vadd.f32 %v964, %v996
        %v1029 = vadd.f32 %v965, %v997
        %v1030 = vadd.f32 %v966, %v998
        %v1031 = vadd.f32 %v967, %v999
        %1032 = vst [vmem:[%s317] sm:$0xff] %v1000
        %1033 = vst [vmem:[%s317 + $0x8] sm:$0xff] %v1001
        %1034 = vst [vmem:[%s317 + $0x10] sm:$0xff] %v1002
        %1035 = vst [vmem:[%s317 + $0x18] sm:$0xff] %v1003
        %1036 = vst [vmem:[%s317 + $0x20] sm:$0xff] %v1004
        %1037 = vst [vmem:[%s317 + $0x28] sm:$0xff] %v1005
        %1038 = vst [vmem:[%s317 + $0x30] sm:$0xff] %v1006
        %1039 = vst [vmem:[%s317 + $0x38] sm:$0xff] %v1007
        %1040 = vst [vmem:[%s317 + $0x40] sm:$0xff] %v1008
        %1041 = vst [vmem:[%s317 + $0x48] sm:$0xff] %v1009
        %1042 = vst [vmem:[%s317 + $0x50] sm:$0xff] %v1010
        %1043 = vst [vmem:[%s317 + $0x58] sm:$0xff] %v1011
        %1044 = vst [vmem:[%s317 + $0x60] sm:$0xff] %v1012
        %1045 = vst [vmem:[%s317 + $0x68] sm:$0xff] %v1013
        %1046 = vst [vmem:[%s317 + $0x70] sm:$0xff] %v1014
        %1047 = vst [vmem:[%s317 + $0x78] sm:$0xff] %v1015
        %1048 = vst [vmem:[%s317 + $0x80] sm:$0xff] %v1016
        %1049 = vst [vmem:[%s317 + $0x88] sm:$0xff] %v1017
        %1050 = vst [vmem:[%s317 + $0x90] sm:$0xff] %v1018
        %1051 = vst [vmem:[%s317 + $0x98] sm:$0xff] %v1019
        %1052 = vst [vmem:[%s317 + $0xa0] sm:$0xff] %v1020
        %1053 = vst [vmem:[%s317 + $0xa8] sm:$0xff] %v1021
        %1054 = vst [vmem:[%s317 + $0xb0] sm:$0xff] %v1022
        %1055 = vst [vmem:[%s317 + $0xb8] sm:$0xff] %v1023
        %1056 = vst [vmem:[%s317 + $0xc0] sm:$0xff] %v1024
        %1057 = vst [vmem:[%s317 + $0xc8] sm:$0xff] %v1025
        %1058 = vst [vmem:[%s317 + $0xd0] sm:$0xff] %v1026
        %1059 = vst [vmem:[%s317 + $0xd8] sm:$0xff] %v1027
        %1060 = vst [vmem:[%s317 + $0xe0] sm:$0xff] %v1028
        %1061 = vst [vmem:[%s317 + $0xe8] sm:$0xff] %v1029
        %1062 = vst [vmem:[%s317 + $0xf0] sm:$0xff] %v1030
        %1063 = vst [vmem:[%s317 + $0xf8] sm:$0xff] %v1031
      $region44: #{fgmm_forward.17} parent=35 // pred_fallthru
        _
      %s1064 = smul.u32 32, %s20
      %p1065 = scmp.lt.s32.totalorder %s1064, 63
      %s1066 = scalar_select %p1065, %s1064, 63
      %p1067 = scmp.lt.s32.totalorder %s21, 0
      %s1068 = scalar_select %p1067, %s21, 0
      %s1069 = sadd.s32 %s1068, %s1066
      %s1070 = smul.addr %s1069, 8
      %s1071 = scalar_lea.vmem %s4, %s1070
      // Predicated region
      $region45: #{fgmm_forward.17} parent=35 // pred_check
        %p1072 = pneg %p164
      $region46: #{fgmm_forward.17} parent=35 // pred_check_branch
        %1074 = sbr.rel (%p1072) target = $region48
      $region47: #{fgmm_forward.17} parent=35 // pred_region
        %s1075 = smul.u32 32, %s20
      $region48: #{fgmm_forward.17} parent=35 // pred_fallthru
        _
    $region36: #{fgmm_forward.17} parent=5 // pred_fallthru
      _
    %p1076 = scmp.le.s32.totalorder 2, %s10
    // Predicated region
    $region49: #{fgmm_forward.17} parent=5 // pred_check
      %p1077 = pneg %p1076
    $region50: #{fgmm_forward.17} parent=5 // pred_check_branch
      %1079 = sbr.rel (%p1077) target = $region52
    $region51: #{fgmm_forward.17} parent=5 // pred_region
      %s1080 = ssub.s32 %s10, 2
      // Predicated region
      $region53: #{fgmm_forward.17} parent=51 // pred_check
        %p1081 = pneg %p170
      $region54: #{fgmm_forward.17} parent=51 // pred_check_branch
        %1083 = sbr.rel (%p1081) target = $region56
      $region55: #{fgmm_forward.17} parent=51 // pred_region
        %s1084 = smul.u32 32, %s23
        %p1085 = scmp.lt.s32.totalorder %s1084, 63
        %s1086 = scalar_select %p1085, %s1084, 63
        %p1087 = scmp.lt.s32.totalorder %s24, 0
        %s1088 = scalar_select %p1087, %s24, 0
        %s1089 = sadd.s32 %s1088, %s1086
        %s1090 = smul.addr %s1089, 8
        %s1091 = scalar_lea.vmem %s4, %s1090
      $region56: #{fgmm_forward.17} parent=51 // pred_fallthru
        _
    $region52: #{fgmm_forward.17} parent=5 // pred_fallthru
      _
  $region6: #{fgmm_forward.17} parent=0 // loop_footer
    %s14 = sadd.s32 1, %s10
  $region7: #{fgmm_forward.17} parent=0 // loop_footer_branch
    %9 = sbr.rel target = $region3
  $region8: #{fgmm_forward.17} parent=0 // loop_exit
    _

// kernel: fgmm_forward.18
$region0: #{fgmm_forward.18}
  #allocation0 [shape = 'u32[]', space=smem, size = 0x4, offset = 0x4, fixed_abs, tag = 'smem constant byte address 0x4 - core index']
  #allocation1 [shape = 'u32[144,128]{1,0:T(1,128)}', space=vmem, size = 0x12000, scoped, tag = 'internal scratch']
  #allocation2 [shape = 'f32[144,128]{1,0:T(8,128)}', space=vmem, size = 0x12000, scoped, tag = 'scratch operand']
  %s0 = inlined_call_operand.vmem [shape: bf16[288,8], index: 0, kind: input, shape index: {}]
  %s1 = inlined_call_operand.vmem [shape: bf16[8,128], index: 1, kind: input, shape index: {}]
  %s2 = inlined_call_operand.vmem [shape: f32[1,128], index: 2, kind: input, shape index: {}]
  %s3 = inlined_call_operand.vmem [shape: f32[288,128], index: 3, kind: output, shape index: {}]
  %s4 = sld [smem:[#allocation0]]
  $region53: #{fgmm_forward.18} parent=0
    _
  %s6 = ssub.s32 1, %s4
  %s7 = scalar_select 0, %s6, %s4
  loop: start=0, step=1, limit=4
  $region2: #{fgmm_forward.18} parent=0 // loop_pre_header
    _
  $region3: #{fgmm_forward.18} parent=0 // loop_header
    %s9 = sphi 0, %s13
    %p10 = scmp.ge.s32.totalorder %s9, 4
    %s16 = sphi 0, %s35
    %s17 = sphi 0, %s31
    %s18 = sphi 0, %s27
    %s19 = sphi 0, %s16
    %s20 = sphi 0, %s17
    %s21 = sphi 0, %s18
    %s22 = sphi 0, %s19
    %s23 = sphi 0, %s20
    %s24 = sphi 0, %s21
    %s40 = sphi 0, %s42
    %s43 = sphi 0, %s40
    %s44 = sphi 0, %s43
    %s60 = sphi 0, %s44
    %s68 = sphi 0, %s70
    %s71 = sphi 0, %s68
    %s72 = sphi 0, %s71
    %s88 = sphi 0, %s72
    %s94 = sphi 0, %s96
    %s97 = sphi 0, %s94
    %s98 = sphi 0, %s97
    %s114 = sphi 0, %s98
    %s122 = sphi 0, %s124
    %s125 = sphi 0, %s122
    %s126 = sphi 0, %s125
    %s142 = sphi 0, %s126
  $region4: #{fgmm_forward.18} parent=0 // loop_header_branch
    %12 = sbr.rel (%p10) target = $region8
  $region5: #{fgmm_forward.18} parent=0 // loop_body
    %s14 = ssub.s32 %s9, 1
    %s15 = ssub.s32 %s9, 2
    %s25 = sadd.s32 1, %s18
    %p26 = scmp.ge.s32.totalorder %s25, 1
    %s27 = scalar_select %p26, 0, %s25
    %s28 = sadd.s32 1, %s17
    %s29 = scalar_select %p26, %s28, %s17
    %p30 = scmp.ge.s32.totalorder %s29, 1
    %s31 = scalar_select %p30, 0, %s29
    %s32 = sadd.s32 1, %s16
    %s33 = scalar_select %p30, %s32, %s16
    %p34 = scmp.ge.s32.totalorder %s33, 2
    %s35 = scalar_select %p34, 0, %s33
    %s36 = ssub.s32 %s16, %s35
    %s37 = ssub.s32 %s18, %s27
    %s38 = sor.u32 %s36, %s37
    %p39 = scmp.eq.s32.totalorder %s38, 0
    %s41 = sadd.s32 %s40, 1
    %s42 = scalar_select %p39, %s40, %s41
    %p45 = pneg %p39
    %p46 = scmp.eq.s32.totalorder %s9, 1
    %p47 = por %p45, %p46
    %p48 = scmp.ne.s32.totalorder %s40, %s43
    %p49 = scmp.eq.s32.totalorder %s9, 0
    %p50 = por %p48, %p49
    %p51 = scmp.ne.s32.totalorder %s40, %s43
    %p52 = scmp.eq.s32.totalorder %s14, 1
    %p53 = por %p51, %p52
    %p54 = scmp.ne.s32.totalorder %s43, %s44
    %p55 = scmp.eq.s32.totalorder %s14, 0
    %p56 = por %p54, %p55
    %p57 = scmp.ne.s32.totalorder %s43, %s44
    %p58 = scmp.eq.s32.totalorder %s15, 1
    %p59 = por %p57, %p58
    %p61 = scmp.ne.s32.totalorder %s44, %s60
    %p62 = scmp.eq.s32.totalorder %s15, 0
    %p63 = por %p61, %p62
    %s64 = ssub.s32 %s18, %s27
    %s65 = ssub.s32 %s17, %s31
    %s66 = sor.u32 %s64, %s65
    %p67 = scmp.eq.s32.totalorder %s66, 0
    %s69 = sadd.s32 %s68, 1
    %s70 = scalar_select %p67, %s68, %s69
    %p73 = pneg %p67
    %p74 = scmp.eq.s32.totalorder %s9, 1
    %p75 = por %p73, %p74
    %p76 = scmp.ne.s32.totalorder %s68, %s71
    %p77 = scmp.eq.s32.totalorder %s9, 0
    %p78 = por %p76, %p77
    %p79 = scmp.ne.s32.totalorder %s68, %s71
    %p80 = scmp.eq.s32.totalorder %s14, 1
    %p81 = por %p79, %p80
    %p82 = scmp.ne.s32.totalorder %s71, %s72
    %p83 = scmp.eq.s32.totalorder %s14, 0
    %p84 = por %p82, %p83
    %p85 = scmp.ne.s32.totalorder %s71, %s72
    %p86 = scmp.eq.s32.totalorder %s15, 1
    %p87 = por %p85, %p86
    %p89 = scmp.ne.s32.totalorder %s72, %s88
    %p90 = scmp.eq.s32.totalorder %s15, 0
    %p91 = por %p89, %p90
    %s92 = ssub.s32 %s17, %s31
    %p93 = scmp.eq.s32.totalorder %s92, 0
    %s95 = sadd.s32 %s94, 1
    %s96 = scalar_select %p93, %s94, %s95
    %p99 = pneg %p93
    %p100 = scmp.eq.s32.totalorder %s9, 1
    %p101 = por %p99, %p100
    %p102 = scmp.ne.s32.totalorder %s94, %s97
    %p103 = scmp.eq.s32.totalorder %s9, 0
    %p104 = por %p102, %p103
    %p105 = scmp.ne.s32.totalorder %s94, %s97
    %p106 = scmp.eq.s32.totalorder %s14, 1
    %p107 = por %p105, %p106
    %p108 = scmp.ne.s32.totalorder %s97, %s98
    %p109 = scmp.eq.s32.totalorder %s14, 0
    %p110 = por %p108, %p109
    %p111 = scmp.ne.s32.totalorder %s97, %s98
    %p112 = scmp.eq.s32.totalorder %s15, 1
    %p113 = por %p111, %p112
    %p115 = scmp.ne.s32.totalorder %s98, %s114
    %p116 = scmp.eq.s32.totalorder %s15, 0
    %p117 = por %p115, %p116
    %s118 = ssub.s32 %s16, %s35
    %s119 = ssub.s32 %s17, %s31
    %s120 = sor.u32 %s118, %s119
    %p121 = scmp.eq.s32.totalorder %s120, 0
    %s123 = sadd.s32 %s122, 1
    %s124 = scalar_select %p121, %s122, %s123
    %p127 = pneg %p121
    %p128 = scmp.eq.s32.totalorder %s9, 1
    %p129 = por %p127, %p128
    %p130 = scmp.ne.s32.totalorder %s122, %s125
    %p131 = scmp.eq.s32.totalorder %s9, 0
    %p132 = por %p130, %p131
    %p133 = scmp.ne.s32.totalorder %s122, %s125
    %p134 = scmp.eq.s32.totalorder %s14, 1
    %p135 = por %p133, %p134
    %p136 = scmp.ne.s32.totalorder %s125, %s126
    %p137 = scmp.eq.s32.totalorder %s14, 0
    %p138 = por %p136, %p137
    %p139 = scmp.ne.s32.totalorder %s125, %s126
    %p140 = scmp.eq.s32.totalorder %s15, 1
    %p141 = por %p139, %p140
    %p143 = scmp.ne.s32.totalorder %s126, %s142
    %p144 = scmp.eq.s32.totalorder %s15, 0
    %p145 = por %p143, %p144
    %p146 = scmp.le.s32.totalorder 1, %s9
    %p147 = scmp.lt.s32.totalorder %s9, 3
    %p148 = pnand %p146, %p147
    %p149 = pneg %p148
    // Predicated region
    $region9: #{fgmm_forward.18} parent=5 // pred_check
      _
    $region10: #{fgmm_forward.18} parent=5 // pred_check_branch
      %151 = sbr.rel (%p148) target = $region12
    $region11: #{fgmm_forward.18} parent=5 // pred_region
      %s152 = ssub.s32 %s9, 1
      // Predicated region
      $region13: #{fgmm_forward.18} parent=11 // pred_check
        %p153 = pneg %p84
      $region14: #{fgmm_forward.18} parent=11 // pred_check_branch
        %155 = sbr.rel (%p153) target = $region16
      $region15: #{fgmm_forward.18} parent=11 // pred_region
        %p156 = scmp.lt.s32.totalorder %s21, 0
        %s157 = scalar_select %p156, %s21, 0
        %p158 = scmp.lt.s32.totalorder %s20, 0
        %s159 = scalar_select %p158, %s20, 0
        %s160 = sadd.s32 %s159, %s157
        %s161 = smul.addr %s160, 4
        %s162 = scalar_lea.vmem %s1, %s161
      $region16: #{fgmm_forward.18} parent=11 // pred_fallthru
        _
      // Predicated region
      $region17: #{fgmm_forward.18} parent=11 // pred_check
        %p163 = pneg %p110
      $region18: #{fgmm_forward.18} parent=11 // pred_check_branch
        %165 = sbr.rel (%p163) target = $region20
      $region19: #{fgmm_forward.18} parent=11 // pred_region
        %p166 = scmp.lt.s32.totalorder %s20, 0
        %s167 = scalar_select %p166, %s20, 0
        %s168 = scalar_lea.vmem %s2, %s167
      $region20: #{fgmm_forward.18} parent=11 // pred_fallthru
        _
    $region12: #{fgmm_forward.18} parent=5 // pred_fallthru
      _
    %p169 = scmp.lt.s32.totalorder %s9, 2
    // Predicated region
    $region21: #{fgmm_forward.18} parent=5 // pred_check
      %p170 = pneg %p169
    $region22: #{fgmm_forward.18} parent=5 // pred_check_branch
      %172 = sbr.rel (%p170) target = $region24
    $region23: #{fgmm_forward.18} parent=5 // pred_region
      // Predicated region
      $region25: #{fgmm_forward.18} parent=23 // pred_check
        %p173 = pneg %p50
      $region26: #{fgmm_forward.18} parent=23 // pred_check_branch
        %175 = sbr.rel (%p173) target = $region28
      $region27: #{fgmm_forward.18} parent=23 // pred_region
        %s176 = smul.u32 18, %s16
        %p177 = scmp.lt.s32.totalorder %s176, 35
        %s178 = scalar_select %p177, %s176, 35
        %p179 = scmp.lt.s32.totalorder %s18, 0
        %s180 = scalar_select %p179, %s18, 0
        %s181 = sadd.s32 %s180, %s178
        %s182 = smul.addr %s181, 4
        %s183 = scalar_lea.vmem %s0, %s182
        %s184 = smul.u32 18, %s16
      $region28: #{fgmm_forward.18} parent=23 // pred_fallthru
        _
    $region24: #{fgmm_forward.18} parent=5 // pred_fallthru
      _
    %p185 = scmp.le.s32.totalorder 1, %s9
    %p186 = scmp.lt.s32.totalorder %s9, 3
    %p187 = pnand %p185, %p186
    %p188 = pneg %p187
    // Predicated region
    $region29: #{fgmm_forward.18} parent=5 // pred_check
      _
    $region30: #{fgmm_forward.18} parent=5 // pred_check_branch
      %190 = sbr.rel (%p187) target = $region32
    $region31: #{fgmm_forward.18} parent=5 // pred_region
      %s191 = ssub.s32 %s9, 1
      %s192 = smul.u32 18, %s19
      %p193 = scmp.lt.s32.totalorder %s192, 35
      %s194 = scalar_select %p193, %s192, 35
      %p195 = scmp.lt.s32.totalorder %s21, 0
      %s196 = scalar_select %p195, %s21, 0
      %s197 = sadd.s32 %s196, %s194
      %s198 = smul.addr %s197, 4
      %s199 = scalar_lea.vmem %s0, %s198
      %p200 = pneg %p56
      %p201 = pneg %p53
      %p202 = scmp.lt.s32.totalorder %s21, 0
      %s203 = scalar_select %p202, %s21, 0
      %p204 = scmp.lt.s32.totalorder %s20, 0
      %s205 = scalar_select %p204, %s20, 0
      %s206 = sadd.s32 %s205, %s203
      %s207 = smul.addr %s206, 4
      %s208 = scalar_lea.vmem %s1, %s207
      %p209 = pneg %p84
      %p210 = pneg %p81
      %p211 = scmp.lt.s32.totalorder %s20, 0
      %s212 = scalar_select %p211, %s20, 0
      %s213 = scalar_lea.vmem %s2, %s212
      %p214 = pneg %p110
      %p215 = pneg %p107
      %p216 = pneg %p138
      %p217 = pneg %p135
      %s218 = smul.u32 18, %s19
      %p219 = scmp.lt.s32.totalorder %s218, 35
      %s220 = scalar_select %p219, %s218, 35
      %p221 = scmp.lt.s32.totalorder %s20, 0
      %s222 = scalar_select %p221, %s20, 0
      %s223 = sadd.s32 %s222, %s220
      %s224 = smul.addr %s223, 8
      %s225 = scalar_lea.vmem %s3, %s224
      %s226 = smul.u32 18, %s19
      %p227 = scmp.lt.s32.totalorder %s226, 35
      %s228 = scalar_select %p227, %s226, 35
      %p229 = scmp.lt.s32.totalorder %s21, 0
      %s230 = scalar_select %p229, %s21, 0
      %s231 = sadd.s32 %s230, %s228
      %s232 = smul.addr %s231, 4
      %s233 = scalar_lea.vmem %s0, %s232
      %s234 = smul.u32 18, %s19
      %p235 = scmp.lt.s32.totalorder %s21, 0
      %s236 = scalar_select %p235, %s21, 0
      %p237 = scmp.lt.s32.totalorder %s20, 0
      %s238 = scalar_select %p237, %s20, 0
      %s239 = sadd.s32 %s238, %s236
      %s240 = smul.addr %s239, 4
      %s241 = scalar_lea.vmem %s1, %s240
      %p242 = scmp.lt.s32.totalorder %s20, 0
      %s243 = scalar_select %p242, %s20, 0
      %s244 = scalar_lea.vmem %s2, %s243
      %s245 = smul.u32 18, %s19
      %p246 = scmp.lt.s32.totalorder %s245, 35
      %s247 = scalar_select %p246, %s245, 35
      %p248 = scmp.lt.s32.totalorder %s20, 0
      %s249 = scalar_select %p248, %s20, 0
      %s250 = sadd.s32 %s249, %s247
      %s251 = smul.addr %s250, 8
      %s252 = scalar_lea.vmem %s3, %s251
      %s253 = smul.u32 18, %s19
      %p255 = scmp.eq.s32.totalorder %s21, 0
      // Predicated region
      $region33: #{fgmm_forward.18} parent=31 // pred_check
        %p256 = pneg %p255
      $region34: #{fgmm_forward.18} parent=31 // pred_check_branch
        %258 = sbr.rel (%p256) target = $region36
      $region35: #{fgmm_forward.18} parent=31 // pred_region
        %259 = vst [vmem:[#allocation2] sm:$0xff] 0.0
        %260 = vst [vmem:[#allocation2 + $0x8] sm:$0xff] 0.0
        %261 = vst [vmem:[#allocation2 + $0x10] sm:$0xff] 0.0
        %262 = vst [vmem:[#allocation2 + $0x18] sm:$0xff] 0.0
        %263 = vst [vmem:[#allocation2 + $0x20] sm:$0xff] 0.0
        %264 = vst [vmem:[#allocation2 + $0x28] sm:$0xff] 0.0
        %265 = vst [vmem:[#allocation2 + $0x30] sm:$0xff] 0.0
        %266 = vst [vmem:[#allocation2 + $0x38] sm:$0xff] 0.0
        %267 = vst [vmem:[#allocation2 + $0x40] sm:$0xff] 0.0
        %268 = vst [vmem:[#allocation2 + $0x48] sm:$0xff] 0.0
        %269 = vst [vmem:[#allocation2 + $0x50] sm:$0xff] 0.0
        %270 = vst [vmem:[#allocation2 + $0x58] sm:$0xff] 0.0
        %271 = vst [vmem:[#allocation2 + $0x60] sm:$0xff] 0.0
        %272 = vst [vmem:[#allocation2 + $0x68] sm:$0xff] 0.0
        %273 = vst [vmem:[#allocation2 + $0x70] sm:$0xff] 0.0
        %274 = vst [vmem:[#allocation2 + $0x78] sm:$0xff] 0.0
        %275 = vst [vmem:[#allocation2 + $0x80] sm:$0xff] 0.0
        %276 = vst [vmem:[#allocation2 + $0x88] sm:$0xff] 0.0
      $region36: #{fgmm_forward.18} parent=31 // pred_fallthru
        _
      %v277 = vld [vmem:[#allocation2] sm:$0xff]
      %v278 = vld [vmem:[#allocation2 + $0x8] sm:$0xff]
      %v279 = vld [vmem:[#allocation2 + $0x10] sm:$0xff]
      %v280 = vld [vmem:[#allocation2 + $0x18] sm:$0xff]
      %v281 = vld [vmem:[#allocation2 + $0x20] sm:$0xff]
      %v282 = vld [vmem:[#allocation2 + $0x28] sm:$0xff]
      %v283 = vld [vmem:[#allocation2 + $0x30] sm:$0xff]
      %v284 = vld [vmem:[#allocation2 + $0x38] sm:$0xff]
      %v285 = vld [vmem:[#allocation2 + $0x40] sm:$0xff]
      %v286 = vld [vmem:[#allocation2 + $0x48] sm:$0xff]
      %v287 = vld [vmem:[#allocation2 + $0x50] sm:$0xff]
      %v288 = vld [vmem:[#allocation2 + $0x58] sm:$0xff]
      %v289 = vld [vmem:[#allocation2 + $0x60] sm:$0xff]
      %v290 = vld [vmem:[#allocation2 + $0x68] sm:$0xff]
      %v291 = vld [vmem:[#allocation2 + $0x70] sm:$0xff]
      %v292 = vld [vmem:[#allocation2 + $0x78] sm:$0xff]
      %v293 = vld [vmem:[#allocation2 + $0x80] sm:$0xff]
      %v294 = vld [vmem:[#allocation2 + $0x88] sm:$0xff]
      %v295 = vld [vmem:[%s233] sm:$0xf]
      %v296 = vld [vmem:[%s233 + $0x4] sm:$0xf]
      %v297 = vld [vmem:[%s233 + $0x8] sm:$0xf]
      %v298 = vld [vmem:[%s233 + $0xc] sm:$0xf]
      %v299 = vld [vmem:[%s233 + $0x10] sm:$0xf]
      %v300 = vld [vmem:[%s233 + $0x14] sm:$0xf]
      %v301 = vld [vmem:[%s233 + $0x18] sm:$0xf]
      %v302 = vld [vmem:[%s233 + $0x1c] sm:$0xf]
      %v303 = vld [vmem:[%s233 + $0x20] sm:$0xf]
      %v304 = vld [vmem:[%s233 + $0x24] sm:$0xf]
      %v305 = vld [vmem:[%s233 + $0x28] sm:$0xf]
      %v306 = vld [vmem:[%s233 + $0x2c] sm:$0xf]
      %v307 = vld [vmem:[%s233 + $0x30] sm:$0xf]
      %v308 = vld [vmem:[%s233 + $0x34] sm:$0xf]
      %v309 = vld [vmem:[%s233 + $0x38] sm:$0xf]
      %v310 = vld [vmem:[%s233 + $0x3c] sm:$0xf]
      %v311 = vld [vmem:[%s233 + $0x40] sm:$0xf]
      %v312 = vld [vmem:[%s233 + $0x44] sm:$0xf]
      %v313 = vld [vmem:[%s241] sm:$0xf]
      %v332 = vunpack.c.l.b16 %v295
      %v333 = vunpack.c.l.b16 %v296
      %v334 = vunpack.c.l.b16 %v297
      %v335 = vunpack.c.l.b16 %v298
      %v336 = vunpack.c.l.b16 %v299
      %v337 = vunpack.c.l.b16 %v300
      %v338 = vunpack.c.l.b16 %v301
      %v339 = vunpack.c.l.b16 %v302
      %v340 = vunpack.c.l.b16 %v303
      %v341 = vunpack.c.l.b16 %v304
      %v342 = vunpack.c.l.b16 %v305
      %v343 = vunpack.c.l.b16 %v306
      %v344 = vunpack.c.l.b16 %v307
      %v345 = vunpack.c.l.b16 %v308
      %v346 = vunpack.c.l.b16 %v309
      %v347 = vunpack.c.l.b16 %v310
      %v348 = vunpack.c.l.b16 %v311
      %v349 = vunpack.c.l.b16 %v312
      %v350 = vpack.c.b16 %v333, %v332
      %v351 = vpack.c.b16 %v335, %v334
      %v352 = vpack.c.b16 %v337, %v336
      %v353 = vpack.c.b16 %v339, %v338
      %v354 = vpack.c.b16 %v341, %v340
      %v355 = vpack.c.b16 %v343, %v342
      %v356 = vpack.c.b16 %v345, %v344
      %v357 = vpack.c.b16 %v347, %v346
      %v358 = vpack.c.b16 %v349, %v348
      %vm359 = vcmask 64512
      %v361 = vsel %vm359, %v350, 0
      %v364 = vsel %vm359, %v351, 0
      %v367 = vsel %vm359, %v352, 0
      %v370 = vsel %vm359, %v353, 0
      %v373 = vsel %vm359, %v354, 0
      %v376 = vsel %vm359, %v355, 0
      %v379 = vsel %vm359, %v356, 0
      %v382 = vsel %vm359, %v357, 0
      %v385 = vsel %vm359, %v358, 0
      %vm387 = vcmask 1043456
      %v389 = vsel %vm387, %v313, 0
      %391 = vmatprep.subr.bf16.mxu0 0
      %392 = vmatpush1.bf16.msra.mxu0 %v389
      %393 = vmatprep.subr.bf16.mxu0 0
      %394 = vmatpush1.bf16.msra.mxu0 0
      %395 = vmatprep.subr.bf16.mxu0 0
      %396 = vmatpush1.bf16.msra.mxu0 0
      %397 = vmatprep.subr.bf16.mxu0 0
      %398 = vmatpush1.bf16.msra.mxu0 0
      %399 = vmatprep.subr.bf16.mxu0 0
      %400 = vmatpush1.bf16.msra.mxu0 0
      %401 = vmatprep.subr.bf16.mxu0 0
      %402 = vmatpush1.bf16.msra.mxu0 0
      %403 = vmatprep.subr.bf16.mxu0 0
      %404 = vmatpush1.bf16.msra.mxu0 0
      %405 = vmatprep.subr.bf16.mxu0 0
      %406 = vmatpush1.bf16.msra.mxu0 0
      %407 = vmatprep.subr.bf16.mxu0 0
      %408 = vmatpush1.bf16.msra.mxu0 0
      %409 = vmatprep.subr.bf16.mxu0 0
      %410 = vmatpush1.bf16.msra.mxu0 0
      %411 = vmatprep.subr.bf16.mxu0 0
      %412 = vmatpush1.bf16.msra.mxu0 0
      %413 = vmatprep.subr.bf16.mxu0 0
      %414 = vmatpush1.bf16.msra.mxu0 0
      %415 = vmatprep.subr.bf16.mxu0 0
      %416 = vmatpush1.bf16.msra.mxu0 0
      %417 = vmatprep.subr.bf16.mxu0 0
      %418 = vmatpush1.bf16.msra.mxu0 0
      %419 = vmatprep.subr.bf16.mxu0 0
      %420 = vmatpush1.bf16.msra.mxu0 0
      %421 = vmatprep.subr.bf16.mxu0 0
      %422 = vmatpush1.bf16.msra.mxu0 0
      %423 = vmatprep.mubr.bf16.mxu0 0
      %424 = vmatmul.mubr.bf16.gmra.mrb[0].mxu0 %v361
      %v425 = vpop.f32.mrb[0].mxu0
      %v426 = vadd.f32 0.0, %v425
      %v427 = vpop.f32.mrb[0].mxu0
      %v428 = vpop.f32.mrb[0].mxu0
      %v429 = vadd.f32 0.0, %v428
      %v430 = vpop.f32.mrb[0].mxu0
      %431 = vmatprep.mubr.bf16.mxu0 0
      %432 = vmatmul.mubr.bf16.gmra.mrb[0].mxu0 %v364
      %v433 = vpop.f32.mrb[0].mxu0
      %v434 = vadd.f32 0.0, %v433
      %v435 = vpop.f32.mrb[0].mxu0
      %v436 = vpop.f32.mrb[0].mxu0
      %v437 = vadd.f32 0.0, %v436
      %v438 = vpop.f32.mrb[0].mxu0
      %439 = vmatprep.mubr.bf16.mxu0 0
      %440 = vmatmul.mubr.bf16.gmra.mrb[0].mxu0 %v367
      %v441 = vpop.f32.mrb[0].mxu0
      %v442 = vadd.f32 0.0, %v441
      %v443 = vpop.f32.mrb[0].mxu0
      %v444 = vpop.f32.mrb[0].mxu0
      %v445 = vadd.f32 0.0, %v444
      %v446 = vpop.f32.mrb[0].mxu0
      %447 = vmatprep.mubr.bf16.mxu0 0
      %448 = vmatmul.mubr.bf16.gmra.mrb[0].mxu0 %v370
      %v449 = vpop.f32.mrb[0].mxu0
      %v450 = vadd.f32 0.0, %v449
      %v451 = vpop.f32.mrb[0].mxu0
      %v452 = vpop.f32.mrb[0].mxu0
      %v453 = vadd.f32 0.0, %v452
      %v454 = vpop.f32.mrb[0].mxu0
      %455 = vmatprep.mubr.bf16.mxu0 0
      %456 = vmatmul.mubr.bf16.gmra.mrb[0].mxu0 %v373
      %v457 = vpop.f32.mrb[0].mxu0
      %v458 = vadd.f32 0.0, %v457
      %v459 = vpop.f32.mrb[0].mxu0
      %v460 = vpop.f32.mrb[0].mxu0
      %v461 = vadd.f32 0.0, %v460
      %v462 = vpop.f32.mrb[0].mxu0
      %463 = vmatprep.mubr.bf16.mxu0 0
      %464 = vmatmul.mubr.bf16.gmra.mrb[0].mxu0 %v376
      %v465 = vpop.f32.mrb[0].mxu0
      %v466 = vadd.f32 0.0, %v465
      %v467 = vpop.f32.mrb[0].mxu0
      %v468 = vpop.f32.mrb[0].mxu0
      %v469 = vadd.f32 0.0, %v468
      %v470 = vpop.f32.mrb[0].mxu0
      %471 = vmatprep.mubr.bf16.mxu0 0
      %472 = vmatmul.mubr.bf16.gmra.mrb[0].mxu0 %v379
      %v473 = vpop.f32.mrb[0].mxu0
      %v474 = vadd.f32 0.0, %v473
      %v475 = vpop.f32.mrb[0].mxu0
      %v476 = vpop.f32.mrb[0].mxu0
      %v477 = vadd.f32 0.0, %v476
      %v478 = vpop.f32.mrb[0].mxu0
      %479 = vmatprep.mubr.bf16.mxu0 0
      %480 = vmatmul.mubr.bf16.gmra.mrb[0].mxu0 %v382
      %v481 = vpop.f32.mrb[0].mxu0
      %v482 = vadd.f32 0.0, %v481
      %v483 = vpop.f32.mrb[0].mxu0
      %v484 = vpop.f32.mrb[0].mxu0
      %v485 = vadd.f32 0.0, %v484
      %v486 = vpop.f32.mrb[0].mxu0
      %487 = vmatprep.mubr.bf16.mxu0 0
      %488 = vmatmul.mubr.bf16.gmra.mrb[0].mxu0 %v385
      %v489 = vpop.f32.mrb[0].mxu0
      %v490 = vadd.f32 0.0, %v489
      %v491 = vpop.f32.mrb[0].mxu0
      %v492 = vpop.f32.mrb[0].mxu0
      %v493 = vadd.f32 0.0, %v492
      %v494 = vpop.f32.mrb[0].mxu0
      %495 = vdwg.mxu0
      %v496 = vadd.f32 %v277, %v426
      %v497 = vadd.f32 %v278, %v429
      %v498 = vadd.f32 %v279, %v434
      %v499 = vadd.f32 %v280, %v437
      %v500 = vadd.f32 %v281, %v442
      %v501 = vadd.f32 %v282, %v445
      %v502 = vadd.f32 %v283, %v450
      %v503 = vadd.f32 %v284, %v453
      %v504 = vadd.f32 %v285, %v458
      %v505 = vadd.f32 %v286, %v461
      %v506 = vadd.f32 %v287, %v466
      %v507 = vadd.f32 %v288, %v469
      %v508 = vadd.f32 %v289, %v474
      %v509 = vadd.f32 %v290, %v477
      %v510 = vadd.f32 %v291, %v482
      %v511 = vadd.f32 %v292, %v485
      %v512 = vadd.f32 %v293, %v490
      %v513 = vadd.f32 %v294, %v493
      %514 = vst [vmem:[#allocation2] sm:$0xff] %v496
      %515 = vst [vmem:[#allocation2 + $0x8] sm:$0xff] %v497
      %516 = vst [vmem:[#allocation2 + $0x10] sm:$0xff] %v498
      %517 = vst [vmem:[#allocation2 + $0x18] sm:$0xff] %v499
      %518 = vst [vmem:[#allocation2 + $0x20] sm:$0xff] %v500
      %519 = vst [vmem:[#allocation2 + $0x28] sm:$0xff] %v501
      %520 = vst [vmem:[#allocation2 + $0x30] sm:$0xff] %v502
      %521 = vst [vmem:[#allocation2 + $0x38] sm:$0xff] %v503
      %522 = vst [vmem:[#allocation2 + $0x40] sm:$0xff] %v504
      %523 = vst [vmem:[#allocation2 + $0x48] sm:$0xff] %v505
      %524 = vst [vmem:[#allocation2 + $0x50] sm:$0xff] %v506
      %525 = vst [vmem:[#allocation2 + $0x58] sm:$0xff] %v507
      %526 = vst [vmem:[#allocation2 + $0x60] sm:$0xff] %v508
      %527 = vst [vmem:[#allocation2 + $0x68] sm:$0xff] %v509
      %528 = vst [vmem:[#allocation2 + $0x70] sm:$0xff] %v510
      %529 = vst [vmem:[#allocation2 + $0x78] sm:$0xff] %v511
      %530 = vst [vmem:[#allocation2 + $0x80] sm:$0xff] %v512
      %531 = vst [vmem:[#allocation2 + $0x88] sm:$0xff] %v513
      // Predicated region
      $region37: #{fgmm_forward.18} parent=31 // pred_check
        %p532 = pneg %p255
      $region38: #{fgmm_forward.18} parent=31 // pred_check_branch
        %534 = sbr.rel (%p532) target = $region40
      $region39: #{fgmm_forward.18} parent=31 // pred_region
        %v535 = vld [vmem:[#allocation2] sm:$0xff]
        %v536 = vld [vmem:[#allocation2 + $0x8] sm:$0xff]
        %v537 = vld [vmem:[#allocation2 + $0x10] sm:$0xff]
        %v538 = vld [vmem:[#allocation2 + $0x18] sm:$0xff]
        %v539 = vld [vmem:[#allocation2 + $0x20] sm:$0xff]
        %v540 = vld [vmem:[#allocation2 + $0x28] sm:$0xff]
        %v541 = vld [vmem:[#allocation2 + $0x30] sm:$0xff]
        %v542 = vld [vmem:[#allocation2 + $0x38] sm:$0xff]
        %v543 = vld [vmem:[#allocation2 + $0x40] sm:$0xff]
        %v544 = vld [vmem:[#allocation2 + $0x48] sm:$0xff]
        %v545 = vld [vmem:[#allocation2 + $0x50] sm:$0xff]
        %v546 = vld [vmem:[#allocation2 + $0x58] sm:$0xff]
        %v547 = vld [vmem:[#allocation2 + $0x60] sm:$0xff]
        %v548 = vld [vmem:[#allocation2 + $0x68] sm:$0xff]
        %v549 = vld [vmem:[#allocation2 + $0x70] sm:$0xff]
        %v550 = vld [vmem:[#allocation2 + $0x78] sm:$0xff]
        %v551 = vld [vmem:[#allocation2 + $0x80] sm:$0xff]
        %v552 = vld [vmem:[#allocation2 + $0x88] sm:$0xff]
        %v553 = vld [vmem:[%s244] sm:$0x1]
        %v555 = vlaneseq
        %v556 = vshrl.u32 %v555, 7
        %v557 = vsub.s32 0, %v556
        %v558 = vrot.slane %v553, %v557
        %v560 = vadd.f32 %v535, %v558
        %v561 = vadd.f32 %v536, %v558
        %v562 = vadd.f32 %v537, %v558
        %v563 = vadd.f32 %v538, %v558
        %v564 = vadd.f32 %v539, %v558
        %v565 = vadd.f32 %v540, %v558
        %v566 = vadd.f32 %v541, %v558
        %v567 = vadd.f32 %v542, %v558
        %v568 = vadd.f32 %v543, %v558
        %v569 = vadd.f32 %v544, %v558
        %v570 = vadd.f32 %v545, %v558
        %v571 = vadd.f32 %v546, %v558
        %v572 = vadd.f32 %v547, %v558
        %v573 = vadd.f32 %v548, %v558
        %v574 = vadd.f32 %v549, %v558
        %v575 = vadd.f32 %v550, %v558
        %v576 = vadd.f32 %v551, %v558
        %v577 = vadd.f32 %v552, %v558
        %v578 = vmax.f32 %v560, 0.0
        %v579 = vmax.f32 %v561, 0.0
        %v580 = vmax.f32 %v562, 0.0
        %v581 = vmax.f32 %v563, 0.0
        %v582 = vmax.f32 %v564, 0.0
        %v583 = vmax.f32 %v565, 0.0
        %v584 = vmax.f32 %v566, 0.0
        %v585 = vmax.f32 %v567, 0.0
        %v586 = vmax.f32 %v568, 0.0
        %v587 = vmax.f32 %v569, 0.0
        %v588 = vmax.f32 %v570, 0.0
        %v589 = vmax.f32 %v571, 0.0
        %v590 = vmax.f32 %v572, 0.0
        %v591 = vmax.f32 %v573, 0.0
        %v592 = vmax.f32 %v574, 0.0
        %v593 = vmax.f32 %v575, 0.0
        %v594 = vmax.f32 %v576, 0.0
        %v595 = vmax.f32 %v577, 0.0
        %596 = vst [vmem:[%s252] sm:$0xff] %v578
        %597 = vst [vmem:[%s252 + $0x8] sm:$0xff] %v579
        %598 = vst [vmem:[%s252 + $0x10] sm:$0xff] %v580
        %599 = vst [vmem:[%s252 + $0x18] sm:$0xff] %v581
        %600 = vst [vmem:[%s252 + $0x20] sm:$0xff] %v582
        %601 = vst [vmem:[%s252 + $0x28] sm:$0xff] %v583
        %602 = vst [vmem:[%s252 + $0x30] sm:$0xff] %v584
        %603 = vst [vmem:[%s252 + $0x38] sm:$0xff] %v585
        %604 = vst [vmem:[%s252 + $0x40] sm:$0xff] %v586
        %605 = vst [vmem:[%s252 + $0x48] sm:$0xff] %v587
        %606 = vst [vmem:[%s252 + $0x50] sm:$0xff] %v588
        %607 = vst [vmem:[%s252 + $0x58] sm:$0xff] %v589
        %608 = vst [vmem:[%s252 + $0x60] sm:$0xff] %v590
        %609 = vst [vmem:[%s252 + $0x68] sm:$0xff] %v591
        %610 = vst [vmem:[%s252 + $0x70] sm:$0xff] %v592
        %611 = vst [vmem:[%s252 + $0x78] sm:$0xff] %v593
        %612 = vst [vmem:[%s252 + $0x80] sm:$0xff] %v594
        %613 = vst [vmem:[%s252 + $0x88] sm:$0xff] %v595
      $region40: #{fgmm_forward.18} parent=31 // pred_fallthru
        _
      %s614 = smul.u32 18, %s19
      %p615 = scmp.lt.s32.totalorder %s614, 35
      %s616 = scalar_select %p615, %s614, 35
      %p617 = scmp.lt.s32.totalorder %s20, 0
      %s618 = scalar_select %p617, %s20, 0
      %s619 = sadd.s32 %s618, %s616
      %s620 = smul.addr %s619, 8
      %s621 = scalar_lea.vmem %s3, %s620
      // Predicated region
      $region41: #{fgmm_forward.18} parent=31 // pred_check
        %p622 = pneg %p135
      $region42: #{fgmm_forward.18} parent=31 // pred_check_branch
        %624 = sbr.rel (%p622) target = $region44
      $region43: #{fgmm_forward.18} parent=31 // pred_region
        %s625 = smul.u32 18, %s19
      $region44: #{fgmm_forward.18} parent=31 // pred_fallthru
        _
    $region32: #{fgmm_forward.18} parent=5 // pred_fallthru
      _
    %p626 = scmp.le.s32.totalorder 2, %s9
    // Predicated region
    $region45: #{fgmm_forward.18} parent=5 // pred_check
      %p627 = pneg %p626
    $region46: #{fgmm_forward.18} parent=5 // pred_check_branch
      %629 = sbr.rel (%p627) target = $region48
    $region47: #{fgmm_forward.18} parent=5 // pred_region
      %s630 = ssub.s32 %s9, 2
      // Predicated region
      $region49: #{fgmm_forward.18} parent=47 // pred_check
        %p631 = pneg %p141
      $region50: #{fgmm_forward.18} parent=47 // pred_check_branch
        %633 = sbr.rel (%p631) target = $region52
      $region51: #{fgmm_forward.18} parent=47 // pred_region
        %s634 = smul.u32 18, %s22
        %p635 = scmp.lt.s32.totalorder %s634, 35
        %s636 = scalar_select %p635, %s634, 35
        %p637 = scmp.lt.s32.totalorder %s23, 0
        %s638 = scalar_select %p637, %s23, 0
        %s639 = sadd.s32 %s638, %s636
        %s640 = smul.addr %s639, 8
        %s641 = scalar_lea.vmem %s3, %s640
      $region52: #{fgmm_forward.18} parent=47 // pred_fallthru
        _
    $region48: #{fgmm_forward.18} parent=5 // pred_fallthru
      _
  $region6: #{fgmm_forward.18} parent=0 // loop_footer
    %s13 = sadd.s32 1, %s9
  $region7: #{fgmm_forward.18} parent=0 // loop_footer_branch
    %8 = sbr.rel target = $region3
  $region8: #{fgmm_forward.18} parent=0 // loop_exit
    _

// kernel: fgmm_forward.19
$region0: #{fgmm_forward.19}
  #allocation0 [shape = 'u32[]', space=smem, size = 0x4, offset = 0x4, fixed_abs, tag = 'smem constant byte address 0x4 - core index']
  #allocation1 [shape = 'u32[144,128]{1,0:T(1,128)}', space=vmem, size = 0x12000, scoped, tag = 'internal scratch']
  #allocation2 [shape = 'f32[144,128]{1,0:T(8,128)}', space=vmem, size = 0x12000, scoped, tag = 'scratch operand']
  %s0 = inlined_call_operand.vmem [shape: bf16[288,8], index: 0, kind: input, shape index: {}]
  %s1 = inlined_call_operand.vmem [shape: bf16[8,128], index: 1, kind: input, shape index: {}]
  %s2 = inlined_call_operand.vmem [shape: f32[1,128], index: 2, kind: input, shape index: {}]
  %s3 = inlined_call_operand.vmem [shape: f32[288,128], index: 3, kind: output, shape index: {}]
  %s4 = sld [smem:[#allocation0]]
  $region53: #{fgmm_forward.19} parent=0
    _
  %s6 = ssub.s32 1, %s4
  %s7 = scalar_select 0, %s6, %s4
  loop: start=0, step=1, limit=4
  $region2: #{fgmm_forward.19} parent=0 // loop_pre_header
    _
  $region3: #{fgmm_forward.19} parent=0 // loop_header
    %s9 = sphi 0, %s13
    %p10 = scmp.ge.s32.totalorder %s9, 4
    %s16 = sphi 0, %s35
    %s17 = sphi 0, %s31
    %s18 = sphi 0, %s27
    %s19 = sphi 0, %s16
    %s20 = sphi 0, %s17
    %s21 = sphi 0, %s18
    %s22 = sphi 0, %s19
    %s23 = sphi 0, %s20
    %s24 = sphi 0, %s21
    %s40 = sphi 0, %s42
    %s43 = sphi 0, %s40
    %s44 = sphi 0, %s43
    %s60 = sphi 0, %s44
    %s68 = sphi 0, %s70
    %s71 = sphi 0, %s68
    %s72 = sphi 0, %s71
    %s88 = sphi 0, %s72
    %s94 = sphi 0, %s96
    %s97 = sphi 0, %s94
    %s98 = sphi 0, %s97
    %s114 = sphi 0, %s98
    %s122 = sphi 0, %s124
    %s125 = sphi 0, %s122
    %s126 = sphi 0, %s125
    %s142 = sphi 0, %s126
  $region4: #{fgmm_forward.19} parent=0 // loop_header_branch
    %12 = sbr.rel (%p10) target = $region8
  $region5: #{fgmm_forward.19} parent=0 // loop_body
    %s14 = ssub.s32 %s9, 1
    %s15 = ssub.s32 %s9, 2
    %s25 = sadd.s32 1, %s18
    %p26 = scmp.ge.s32.totalorder %s25, 1
    %s27 = scalar_select %p26, 0, %s25
    %s28 = sadd.s32 1, %s17
    %s29 = scalar_select %p26, %s28, %s17
    %p30 = scmp.ge.s32.totalorder %s29, 1
    %s31 = scalar_select %p30, 0, %s29
    %s32 = sadd.s32 1, %s16
    %s33 = scalar_select %p30, %s32, %s16
    %p34 = scmp.ge.s32.totalorder %s33, 2
    %s35 = scalar_select %p34, 0, %s33
    %s36 = ssub.s32 %s16, %s35
    %s37 = ssub.s32 %s18, %s27
    %s38 = sor.u32 %s36, %s37
    %p39 = scmp.eq.s32.totalorder %s38, 0
    %s41 = sadd.s32 %s40, 1
    %s42 = scalar_select %p39, %s40, %s41
    %p45 = pneg %p39
    %p46 = scmp.eq.s32.totalorder %s9, 1
    %p47 = por %p45, %p46
    %p48 = scmp.ne.s32.totalorder %s40, %s43
    %p49 = scmp.eq.s32.totalorder %s9, 0
    %p50 = por %p48, %p49
    %p51 = scmp.ne.s32.totalorder %s40, %s43
    %p52 = scmp.eq.s32.totalorder %s14, 1
    %p53 = por %p51, %p52
    %p54 = scmp.ne.s32.totalorder %s43, %s44
    %p55 = scmp.eq.s32.totalorder %s14, 0
    %p56 = por %p54, %p55
    %p57 = scmp.ne.s32.totalorder %s43, %s44
    %p58 = scmp.eq.s32.totalorder %s15, 1
    %p59 = por %p57, %p58
    %p61 = scmp.ne.s32.totalorder %s44, %s60
    %p62 = scmp.eq.s32.totalorder %s15, 0
    %p63 = por %p61, %p62
    %s64 = ssub.s32 %s18, %s27
    %s65 = ssub.s32 %s17, %s31
    %s66 = sor.u32 %s64, %s65
    %p67 = scmp.eq.s32.totalorder %s66, 0
    %s69 = sadd.s32 %s68, 1
    %s70 = scalar_select %p67, %s68, %s69
    %p73 = pneg %p67
    %p74 = scmp.eq.s32.totalorder %s9, 1
    %p75 = por %p73, %p74
    %p76 = scmp.ne.s32.totalorder %s68, %s71
    %p77 = scmp.eq.s32.totalorder %s9, 0
    %p78 = por %p76, %p77
    %p79 = scmp.ne.s32.totalorder %s68, %s71
    %p80 = scmp.eq.s32.totalorder %s14, 1
    %p81 = por %p79, %p80
    %p82 = scmp.ne.s32.totalorder %s71, %s72
    %p83 = scmp.eq.s32.totalorder %s14, 0
    %p84 = por %p82, %p83
    %p85 = scmp.ne.s32.totalorder %s71, %s72
    %p86 = scmp.eq.s32.totalorder %s15, 1
    %p87 = por %p85, %p86
    %p89 = scmp.ne.s32.totalorder %s72, %s88
    %p90 = scmp.eq.s32.totalorder %s15, 0
    %p91 = por %p89, %p90
    %s92 = ssub.s32 %s17, %s31
    %p93 = scmp.eq.s32.totalorder %s92, 0
    %s95 = sadd.s32 %s94, 1
    %s96 = scalar_select %p93, %s94, %s95
    %p99 = pneg %p93
    %p100 = scmp.eq.s32.totalorder %s9, 1
    %p101 = por %p99, %p100
    %p102 = scmp.ne.s32.totalorder %s94, %s97
    %p103 = scmp.eq.s32.totalorder %s9, 0
    %p104 = por %p102, %p103
    %p105 = scmp.ne.s32.totalorder %s94, %s97
    %p106 = scmp.eq.s32.totalorder %s14, 1
    %p107 = por %p105, %p106
    %p108 = scmp.ne.s32.totalorder %s97, %s98
    %p109 = scmp.eq.s32.totalorder %s14, 0
    %p110 = por %p108, %p109
    %p111 = scmp.ne.s32.totalorder %s97, %s98
    %p112 = scmp.eq.s32.totalorder %s15, 1
    %p113 = por %p111, %p112
    %p115 = scmp.ne.s32.totalorder %s98, %s114
    %p116 = scmp.eq.s32.totalorder %s15, 0
    %p117 = por %p115, %p116
    %s118 = ssub.s32 %s16, %s35
    %s119 = ssub.s32 %s17, %s31
    %s120 = sor.u32 %s118, %s119
    %p121 = scmp.eq.s32.totalorder %s120, 0
    %s123 = sadd.s32 %s122, 1
    %s124 = scalar_select %p121, %s122, %s123
    %p127 = pneg %p121
    %p128 = scmp.eq.s32.totalorder %s9, 1
    %p129 = por %p127, %p128
    %p130 = scmp.ne.s32.totalorder %s122, %s125
    %p131 = scmp.eq.s32.totalorder %s9, 0
    %p132 = por %p130, %p131
    %p133 = scmp.ne.s32.totalorder %s122, %s125
    %p134 = scmp.eq.s32.totalorder %s14, 1
    %p135 = por %p133, %p134
    %p136 = scmp.ne.s32.totalorder %s125, %s126
    %p137 = scmp.eq.s32.totalorder %s14, 0
    %p138 = por %p136, %p137
    %p139 = scmp.ne.s32.totalorder %s125, %s126
    %p140 = scmp.eq.s32.totalorder %s15, 1
    %p141 = por %p139, %p140
    %p143 = scmp.ne.s32.totalorder %s126, %s142
    %p144 = scmp.eq.s32.totalorder %s15, 0
    %p145 = por %p143, %p144
    %p146 = scmp.le.s32.totalorder 1, %s9
    %p147 = scmp.lt.s32.totalorder %s9, 3
    %p148 = pnand %p146, %p147
    %p149 = pneg %p148
    // Predicated region
    $region9: #{fgmm_forward.19} parent=5 // pred_check
      _
    $region10: #{fgmm_forward.19} parent=5 // pred_check_branch
      %151 = sbr.rel (%p148) target = $region12
    $region11: #{fgmm_forward.19} parent=5 // pred_region
      %s152 = ssub.s32 %s9, 1
      // Predicated region
      $region13: #{fgmm_forward.19} parent=11 // pred_check
        %p153 = pneg %p84
      $region14: #{fgmm_forward.19} parent=11 // pred_check_branch
        %155 = sbr.rel (%p153) target = $region16
      $region15: #{fgmm_forward.19} parent=11 // pred_region
        %p156 = scmp.lt.s32.totalorder %s21, 0
        %s157 = scalar_select %p156, %s21, 0
        %p158 = scmp.lt.s32.totalorder %s20, 0
        %s159 = scalar_select %p158, %s20, 0
        %s160 = sadd.s32 %s159, %s157
        %s161 = smul.addr %s160, 4
        %s162 = scalar_lea.vmem %s1, %s161
      $region16: #{fgmm_forward.19} parent=11 // pred_fallthru
        _
      // Predicated region
      $region17: #{fgmm_forward.19} parent=11 // pred_check
        %p163 = pneg %p110
      $region18: #{fgmm_forward.19} parent=11 // pred_check_branch
        %165 = sbr.rel (%p163) target = $region20
      $region19: #{fgmm_forward.19} parent=11 // pred_region
        %p166 = scmp.lt.s32.totalorder %s20, 0
        %s167 = scalar_select %p166, %s20, 0
        %s168 = scalar_lea.vmem %s2, %s167
      $region20: #{fgmm_forward.19} parent=11 // pred_fallthru
        _
    $region12: #{fgmm_forward.19} parent=5 // pred_fallthru
      _
    %p169 = scmp.lt.s32.totalorder %s9, 2
    // Predicated region
    $region21: #{fgmm_forward.19} parent=5 // pred_check
      %p170 = pneg %p169
    $region22: #{fgmm_forward.19} parent=5 // pred_check_branch
      %172 = sbr.rel (%p170) target = $region24
    $region23: #{fgmm_forward.19} parent=5 // pred_region
      // Predicated region
      $region25: #{fgmm_forward.19} parent=23 // pred_check
        %p173 = pneg %p50
      $region26: #{fgmm_forward.19} parent=23 // pred_check_branch
        %175 = sbr.rel (%p173) target = $region28
      $region27: #{fgmm_forward.19} parent=23 // pred_region
        %s176 = smul.u32 18, %s16
        %p177 = scmp.lt.s32.totalorder %s176, 35
        %s178 = scalar_select %p177, %s176, 35
        %p179 = scmp.lt.s32.totalorder %s18, 0
        %s180 = scalar_select %p179, %s18, 0
        %s181 = sadd.s32 %s180, %s178
        %s182 = smul.addr %s181, 4
        %s183 = scalar_lea.vmem %s0, %s182
        %s184 = smul.u32 18, %s16
      $region28: #{fgmm_forward.19} parent=23 // pred_fallthru
        _
    $region24: #{fgmm_forward.19} parent=5 // pred_fallthru
      _
    %p185 = scmp.le.s32.totalorder 1, %s9
    %p186 = scmp.lt.s32.totalorder %s9, 3
    %p187 = pnand %p185, %p186
    %p188 = pneg %p187
    // Predicated region
    $region29: #{fgmm_forward.19} parent=5 // pred_check
      _
    $region30: #{fgmm_forward.19} parent=5 // pred_check_branch
      %190 = sbr.rel (%p187) target = $region32
    $region31: #{fgmm_forward.19} parent=5 // pred_region
      %s191 = ssub.s32 %s9, 1
      %s192 = smul.u32 18, %s19
      %p193 = scmp.lt.s32.totalorder %s192, 35
      %s194 = scalar_select %p193, %s192, 35
      %p195 = scmp.lt.s32.totalorder %s21, 0
      %s196 = scalar_select %p195, %s21, 0
      %s197 = sadd.s32 %s196, %s194
      %s198 = smul.addr %s197, 4
      %s199 = scalar_lea.vmem %s0, %s198
      %p200 = pneg %p56
      %p201 = pneg %p53
      %p202 = scmp.lt.s32.totalorder %s21, 0
      %s203 = scalar_select %p202, %s21, 0
      %p204 = scmp.lt.s32.totalorder %s20, 0
      %s205 = scalar_select %p204, %s20, 0
      %s206 = sadd.s32 %s205, %s203
      %s207 = smul.addr %s206, 4
      %s208 = scalar_lea.vmem %s1, %s207
      %p209 = pneg %p84
      %p210 = pneg %p81
      %p211 = scmp.lt.s32.totalorder %s20, 0
      %s212 = scalar_select %p211, %s20, 0
      %s213 = scalar_lea.vmem %s2, %s212
      %p214 = pneg %p110
      %p215 = pneg %p107
      %p216 = pneg %p138
      %p217 = pneg %p135
      %s218 = smul.u32 18, %s19
      %p219 = scmp.lt.s32.totalorder %s218, 35
      %s220 = scalar_select %p219, %s218, 35
      %p221 = scmp.lt.s32.totalorder %s20, 0
      %s222 = scalar_select %p221, %s20, 0
      %s223 = sadd.s32 %s222, %s220
      %s224 = smul.addr %s223, 8
      %s225 = scalar_lea.vmem %s3, %s224
      %s226 = smul.u32 18, %s19
      %p227 = scmp.lt.s32.totalorder %s226, 35
      %s228 = scalar_select %p227, %s226, 35
      %p229 = scmp.lt.s32.totalorder %s21, 0
      %s230 = scalar_select %p229, %s21, 0
      %s231 = sadd.s32 %s230, %s228
      %s232 = smul.addr %s231, 4
      %s233 = scalar_lea.vmem %s0, %s232
      %s234 = smul.u32 18, %s19
      %p235 = scmp.lt.s32.totalorder %s21, 0
      %s236 = scalar_select %p235, %s21, 0
      %p237 = scmp.lt.s32.totalorder %s20, 0
      %s238 = scalar_select %p237, %s20, 0
      %s239 = sadd.s32 %s238, %s236
      %s240 = smul.addr %s239, 4
      %s241 = scalar_lea.vmem %s1, %s240
      %p242 = scmp.lt.s32.totalorder %s20, 0
      %s243 = scalar_select %p242, %s20, 0
      %s244 = scalar_lea.vmem %s2, %s243
      %s245 = smul.u32 18, %s19
      %p246 = scmp.lt.s32.totalorder %s245, 35
      %s247 = scalar_select %p246, %s245, 35
      %p248 = scmp.lt.s32.totalorder %s20, 0
      %s249 = scalar_select %p248, %s20, 0
      %s250 = sadd.s32 %s249, %s247
      %s251 = smul.addr %s250, 8
      %s252 = scalar_lea.vmem %s3, %s251
      %s253 = smul.u32 18, %s19
      %p255 = scmp.eq.s32.totalorder %s21, 0
      // Predicated region
      $region33: #{fgmm_forward.19} parent=31 // pred_check
        %p256 = pneg %p255
      $region34: #{fgmm_forward.19} parent=31 // pred_check_branch
        %258 = sbr.rel (%p256) target = $region36
      $region35: #{fgmm_forward.19} parent=31 // pred_region
        %259 = vst [vmem:[#allocation2] sm:$0xff] 0.0
        %260 = vst [vmem:[#allocation2 + $0x8] sm:$0xff] 0.0
        %261 = vst [vmem:[#allocation2 + $0x10] sm:$0xff] 0.0
        %262 = vst [vmem:[#allocation2 + $0x18] sm:$0xff] 0.0
        %263 = vst [vmem:[#allocation2 + $0x20] sm:$0xff] 0.0
        %264 = vst [vmem:[#allocation2 + $0x28] sm:$0xff] 0.0
        %265 = vst [vmem:[#allocation2 + $0x30] sm:$0xff] 0.0
        %266 = vst [vmem:[#allocation2 + $0x38] sm:$0xff] 0.0
        %267 = vst [vmem:[#allocation2 + $0x40] sm:$0xff] 0.0
        %268 = vst [vmem:[#allocation2 + $0x48] sm:$0xff] 0.0
        %269 = vst [vmem:[#allocation2 + $0x50] sm:$0xff] 0.0
        %270 = vst [vmem:[#allocation2 + $0x58] sm:$0xff] 0.0
        %271 = vst [vmem:[#allocation2 + $0x60] sm:$0xff] 0.0
        %272 = vst [vmem:[#allocation2 + $0x68] sm:$0xff] 0.0
        %273 = vst [vmem:[#allocation2 + $0x70] sm:$0xff] 0.0
        %274 = vst [vmem:[#allocation2 + $0x78] sm:$0xff] 0.0
        %275 = vst [vmem:[#allocation2 + $0x80] sm:$0xff] 0.0
        %276 = vst [vmem:[#allocation2 + $0x88] sm:$0xff] 0.0
      $region36: #{fgmm_forward.19} parent=31 // pred_fallthru
        _
      %v277 = vld [vmem:[#allocation2] sm:$0xff]
      %v278 = vld [vmem:[#allocation2 + $0x8] sm:$0xff]
      %v279 = vld [vmem:[#allocation2 + $0x10] sm:$0xff]
      %v280 = vld [vmem:[#allocation2 + $0x18] sm:$0xff]
      %v281 = vld [vmem:[#allocation2 + $0x20] sm:$0xff]
      %v282 = vld [vmem:[#allocation2 + $0x28] sm:$0xff]
      %v283 = vld [vmem:[#allocation2 + $0x30] sm:$0xff]
      %v284 = vld [vmem:[#allocation2 + $0x38] sm:$0xff]
      %v285 = vld [vmem:[#allocation2 + $0x40] sm:$0xff]
      %v286 = vld [vmem:[#allocation2 + $0x48] sm:$0xff]
      %v287 = vld [vmem:[#allocation2 + $0x50] sm:$0xff]
      %v288 = vld [vmem:[#allocation2 + $0x58] sm:$0xff]
      %v289 = vld [vmem:[#allocation2 + $0x60] sm:$0xff]
      %v290 = vld [vmem:[#allocation2 + $0x68] sm:$0xff]
      %v291 = vld [vmem:[#allocation2 + $0x70] sm:$0xff]
      %v292 = vld [vmem:[#allocation2 + $0x78] sm:$0xff]
      %v293 = vld [vmem:[#allocation2 + $0x80] sm:$0xff]
      %v294 = vld [vmem:[#allocation2 + $0x88] sm:$0xff]
      %v295 = vld [vmem:[%s233] sm:$0xf]
      %v296 = vld [vmem:[%s233 + $0x4] sm:$0xf]
      %v297 = vld [vmem:[%s233 + $0x8] sm:$0xf]
      %v298 = vld [vmem:[%s233 + $0xc] sm:$0xf]
      %v299 = vld [vmem:[%s233 + $0x10] sm:$0xf]
      %v300 = vld [vmem:[%s233 + $0x14] sm:$0xf]
      %v301 = vld [vmem:[%s233 + $0x18] sm:$0xf]
      %v302 = vld [vmem:[%s233 + $0x1c] sm:$0xf]
      %v303 = vld [vmem:[%s233 + $0x20] sm:$0xf]
      %v304 = vld [vmem:[%s233 + $0x24] sm:$0xf]
      %v305 = vld [vmem:[%s233 + $0x28] sm:$0xf]
      %v306 = vld [vmem:[%s233 + $0x2c] sm:$0xf]
      %v307 = vld [vmem:[%s233 + $0x30] sm:$0xf]
      %v308 = vld [vmem:[%s233 + $0x34] sm:$0xf]
      %v309 = vld [vmem:[%s233 + $0x38] sm:$0xf]
      %v310 = vld [vmem:[%s233 + $0x3c] sm:$0xf]
      %v311 = vld [vmem:[%s233 + $0x40] sm:$0xf]
      %v312 = vld [vmem:[%s233 + $0x44] sm:$0xf]
      %v313 = vld [vmem:[%s241] sm:$0xf]
      %v332 = vunpack.c.l.b16 %v295
      %v333 = vunpack.c.l.b16 %v296
      %v334 = vunpack.c.l.b16 %v297
      %v335 = vunpack.c.l.b16 %v298
      %v336 = vunpack.c.l.b16 %v299
      %v337 = vunpack.c.l.b16 %v300
      %v338 = vunpack.c.l.b16 %v301
      %v339 = vunpack.c.l.b16 %v302
      %v340 = vunpack.c.l.b16 %v303
      %v341 = vunpack.c.l.b16 %v304
      %v342 = vunpack.c.l.b16 %v305
      %v343 = vunpack.c.l.b16 %v306
      %v344 = vunpack.c.l.b16 %v307
      %v345 = vunpack.c.l.b16 %v308
      %v346 = vunpack.c.l.b16 %v309
      %v347 = vunpack.c.l.b16 %v310
      %v348 = vunpack.c.l.b16 %v311
      %v349 = vunpack.c.l.b16 %v312
      %v350 = vpack.c.b16 %v333, %v332
      %v351 = vpack.c.b16 %v335, %v334
      %v352 = vpack.c.b16 %v337, %v336
      %v353 = vpack.c.b16 %v339, %v338
      %v354 = vpack.c.b16 %v341, %v340
      %v355 = vpack.c.b16 %v343, %v342
      %v356 = vpack.c.b16 %v345, %v344
      %v357 = vpack.c.b16 %v347, %v346
      %v358 = vpack.c.b16 %v349, %v348
      %vm359 = vcmask 64512
      %v361 = vsel %vm359, %v350, 0
      %v364 = vsel %vm359, %v351, 0
      %v367 = vsel %vm359, %v352, 0
      %v370 = vsel %vm359, %v353, 0
      %v373 = vsel %vm359, %v354, 0
      %v376 = vsel %vm359, %v355, 0
      %v379 = vsel %vm359, %v356, 0
      %v382 = vsel %vm359, %v357, 0
      %v385 = vsel %vm359, %v358, 0
      %vm387 = vcmask 1043456
      %v389 = vsel %vm387, %v313, 0
      %391 = vmatprep.subr.bf16.mxu0 0
      %392 = vmatpush1.bf16.msra.mxu0 %v389
      %393 = vmatprep.subr.bf16.mxu0 0
      %394 = vmatpush1.bf16.msra.mxu0 0
      %395 = vmatprep.subr.bf16.mxu0 0
      %396 = vmatpush1.bf16.msra.mxu0 0
      %397 = vmatprep.subr.bf16.mxu0 0
      %398 = vmatpush1.bf16.msra.mxu0 0
      %399 = vmatprep.subr.bf16.mxu0 0
      %400 = vmatpush1.bf16.msra.mxu0 0
      %401 = vmatprep.subr.bf16.mxu0 0
      %402 = vmatpush1.bf16.msra.mxu0 0
      %403 = vmatprep.subr.bf16.mxu0 0
      %404 = vmatpush1.bf16.msra.mxu0 0
      %405 = vmatprep.subr.bf16.mxu0 0
      %406 = vmatpush1.bf16.msra.mxu0 0
      %407 = vmatprep.subr.bf16.mxu0 0
      %408 = vmatpush1.bf16.msra.mxu0 0
      %409 = vmatprep.subr.bf16.mxu0 0
      %410 = vmatpush1.bf16.msra.mxu0 0
      %411 = vmatprep.subr.bf16.mxu0 0
      %412 = vmatpush1.bf16.msra.mxu0 0
      %413 = vmatprep.subr.bf16.mxu0 0
      %414 = vmatpush1.bf16.msra.mxu0 0
      %415 = vmatprep.subr.bf16.mxu0 0
      %416 = vmatpush1.bf16.msra.mxu0 0
      %417 = vmatprep.subr.bf16.mxu0 0
      %418 = vmatpush1.bf16.msra.mxu0 0
      %419 = vmatprep.subr.bf16.mxu0 0
      %420 = vmatpush1.bf16.msra.mxu0 0
      %421 = vmatprep.subr.bf16.mxu0 0
      %422 = vmatpush1.bf16.msra.mxu0 0
      %423 = vmatprep.mubr.bf16.mxu0 0
      %424 = vmatmul.mubr.bf16.gmra.mrb[0].mxu0 %v361
      %v425 = vpop.f32.mrb[0].mxu0
      %v426 = vadd.f32 0.0, %v425
      %v427 = vpop.f32.mrb[0].mxu0
      %v428 = vpop.f32.mrb[0].mxu0
      %v429 = vadd.f32 0.0, %v428
      %v430 = vpop.f32.mrb[0].mxu0
      %431 = vmatprep.mubr.bf16.mxu0 0
      %432 = vmatmul.mubr.bf16.gmra.mrb[0].mxu0 %v364
      %v433 = vpop.f32.mrb[0].mxu0
      %v434 = vadd.f32 0.0, %v433
      %v435 = vpop.f32.mrb[0].mxu0
      %v436 = vpop.f32.mrb[0].mxu0
      %v437 = vadd.f32 0.0, %v436
      %v438 = vpop.f32.mrb[0].mxu0
      %439 = vmatprep.mubr.bf16.mxu0 0
      %440 = vmatmul.mubr.bf16.gmra.mrb[0].mxu0 %v367
      %v441 = vpop.f32.mrb[0].mxu0
      %v442 = vadd.f32 0.0, %v441
      %v443 = vpop.f32.mrb[0].mxu0
      %v444 = vpop.f32.mrb[0].mxu0
      %v445 = vadd.f32 0.0, %v444
      %v446 = vpop.f32.mrb[0].mxu0
      %447 = vmatprep.mubr.bf16.mxu0 0
      %448 = vmatmul.mubr.bf16.gmra.mrb[0].mxu0 %v370
      %v449 = vpop.f32.mrb[0].mxu0
      %v450 = vadd.f32 0.0, %v449
      %v451 = vpop.f32.mrb[0].mxu0
      %v452 = vpop.f32.mrb[0].mxu0
      %v453 = vadd.f32 0.0, %v452
      %v454 = vpop.f32.mrb[0].mxu0
      %455 = vmatprep.mubr.bf16.mxu0 0
      %456 = vmatmul.mubr.bf16.gmra.mrb[0].mxu0 %v373
      %v457 = vpop.f32.mrb[0].mxu0
      %v458 = vadd.f32 0.0, %v457
      %v459 = vpop.f32.mrb[0].mxu0
      %v460 = vpop.f32.mrb[0].mxu0
      %v461 = vadd.f32 0.0, %v460
      %v462 = vpop.f32.mrb[0].mxu0
      %463 = vmatprep.mubr.bf16.mxu0 0
      %464 = vmatmul.mubr.bf16.gmra.mrb[0].mxu0 %v376
      %v465 = vpop.f32.mrb[0].mxu0
      %v466 = vadd.f32 0.0, %v465
      %v467 = vpop.f32.mrb[0].mxu0
      %v468 = vpop.f32.mrb[0].mxu0
      %v469 = vadd.f32 0.0, %v468
      %v470 = vpop.f32.mrb[0].mxu0
      %471 = vmatprep.mubr.bf16.mxu0 0
      %472 = vmatmul.mubr.bf16.gmra.mrb[0].mxu0 %v379
      %v473 = vpop.f32.mrb[0].mxu0
      %v474 = vadd.f32 0.0, %v473
      %v475 = vpop.f32.mrb[0].mxu0
      %v476 = vpop.f32.mrb[0].mxu0
      %v477 = vadd.f32 0.0, %v476
      %v478 = vpop.f32.mrb[0].mxu0
      %479 = vmatprep.mubr.bf16.mxu0 0
      %480 = vmatmul.mubr.bf16.gmra.mrb[0].mxu0 %v382
      %v481 = vpop.f32.mrb[0].mxu0
      %v482 = vadd.f32 0.0, %v481
      %v483 = vpop.f32.mrb[0].mxu0
      %v484 = vpop.f32.mrb[0].mxu0
      %v485 = vadd.f32 0.0, %v484
      %v486 = vpop.f32.mrb[0].mxu0
      %487 = vmatprep.mubr.bf16.mxu0 0
      %488 = vmatmul.mubr.bf16.gmra.mrb[0].mxu0 %v385
      %v489 = vpop.f32.mrb[0].mxu0
      %v490 = vadd.f32 0.0, %v489
      %v491 = vpop.f32.mrb[0].mxu0
      %v492 = vpop.f32.mrb[0].mxu0
      %v493 = vadd.f32 0.0, %v492
      %v494 = vpop.f32.mrb[0].mxu0
      %495 = vdwg.mxu0
      %v496 = vadd.f32 %v277, %v426
      %v497 = vadd.f32 %v278, %v429
      %v498 = vadd.f32 %v279, %v434
      %v499 = vadd.f32 %v280, %v437
      %v500 = vadd.f32 %v281, %v442
      %v501 = vadd.f32 %v282, %v445
      %v502 = vadd.f32 %v283, %v450
      %v503 = vadd.f32 %v284, %v453
      %v504 = vadd.f32 %v285, %v458
      %v505 = vadd.f32 %v286, %v461
      %v506 = vadd.f32 %v287, %v466
      %v507 = vadd.f32 %v288, %v469
      %v508 = vadd.f32 %v289, %v474
      %v509 = vadd.f32 %v290, %v477
      %v510 = vadd.f32 %v291, %v482
      %v511 = vadd.f32 %v292, %v485
      %v512 = vadd.f32 %v293, %v490
      %v513 = vadd.f32 %v294, %v493
      %514 = vst [vmem:[#allocation2] sm:$0xff] %v496
      %515 = vst [vmem:[#allocation2 + $0x8] sm:$0xff] %v497
      %516 = vst [vmem:[#allocation2 + $0x10] sm:$0xff] %v498
      %517 = vst [vmem:[#allocation2 + $0x18] sm:$0xff] %v499
      %518 = vst [vmem:[#allocation2 + $0x20] sm:$0xff] %v500
      %519 = vst [vmem:[#allocation2 + $0x28] sm:$0xff] %v501
      %520 = vst [vmem:[#allocation2 + $0x30] sm:$0xff] %v502
      %521 = vst [vmem:[#allocation2 + $0x38] sm:$0xff] %v503
      %522 = vst [vmem:[#allocation2 + $0x40] sm:$0xff] %v504
      %523 = vst [vmem:[#allocation2 + $0x48] sm:$0xff] %v505
      %524 = vst [vmem:[#allocation2 + $0x50] sm:$0xff] %v506
      %525 = vst [vmem:[#allocation2 + $0x58] sm:$0xff] %v507
      %526 = vst [vmem:[#allocation2 + $0x60] sm:$0xff] %v508
      %527 = vst [vmem:[#allocation2 + $0x68] sm:$0xff] %v509
      %528 = vst [vmem:[#allocation2 + $0x70] sm:$0xff] %v510
      %529 = vst [vmem:[#allocation2 + $0x78] sm:$0xff] %v511
      %530 = vst [vmem:[#allocation2 + $0x80] sm:$0xff] %v512
      %531 = vst [vmem:[#allocation2 + $0x88] sm:$0xff] %v513
      // Predicated region
      $region37: #{fgmm_forward.19} parent=31 // pred_check
        %p532 = pneg %p255
      $region38: #{fgmm_forward.19} parent=31 // pred_check_branch
        %534 = sbr.rel (%p532) target = $region40
      $region39: #{fgmm_forward.19} parent=31 // pred_region
        %v535 = vld [vmem:[#allocation2] sm:$0xff]
        %v536 = vld [vmem:[#allocation2 + $0x8] sm:$0xff]
        %v537 = vld [vmem:[#allocation2 + $0x10] sm:$0xff]
        %v538 = vld [vmem:[#allocation2 + $0x18] sm:$0xff]
        %v539 = vld [vmem:[#allocation2 + $0x20] sm:$0xff]
        %v540 = vld [vmem:[#allocation2 + $0x28] sm:$0xff]
        %v541 = vld [vmem:[#allocation2 + $0x30] sm:$0xff]
        %v542 = vld [vmem:[#allocation2 + $0x38] sm:$0xff]
        %v543 = vld [vmem:[#allocation2 + $0x40] sm:$0xff]
        %v544 = vld [vmem:[#allocation2 + $0x48] sm:$0xff]
        %v545 = vld [vmem:[#allocation2 + $0x50] sm:$0xff]
        %v546 = vld [vmem:[#allocation2 + $0x58] sm:$0xff]
        %v547 = vld [vmem:[#allocation2 + $0x60] sm:$0xff]
        %v548 = vld [vmem:[#allocation2 + $0x68] sm:$0xff]
        %v549 = vld [vmem:[#allocation2 + $0x70] sm:$0xff]
        %v550 = vld [vmem:[#allocation2 + $0x78] sm:$0xff]
        %v551 = vld [vmem:[#allocation2 + $0x80] sm:$0xff]
        %v552 = vld [vmem:[#allocation2 + $0x88] sm:$0xff]
        %v553 = vld [vmem:[%s244] sm:$0x1]
        %v555 = vlaneseq
        %v556 = vshrl.u32 %v555, 7
        %v557 = vsub.s32 0, %v556
        %v558 = vrot.slane %v553, %v557
        %v560 = vadd.f32 %v535, %v558
        %v561 = vadd.f32 %v536, %v558
        %v562 = vadd.f32 %v537, %v558
        %v563 = vadd.f32 %v538, %v558
        %v564 = vadd.f32 %v539, %v558
        %v565 = vadd.f32 %v540, %v558
        %v566 = vadd.f32 %v541, %v558
        %v567 = vadd.f32 %v542, %v558
        %v568 = vadd.f32 %v543, %v558
        %v569 = vadd.f32 %v544, %v558
        %v570 = vadd.f32 %v545, %v558
        %v571 = vadd.f32 %v546, %v558
        %v572 = vadd.f32 %v547, %v558
        %v573 = vadd.f32 %v548, %v558
        %v574 = vadd.f32 %v549, %v558
        %v575 = vadd.f32 %v550, %v558
        %v576 = vadd.f32 %v551, %v558
        %v577 = vadd.f32 %v552, %v558
        %578 = vst [vmem:[%s252] sm:$0xff] %v560
        %579 = vst [vmem:[%s252 + $0x8] sm:$0xff] %v561
        %580 = vst [vmem:[%s252 + $0x10] sm:$0xff] %v562
        %581 = vst [vmem:[%s252 + $0x18] sm:$0xff] %v563
        %582 = vst [vmem:[%s252 + $0x20] sm:$0xff] %v564
        %583 = vst [vmem:[%s252 + $0x28] sm:$0xff] %v565
        %584 = vst [vmem:[%s252 + $0x30] sm:$0xff] %v566
        %585 = vst [vmem:[%s252 + $0x38] sm:$0xff] %v567
        %586 = vst [vmem:[%s252 + $0x40] sm:$0xff] %v568
        %587 = vst [vmem:[%s252 + $0x48] sm:$0xff] %v569
        %588 = vst [vmem:[%s252 + $0x50] sm:$0xff] %v570
        %589 = vst [vmem:[%s252 + $0x58] sm:$0xff] %v571
        %590 = vst [vmem:[%s252 + $0x60] sm:$0xff] %v572
        %591 = vst [vmem:[%s252 + $0x68] sm:$0xff] %v573
        %592 = vst [vmem:[%s252 + $0x70] sm:$0xff] %v574
        %593 = vst [vmem:[%s252 + $0x78] sm:$0xff] %v575
        %594 = vst [vmem:[%s252 + $0x80] sm:$0xff] %v576
        %595 = vst [vmem:[%s252 + $0x88] sm:$0xff] %v577
      $region40: #{fgmm_forward.19} parent=31 // pred_fallthru
        _
      %s596 = smul.u32 18, %s19
      %p597 = scmp.lt.s32.totalorder %s596, 35
      %s598 = scalar_select %p597, %s596, 35
      %p599 = scmp.lt.s32.totalorder %s20, 0
      %s600 = scalar_select %p599, %s20, 0
      %s601 = sadd.s32 %s600, %s598
      %s602 = smul.addr %s601, 8
      %s603 = scalar_lea.vmem %s3, %s602
      // Predicated region
      $region41: #{fgmm_forward.19} parent=31 // pred_check
        %p604 = pneg %p135
      $region42: #{fgmm_forward.19} parent=31 // pred_check_branch
        %606 = sbr.rel (%p604) target = $region44
      $region43: #{fgmm_forward.19} parent=31 // pred_region
        %s607 = smul.u32 18, %s19
      $region44: #{fgmm_forward.19} parent=31 // pred_fallthru
        _
    $region32: #{fgmm_forward.19} parent=5 // pred_fallthru
      _
    %p608 = scmp.le.s32.totalorder 2, %s9
    // Predicated region
    $region45: #{fgmm_forward.19} parent=5 // pred_check
      %p609 = pneg %p608
    $region46: #{fgmm_forward.19} parent=5 // pred_check_branch
      %611 = sbr.rel (%p609) target = $region48
    $region47: #{fgmm_forward.19} parent=5 // pred_region
      %s612 = ssub.s32 %s9, 2
      // Predicated region
      $region49: #{fgmm_forward.19} parent=47 // pred_check
        %p613 = pneg %p141
      $region50: #{fgmm_forward.19} parent=47 // pred_check_branch
        %615 = sbr.rel (%p613) target = $region52
      $region51: #{fgmm_forward.19} parent=47 // pred_region
        %s616 = smul.u32 18, %s22
        %p617 = scmp.lt.s32.totalorder %s616, 35
        %s618 = scalar_select %p617, %s616, 35
        %p619 = scmp.lt.s32.totalorder %s23, 0
        %s620 = scalar_select %p619, %s23, 0
        %s621 = sadd.s32 %s620, %s618
        %s622 = smul.addr %s621, 8
        %s623 = scalar_lea.vmem %s3, %s622
      $region52: #{fgmm_forward.19} parent=47 // pred_fallthru
        _
    $region48: #{fgmm_forward.19} parent=5 // pred_fallthru
      _
  $region6: #{fgmm_forward.19} parent=0 // loop_footer
    %s13 = sadd.s32 1, %s9
  $region7: #{fgmm_forward.19} parent=0 // loop_footer_branch
    %8 = sbr.rel target = $region3
  $region8: #{fgmm_forward.19} parent=0 // loop_exit
    _

</llo_original>
